<compile_context>
chip_gen: v5e
topology: v5e:2x2
jax: 0.10.0
libtpu: 0.0.40
codegen_flags: <defaults>
</compile_context>

<pallas_src>
import functools

import jax
import jax.numpy as jnp
import numpy as np
from jax.experimental import pallas as pl
from jax.experimental.pallas import tpu as pltpu


# ----------------------------- Pallas kernel -------------------------------

def _ln_rows(x, g, b, eps):
    """Row-wise LayerNorm of an (M, D) f32 tile; g/b are (1, D)."""
    mean = jnp.mean(x, axis=-1, keepdims=True)
    xc = x - mean
    var = jnp.mean(xc * xc, axis=-1, keepdims=True)
    return xc * jax.lax.rsqrt(var + eps) * g + b


def _vit_layer_kernel(x_ref, bias_ref, wqkv_ref, bqkv_ref, wo_ref, bo_ref,
                      w1_ref, b1_ref, w2_ref, b2_ref,
                      ln1g_ref, ln1b_ref, ln2g_ref, ln2b_ref,
                      lnfg_ref, lnfb_ref, o_ref, *, heads, eps, final_ln):
    """One fused HF ViTLayer (pre-LN) for a block of nb images, fully in VMEM:

        x + Attn(LN1(x));  h + MLP(LN2(h));  [optional fused final LayerNorm]

    x_ref is a flattened (nb*Tp, D) token slab; bias_ref is a precomputed
    (M, M) additive attention bias that is 0 for (query, key) pairs in the same
    image with a real (non-pad) key and -1e30 otherwise, which keeps the
    per-image attention exact without any in-kernel reshape.
    """
    x = x_ref[...].astype(jnp.float32)                      # (M, D)
    M, D = x.shape
    Dh = D // heads
    scale = 1.0 / (Dh ** 0.5)

    # ---- attention block ----
    ln1 = _ln_rows(x, ln1g_ref[...], ln1b_ref[...], eps)
    # fused QKV projection: one (M, D) @ (D, 3D) matmul
    qkv = jnp.dot(ln1, wqkv_ref[...],
                  preferred_element_type=jnp.float32) + bqkv_ref[...]

    attn_bias = bias_ref[...]                               # (M, M)
    wo = wo_ref[...]                                        # (D, D)

    attn_proj = jnp.zeros((M, D), jnp.float32)
    # Static 4-iteration head loop; every matmul is M rows wide (96 in phase 1)
    # and the per-head output is folded straight into Wo (attn @ Wo ==
    # sum_h ctx_h @ Wo[h*Dh:(h+1)*Dh]) so there is no 8-lane concat epilogue.
    for h in range(heads):
        qh = qkv[:, h * Dh:(h + 1) * Dh]
        kh = qkv[:, D + h * Dh:D + (h + 1) * Dh]
        vh = qkv[:, 2 * D + h * Dh:2 * D + (h + 1) * Dh]
        s = jax.lax.dot_general(qh, kh, (((1,), (1,)), ((), ())),
                                preferred_element_type=jnp.float32) * scale
        s = s + attn_bias
        s = s - jnp.max(s, axis=-1, keepdims=True)
        p = jnp.exp(s)
        # softmax normalization via EUP reciprocal (free VLIW slot vs VPU divide);
        # approximation is below the already-accepted tanh-GELU tolerance.
        p = p * pl.reciprocal(jnp.sum(p, axis=-1, keepdims=True), approx=True)
        ctx = jnp.dot(p, vh, preferred_element_type=jnp.float32)       # (M, Dh)
        attn_proj = attn_proj + jnp.dot(ctx, wo[h * Dh:(h + 1) * Dh, :],
                                        preferred_element_type=jnp.float32)
    h1 = x + attn_proj + bo_ref[...]

    # ---- MLP block ----
    ln2 = _ln_rows(h1, ln2g_ref[...], ln2b_ref[...], eps)
    m = jnp.dot(ln2, w1_ref[...],
                preferred_element_type=jnp.float32) + b1_ref[...]
    # TODO(synk): HF ViT uses exact (erf) GELU; tanh approximation used here for
    # robust Mosaic lowering (differences ~1e-3).
    m = jax.nn.gelu(m, approximate=True)
    m = jnp.dot(m, w2_ref[...],
                preferred_element_type=jnp.float32) + b2_ref[...]
    out = h1 + m

    if final_ln:
        # fused model.layernorm epilogue on the last encoder layer
        out = _ln_rows(out, lnfg_ref[...], lnfb_ref[...], eps)

    o_ref[...] = out.astype(o_ref.dtype)


def vit_layer(tok2d, attn_bias, lp, lnf_g, lnf_b, cfg, *, nb, final_ln=False,
              eps=1e-12):
    """Fused transformer layer on a flattened (n_images*Tp, D) token slab.

    One pallas_call; each grid step processes `nb` images (nb*Tp rows)."""
    Mtot, D = tok2d.shape
    rows = nb * cfg["tp"]
    mlp = cfg["mlp"]
    assert Mtot % rows == 0
    grid = (Mtot // rows,)
    kern = functools.partial(_vit_layer_kernel, heads=cfg["heads"], eps=eps,
                             final_ln=final_ln)

    def full(shape):
        return pl.BlockSpec(shape, lambda i: (0, 0))

    tok_spec = pl.BlockSpec((rows, D), lambda i: (i, 0))
    return pl.pallas_call(
        kern,
        out_shape=jax.ShapeDtypeStruct((Mtot, D), tok2d.dtype),
        grid=grid,
        in_specs=[
            tok_spec,
            full((rows, rows)),                   # block-diag + pad-mask attn bias
            full((D, 3 * D)), full((1, 3 * D)),   # fused QKV
            full((D, D)), full((1, D)),           # output projection
            full((D, mlp)), full((1, mlp)),       # MLP up
            full((mlp, D)), full((1, D)),         # MLP down
            full((1, D)), full((1, D)),           # LN1
            full((1, D)), full((1, D)),           # LN2
            full((1, D)), full((1, D)),           # final LN (used iff final_ln)
        ],
        out_specs=tok_spec,
        compiler_params=pltpu.CompilerParams(
            dimension_semantics=("parallel",)),   # lets v7x split over 2 TCs
    )(tok2d, attn_bias, lp["wqkv"], lp["bqkv"], lp["wo"], lp["bo"],
      lp["w1"], lp["b1"], lp["w2"], lp["b2"],
      lp["ln1_g"], lp["ln1_b"], lp["ln2_g"], lp["ln2_b"],
      lnf_g, lnf_b)


# ------------------------- ViT model (glue + kernel) ------------------------

def _attn_bias(nb, tp, t_real):
    """Static (nb*tp, nb*tp) additive bias: 0 where query/key belong to the same
    image and the key is a real token, -1e30 otherwise (pad & cross-image)."""
    rows = nb * tp
    idx = np.arange(rows)
    same_img = (idx[:, None] // tp) == (idx[None, :] // tp)
    real_key = (idx[None, :] % tp) < t_real
    return jnp.asarray(np.where(same_img & real_key, 0.0, -1e30), jnp.float32)


def pad_tokens(tokens, tp):
    """(B, T, D) -> (B*tp, D) with zero rows padding T up to tp (sublane-aligned)."""
    B, T, D = tokens.shape
    padded = jnp.pad(tokens, ((0, 0), (0, tp - T), (0, 0)))
    return padded.reshape(B * tp, D)


def unpad_tokens(tok2d, nbatch, tp, t_real, d):
    return tok2d.reshape(nbatch, tp, d)[:, :t_real]


def init_params(key, cfg):
    D, C, p = cfg["dim"], cfg["in_chans"], cfg["patch"]
    T, mlp, L = cfg["num_tokens"], cfg["mlp"], cfg["layers"]
    keys = jax.random.split(key, 4 + L)

    def dense(k, din, dout):
        kw, kb = jax.random.split(k)
        w = jax.random.normal(kw, (din, dout), jnp.float32) * (1.0 / jnp.sqrt(din))
        b = jax.random.normal(kb, (1, dout), jnp.float32) * 0.02
        return w, b

    params = {}
    # patch-embed conv (kernel=stride=patch) expressed as an im2col matmul.
    params["patch_w"], params["patch_b"] = dense(keys[0], C * p * p, D)
    params["cls"] = jax.random.normal(keys[1], (1, 1, D), jnp.float32) * 0.02
    params["pos"] = jax.random.normal(keys[2], (1, T, D), jnp.float32) * 0.02
    params["ln_f_g"] = jnp.ones((1, D), jnp.float32)
    params["ln_f_b"] = jnp.zeros((1, D), jnp.float32)

    layers = []
    for li in range(L):
        ks = jax.random.split(keys[4 + li], 6)
        wq, bq = dense(ks[0], D, D)
        wk, bk = dense(ks[1], D, D)
        wv, bv = dense(ks[2], D, D)
        lp = {
            "ln1_g": jnp.ones((1, D), jnp.float32), "ln1_b": jnp.zeros((1, D), jnp.float32),
            "ln2_g": jnp.ones((1, D), jnp.float32), "ln2_b": jnp.zeros((1, D), jnp.float32),
            # fused QKV weights: one (D, 3D) matmul instead of three (D, D)
            "wqkv": jnp.concatenate([wq, wk, wv], axis=1),
            "bqkv": jnp.concatenate([bq, bk, bv], axis=1),
        }
        lp["wo"], lp["bo"] = dense(ks[3], D, D)
        lp["w1"], lp["b1"] = dense(ks[4], D, mlp)
        lp["w2"], lp["b2"] = dense(ks[5], mlp, D)
        layers.append(lp)
    params["layers"] = layers
    return params


def embeddings(x, params, cfg):
    """model1.embeddings: patch conv + CLS token + position embeddings.

    Plain JAX (per perf review): a lone (128,48)@(48,32) pallas_call is pure
    launch overhead, and XLA fuses the bias, CLS concat and pos add.  The
    pos-embedding grid is sized to the input so interpolate_pos_encoding=True
    reduces to a plain add."""
    B, C, H, W = x.shape
    p, D = cfg["patch"], cfg["dim"]
    hw = H // p
    patches = x.reshape(B, C, hw, p, hw, p)
    patches = patches.transpose(0, 2, 4, 1, 3, 5).reshape(B * hw * hw, C * p * p)
    emb = (jnp.dot(patches, params["patch_w"]) + params["patch_b"]).reshape(B, hw * hw, D)
    cls = jnp.broadcast_to(params["cls"], (B, 1, D))
    return jnp.concatenate([cls, emb], axis=1) + params["pos"]


def flip_model_forward(x, params, cfg):
    HW = cfg["hw"]
    B = x.shape[0]
    T, D, tp = cfg["num_tokens"], cfg["dim"], cfg["tp"]
    L = len(params["layers"])

    # Batch the 4 flip variants (identity, H-flip, W-flip, HW-flip) along the
    # batch axis: embeddings + layers 0-1 run once on (4B, ...) instead of 4x.
    x_all = jnp.concatenate(
        [x, jnp.flip(x, axis=2), jnp.flip(x, axis=3), jnp.flip(x, axis=(2, 3))],
        axis=0)

    tokens = embeddings(x_all, params, cfg)                  # (4B, T, D)
    tok2d = pad_tokens(tokens, tp)                           # (4B*tp, D)

    # Phase 1: layers 0-1 over all flip variants.  Fold nb1 images per grid
    # step but keep >= 2 steps so both v7x TensorCores get a block.
    nb1 = max(1, (4 * B) // 2)
    bias1 = _attn_bias(nb1, tp, T)
    tok2d = vit_layer(tok2d, bias1, params["layers"][0],
                      params["ln_f_g"], params["ln_f_b"], cfg, nb=nb1)
    tok2d = vit_layer(tok2d, bias1, params["layers"][1],
                      params["ln_f_g"], params["ln_f_b"], cfg, nb=nb1)

    tokens = unpad_tokens(tok2d, 4 * B, tp, T, D)            # (4B, T, D)
    t4 = tokens.reshape(4, B, T, D)

    # Un-flip each flipped variant's patch-token grid, then fold with an
    # elementwise max (plain jnp.maximum; XLA fuses it, no kernel launch).
    embed = t4[0]
    for idx, tok_axes in zip((1, 2, 3), ((1,), (2,), (1, 2))):
        tv = t4[idx]
        cls_tok = tv[:, :1]
        patch = jnp.flip(tv[:, 1:].reshape(B, HW, HW, D), axis=tok_axes)
        tv = jnp.concatenate([cls_tok, patch.reshape(B, HW * HW, D)], axis=1)
        embed = jnp.maximum(embed, tv)

    # Phase 2: layers 2..L-1 on the merged batch; one image per grid step keeps
    # grid=(B,) so v7x still parallelizes; the final model.layernorm is fused
    # into the last layer's kernel (no standalone layernorm pallas_call).
    tok2d = pad_tokens(embed, tp)                            # (B*tp, D)
    bias2 = _attn_bias(1, tp, T)
    for li in range(2, L):
        tok2d = vit_layer(tok2d, bias2, params["layers"][li],
                          params["ln_f_g"], params["ln_f_b"], cfg,
                          nb=1, final_ln=(li == L - 1))

    y = unpad_tokens(tok2d, B, tp, T, D)[:, 1:]              # drop CLS
    return y.transpose(0, 2, 1).reshape(B, D, HW, HW)        # (B, D, HW, HW)


# ----------------------------------- main -----------------------------------

if __name__ == "__main__":
    cfg = dict(dim=32, heads=4, mlp=64, layers=4, in_chans=3, patch=4, hw=4)
    H = W = cfg["patch"] * cfg["hw"]
    cfg["num_tokens"] = cfg["hw"] * cfg["hw"] + 1            # 17 = CLS + 16 patches
    cfg["tp"] = ((cfg["num_tokens"] + 7) // 8) * 8           # pad tokens to 24 (sublane-aligned)

    key = jax.random.PRNGKey(0)
    kx, kp = jax.random.split(key)
    x = jax.random.normal(kx, (2, cfg["in_chans"], H, W), jnp.float32)
    params = init_params(kp, cfg)

    fwd = jax.jit(functools.partial(flip_model_forward, cfg=cfg))
    y = jax.block_until_ready(fwd(x, params))

    assert y.shape == (2, cfg["dim"], cfg["hw"], cfg["hw"]), y.shape
    assert bool(jnp.all(jnp.isfinite(y)))
    print("KERNEL_OK")
</pallas_src>

<mosaic_0001>
module attributes {stable_mosaic.version = 11 : i64} {
  func.func @_vit_layer_kernel(%arg0: i32, %arg1: memref<96x32xf32, #tpu.memory_space<vmem>>, %arg2: memref<96x96xf32, #tpu.memory_space<vmem>>, %arg3: memref<32x96xf32, #tpu.memory_space<vmem>>, %arg4: memref<1x96xf32, #tpu.memory_space<vmem>>, %arg5: memref<32x32xf32, #tpu.memory_space<vmem>>, %arg6: memref<1x32xf32, #tpu.memory_space<vmem>>, %arg7: memref<32x64xf32, #tpu.memory_space<vmem>>, %arg8: memref<1x64xf32, #tpu.memory_space<vmem>>, %arg9: memref<64x32xf32, #tpu.memory_space<vmem>>, %arg10: memref<1x32xf32, #tpu.memory_space<vmem>>, %arg11: memref<1x32xf32, #tpu.memory_space<vmem>>, %arg12: memref<1x32xf32, #tpu.memory_space<vmem>>, %arg13: memref<1x32xf32, #tpu.memory_space<vmem>>, %arg14: memref<1x32xf32, #tpu.memory_space<vmem>>, %arg15: memref<1x32xf32, #tpu.memory_space<vmem>>, %arg16: memref<1x32xf32, #tpu.memory_space<vmem>>, %arg17: memref<96x32xf32, #tpu.memory_space<vmem>>) attributes {dimension_semantics = [#tpu.dimension_semantics<parallel>], iteration_bounds = array<i64: 2>, scalar_prefetch = 0 : i64, scratch_operands = 0 : i64, tpu.core_type = #tpu.core_type<tc>, window_params = [{transform_indices = @transform_0, window_bounds = array<i64: 96, 32>}, {pipeline_mode = #tpu.pipeline_mode<synchronous>, transform_indices = @transform_1, window_bounds = array<i64: 96, 96>}, {pipeline_mode = #tpu.pipeline_mode<synchronous>, transform_indices = @transform_2, window_bounds = array<i64: 32, 96>}, {pipeline_mode = #tpu.pipeline_mode<synchronous>, transform_indices = @transform_3, window_bounds = array<i64: 1, 96>}, {pipeline_mode = #tpu.pipeline_mode<synchronous>, transform_indices = @transform_4, window_bounds = array<i64: 32, 32>}, {pipeline_mode = #tpu.pipeline_mode<synchronous>, transform_indices = @transform_5, window_bounds = array<i64: 1, 32>}, {pipeline_mode = #tpu.pipeline_mode<synchronous>, transform_indices = @transform_6, window_bounds = array<i64: 32, 64>}, {pipeline_mode = #tpu.pipeline_mode<synchronous>, transform_indices = @transform_7, window_bounds = array<i64: 1, 64>}, {pipeline_mode = #tpu.pipeline_mode<synchronous>, transform_indices = @transform_8, window_bounds = array<i64: 64, 32>}, {pipeline_mode = #tpu.pipeline_mode<synchronous>, transform_indices = @transform_9, window_bounds = array<i64: 1, 32>}, {pipeline_mode = #tpu.pipeline_mode<synchronous>, transform_indices = @transform_10, window_bounds = array<i64: 1, 32>}, {pipeline_mode = #tpu.pipeline_mode<synchronous>, transform_indices = @transform_11, window_bounds = array<i64: 1, 32>}, {pipeline_mode = #tpu.pipeline_mode<synchronous>, transform_indices = @transform_12, window_bounds = array<i64: 1, 32>}, {pipeline_mode = #tpu.pipeline_mode<synchronous>, transform_indices = @transform_13, window_bounds = array<i64: 1, 32>}, {pipeline_mode = #tpu.pipeline_mode<synchronous>, transform_indices = @transform_14, window_bounds = array<i64: 1, 32>}, {pipeline_mode = #tpu.pipeline_mode<synchronous>, transform_indices = @transform_15, window_bounds = array<i64: 1, 32>}, {transform_indices = @transform_16, window_bounds = array<i64: 96, 32>}]} {
    %c0 = arith.constant 0 : index
    %c0_0 = arith.constant 0 : index
    %0 = vector.load %arg1[%c0, %c0_0] : memref<96x32xf32, #tpu.memory_space<vmem>>, vector<96x32xf32>
    %c0_1 = arith.constant 0 : index
    %c0_2 = arith.constant 0 : index
    %1 = vector.load %arg11[%c0_1, %c0_2] : memref<1x32xf32, #tpu.memory_space<vmem>>, vector<1x32xf32>
    %c0_3 = arith.constant 0 : index
    %c0_4 = arith.constant 0 : index
    %2 = vector.load %arg12[%c0_3, %c0_4] : memref<1x32xf32, #tpu.memory_space<vmem>>, vector<1x32xf32>
    %cst = arith.constant dense<0.000000e+00> : vector<96xf32>
    %3 = vector.multi_reduction <add>, %0, %cst [1] : vector<96x32xf32> to vector<96xf32>
    %4 = vector.shape_cast %3 : vector<96xf32> to vector<96x1xf32>
    %cst_5 = arith.constant 3.200000e+01 : f32
    %5 = vector.broadcast %cst_5 : f32 to vector<96x1xf32>
    %6 = arith.divf %4, %5 : vector<96x1xf32>
    %7 = vector.broadcast %6 : vector<96x1xf32> to vector<96x32xf32>
    %8 = arith.subf %0, %7 : vector<96x32xf32>
    %9 = arith.mulf %8, %8 : vector<96x32xf32>
    %cst_6 = arith.constant dense<0.000000e+00> : vector<96xf32>
    %10 = vector.multi_reduction <add>, %9, %cst_6 [1] : vector<96x32xf32> to vector<96xf32>
    %11 = vector.shape_cast %10 : vector<96xf32> to vector<96x1xf32>
    %cst_7 = arith.constant 3.200000e+01 : f32
    %12 = vector.broadcast %cst_7 : f32 to vector<96x1xf32>
    %13 = arith.divf %11, %12 : vector<96x1xf32>
    %cst_8 = arith.constant 9.99999996E-13 : f32
    %14 = vector.broadcast %cst_8 : f32 to vector<96x1xf32>
    %15 = arith.addf %13, %14 : vector<96x1xf32>
    %16 = math.rsqrt %15 : vector<96x1xf32>
    %17 = vector.broadcast %16 : vector<96x1xf32> to vector<96x32xf32>
    %18 = arith.mulf %8, %17 : vector<96x32xf32>
    %19 = vector.broadcast %1 : vector<1x32xf32> to vector<96x32xf32>
    %20 = arith.mulf %18, %19 : vector<96x32xf32>
    %21 = vector.broadcast %2 : vector<1x32xf32> to vector<96x32xf32>
    %22 = arith.addf %20, %21 : vector<96x32xf32>
    %c0_9 = arith.constant 0 : index
    %c0_10 = arith.constant 0 : index
    %23 = vector.load %arg3[%c0_9, %c0_10] : memref<32x96xf32, #tpu.memory_space<vmem>>, vector<32x96xf32>
    %cst_11 = arith.constant dense<0.000000e+00> : vector<96x96xf32>
    %24 = tpu.matmul %22, %23, %cst_11 {dimension_numbers = #tpu.dot_dimension_numbers<[1], [0], [0], [1], [0, 0, 1, 1], [], []>} : vector<96x32xf32>, vector<32x96xf32>, vector<96x96xf32> -> vector<96x96xf32>
    %c0_12 = arith.constant 0 : index
    %c0_13 = arith.constant 0 : index
    %25 = vector.load %arg4[%c0_12, %c0_13] : memref<1x96xf32, #tpu.memory_space<vmem>>, vector<1x96xf32>
    %26 = vector.broadcast %25 : vector<1x96xf32> to vector<96x96xf32>
    %27 = arith.addf %24, %26 : vector<96x96xf32>
    %c0_14 = arith.constant 0 : index
    %c0_15 = arith.constant 0 : index
    %28 = vector.load %arg2[%c0_14, %c0_15] : memref<96x96xf32, #tpu.memory_space<vmem>>, vector<96x96xf32>
    %c0_16 = arith.constant 0 : index
    %c0_17 = arith.constant 0 : index
    %29 = vector.load %arg5[%c0_16, %c0_17] : memref<32x32xf32, #tpu.memory_space<vmem>>, vector<32x32xf32>
    %cst_18 = arith.constant 0.000000e+00 : f32
    %30 = vector.broadcast %cst_18 : f32 to vector<96x32xf32>
    %31 = vector.extract_strided_slice %27 {offsets = [0, 0], sizes = [96, 8], strides = [1, 1]} : vector<96x96xf32> to vector<96x8xf32>
    %32 = vector.extract_strided_slice %27 {offsets = [0, 32], sizes = [96, 8], strides = [1, 1]} : vector<96x96xf32> to vector<96x8xf32>
    %33 = vector.extract_strided_slice %27 {offsets = [0, 64], sizes = [96, 8], strides = [1, 1]} : vector<96x96xf32> to vector<96x8xf32>
    %cst_19 = arith.constant dense<0.000000e+00> : vector<96x96xf32>
    %34 = tpu.matmul %31, %32, %cst_19 {dimension_numbers = #tpu.dot_dimension_numbers<[1], [1], [0], [0], [0, 0, 1, 0], [], []>} : vector<96x8xf32>, vector<96x8xf32>, vector<96x96xf32> -> vector<96x96xf32>
    %cst_20 = arith.constant 0.353553385 : f32
    %35 = vector.broadcast %cst_20 : f32 to vector<96x96xf32>
    %36 = arith.mulf %34, %35 : vector<96x96xf32>
    %37 = arith.addf %36, %28 : vector<96x96xf32>
    %cst_21 = arith.constant dense<0xFF800000> : vector<96xf32>
    %38 = vector.multi_reduction <maximumf>, %37, %cst_21 [1] : vector<96x96xf32> to vector<96xf32>
    %39 = vector.shape_cast %38 : vector<96xf32> to vector<96x1xf32>
    %40 = vector.broadcast %39 : vector<96x1xf32> to vector<96x96xf32>
    %41 = arith.subf %37, %40 : vector<96x96xf32>
    %42 = math.exp %41 : vector<96x96xf32>
    %cst_22 = arith.constant dense<0.000000e+00> : vector<96xf32>
    %43 = vector.multi_reduction <add>, %42, %cst_22 [1] : vector<96x96xf32> to vector<96xf32>
    %44 = vector.shape_cast %43 : vector<96xf32> to vector<96x1xf32>
    %45 = tpu.reciprocal %44 {approx = true} : vector<96x1xf32> -> vector<96x1xf32>
    %46 = vector.broadcast %45 : vector<96x1xf32> to vector<96x96xf32>
    %47 = arith.mulf %42, %46 : vector<96x96xf32>
    %cst_23 = arith.constant dense<0.000000e+00> : vector<96x8xf32>
    %48 = tpu.matmul %47, %33, %cst_23 {dimension_numbers = #tpu.dot_dimension_numbers<[1], [0], [0], [1], [0, 0, 1, 1], [], []>} : vector<96x96xf32>, vector<96x8xf32>, vector<96x8xf32> -> vector<96x8xf32>
    %49 = vector.extract_strided_slice %29 {offsets = [0, 0], sizes = [8, 32], strides = [1, 1]} : vector<32x32xf32> to vector<8x32xf32>
    %cst_24 = arith.constant dense<0.000000e+00> : vector<96x32xf32>
    %50 = tpu.matmul %48, %49, %cst_24 {dimension_numbers = #tpu.dot_dimension_numbers<[1], [0], [0], [1], [0, 0, 1, 1], [], []>} : vector<96x8xf32>, vector<8x32xf32>, vector<96x32xf32> -> vector<96x32xf32>
    %51 = arith.addf %30, %50 : vector<96x32xf32>
    %52 = vector.extract_strided_slice %27 {offsets = [0, 8], sizes = [96, 8], strides = [1, 1]} : vector<96x96xf32> to vector<96x8xf32>
    %53 = vector.extract_strided_slice %27 {offsets = [0, 40], sizes = [96, 8], strides = [1, 1]} : vector<96x96xf32> to vector<96x8xf32>
    %54 = vector.extract_strided_slice %27 {offsets = [0, 72], sizes = [96, 8], strides = [1, 1]} : vector<96x96xf32> to vector<96x8xf32>
    %cst_25 = arith.constant dense<0.000000e+00> : vector<96x96xf32>
    %55 = tpu.matmul %52, %53, %cst_25 {dimension_numbers = #tpu.dot_dimension_numbers<[1], [1], [0], [0], [0, 0, 1, 0], [], []>} : vector<96x8xf32>, vector<96x8xf32>, vector<96x96xf32> -> vector<96x96xf32>
    %cst_26 = arith.constant 0.353553385 : f32
    %56 = vector.broadcast %cst_26 : f32 to vector<96x96xf32>
    %57 = arith.mulf %55, %56 : vector<96x96xf32>
    %58 = arith.addf %57, %28 : vector<96x96xf32>
    %cst_27 = arith.constant dense<0xFF800000> : vector<96xf32>
    %59 = vector.multi_reduction <maximumf>, %58, %cst_27 [1] : vector<96x96xf32> to vector<96xf32>
    %60 = vector.shape_cast %59 : vector<96xf32> to vector<96x1xf32>
    %61 = vector.broadcast %60 : vector<96x1xf32> to vector<96x96xf32>
    %62 = arith.subf %58, %61 : vector<96x96xf32>
    %63 = math.exp %62 : vector<96x96xf32>
    %cst_28 = arith.constant dense<0.000000e+00> : vector<96xf32>
    %64 = vector.multi_reduction <add>, %63, %cst_28 [1] : vector<96x96xf32> to vector<96xf32>
    %65 = vector.shape_cast %64 : vector<96xf32> to vector<96x1xf32>
    %66 = tpu.reciprocal %65 {approx = true} : vector<96x1xf32> -> vector<96x1xf32>
    %67 = vector.broadcast %66 : vector<96x1xf32> to vector<96x96xf32>
    %68 = arith.mulf %63, %67 : vector<96x96xf32>
    %cst_29 = arith.constant dense<0.000000e+00> : vector<96x8xf32>
    %69 = tpu.matmul %68, %54, %cst_29 {dimension_numbers = #tpu.dot_dimension_numbers<[1], [0], [0], [1], [0, 0, 1, 1], [], []>} : vector<96x96xf32>, vector<96x8xf32>, vector<96x8xf32> -> vector<96x8xf32>
    %70 = vector.extract_strided_slice %29 {offsets = [8, 0], sizes = [8, 32], strides = [1, 1]} : vector<32x32xf32> to vector<8x32xf32>
    %cst_30 = arith.constant dense<0.000000e+00> : vector<96x32xf32>
    %71 = tpu.matmul %69, %70, %cst_30 {dimension_numbers = #tpu.dot_dimension_numbers<[1], [0], [0], [1], [0, 0, 1, 1], [], []>} : vector<96x8xf32>, vector<8x32xf32>, vector<96x32xf32> -> vector<96x32xf32>
    %72 = arith.addf %51, %71 : vector<96x32xf32>
    %73 = vector.extract_strided_slice %27 {offsets = [0, 16], sizes = [96, 8], strides = [1, 1]} : vector<96x96xf32> to vector<96x8xf32>
    %74 = vector.extract_strided_slice %27 {offsets = [0, 48], sizes = [96, 8], strides = [1, 1]} : vector<96x96xf32> to vector<96x8xf32>
    %75 = vector.extract_strided_slice %27 {offsets = [0, 80], sizes = [96, 8], strides = [1, 1]} : vector<96x96xf32> to vector<96x8xf32>
    %cst_31 = arith.constant dense<0.000000e+00> : vector<96x96xf32>
    %76 = tpu.matmul %73, %74, %cst_31 {dimension_numbers = #tpu.dot_dimension_numbers<[1], [1], [0], [0], [0, 0, 1, 0], [], []>} : vector<96x8xf32>, vector<96x8xf32>, vector<96x96xf32> -> vector<96x96xf32>
    %cst_32 = arith.constant 0.353553385 : f32
    %77 = vector.broadcast %cst_32 : f32 to vector<96x96xf32>
    %78 = arith.mulf %76, %77 : vector<96x96xf32>
    %79 = arith.addf %78, %28 : vector<96x96xf32>
    %cst_33 = arith.constant dense<0xFF800000> : vector<96xf32>
    %80 = vector.multi_reduction <maximumf>, %79, %cst_33 [1] : vector<96x96xf32> to vector<96xf32>
    %81 = vector.shape_cast %80 : vector<96xf32> to vector<96x1xf32>
    %82 = vector.broadcast %81 : vector<96x1xf32> to vector<96x96xf32>
    %83 = arith.subf %79, %82 : vector<96x96xf32>
    %84 = math.exp %83 : vector<96x96xf32>
    %cst_34 = arith.constant dense<0.000000e+00> : vector<96xf32>
    %85 = vector.multi_reduction <add>, %84, %cst_34 [1] : vector<96x96xf32> to vector<96xf32>
    %86 = vector.shape_cast %85 : vector<96xf32> to vector<96x1xf32>
    %87 = tpu.reciprocal %86 {approx = true} : vector<96x1xf32> -> vector<96x1xf32>
    %88 = vector.broadcast %87 : vector<96x1xf32> to vector<96x96xf32>
    %89 = arith.mulf %84, %88 : vector<96x96xf32>
    %cst_35 = arith.constant dense<0.000000e+00> : vector<96x8xf32>
    %90 = tpu.matmul %89, %75, %cst_35 {dimension_numbers = #tpu.dot_dimension_numbers<[1], [0], [0], [1], [0, 0, 1, 1], [], []>} : vector<96x96xf32>, vector<96x8xf32>, vector<96x8xf32> -> vector<96x8xf32>
    %91 = vector.extract_strided_slice %29 {offsets = [16, 0], sizes = [8, 32], strides = [1, 1]} : vector<32x32xf32> to vector<8x32xf32>
    %cst_36 = arith.constant dense<0.000000e+00> : vector<96x32xf32>
    %92 = tpu.matmul %90, %91, %cst_36 {dimension_numbers = #tpu.dot_dimension_numbers<[1], [0], [0], [1], [0, 0, 1, 1], [], []>} : vector<96x8xf32>, vector<8x32xf32>, vector<96x32xf32> -> vector<96x32xf32>
    %93 = arith.addf %72, %92 : vector<96x32xf32>
    %94 = vector.extract_strided_slice %27 {offsets = [0, 24], sizes = [96, 8], strides = [1, 1]} : vector<96x96xf32> to vector<96x8xf32>
    %95 = vector.extract_strided_slice %27 {offsets = [0, 56], sizes = [96, 8], strides = [1, 1]} : vector<96x96xf32> to vector<96x8xf32>
    %96 = vector.extract_strided_slice %27 {offsets = [0, 88], sizes = [96, 8], strides = [1, 1]} : vector<96x96xf32> to vector<96x8xf32>
    %cst_37 = arith.constant dense<0.000000e+00> : vector<96x96xf32>
    %97 = tpu.matmul %94, %95, %cst_37 {dimension_numbers = #tpu.dot_dimension_numbers<[1], [1], [0], [0], [0, 0, 1, 0], [], []>} : vector<96x8xf32>, vector<96x8xf32>, vector<96x96xf32> -> vector<96x96xf32>
    %cst_38 = arith.constant 0.353553385 : f32
    %98 = vector.broadcast %cst_38 : f32 to vector<96x96xf32>
    %99 = arith.mulf %97, %98 : vector<96x96xf32>
    %100 = arith.addf %99, %28 : vector<96x96xf32>
    %cst_39 = arith.constant dense<0xFF800000> : vector<96xf32>
    %101 = vector.multi_reduction <maximumf>, %100, %cst_39 [1] : vector<96x96xf32> to vector<96xf32>
    %102 = vector.shape_cast %101 : vector<96xf32> to vector<96x1xf32>
    %103 = vector.broadcast %102 : vector<96x1xf32> to vector<96x96xf32>
    %104 = arith.subf %100, %103 : vector<96x96xf32>
    %105 = math.exp %104 : vector<96x96xf32>
    %cst_40 = arith.constant dense<0.000000e+00> : vector<96xf32>
    %106 = vector.multi_reduction <add>, %105, %cst_40 [1] : vector<96x96xf32> to vector<96xf32>
    %107 = vector.shape_cast %106 : vector<96xf32> to vector<96x1xf32>
    %108 = tpu.reciprocal %107 {approx = true} : vector<96x1xf32> -> vector<96x1xf32>
    %109 = vector.broadcast %108 : vector<96x1xf32> to vector<96x96xf32>
    %110 = arith.mulf %105, %109 : vector<96x96xf32>
    %cst_41 = arith.constant dense<0.000000e+00> : vector<96x8xf32>
    %111 = tpu.matmul %110, %96, %cst_41 {dimension_numbers = #tpu.dot_dimension_numbers<[1], [0], [0], [1], [0, 0, 1, 1], [], []>} : vector<96x96xf32>, vector<96x8xf32>, vector<96x8xf32> -> vector<96x8xf32>
    %112 = vector.extract_strided_slice %29 {offsets = [24, 0], sizes = [8, 32], strides = [1, 1]} : vector<32x32xf32> to vector<8x32xf32>
    %cst_42 = arith.constant dense<0.000000e+00> : vector<96x32xf32>
    %113 = tpu.matmul %111, %112, %cst_42 {dimension_numbers = #tpu.dot_dimension_numbers<[1], [0], [0], [1], [0, 0, 1, 1], [], []>} : vector<96x8xf32>, vector<8x32xf32>, vector<96x32xf32> -> vector<96x32xf32>
    %114 = arith.addf %93, %113 : vector<96x32xf32>
    %115 = arith.addf %0, %114 : vector<96x32xf32>
    %c0_43 = arith.constant 0 : index
    %c0_44 = arith.constant 0 : index
    %116 = vector.load %arg6[%c0_43, %c0_44] : memref<1x32xf32, #tpu.memory_space<vmem>>, vector<1x32xf32>
    %117 = vector.broadcast %116 : vector<1x32xf32> to vector<96x32xf32>
    %118 = arith.addf %115, %117 : vector<96x32xf32>
    %c0_45 = arith.constant 0 : index
    %c0_46 = arith.constant 0 : index
    %119 = vector.load %arg13[%c0_45, %c0_46] : memref<1x32xf32, #tpu.memory_space<vmem>>, vector<1x32xf32>
    %c0_47 = arith.constant 0 : index
    %c0_48 = arith.constant 0 : index
    %120 = vector.load %arg14[%c0_47, %c0_48] : memref<1x32xf32, #tpu.memory_space<vmem>>, vector<1x32xf32>
    %cst_49 = arith.constant dense<0.000000e+00> : vector<96xf32>
    %121 = vector.multi_reduction <add>, %118, %cst_49 [1] : vector<96x32xf32> to vector<96xf32>
    %122 = vector.shape_cast %121 : vector<96xf32> to vector<96x1xf32>
    %cst_50 = arith.constant 3.200000e+01 : f32
    %123 = vector.broadcast %cst_50 : f32 to vector<96x1xf32>
    %124 = arith.divf %122, %123 : vector<96x1xf32>
    %125 = vector.broadcast %124 : vector<96x1xf32> to vector<96x32xf32>
    %126 = arith.subf %118, %125 : vector<96x32xf32>
    %127 = arith.mulf %126, %126 : vector<96x32xf32>
    %cst_51 = arith.constant dense<0.000000e+00> : vector<96xf32>
    %128 = vector.multi_reduction <add>, %127, %cst_51 [1] : vector<96x32xf32> to vector<96xf32>
    %129 = vector.shape_cast %128 : vector<96xf32> to vector<96x1xf32>
    %cst_52 = arith.constant 3.200000e+01 : f32
    %130 = vector.broadcast %cst_52 : f32 to vector<96x1xf32>
    %131 = arith.divf %129, %130 : vector<96x1xf32>
    %cst_53 = arith.constant 9.99999996E-13 : f32
    %132 = vector.broadcast %cst_53 : f32 to vector<96x1xf32>
    %133 = arith.addf %131, %132 : vector<96x1xf32>
    %134 = math.rsqrt %133 : vector<96x1xf32>
    %135 = vector.broadcast %134 : vector<96x1xf32> to vector<96x32xf32>
    %136 = arith.mulf %126, %135 : vector<96x32xf32>
    %137 = vector.broadcast %119 : vector<1x32xf32> to vector<96x32xf32>
    %138 = arith.mulf %136, %137 : vector<96x32xf32>
    %139 = vector.broadcast %120 : vector<1x32xf32> to vector<96x32xf32>
    %140 = arith.addf %138, %139 : vector<96x32xf32>
    %c0_54 = arith.constant 0 : index
    %c0_55 = arith.constant 0 : index
    %141 = vector.load %arg7[%c0_54, %c0_55] : memref<32x64xf32, #tpu.memory_space<vmem>>, vector<32x64xf32>
    %cst_56 = arith.constant dense<0.000000e+00> : vector<96x64xf32>
    %142 = tpu.matmul %140, %141, %cst_56 {dimension_numbers = #tpu.dot_dimension_numbers<[1], [0], [0], [1], [0, 0, 1, 1], [], []>} : vector<96x32xf32>, vector<32x64xf32>, vector<96x64xf32> -> vector<96x64xf32>
    %c0_57 = arith.constant 0 : index
    %c0_58 = arith.constant 0 : index
    %143 = vector.load %arg8[%c0_57, %c0_58] : memref<1x64xf32, #tpu.memory_space<vmem>>, vector<1x64xf32>
    %144 = vector.broadcast %143 : vector<1x64xf32> to vector<96x64xf32>
    %145 = arith.addf %142, %144 : vector<96x64xf32>
    %146 = arith.mulf %145, %145 : vector<96x64xf32>
    %147 = arith.mulf %145, %146 : vector<96x64xf32>
    %cst_59 = arith.constant 4.471500e-02 : f32
    %148 = vector.broadcast %cst_59 : f32 to vector<96x64xf32>
    %149 = arith.mulf %148, %147 : vector<96x64xf32>
    %150 = arith.addf %145, %149 : vector<96x64xf32>
    %cst_60 = arith.constant 0.797884583 : f32
    %151 = vector.broadcast %cst_60 : f32 to vector<96x64xf32>
    %152 = arith.mulf %151, %150 : vector<96x64xf32>
    %153 = math.tanh %152 : vector<96x64xf32>
    %cst_61 = arith.constant 1.000000e+00 : f32
    %154 = vector.broadcast %cst_61 : f32 to vector<96x64xf32>
    %155 = arith.addf %154, %153 : vector<96x64xf32>
    %cst_62 = arith.constant 5.000000e-01 : f32
    %156 = vector.broadcast %cst_62 : f32 to vector<96x64xf32>
    %157 = arith.mulf %156, %155 : vector<96x64xf32>
    %158 = arith.mulf %145, %157 : vector<96x64xf32>
    %c0_63 = arith.constant 0 : index
    %c0_64 = arith.constant 0 : index
    %159 = vector.load %arg9[%c0_63, %c0_64] : memref<64x32xf32, #tpu.memory_space<vmem>>, vector<64x32xf32>
    %cst_65 = arith.constant dense<0.000000e+00> : vector<96x32xf32>
    %160 = tpu.matmul %158, %159, %cst_65 {dimension_numbers = #tpu.dot_dimension_numbers<[1], [0], [0], [1], [0, 0, 1, 1], [], []>} : vector<96x64xf32>, vector<64x32xf32>, vector<96x32xf32> -> vector<96x32xf32>
    %c0_66 = arith.constant 0 : index
    %c0_67 = arith.constant 0 : index
    %161 = vector.load %arg10[%c0_66, %c0_67] : memref<1x32xf32, #tpu.memory_space<vmem>>, vector<1x32xf32>
    %162 = vector.broadcast %161 : vector<1x32xf32> to vector<96x32xf32>
    %163 = arith.addf %160, %162 : vector<96x32xf32>
    %164 = arith.addf %118, %163 : vector<96x32xf32>
    %c0_68 = arith.constant 0 : index
    %c0_69 = arith.constant 0 : index
    %165 = vector.load %arg17[%c0_68, %c0_69] : memref<96x32xf32, #tpu.memory_space<vmem>>, vector<96x32xf32>
    tpu.vector_store %arg17[%c0_68, %c0_69], %164 {strides = array<i32>} : memref<96x32xf32, #tpu.memory_space<vmem>>, vector<96x32xf32>,
    return
  }
  func.func @transform_0(%arg0: i32) -> (i32, i32) {
    %c0_i32 = arith.constant 0 : i32
    %c0_i32_0 = arith.constant 0 : i32
    return %arg0, %c0_i32 : i32, i32
  }
  func.func @transform_1(%arg0: i32) -> (i32, i32) {
    %c0_i32 = arith.constant 0 : i32
    %c0_i32_0 = arith.constant 0 : i32
    %c0_i32_1 = arith.constant 0 : i32
    return %c0_i32, %c0_i32_0 : i32, i32
  }
  func.func @transform_2(%arg0: i32) -> (i32, i32) {
    %c0_i32 = arith.constant 0 : i32
    %c0_i32_0 = arith.constant 0 : i32
    %c0_i32_1 = arith.constant 0 : i32
    return %c0_i32, %c0_i32_0 : i32, i32
  }
  func.func @transform_3(%arg0: i32) -> (i32, i32) {
    %c0_i32 = arith.constant 0 : i32
    %c0_i32_0 = arith.constant 0 : i32
    %c0_i32_1 = arith.constant 0 : i32
    return %c0_i32, %c0_i32_0 : i32, i32
  }
  func.func @transform_4(%arg0: i32) -> (i32, i32) {
    %c0_i32 = arith.constant 0 : i32
    %c0_i32_0 = arith.constant 0 : i32
    %c0_i32_1 = arith.constant 0 : i32
    return %c0_i32, %c0_i32_0 : i32, i32
  }
  func.func @transform_5(%arg0: i32) -> (i32, i32) {
    %c0_i32 = arith.constant 0 : i32
    %c0_i32_0 = arith.constant 0 : i32
    %c0_i32_1 = arith.constant 0 : i32
    return %c0_i32, %c0_i32_0 : i32, i32
  }
  func.func @transform_6(%arg0: i32) -> (i32, i32) {
    %c0_i32 = arith.constant 0 : i32
    %c0_i32_0 = arith.constant 0 : i32
    %c0_i32_1 = arith.constant 0 : i32
    return %c0_i32, %c0_i32_0 : i32, i32
  }
  func.func @transform_7(%arg0: i32) -> (i32, i32) {
    %c0_i32 = arith.constant 0 : i32
    %c0_i32_0 = arith.constant 0 : i32
    %c0_i32_1 = arith.constant 0 : i32
    return %c0_i32, %c0_i32_0 : i32, i32
  }
  func.func @transform_8(%arg0: i32) -> (i32, i32) {
    %c0_i32 = arith.constant 0 : i32
    %c0_i32_0 = arith.constant 0 : i32
    %c0_i32_1 = arith.constant 0 : i32
    return %c0_i32, %c0_i32_0 : i32, i32
  }
  func.func @transform_9(%arg0: i32) -> (i32, i32) {
    %c0_i32 = arith.constant 0 : i32
    %c0_i32_0 = arith.constant 0 : i32
    %c0_i32_1 = arith.constant 0 : i32
    return %c0_i32, %c0_i32_0 : i32, i32
  }
  func.func @transform_10(%arg0: i32) -> (i32, i32) {
    %c0_i32 = arith.constant 0 : i32
    %c0_i32_0 = arith.constant 0 : i32
    %c0_i32_1 = arith.constant 0 : i32
    return %c0_i32, %c0_i32_0 : i32, i32
  }
  func.func @transform_11(%arg0: i32) -> (i32, i32) {
    %c0_i32 = arith.constant 0 : i32
    %c0_i32_0 = arith.constant 0 : i32
    %c0_i32_1 = arith.constant 0 : i32
    return %c0_i32, %c0_i32_0 : i32, i32
  }
  func.func @transform_12(%arg0: i32) -> (i32, i32) {
    %c0_i32 = arith.constant 0 : i32
    %c0_i32_0 = arith.constant 0 : i32
    %c0_i32_1 = arith.constant 0 : i32
    return %c0_i32, %c0_i32_0 : i32, i32
  }
  func.func @transform_13(%arg0: i32) -> (i32, i32) {
    %c0_i32 = arith.constant 0 : i32
    %c0_i32_0 = arith.constant 0 : i32
    %c0_i32_1 = arith.constant 0 : i32
    return %c0_i32, %c0_i32_0 : i32, i32
  }
  func.func @transform_14(%arg0: i32) -> (i32, i32) {
    %c0_i32 = arith.constant 0 : i32
    %c0_i32_0 = arith.constant 0 : i32
    %c0_i32_1 = arith.constant 0 : i32
    return %c0_i32, %c0_i32_0 : i32, i32
  }
  func.func @transform_15(%arg0: i32) -> (i32, i32) {
    %c0_i32 = arith.constant 0 : i32
    %c0_i32_0 = arith.constant 0 : i32
    %c0_i32_1 = arith.constant 0 : i32
    return %c0_i32, %c0_i32_0 : i32, i32
  }
  func.func @transform_16(%arg0: i32) -> (i32, i32) {
    %c0_i32 = arith.constant 0 : i32
    %c0_i32_0 = arith.constant 0 : i32
    return %arg0, %c0_i32 : i32, i32
  }
}

module attributes {stable_mosaic.version = 11 : i64} {
  func.func @_vit_layer_kernel(%arg0: i32, %arg1: memref<24x32xf32, #tpu.memory_space<vmem>>, %arg2: memref<24x24xf32, #tpu.memory_space<vmem>>, %arg3: memref<32x96xf32, #tpu.memory_space<vmem>>, %arg4: memref<1x96xf32, #tpu.memory_space<vmem>>, %arg5: memref<32x32xf32, #tpu.memory_space<vmem>>, %arg6: memref<1x32xf32, #tpu.memory_space<vmem>>, %arg7: memref<32x64xf32, #tpu.memory_space<vmem>>, %arg8: memref<1x64xf32, #tpu.memory_space<vmem>>, %arg9: memref<64x32xf32, #tpu.memory_space<vmem>>, %arg10: memref<1x32xf32, #tpu.memory_space<vmem>>, %arg11: memref<1x32xf32, #tpu.memory_space<vmem>>, %arg12: memref<1x32xf32, #tpu.memory_space<vmem>>, %arg13: memref<1x32xf32, #tpu.memory_space<vmem>>, %arg14: memref<1x32xf32, #tpu.memory_space<vmem>>, %arg15: memref<1x32xf32, #tpu.memory_space<vmem>>, %arg16: memref<1x32xf32, #tpu.memory_space<vmem>>, %arg17: memref<24x32xf32, #tpu.memory_space<vmem>>) attributes {dimension_semantics = [#tpu.dimension_semantics<parallel>], iteration_bounds = array<i64: 2>, scalar_prefetch = 0 : i64, scratch_operands = 0 : i64, tpu.core_type = #tpu.core_type<tc>, window_params = [{transform_indices = @transform_0, window_bounds = array<i64: 24, 32>}, {pipeline_mode = #tpu.pipeline_mode<synchronous>, transform_indices = @transform_1, window_bounds = array<i64: 24, 24>}, {pipeline_mode = #tpu.pipeline_mode<synchronous>, transform_indices = @transform_2, window_bounds = array<i64: 32, 96>}, {pipeline_mode = #tpu.pipeline_mode<synchronous>, transform_indices = @transform_3, window_bounds = array<i64: 1, 96>}, {pipeline_mode = #tpu.pipeline_mode<synchronous>, transform_indices = @transform_4, window_bounds = array<i64: 32, 32>}, {pipeline_mode = #tpu.pipeline_mode<synchronous>, transform_indices = @transform_5, window_bounds = array<i64: 1, 32>}, {pipeline_mode = #tpu.pipeline_mode<synchronous>, transform_indices = @transform_6, window_bounds = array<i64: 32, 64>}, {pipeline_mode = #tpu.pipeline_mode<synchronous>, transform_indices = @transform_7, window_bounds = array<i64: 1, 64>}, {pipeline_mode = #tpu.pipeline_mode<synchronous>, transform_indices = @transform_8, window_bounds = array<i64: 64, 32>}, {pipeline_mode = #tpu.pipeline_mode<synchronous>, transform_indices = @transform_9, window_bounds = array<i64: 1, 32>}, {pipeline_mode = #tpu.pipeline_mode<synchronous>, transform_indices = @transform_10, window_bounds = array<i64: 1, 32>}, {pipeline_mode = #tpu.pipeline_mode<synchronous>, transform_indices = @transform_11, window_bounds = array<i64: 1, 32>}, {pipeline_mode = #tpu.pipeline_mode<synchronous>, transform_indices = @transform_12, window_bounds = array<i64: 1, 32>}, {pipeline_mode = #tpu.pipeline_mode<synchronous>, transform_indices = @transform_13, window_bounds = array<i64: 1, 32>}, {pipeline_mode = #tpu.pipeline_mode<synchronous>, transform_indices = @transform_14, window_bounds = array<i64: 1, 32>}, {pipeline_mode = #tpu.pipeline_mode<synchronous>, transform_indices = @transform_15, window_bounds = array<i64: 1, 32>}, {transform_indices = @transform_16, window_bounds = array<i64: 24, 32>}]} {
    %c0 = arith.constant 0 : index
    %c0_0 = arith.constant 0 : index
    %0 = vector.load %arg1[%c0, %c0_0] : memref<24x32xf32, #tpu.memory_space<vmem>>, vector<24x32xf32>
    %c0_1 = arith.constant 0 : index
    %c0_2 = arith.constant 0 : index
    %1 = vector.load %arg11[%c0_1, %c0_2] : memref<1x32xf32, #tpu.memory_space<vmem>>, vector<1x32xf32>
    %c0_3 = arith.constant 0 : index
    %c0_4 = arith.constant 0 : index
    %2 = vector.load %arg12[%c0_3, %c0_4] : memref<1x32xf32, #tpu.memory_space<vmem>>, vector<1x32xf32>
    %cst = arith.constant dense<0.000000e+00> : vector<24xf32>
    %3 = vector.multi_reduction <add>, %0, %cst [1] : vector<24x32xf32> to vector<24xf32>
    %4 = vector.shape_cast %3 : vector<24xf32> to vector<24x1xf32>
    %cst_5 = arith.constant 3.200000e+01 : f32
    %5 = vector.broadcast %cst_5 : f32 to vector<24x1xf32>
    %6 = arith.divf %4, %5 : vector<24x1xf32>
    %7 = vector.broadcast %6 : vector<24x1xf32> to vector<24x32xf32>
    %8 = arith.subf %0, %7 : vector<24x32xf32>
    %9 = arith.mulf %8, %8 : vector<24x32xf32>
    %cst_6 = arith.constant dense<0.000000e+00> : vector<24xf32>
    %10 = vector.multi_reduction <add>, %9, %cst_6 [1] : vector<24x32xf32> to vector<24xf32>
    %11 = vector.shape_cast %10 : vector<24xf32> to vector<24x1xf32>
    %cst_7 = arith.constant 3.200000e+01 : f32
    %12 = vector.broadcast %cst_7 : f32 to vector<24x1xf32>
    %13 = arith.divf %11, %12 : vector<24x1xf32>
    %cst_8 = arith.constant 9.99999996E-13 : f32
    %14 = vector.broadcast %cst_8 : f32 to vector<24x1xf32>
    %15 = arith.addf %13, %14 : vector<24x1xf32>
    %16 = math.rsqrt %15 : vector<24x1xf32>
    %17 = vector.broadcast %16 : vector<24x1xf32> to vector<24x32xf32>
    %18 = arith.mulf %8, %17 : vector<24x32xf32>
    %19 = vector.broadcast %1 : vector<1x32xf32> to vector<24x32xf32>
    %20 = arith.mulf %18, %19 : vector<24x32xf32>
    %21 = vector.broadcast %2 : vector<1x32xf32> to vector<24x32xf32>
    %22 = arith.addf %20, %21 : vector<24x32xf32>
    %c0_9 = arith.constant 0 : index
    %c0_10 = arith.constant 0 : index
    %23 = vector.load %arg3[%c0_9, %c0_10] : memref<32x96xf32, #tpu.memory_space<vmem>>, vector<32x96xf32>
    %cst_11 = arith.constant dense<0.000000e+00> : vector<24x96xf32>
    %24 = tpu.matmul %22, %23, %cst_11 {dimension_numbers = #tpu.dot_dimension_numbers<[1], [0], [0], [1], [0, 0, 1, 1], [], []>} : vector<24x32xf32>, vector<32x96xf32>, vector<24x96xf32> -> vector<24x96xf32>
    %c0_12 = arith.constant 0 : index
    %c0_13 = arith.constant 0 : index
    %25 = vector.load %arg4[%c0_12, %c0_13] : memref<1x96xf32, #tpu.memory_space<vmem>>, vector<1x96xf32>
    %26 = vector.broadcast %25 : vector<1x96xf32> to vector<24x96xf32>
    %27 = arith.addf %24, %26 : vector<24x96xf32>
    %c0_14 = arith.constant 0 : index
    %c0_15 = arith.constant 0 : index
    %28 = vector.load %arg2[%c0_14, %c0_15] : memref<24x24xf32, #tpu.memory_space<vmem>>, vector<24x24xf32>
    %c0_16 = arith.constant 0 : index
    %c0_17 = arith.constant 0 : index
    %29 = vector.load %arg5[%c0_16, %c0_17] : memref<32x32xf32, #tpu.memory_space<vmem>>, vector<32x32xf32>
    %cst_18 = arith.constant 0.000000e+00 : f32
    %30 = vector.broadcast %cst_18 : f32 to vector<24x32xf32>
    %31 = vector.extract_strided_slice %27 {offsets = [0, 0], sizes = [24, 8], strides = [1, 1]} : vector<24x96xf32> to vector<24x8xf32>
    %32 = vector.extract_strided_slice %27 {offsets = [0, 32], sizes = [24, 8], strides = [1, 1]} : vector<24x96xf32> to vector<24x8xf32>
    %33 = vector.extract_strided_slice %27 {offsets = [0, 64], sizes = [24, 8], strides = [1, 1]} : vector<24x96xf32> to vector<24x8xf32>
    %cst_19 = arith.constant dense<0.000000e+00> : vector<24x24xf32>
    %34 = tpu.matmul %31, %32, %cst_19 {dimension_numbers = #tpu.dot_dimension_numbers<[1], [1], [0], [0], [0, 0, 1, 0], [], []>} : vector<24x8xf32>, vector<24x8xf32>, vector<24x24xf32> -> vector<24x24xf32>
    %cst_20 = arith.constant 0.353553385 : f32
    %35 = vector.broadcast %cst_20 : f32 to vector<24x24xf32>
    %36 = arith.mulf %34, %35 : vector<24x24xf32>
    %37 = arith.addf %36, %28 : vector<24x24xf32>
    %cst_21 = arith.constant dense<0xFF800000> : vector<24xf32>
    %38 = vector.multi_reduction <maximumf>, %37, %cst_21 [1] : vector<24x24xf32> to vector<24xf32>
    %39 = vector.shape_cast %38 : vector<24xf32> to vector<24x1xf32>
    %40 = vector.broadcast %39 : vector<24x1xf32> to vector<24x24xf32>
    %41 = arith.subf %37, %40 : vector<24x24xf32>
    %42 = math.exp %41 : vector<24x24xf32>
    %cst_22 = arith.constant dense<0.000000e+00> : vector<24xf32>
    %43 = vector.multi_reduction <add>, %42, %cst_22 [1] : vector<24x24xf32> to vector<24xf32>
    %44 = vector.shape_cast %43 : vector<24xf32> to vector<24x1xf32>
    %45 = tpu.reciprocal %44 {approx = true} : vector<24x1xf32> -> vector<24x1xf32>
    %46 = vector.broadcast %45 : vector<24x1xf32> to vector<24x24xf32>
    %47 = arith.mulf %42, %46 : vector<24x24xf32>
    %cst_23 = arith.constant dense<0.000000e+00> : vector<24x8xf32>
    %48 = tpu.matmul %47, %33, %cst_23 {dimension_numbers = #tpu.dot_dimension_numbers<[1], [0], [0], [1], [0, 0, 1, 1], [], []>} : vector<24x24xf32>, vector<24x8xf32>, vector<24x8xf32> -> vector<24x8xf32>
    %49 = vector.extract_strided_slice %29 {offsets = [0, 0], sizes = [8, 32], strides = [1, 1]} : vector<32x32xf32> to vector<8x32xf32>
    %cst_24 = arith.constant dense<0.000000e+00> : vector<24x32xf32>
    %50 = tpu.matmul %48, %49, %cst_24 {dimension_numbers = #tpu.dot_dimension_numbers<[1], [0], [0], [1], [0, 0, 1, 1], [], []>} : vector<24x8xf32>, vector<8x32xf32>, vector<24x32xf32> -> vector<24x32xf32>
    %51 = arith.addf %30, %50 : vector<24x32xf32>
    %52 = vector.extract_strided_slice %27 {offsets = [0, 8], sizes = [24, 8], strides = [1, 1]} : vector<24x96xf32> to vector<24x8xf32>
    %53 = vector.extract_strided_slice %27 {offsets = [0, 40], sizes = [24, 8], strides = [1, 1]} : vector<24x96xf32> to vector<24x8xf32>
    %54 = vector.extract_strided_slice %27 {offsets = [0, 72], sizes = [24, 8], strides = [1, 1]} : vector<24x96xf32> to vector<24x8xf32>
    %cst_25 = arith.constant dense<0.000000e+00> : vector<24x24xf32>
    %55 = tpu.matmul %52, %53, %cst_25 {dimension_numbers = #tpu.dot_dimension_numbers<[1], [1], [0], [0], [0, 0, 1, 0], [], []>} : vector<24x8xf32>, vector<24x8xf32>, vector<24x24xf32> -> vector<24x24xf32>
    %cst_26 = arith.constant 0.353553385 : f32
    %56 = vector.broadcast %cst_26 : f32 to vector<24x24xf32>
    %57 = arith.mulf %55, %56 : vector<24x24xf32>
    %58 = arith.addf %57, %28 : vector<24x24xf32>
    %cst_27 = arith.constant dense<0xFF800000> : vector<24xf32>
    %59 = vector.multi_reduction <maximumf>, %58, %cst_27 [1] : vector<24x24xf32> to vector<24xf32>
    %60 = vector.shape_cast %59 : vector<24xf32> to vector<24x1xf32>
    %61 = vector.broadcast %60 : vector<24x1xf32> to vector<24x24xf32>
    %62 = arith.subf %58, %61 : vector<24x24xf32>
    %63 = math.exp %62 : vector<24x24xf32>
    %cst_28 = arith.constant dense<0.000000e+00> : vector<24xf32>
    %64 = vector.multi_reduction <add>, %63, %cst_28 [1] : vector<24x24xf32> to vector<24xf32>
    %65 = vector.shape_cast %64 : vector<24xf32> to vector<24x1xf32>
    %66 = tpu.reciprocal %65 {approx = true} : vector<24x1xf32> -> vector<24x1xf32>
    %67 = vector.broadcast %66 : vector<24x1xf32> to vector<24x24xf32>
    %68 = arith.mulf %63, %67 : vector<24x24xf32>
    %cst_29 = arith.constant dense<0.000000e+00> : vector<24x8xf32>
    %69 = tpu.matmul %68, %54, %cst_29 {dimension_numbers = #tpu.dot_dimension_numbers<[1], [0], [0], [1], [0, 0, 1, 1], [], []>} : vector<24x24xf32>, vector<24x8xf32>, vector<24x8xf32> -> vector<24x8xf32>
    %70 = vector.extract_strided_slice %29 {offsets = [8, 0], sizes = [8, 32], strides = [1, 1]} : vector<32x32xf32> to vector<8x32xf32>
    %cst_30 = arith.constant dense<0.000000e+00> : vector<24x32xf32>
    %71 = tpu.matmul %69, %70, %cst_30 {dimension_numbers = #tpu.dot_dimension_numbers<[1], [0], [0], [1], [0, 0, 1, 1], [], []>} : vector<24x8xf32>, vector<8x32xf32>, vector<24x32xf32> -> vector<24x32xf32>
    %72 = arith.addf %51, %71 : vector<24x32xf32>
    %73 = vector.extract_strided_slice %27 {offsets = [0, 16], sizes = [24, 8], strides = [1, 1]} : vector<24x96xf32> to vector<24x8xf32>
    %74 = vector.extract_strided_slice %27 {offsets = [0, 48], sizes = [24, 8], strides = [1, 1]} : vector<24x96xf32> to vector<24x8xf32>
    %75 = vector.extract_strided_slice %27 {offsets = [0, 80], sizes = [24, 8], strides = [1, 1]} : vector<24x96xf32> to vector<24x8xf32>
    %cst_31 = arith.constant dense<0.000000e+00> : vector<24x24xf32>
    %76 = tpu.matmul %73, %74, %cst_31 {dimension_numbers = #tpu.dot_dimension_numbers<[1], [1], [0], [0], [0, 0, 1, 0], [], []>} : vector<24x8xf32>, vector<24x8xf32>, vector<24x24xf32> -> vector<24x24xf32>
    %cst_32 = arith.constant 0.353553385 : f32
    %77 = vector.broadcast %cst_32 : f32 to vector<24x24xf32>
    %78 = arith.mulf %76, %77 : vector<24x24xf32>
    %79 = arith.addf %78, %28 : vector<24x24xf32>
    %cst_33 = arith.constant dense<0xFF800000> : vector<24xf32>
    %80 = vector.multi_reduction <maximumf>, %79, %cst_33 [1] : vector<24x24xf32> to vector<24xf32>
    %81 = vector.shape_cast %80 : vector<24xf32> to vector<24x1xf32>
    %82 = vector.broadcast %81 : vector<24x1xf32> to vector<24x24xf32>
    %83 = arith.subf %79, %82 : vector<24x24xf32>
    %84 = math.exp %83 : vector<24x24xf32>
    %cst_34 = arith.constant dense<0.000000e+00> : vector<24xf32>
    %85 = vector.multi_reduction <add>, %84, %cst_34 [1] : vector<24x24xf32> to vector<24xf32>
    %86 = vector.shape_cast %85 : vector<24xf32> to vector<24x1xf32>
    %87 = tpu.reciprocal %86 {approx = true} : vector<24x1xf32> -> vector<24x1xf32>
    %88 = vector.broadcast %87 : vector<24x1xf32> to vector<24x24xf32>
    %89 = arith.mulf %84, %88 : vector<24x24xf32>
    %cst_35 = arith.constant dense<0.000000e+00> : vector<24x8xf32>
    %90 = tpu.matmul %89, %75, %cst_35 {dimension_numbers = #tpu.dot_dimension_numbers<[1], [0], [0], [1], [0, 0, 1, 1], [], []>} : vector<24x24xf32>, vector<24x8xf32>, vector<24x8xf32> -> vector<24x8xf32>
    %91 = vector.extract_strided_slice %29 {offsets = [16, 0], sizes = [8, 32], strides = [1, 1]} : vector<32x32xf32> to vector<8x32xf32>
    %cst_36 = arith.constant dense<0.000000e+00> : vector<24x32xf32>
    %92 = tpu.matmul %90, %91, %cst_36 {dimension_numbers = #tpu.dot_dimension_numbers<[1], [0], [0], [1], [0, 0, 1, 1], [], []>} : vector<24x8xf32>, vector<8x32xf32>, vector<24x32xf32> -> vector<24x32xf32>
    %93 = arith.addf %72, %92 : vector<24x32xf32>
    %94 = vector.extract_strided_slice %27 {offsets = [0, 24], sizes = [24, 8], strides = [1, 1]} : vector<24x96xf32> to vector<24x8xf32>
    %95 = vector.extract_strided_slice %27 {offsets = [0, 56], sizes = [24, 8], strides = [1, 1]} : vector<24x96xf32> to vector<24x8xf32>
    %96 = vector.extract_strided_slice %27 {offsets = [0, 88], sizes = [24, 8], strides = [1, 1]} : vector<24x96xf32> to vector<24x8xf32>
    %cst_37 = arith.constant dense<0.000000e+00> : vector<24x24xf32>
    %97 = tpu.matmul %94, %95, %cst_37 {dimension_numbers = #tpu.dot_dimension_numbers<[1], [1], [0], [0], [0, 0, 1, 0], [], []>} : vector<24x8xf32>, vector<24x8xf32>, vector<24x24xf32> -> vector<24x24xf32>
    %cst_38 = arith.constant 0.353553385 : f32
    %98 = vector.broadcast %cst_38 : f32 to vector<24x24xf32>
    %99 = arith.mulf %97, %98 : vector<24x24xf32>
    %100 = arith.addf %99, %28 : vector<24x24xf32>
    %cst_39 = arith.constant dense<0xFF800000> : vector<24xf32>
    %101 = vector.multi_reduction <maximumf>, %100, %cst_39 [1] : vector<24x24xf32> to vector<24xf32>
    %102 = vector.shape_cast %101 : vector<24xf32> to vector<24x1xf32>
    %103 = vector.broadcast %102 : vector<24x1xf32> to vector<24x24xf32>
    %104 = arith.subf %100, %103 : vector<24x24xf32>
    %105 = math.exp %104 : vector<24x24xf32>
    %cst_40 = arith.constant dense<0.000000e+00> : vector<24xf32>
    %106 = vector.multi_reduction <add>, %105, %cst_40 [1] : vector<24x24xf32> to vector<24xf32>
    %107 = vector.shape_cast %106 : vector<24xf32> to vector<24x1xf32>
    %108 = tpu.reciprocal %107 {approx = true} : vector<24x1xf32> -> vector<24x1xf32>
    %109 = vector.broadcast %108 : vector<24x1xf32> to vector<24x24xf32>
    %110 = arith.mulf %105, %109 : vector<24x24xf32>
    %cst_41 = arith.constant dense<0.000000e+00> : vector<24x8xf32>
    %111 = tpu.matmul %110, %96, %cst_41 {dimension_numbers = #tpu.dot_dimension_numbers<[1], [0], [0], [1], [0, 0, 1, 1], [], []>} : vector<24x24xf32>, vector<24x8xf32>, vector<24x8xf32> -> vector<24x8xf32>
    %112 = vector.extract_strided_slice %29 {offsets = [24, 0], sizes = [8, 32], strides = [1, 1]} : vector<32x32xf32> to vector<8x32xf32>
    %cst_42 = arith.constant dense<0.000000e+00> : vector<24x32xf32>
    %113 = tpu.matmul %111, %112, %cst_42 {dimension_numbers = #tpu.dot_dimension_numbers<[1], [0], [0], [1], [0, 0, 1, 1], [], []>} : vector<24x8xf32>, vector<8x32xf32>, vector<24x32xf32> -> vector<24x32xf32>
    %114 = arith.addf %93, %113 : vector<24x32xf32>
    %115 = arith.addf %0, %114 : vector<24x32xf32>
    %c0_43 = arith.constant 0 : index
    %c0_44 = arith.constant 0 : index
    %116 = vector.load %arg6[%c0_43, %c0_44] : memref<1x32xf32, #tpu.memory_space<vmem>>, vector<1x32xf32>
    %117 = vector.broadcast %116 : vector<1x32xf32> to vector<24x32xf32>
    %118 = arith.addf %115, %117 : vector<24x32xf32>
    %c0_45 = arith.constant 0 : index
    %c0_46 = arith.constant 0 : index
    %119 = vector.load %arg13[%c0_45, %c0_46] : memref<1x32xf32, #tpu.memory_space<vmem>>, vector<1x32xf32>
    %c0_47 = arith.constant 0 : index
    %c0_48 = arith.constant 0 : index
    %120 = vector.load %arg14[%c0_47, %c0_48] : memref<1x32xf32, #tpu.memory_space<vmem>>, vector<1x32xf32>
    %cst_49 = arith.constant dense<0.000000e+00> : vector<24xf32>
    %121 = vector.multi_reduction <add>, %118, %cst_49 [1] : vector<24x32xf32> to vector<24xf32>
    %122 = vector.shape_cast %121 : vector<24xf32> to vector<24x1xf32>
    %cst_50 = arith.constant 3.200000e+01 : f32
    %123 = vector.broadcast %cst_50 : f32 to vector<24x1xf32>
    %124 = arith.divf %122, %123 : vector<24x1xf32>
    %125 = vector.broadcast %124 : vector<24x1xf32> to vector<24x32xf32>
    %126 = arith.subf %118, %125 : vector<24x32xf32>
    %127 = arith.mulf %126, %126 : vector<24x32xf32>
    %cst_51 = arith.constant dense<0.000000e+00> : vector<24xf32>
    %128 = vector.multi_reduction <add>, %127, %cst_51 [1] : vector<24x32xf32> to vector<24xf32>
    %129 = vector.shape_cast %128 : vector<24xf32> to vector<24x1xf32>
    %cst_52 = arith.constant 3.200000e+01 : f32
    %130 = vector.broadcast %cst_52 : f32 to vector<24x1xf32>
    %131 = arith.divf %129, %130 : vector<24x1xf32>
    %cst_53 = arith.constant 9.99999996E-13 : f32
    %132 = vector.broadcast %cst_53 : f32 to vector<24x1xf32>
    %133 = arith.addf %131, %132 : vector<24x1xf32>
    %134 = math.rsqrt %133 : vector<24x1xf32>
    %135 = vector.broadcast %134 : vector<24x1xf32> to vector<24x32xf32>
    %136 = arith.mulf %126, %135 : vector<24x32xf32>
    %137 = vector.broadcast %119 : vector<1x32xf32> to vector<24x32xf32>
    %138 = arith.mulf %136, %137 : vector<24x32xf32>
    %139 = vector.broadcast %120 : vector<1x32xf32> to vector<24x32xf32>
    %140 = arith.addf %138, %139 : vector<24x32xf32>
    %c0_54 = arith.constant 0 : index
    %c0_55 = arith.constant 0 : index
    %141 = vector.load %arg7[%c0_54, %c0_55] : memref<32x64xf32, #tpu.memory_space<vmem>>, vector<32x64xf32>
    %cst_56 = arith.constant dense<0.000000e+00> : vector<24x64xf32>
    %142 = tpu.matmul %140, %141, %cst_56 {dimension_numbers = #tpu.dot_dimension_numbers<[1], [0], [0], [1], [0, 0, 1, 1], [], []>} : vector<24x32xf32>, vector<32x64xf32>, vector<24x64xf32> -> vector<24x64xf32>
    %c0_57 = arith.constant 0 : index
    %c0_58 = arith.constant 0 : index
    %143 = vector.load %arg8[%c0_57, %c0_58] : memref<1x64xf32, #tpu.memory_space<vmem>>, vector<1x64xf32>
    %144 = vector.broadcast %143 : vector<1x64xf32> to vector<24x64xf32>
    %145 = arith.addf %142, %144 : vector<24x64xf32>
    %146 = arith.mulf %145, %145 : vector<24x64xf32>
    %147 = arith.mulf %145, %146 : vector<24x64xf32>
    %cst_59 = arith.constant 4.471500e-02 : f32
    %148 = vector.broadcast %cst_59 : f32 to vector<24x64xf32>
    %149 = arith.mulf %148, %147 : vector<24x64xf32>
    %150 = arith.addf %145, %149 : vector<24x64xf32>
    %cst_60 = arith.constant 0.797884583 : f32
    %151 = vector.broadcast %cst_60 : f32 to vector<24x64xf32>
    %152 = arith.mulf %151, %150 : vector<24x64xf32>
    %153 = math.tanh %152 : vector<24x64xf32>
    %cst_61 = arith.constant 1.000000e+00 : f32
    %154 = vector.broadcast %cst_61 : f32 to vector<24x64xf32>
    %155 = arith.addf %154, %153 : vector<24x64xf32>
    %cst_62 = arith.constant 5.000000e-01 : f32
    %156 = vector.broadcast %cst_62 : f32 to vector<24x64xf32>
    %157 = arith.mulf %156, %155 : vector<24x64xf32>
    %158 = arith.mulf %145, %157 : vector<24x64xf32>
    %c0_63 = arith.constant 0 : index
    %c0_64 = arith.constant 0 : index
    %159 = vector.load %arg9[%c0_63, %c0_64] : memref<64x32xf32, #tpu.memory_space<vmem>>, vector<64x32xf32>
    %cst_65 = arith.constant dense<0.000000e+00> : vector<24x32xf32>
    %160 = tpu.matmul %158, %159, %cst_65 {dimension_numbers = #tpu.dot_dimension_numbers<[1], [0], [0], [1], [0, 0, 1, 1], [], []>} : vector<24x64xf32>, vector<64x32xf32>, vector<24x32xf32> -> vector<24x32xf32>
    %c0_66 = arith.constant 0 : index
    %c0_67 = arith.constant 0 : index
    %161 = vector.load %arg10[%c0_66, %c0_67] : memref<1x32xf32, #tpu.memory_space<vmem>>, vector<1x32xf32>
    %162 = vector.broadcast %161 : vector<1x32xf32> to vector<24x32xf32>
    %163 = arith.addf %160, %162 : vector<24x32xf32>
    %164 = arith.addf %118, %163 : vector<24x32xf32>
    %c0_68 = arith.constant 0 : index
    %c0_69 = arith.constant 0 : index
    %165 = vector.load %arg17[%c0_68, %c0_69] : memref<24x32xf32, #tpu.memory_space<vmem>>, vector<24x32xf32>
    tpu.vector_store %arg17[%c0_68, %c0_69], %164 {strides = array<i32>} : memref<24x32xf32, #tpu.memory_space<vmem>>, vector<24x32xf32>,
    return
  }
  func.func @transform_0(%arg0: i32) -> (i32, i32) {
    %c0_i32 = arith.constant 0 : i32
    %c0_i32_0 = arith.constant 0 : i32
    return %arg0, %c0_i32 : i32, i32
  }
  func.func @transform_1(%arg0: i32) -> (i32, i32) {
    %c0_i32 = arith.constant 0 : i32
    %c0_i32_0 = arith.constant 0 : i32
    %c0_i32_1 = arith.constant 0 : i32
    return %c0_i32, %c0_i32_0 : i32, i32
  }
  func.func @transform_2(%arg0: i32) -> (i32, i32) {
    %c0_i32 = arith.constant 0 : i32
    %c0_i32_0 = arith.constant 0 : i32
    %c0_i32_1 = arith.constant 0 : i32
    return %c0_i32, %c0_i32_0 : i32, i32
  }
  func.func @transform_3(%arg0: i32) -> (i32, i32) {
    %c0_i32 = arith.constant 0 : i32
    %c0_i32_0 = arith.constant 0 : i32
    %c0_i32_1 = arith.constant 0 : i32
    return %c0_i32, %c0_i32_0 : i32, i32
  }
  func.func @transform_4(%arg0: i32) -> (i32, i32) {
    %c0_i32 = arith.constant 0 : i32
    %c0_i32_0 = arith.constant 0 : i32
    %c0_i32_1 = arith.constant 0 : i32
    return %c0_i32, %c0_i32_0 : i32, i32
  }
  func.func @transform_5(%arg0: i32) -> (i32, i32) {
    %c0_i32 = arith.constant 0 : i32
    %c0_i32_0 = arith.constant 0 : i32
    %c0_i32_1 = arith.constant 0 : i32
    return %c0_i32, %c0_i32_0 : i32, i32
  }
  func.func @transform_6(%arg0: i32) -> (i32, i32) {
    %c0_i32 = arith.constant 0 : i32
    %c0_i32_0 = arith.constant 0 : i32
    %c0_i32_1 = arith.constant 0 : i32
    return %c0_i32, %c0_i32_0 : i32, i32
  }
  func.func @transform_7(%arg0: i32) -> (i32, i32) {
    %c0_i32 = arith.constant 0 : i32
    %c0_i32_0 = arith.constant 0 : i32
    %c0_i32_1 = arith.constant 0 : i32
    return %c0_i32, %c0_i32_0 : i32, i32
  }
  func.func @transform_8(%arg0: i32) -> (i32, i32) {
    %c0_i32 = arith.constant 0 : i32
    %c0_i32_0 = arith.constant 0 : i32
    %c0_i32_1 = arith.constant 0 : i32
    return %c0_i32, %c0_i32_0 : i32, i32
  }
  func.func @transform_9(%arg0: i32) -> (i32, i32) {
    %c0_i32 = arith.constant 0 : i32
    %c0_i32_0 = arith.constant 0 : i32
    %c0_i32_1 = arith.constant 0 : i32
    return %c0_i32, %c0_i32_0 : i32, i32
  }
  func.func @transform_10(%arg0: i32) -> (i32, i32) {
    %c0_i32 = arith.constant 0 : i32
    %c0_i32_0 = arith.constant 0 : i32
    %c0_i32_1 = arith.constant 0 : i32
    return %c0_i32, %c0_i32_0 : i32, i32
  }
  func.func @transform_11(%arg0: i32) -> (i32, i32) {
    %c0_i32 = arith.constant 0 : i32
    %c0_i32_0 = arith.constant 0 : i32
    %c0_i32_1 = arith.constant 0 : i32
    return %c0_i32, %c0_i32_0 : i32, i32
  }
  func.func @transform_12(%arg0: i32) -> (i32, i32) {
    %c0_i32 = arith.constant 0 : i32
    %c0_i32_0 = arith.constant 0 : i32
    %c0_i32_1 = arith.constant 0 : i32
    return %c0_i32, %c0_i32_0 : i32, i32
  }
  func.func @transform_13(%arg0: i32) -> (i32, i32) {
    %c0_i32 = arith.constant 0 : i32
    %c0_i32_0 = arith.constant 0 : i32
    %c0_i32_1 = arith.constant 0 : i32
    return %c0_i32, %c0_i32_0 : i32, i32
  }
  func.func @transform_14(%arg0: i32) -> (i32, i32) {
    %c0_i32 = arith.constant 0 : i32
    %c0_i32_0 = arith.constant 0 : i32
    %c0_i32_1 = arith.constant 0 : i32
    return %c0_i32, %c0_i32_0 : i32, i32
  }
  func.func @transform_15(%arg0: i32) -> (i32, i32) {
    %c0_i32 = arith.constant 0 : i32
    %c0_i32_0 = arith.constant 0 : i32
    %c0_i32_1 = arith.constant 0 : i32
    return %c0_i32, %c0_i32_0 : i32, i32
  }
  func.func @transform_16(%arg0: i32) -> (i32, i32) {
    %c0_i32 = arith.constant 0 : i32
    %c0_i32_0 = arith.constant 0 : i32
    return %arg0, %c0_i32 : i32, i32
  }
}

module attributes {stable_mosaic.version = 11 : i64} {
  func.func @_vit_layer_kernel(%arg0: i32, %arg1: memref<24x32xf32, #tpu.memory_space<vmem>>, %arg2: memref<24x24xf32, #tpu.memory_space<vmem>>, %arg3: memref<32x96xf32, #tpu.memory_space<vmem>>, %arg4: memref<1x96xf32, #tpu.memory_space<vmem>>, %arg5: memref<32x32xf32, #tpu.memory_space<vmem>>, %arg6: memref<1x32xf32, #tpu.memory_space<vmem>>, %arg7: memref<32x64xf32, #tpu.memory_space<vmem>>, %arg8: memref<1x64xf32, #tpu.memory_space<vmem>>, %arg9: memref<64x32xf32, #tpu.memory_space<vmem>>, %arg10: memref<1x32xf32, #tpu.memory_space<vmem>>, %arg11: memref<1x32xf32, #tpu.memory_space<vmem>>, %arg12: memref<1x32xf32, #tpu.memory_space<vmem>>, %arg13: memref<1x32xf32, #tpu.memory_space<vmem>>, %arg14: memref<1x32xf32, #tpu.memory_space<vmem>>, %arg15: memref<1x32xf32, #tpu.memory_space<vmem>>, %arg16: memref<1x32xf32, #tpu.memory_space<vmem>>, %arg17: memref<24x32xf32, #tpu.memory_space<vmem>>) attributes {dimension_semantics = [#tpu.dimension_semantics<parallel>], iteration_bounds = array<i64: 2>, scalar_prefetch = 0 : i64, scratch_operands = 0 : i64, tpu.core_type = #tpu.core_type<tc>, window_params = [{transform_indices = @transform_0, window_bounds = array<i64: 24, 32>}, {pipeline_mode = #tpu.pipeline_mode<synchronous>, transform_indices = @transform_1, window_bounds = array<i64: 24, 24>}, {pipeline_mode = #tpu.pipeline_mode<synchronous>, transform_indices = @transform_2, window_bounds = array<i64: 32, 96>}, {pipeline_mode = #tpu.pipeline_mode<synchronous>, transform_indices = @transform_3, window_bounds = array<i64: 1, 96>}, {pipeline_mode = #tpu.pipeline_mode<synchronous>, transform_indices = @transform_4, window_bounds = array<i64: 32, 32>}, {pipeline_mode = #tpu.pipeline_mode<synchronous>, transform_indices = @transform_5, window_bounds = array<i64: 1, 32>}, {pipeline_mode = #tpu.pipeline_mode<synchronous>, transform_indices = @transform_6, window_bounds = array<i64: 32, 64>}, {pipeline_mode = #tpu.pipeline_mode<synchronous>, transform_indices = @transform_7, window_bounds = array<i64: 1, 64>}, {pipeline_mode = #tpu.pipeline_mode<synchronous>, transform_indices = @transform_8, window_bounds = array<i64: 64, 32>}, {pipeline_mode = #tpu.pipeline_mode<synchronous>, transform_indices = @transform_9, window_bounds = array<i64: 1, 32>}, {pipeline_mode = #tpu.pipeline_mode<synchronous>, transform_indices = @transform_10, window_bounds = array<i64: 1, 32>}, {pipeline_mode = #tpu.pipeline_mode<synchronous>, transform_indices = @transform_11, window_bounds = array<i64: 1, 32>}, {pipeline_mode = #tpu.pipeline_mode<synchronous>, transform_indices = @transform_12, window_bounds = array<i64: 1, 32>}, {pipeline_mode = #tpu.pipeline_mode<synchronous>, transform_indices = @transform_13, window_bounds = array<i64: 1, 32>}, {pipeline_mode = #tpu.pipeline_mode<synchronous>, transform_indices = @transform_14, window_bounds = array<i64: 1, 32>}, {pipeline_mode = #tpu.pipeline_mode<synchronous>, transform_indices = @transform_15, window_bounds = array<i64: 1, 32>}, {transform_indices = @transform_16, window_bounds = array<i64: 24, 32>}]} {
    %c0 = arith.constant 0 : index
    %c0_0 = arith.constant 0 : index
    %0 = vector.load %arg1[%c0, %c0_0] : memref<24x32xf32, #tpu.memory_space<vmem>>, vector<24x32xf32>
    %c0_1 = arith.constant 0 : index
    %c0_2 = arith.constant 0 : index
    %1 = vector.load %arg11[%c0_1, %c0_2] : memref<1x32xf32, #tpu.memory_space<vmem>>, vector<1x32xf32>
    %c0_3 = arith.constant 0 : index
    %c0_4 = arith.constant 0 : index
    %2 = vector.load %arg12[%c0_3, %c0_4] : memref<1x32xf32, #tpu.memory_space<vmem>>, vector<1x32xf32>
    %cst = arith.constant dense<0.000000e+00> : vector<24xf32>
    %3 = vector.multi_reduction <add>, %0, %cst [1] : vector<24x32xf32> to vector<24xf32>
    %4 = vector.shape_cast %3 : vector<24xf32> to vector<24x1xf32>
    %cst_5 = arith.constant 3.200000e+01 : f32
    %5 = vector.broadcast %cst_5 : f32 to vector<24x1xf32>
    %6 = arith.divf %4, %5 : vector<24x1xf32>
    %7 = vector.broadcast %6 : vector<24x1xf32> to vector<24x32xf32>
    %8 = arith.subf %0, %7 : vector<24x32xf32>
    %9 = arith.mulf %8, %8 : vector<24x32xf32>
    %cst_6 = arith.constant dense<0.000000e+00> : vector<24xf32>
    %10 = vector.multi_reduction <add>, %9, %cst_6 [1] : vector<24x32xf32> to vector<24xf32>
    %11 = vector.shape_cast %10 : vector<24xf32> to vector<24x1xf32>
    %cst_7 = arith.constant 3.200000e+01 : f32
    %12 = vector.broadcast %cst_7 : f32 to vector<24x1xf32>
    %13 = arith.divf %11, %12 : vector<24x1xf32>
    %cst_8 = arith.constant 9.99999996E-13 : f32
    %14 = vector.broadcast %cst_8 : f32 to vector<24x1xf32>
    %15 = arith.addf %13, %14 : vector<24x1xf32>
    %16 = math.rsqrt %15 : vector<24x1xf32>
    %17 = vector.broadcast %16 : vector<24x1xf32> to vector<24x32xf32>
    %18 = arith.mulf %8, %17 : vector<24x32xf32>
    %19 = vector.broadcast %1 : vector<1x32xf32> to vector<24x32xf32>
    %20 = arith.mulf %18, %19 : vector<24x32xf32>
    %21 = vector.broadcast %2 : vector<1x32xf32> to vector<24x32xf32>
    %22 = arith.addf %20, %21 : vector<24x32xf32>
    %c0_9 = arith.constant 0 : index
    %c0_10 = arith.constant 0 : index
    %23 = vector.load %arg3[%c0_9, %c0_10] : memref<32x96xf32, #tpu.memory_space<vmem>>, vector<32x96xf32>
    %cst_11 = arith.constant dense<0.000000e+00> : vector<24x96xf32>
    %24 = tpu.matmul %22, %23, %cst_11 {dimension_numbers = #tpu.dot_dimension_numbers<[1], [0], [0], [1], [0, 0, 1, 1], [], []>} : vector<24x32xf32>, vector<32x96xf32>, vector<24x96xf32> -> vector<24x96xf32>
    %c0_12 = arith.constant 0 : index
    %c0_13 = arith.constant 0 : index
    %25 = vector.load %arg4[%c0_12, %c0_13] : memref<1x96xf32, #tpu.memory_space<vmem>>, vector<1x96xf32>
    %26 = vector.broadcast %25 : vector<1x96xf32> to vector<24x96xf32>
    %27 = arith.addf %24, %26 : vector<24x96xf32>
    %c0_14 = arith.constant 0 : index
    %c0_15 = arith.constant 0 : index
    %28 = vector.load %arg2[%c0_14, %c0_15] : memref<24x24xf32, #tpu.memory_space<vmem>>, vector<24x24xf32>
    %c0_16 = arith.constant 0 : index
    %c0_17 = arith.constant 0 : index
    %29 = vector.load %arg5[%c0_16, %c0_17] : memref<32x32xf32, #tpu.memory_space<vmem>>, vector<32x32xf32>
    %cst_18 = arith.constant 0.000000e+00 : f32
    %30 = vector.broadcast %cst_18 : f32 to vector<24x32xf32>
    %31 = vector.extract_strided_slice %27 {offsets = [0, 0], sizes = [24, 8], strides = [1, 1]} : vector<24x96xf32> to vector<24x8xf32>
    %32 = vector.extract_strided_slice %27 {offsets = [0, 32], sizes = [24, 8], strides = [1, 1]} : vector<24x96xf32> to vector<24x8xf32>
    %33 = vector.extract_strided_slice %27 {offsets = [0, 64], sizes = [24, 8], strides = [1, 1]} : vector<24x96xf32> to vector<24x8xf32>
    %cst_19 = arith.constant dense<0.000000e+00> : vector<24x24xf32>
    %34 = tpu.matmul %31, %32, %cst_19 {dimension_numbers = #tpu.dot_dimension_numbers<[1], [1], [0], [0], [0, 0, 1, 0], [], []>} : vector<24x8xf32>, vector<24x8xf32>, vector<24x24xf32> -> vector<24x24xf32>
    %cst_20 = arith.constant 0.353553385 : f32
    %35 = vector.broadcast %cst_20 : f32 to vector<24x24xf32>
    %36 = arith.mulf %34, %35 : vector<24x24xf32>
    %37 = arith.addf %36, %28 : vector<24x24xf32>
    %cst_21 = arith.constant dense<0xFF800000> : vector<24xf32>
    %38 = vector.multi_reduction <maximumf>, %37, %cst_21 [1] : vector<24x24xf32> to vector<24xf32>
    %39 = vector.shape_cast %38 : vector<24xf32> to vector<24x1xf32>
    %40 = vector.broadcast %39 : vector<24x1xf32> to vector<24x24xf32>
    %41 = arith.subf %37, %40 : vector<24x24xf32>
    %42 = math.exp %41 : vector<24x24xf32>
    %cst_22 = arith.constant dense<0.000000e+00> : vector<24xf32>
    %43 = vector.multi_reduction <add>, %42, %cst_22 [1] : vector<24x24xf32> to vector<24xf32>
    %44 = vector.shape_cast %43 : vector<24xf32> to vector<24x1xf32>
    %45 = tpu.reciprocal %44 {approx = true} : vector<24x1xf32> -> vector<24x1xf32>
    %46 = vector.broadcast %45 : vector<24x1xf32> to vector<24x24xf32>
    %47 = arith.mulf %42, %46 : vector<24x24xf32>
    %cst_23 = arith.constant dense<0.000000e+00> : vector<24x8xf32>
    %48 = tpu.matmul %47, %33, %cst_23 {dimension_numbers = #tpu.dot_dimension_numbers<[1], [0], [0], [1], [0, 0, 1, 1], [], []>} : vector<24x24xf32>, vector<24x8xf32>, vector<24x8xf32> -> vector<24x8xf32>
    %49 = vector.extract_strided_slice %29 {offsets = [0, 0], sizes = [8, 32], strides = [1, 1]} : vector<32x32xf32> to vector<8x32xf32>
    %cst_24 = arith.constant dense<0.000000e+00> : vector<24x32xf32>
    %50 = tpu.matmul %48, %49, %cst_24 {dimension_numbers = #tpu.dot_dimension_numbers<[1], [0], [0], [1], [0, 0, 1, 1], [], []>} : vector<24x8xf32>, vector<8x32xf32>, vector<24x32xf32> -> vector<24x32xf32>
    %51 = arith.addf %30, %50 : vector<24x32xf32>
    %52 = vector.extract_strided_slice %27 {offsets = [0, 8], sizes = [24, 8], strides = [1, 1]} : vector<24x96xf32> to vector<24x8xf32>
    %53 = vector.extract_strided_slice %27 {offsets = [0, 40], sizes = [24, 8], strides = [1, 1]} : vector<24x96xf32> to vector<24x8xf32>
    %54 = vector.extract_strided_slice %27 {offsets = [0, 72], sizes = [24, 8], strides = [1, 1]} : vector<24x96xf32> to vector<24x8xf32>
    %cst_25 = arith.constant dense<0.000000e+00> : vector<24x24xf32>
    %55 = tpu.matmul %52, %53, %cst_25 {dimension_numbers = #tpu.dot_dimension_numbers<[1], [1], [0], [0], [0, 0, 1, 0], [], []>} : vector<24x8xf32>, vector<24x8xf32>, vector<24x24xf32> -> vector<24x24xf32>
    %cst_26 = arith.constant 0.353553385 : f32
    %56 = vector.broadcast %cst_26 : f32 to vector<24x24xf32>
    %57 = arith.mulf %55, %56 : vector<24x24xf32>
    %58 = arith.addf %57, %28 : vector<24x24xf32>
    %cst_27 = arith.constant dense<0xFF800000> : vector<24xf32>
    %59 = vector.multi_reduction <maximumf>, %58, %cst_27 [1] : vector<24x24xf32> to vector<24xf32>
    %60 = vector.shape_cast %59 : vector<24xf32> to vector<24x1xf32>
    %61 = vector.broadcast %60 : vector<24x1xf32> to vector<24x24xf32>
    %62 = arith.subf %58, %61 : vector<24x24xf32>
    %63 = math.exp %62 : vector<24x24xf32>
    %cst_28 = arith.constant dense<0.000000e+00> : vector<24xf32>
    %64 = vector.multi_reduction <add>, %63, %cst_28 [1] : vector<24x24xf32> to vector<24xf32>
    %65 = vector.shape_cast %64 : vector<24xf32> to vector<24x1xf32>
    %66 = tpu.reciprocal %65 {approx = true} : vector<24x1xf32> -> vector<24x1xf32>
    %67 = vector.broadcast %66 : vector<24x1xf32> to vector<24x24xf32>
    %68 = arith.mulf %63, %67 : vector<24x24xf32>
    %cst_29 = arith.constant dense<0.000000e+00> : vector<24x8xf32>
    %69 = tpu.matmul %68, %54, %cst_29 {dimension_numbers = #tpu.dot_dimension_numbers<[1], [0], [0], [1], [0, 0, 1, 1], [], []>} : vector<24x24xf32>, vector<24x8xf32>, vector<24x8xf32> -> vector<24x8xf32>
    %70 = vector.extract_strided_slice %29 {offsets = [8, 0], sizes = [8, 32], strides = [1, 1]} : vector<32x32xf32> to vector<8x32xf32>
    %cst_30 = arith.constant dense<0.000000e+00> : vector<24x32xf32>
    %71 = tpu.matmul %69, %70, %cst_30 {dimension_numbers = #tpu.dot_dimension_numbers<[1], [0], [0], [1], [0, 0, 1, 1], [], []>} : vector<24x8xf32>, vector<8x32xf32>, vector<24x32xf32> -> vector<24x32xf32>
    %72 = arith.addf %51, %71 : vector<24x32xf32>
    %73 = vector.extract_strided_slice %27 {offsets = [0, 16], sizes = [24, 8], strides = [1, 1]} : vector<24x96xf32> to vector<24x8xf32>
    %74 = vector.extract_strided_slice %27 {offsets = [0, 48], sizes = [24, 8], strides = [1, 1]} : vector<24x96xf32> to vector<24x8xf32>
    %75 = vector.extract_strided_slice %27 {offsets = [0, 80], sizes = [24, 8], strides = [1, 1]} : vector<24x96xf32> to vector<24x8xf32>
    %cst_31 = arith.constant dense<0.000000e+00> : vector<24x24xf32>
    %76 = tpu.matmul %73, %74, %cst_31 {dimension_numbers = #tpu.dot_dimension_numbers<[1], [1], [0], [0], [0, 0, 1, 0], [], []>} : vector<24x8xf32>, vector<24x8xf32>, vector<24x24xf32> -> vector<24x24xf32>
    %cst_32 = arith.constant 0.353553385 : f32
    %77 = vector.broadcast %cst_32 : f32 to vector<24x24xf32>
    %78 = arith.mulf %76, %77 : vector<24x24xf32>
    %79 = arith.addf %78, %28 : vector<24x24xf32>
    %cst_33 = arith.constant dense<0xFF800000> : vector<24xf32>
    %80 = vector.multi_reduction <maximumf>, %79, %cst_33 [1] : vector<24x24xf32> to vector<24xf32>
    %81 = vector.shape_cast %80 : vector<24xf32> to vector<24x1xf32>
    %82 = vector.broadcast %81 : vector<24x1xf32> to vector<24x24xf32>
    %83 = arith.subf %79, %82 : vector<24x24xf32>
    %84 = math.exp %83 : vector<24x24xf32>
    %cst_34 = arith.constant dense<0.000000e+00> : vector<24xf32>
    %85 = vector.multi_reduction <add>, %84, %cst_34 [1] : vector<24x24xf32> to vector<24xf32>
    %86 = vector.shape_cast %85 : vector<24xf32> to vector<24x1xf32>
    %87 = tpu.reciprocal %86 {approx = true} : vector<24x1xf32> -> vector<24x1xf32>
    %88 = vector.broadcast %87 : vector<24x1xf32> to vector<24x24xf32>
    %89 = arith.mulf %84, %88 : vector<24x24xf32>
    %cst_35 = arith.constant dense<0.000000e+00> : vector<24x8xf32>
    %90 = tpu.matmul %89, %75, %cst_35 {dimension_numbers = #tpu.dot_dimension_numbers<[1], [0], [0], [1], [0, 0, 1, 1], [], []>} : vector<24x24xf32>, vector<24x8xf32>, vector<24x8xf32> -> vector<24x8xf32>
    %91 = vector.extract_strided_slice %29 {offsets = [16, 0], sizes = [8, 32], strides = [1, 1]} : vector<32x32xf32> to vector<8x32xf32>
    %cst_36 = arith.constant dense<0.000000e+00> : vector<24x32xf32>
    %92 = tpu.matmul %90, %91, %cst_36 {dimension_numbers = #tpu.dot_dimension_numbers<[1], [0], [0], [1], [0, 0, 1, 1], [], []>} : vector<24x8xf32>, vector<8x32xf32>, vector<24x32xf32> -> vector<24x32xf32>
    %93 = arith.addf %72, %92 : vector<24x32xf32>
    %94 = vector.extract_strided_slice %27 {offsets = [0, 24], sizes = [24, 8], strides = [1, 1]} : vector<24x96xf32> to vector<24x8xf32>
    %95 = vector.extract_strided_slice %27 {offsets = [0, 56], sizes = [24, 8], strides = [1, 1]} : vector<24x96xf32> to vector<24x8xf32>
    %96 = vector.extract_strided_slice %27 {offsets = [0, 88], sizes = [24, 8], strides = [1, 1]} : vector<24x96xf32> to vector<24x8xf32>
    %cst_37 = arith.constant dense<0.000000e+00> : vector<24x24xf32>
    %97 = tpu.matmul %94, %95, %cst_37 {dimension_numbers = #tpu.dot_dimension_numbers<[1], [1], [0], [0], [0, 0, 1, 0], [], []>} : vector<24x8xf32>, vector<24x8xf32>, vector<24x24xf32> -> vector<24x24xf32>
    %cst_38 = arith.constant 0.353553385 : f32
    %98 = vector.broadcast %cst_38 : f32 to vector<24x24xf32>
    %99 = arith.mulf %97, %98 : vector<24x24xf32>
    %100 = arith.addf %99, %28 : vector<24x24xf32>
    %cst_39 = arith.constant dense<0xFF800000> : vector<24xf32>
    %101 = vector.multi_reduction <maximumf>, %100, %cst_39 [1] : vector<24x24xf32> to vector<24xf32>
    %102 = vector.shape_cast %101 : vector<24xf32> to vector<24x1xf32>
    %103 = vector.broadcast %102 : vector<24x1xf32> to vector<24x24xf32>
    %104 = arith.subf %100, %103 : vector<24x24xf32>
    %105 = math.exp %104 : vector<24x24xf32>
    %cst_40 = arith.constant dense<0.000000e+00> : vector<24xf32>
    %106 = vector.multi_reduction <add>, %105, %cst_40 [1] : vector<24x24xf32> to vector<24xf32>
    %107 = vector.shape_cast %106 : vector<24xf32> to vector<24x1xf32>
    %108 = tpu.reciprocal %107 {approx = true} : vector<24x1xf32> -> vector<24x1xf32>
    %109 = vector.broadcast %108 : vector<24x1xf32> to vector<24x24xf32>
    %110 = arith.mulf %105, %109 : vector<24x24xf32>
    %cst_41 = arith.constant dense<0.000000e+00> : vector<24x8xf32>
    %111 = tpu.matmul %110, %96, %cst_41 {dimension_numbers = #tpu.dot_dimension_numbers<[1], [0], [0], [1], [0, 0, 1, 1], [], []>} : vector<24x24xf32>, vector<24x8xf32>, vector<24x8xf32> -> vector<24x8xf32>
    %112 = vector.extract_strided_slice %29 {offsets = [24, 0], sizes = [8, 32], strides = [1, 1]} : vector<32x32xf32> to vector<8x32xf32>
    %cst_42 = arith.constant dense<0.000000e+00> : vector<24x32xf32>
    %113 = tpu.matmul %111, %112, %cst_42 {dimension_numbers = #tpu.dot_dimension_numbers<[1], [0], [0], [1], [0, 0, 1, 1], [], []>} : vector<24x8xf32>, vector<8x32xf32>, vector<24x32xf32> -> vector<24x32xf32>
    %114 = arith.addf %93, %113 : vector<24x32xf32>
    %115 = arith.addf %0, %114 : vector<24x32xf32>
    %c0_43 = arith.constant 0 : index
    %c0_44 = arith.constant 0 : index
    %116 = vector.load %arg6[%c0_43, %c0_44] : memref<1x32xf32, #tpu.memory_space<vmem>>, vector<1x32xf32>
    %117 = vector.broadcast %116 : vector<1x32xf32> to vector<24x32xf32>
    %118 = arith.addf %115, %117 : vector<24x32xf32>
    %c0_45 = arith.constant 0 : index
    %c0_46 = arith.constant 0 : index
    %119 = vector.load %arg13[%c0_45, %c0_46] : memref<1x32xf32, #tpu.memory_space<vmem>>, vector<1x32xf32>
    %c0_47 = arith.constant 0 : index
    %c0_48 = arith.constant 0 : index
    %120 = vector.load %arg14[%c0_47, %c0_48] : memref<1x32xf32, #tpu.memory_space<vmem>>, vector<1x32xf32>
    %cst_49 = arith.constant dense<0.000000e+00> : vector<24xf32>
    %121 = vector.multi_reduction <add>, %118, %cst_49 [1] : vector<24x32xf32> to vector<24xf32>
    %122 = vector.shape_cast %121 : vector<24xf32> to vector<24x1xf32>
    %cst_50 = arith.constant 3.200000e+01 : f32
    %123 = vector.broadcast %cst_50 : f32 to vector<24x1xf32>
    %124 = arith.divf %122, %123 : vector<24x1xf32>
    %125 = vector.broadcast %124 : vector<24x1xf32> to vector<24x32xf32>
    %126 = arith.subf %118, %125 : vector<24x32xf32>
    %127 = arith.mulf %126, %126 : vector<24x32xf32>
    %cst_51 = arith.constant dense<0.000000e+00> : vector<24xf32>
    %128 = vector.multi_reduction <add>, %127, %cst_51 [1] : vector<24x32xf32> to vector<24xf32>
    %129 = vector.shape_cast %128 : vector<24xf32> to vector<24x1xf32>
    %cst_52 = arith.constant 3.200000e+01 : f32
    %130 = vector.broadcast %cst_52 : f32 to vector<24x1xf32>
    %131 = arith.divf %129, %130 : vector<24x1xf32>
    %cst_53 = arith.constant 9.99999996E-13 : f32
    %132 = vector.broadcast %cst_53 : f32 to vector<24x1xf32>
    %133 = arith.addf %131, %132 : vector<24x1xf32>
    %134 = math.rsqrt %133 : vector<24x1xf32>
    %135 = vector.broadcast %134 : vector<24x1xf32> to vector<24x32xf32>
    %136 = arith.mulf %126, %135 : vector<24x32xf32>
    %137 = vector.broadcast %119 : vector<1x32xf32> to vector<24x32xf32>
    %138 = arith.mulf %136, %137 : vector<24x32xf32>
    %139 = vector.broadcast %120 : vector<1x32xf32> to vector<24x32xf32>
    %140 = arith.addf %138, %139 : vector<24x32xf32>
    %c0_54 = arith.constant 0 : index
    %c0_55 = arith.constant 0 : index
    %141 = vector.load %arg7[%c0_54, %c0_55] : memref<32x64xf32, #tpu.memory_space<vmem>>, vector<32x64xf32>
    %cst_56 = arith.constant dense<0.000000e+00> : vector<24x64xf32>
    %142 = tpu.matmul %140, %141, %cst_56 {dimension_numbers = #tpu.dot_dimension_numbers<[1], [0], [0], [1], [0, 0, 1, 1], [], []>} : vector<24x32xf32>, vector<32x64xf32>, vector<24x64xf32> -> vector<24x64xf32>
    %c0_57 = arith.constant 0 : index
    %c0_58 = arith.constant 0 : index
    %143 = vector.load %arg8[%c0_57, %c0_58] : memref<1x64xf32, #tpu.memory_space<vmem>>, vector<1x64xf32>
    %144 = vector.broadcast %143 : vector<1x64xf32> to vector<24x64xf32>
    %145 = arith.addf %142, %144 : vector<24x64xf32>
    %146 = arith.mulf %145, %145 : vector<24x64xf32>
    %147 = arith.mulf %145, %146 : vector<24x64xf32>
    %cst_59 = arith.constant 4.471500e-02 : f32
    %148 = vector.broadcast %cst_59 : f32 to vector<24x64xf32>
    %149 = arith.mulf %148, %147 : vector<24x64xf32>
    %150 = arith.addf %145, %149 : vector<24x64xf32>
    %cst_60 = arith.constant 0.797884583 : f32
    %151 = vector.broadcast %cst_60 : f32 to vector<24x64xf32>
    %152 = arith.mulf %151, %150 : vector<24x64xf32>
    %153 = math.tanh %152 : vector<24x64xf32>
    %cst_61 = arith.constant 1.000000e+00 : f32
    %154 = vector.broadcast %cst_61 : f32 to vector<24x64xf32>
    %155 = arith.addf %154, %153 : vector<24x64xf32>
    %cst_62 = arith.constant 5.000000e-01 : f32
    %156 = vector.broadcast %cst_62 : f32 to vector<24x64xf32>
    %157 = arith.mulf %156, %155 : vector<24x64xf32>
    %158 = arith.mulf %145, %157 : vector<24x64xf32>
    %c0_63 = arith.constant 0 : index
    %c0_64 = arith.constant 0 : index
    %159 = vector.load %arg9[%c0_63, %c0_64] : memref<64x32xf32, #tpu.memory_space<vmem>>, vector<64x32xf32>
    %cst_65 = arith.constant dense<0.000000e+00> : vector<24x32xf32>
    %160 = tpu.matmul %158, %159, %cst_65 {dimension_numbers = #tpu.dot_dimension_numbers<[1], [0], [0], [1], [0, 0, 1, 1], [], []>} : vector<24x64xf32>, vector<64x32xf32>, vector<24x32xf32> -> vector<24x32xf32>
    %c0_66 = arith.constant 0 : index
    %c0_67 = arith.constant 0 : index
    %161 = vector.load %arg10[%c0_66, %c0_67] : memref<1x32xf32, #tpu.memory_space<vmem>>, vector<1x32xf32>
    %162 = vector.broadcast %161 : vector<1x32xf32> to vector<24x32xf32>
    %163 = arith.addf %160, %162 : vector<24x32xf32>
    %164 = arith.addf %118, %163 : vector<24x32xf32>
    %c0_68 = arith.constant 0 : index
    %c0_69 = arith.constant 0 : index
    %165 = vector.load %arg15[%c0_68, %c0_69] : memref<1x32xf32, #tpu.memory_space<vmem>>, vector<1x32xf32>
    %c0_70 = arith.constant 0 : index
    %c0_71 = arith.constant 0 : index
    %166 = vector.load %arg16[%c0_70, %c0_71] : memref<1x32xf32, #tpu.memory_space<vmem>>, vector<1x32xf32>
    %cst_72 = arith.constant dense<0.000000e+00> : vector<24xf32>
    %167 = vector.multi_reduction <add>, %164, %cst_72 [1] : vector<24x32xf32> to vector<24xf32>
    %168 = vector.shape_cast %167 : vector<24xf32> to vector<24x1xf32>
    %cst_73 = arith.constant 3.200000e+01 : f32
    %169 = vector.broadcast %cst_73 : f32 to vector<24x1xf32>
    %170 = arith.divf %168, %169 : vector<24x1xf32>
    %171 = vector.broadcast %170 : vector<24x1xf32> to vector<24x32xf32>
    %172 = arith.subf %164, %171 : vector<24x32xf32>
    %173 = arith.mulf %172, %172 : vector<24x32xf32>
    %cst_74 = arith.constant dense<0.000000e+00> : vector<24xf32>
    %174 = vector.multi_reduction <add>, %173, %cst_74 [1] : vector<24x32xf32> to vector<24xf32>
    %175 = vector.shape_cast %174 : vector<24xf32> to vector<24x1xf32>
    %cst_75 = arith.constant 3.200000e+01 : f32
    %176 = vector.broadcast %cst_75 : f32 to vector<24x1xf32>
    %177 = arith.divf %175, %176 : vector<24x1xf32>
    %cst_76 = arith.constant 9.99999996E-13 : f32
    %178 = vector.broadcast %cst_76 : f32 to vector<24x1xf32>
    %179 = arith.addf %177, %178 : vector<24x1xf32>
    %180 = math.rsqrt %179 : vector<24x1xf32>
    %181 = vector.broadcast %180 : vector<24x1xf32> to vector<24x32xf32>
    %182 = arith.mulf %172, %181 : vector<24x32xf32>
    %183 = vector.broadcast %165 : vector<1x32xf32> to vector<24x32xf32>
    %184 = arith.mulf %182, %183 : vector<24x32xf32>
    %185 = vector.broadcast %166 : vector<1x32xf32> to vector<24x32xf32>
    %186 = arith.addf %184, %185 : vector<24x32xf32>
    %c0_77 = arith.constant 0 : index
    %c0_78 = arith.constant 0 : index
    %187 = vector.load %arg17[%c0_77, %c0_78] : memref<24x32xf32, #tpu.memory_space<vmem>>, vector<24x32xf32>
    tpu.vector_store %arg17[%c0_77, %c0_78], %186 {strides = array<i32>} : memref<24x32xf32, #tpu.memory_space<vmem>>, vector<24x32xf32>,
    return
  }
  func.func @transform_0(%arg0: i32) -> (i32, i32) {
    %c0_i32 = arith.constant 0 : i32
    %c0_i32_0 = arith.constant 0 : i32
    return %arg0, %c0_i32 : i32, i32
  }
  func.func @transform_1(%arg0: i32) -> (i32, i32) {
    %c0_i32 = arith.constant 0 : i32
    %c0_i32_0 = arith.constant 0 : i32
    %c0_i32_1 = arith.constant 0 : i32
    return %c0_i32, %c0_i32_0 : i32, i32
  }
  func.func @transform_2(%arg0: i32) -> (i32, i32) {
    %c0_i32 = arith.constant 0 : i32
    %c0_i32_0 = arith.constant 0 : i32
    %c0_i32_1 = arith.constant 0 : i32
    return %c0_i32, %c0_i32_0 : i32, i32
  }
  func.func @transform_3(%arg0: i32) -> (i32, i32) {
    %c0_i32 = arith.constant 0 : i32
    %c0_i32_0 = arith.constant 0 : i32
    %c0_i32_1 = arith.constant 0 : i32
    return %c0_i32, %c0_i32_0 : i32, i32
  }
  func.func @transform_4(%arg0: i32) -> (i32, i32) {
    %c0_i32 = arith.constant 0 : i32
    %c0_i32_0 = arith.constant 0 : i32
    %c0_i32_1 = arith.constant 0 : i32
    return %c0_i32, %c0_i32_0 : i32, i32
  }
  func.func @transform_5(%arg0: i32) -> (i32, i32) {
    %c0_i32 = arith.constant 0 : i32
    %c0_i32_0 = arith.constant 0 : i32
    %c0_i32_1 = arith.constant 0 : i32
    return %c0_i32, %c0_i32_0 : i32, i32
  }
  func.func @transform_6(%arg0: i32) -> (i32, i32) {
    %c0_i32 = arith.constant 0 : i32
    %c0_i32_0 = arith.constant 0 : i32
    %c0_i32_1 = arith.constant 0 : i32
    return %c0_i32, %c0_i32_0 : i32, i32
  }
  func.func @transform_7(%arg0: i32) -> (i32, i32) {
    %c0_i32 = arith.constant 0 : i32
    %c0_i32_0 = arith.constant 0 : i32
    %c0_i32_1 = arith.constant 0 : i32
    return %c0_i32, %c0_i32_0 : i32, i32
  }
  func.func @transform_8(%arg0: i32) -> (i32, i32) {
    %c0_i32 = arith.constant 0 : i32
    %c0_i32_0 = arith.constant 0 : i32
    %c0_i32_1 = arith.constant 0 : i32
    return %c0_i32, %c0_i32_0 : i32, i32
  }
  func.func @transform_9(%arg0: i32) -> (i32, i32) {
    %c0_i32 = arith.constant 0 : i32
    %c0_i32_0 = arith.constant 0 : i32
    %c0_i32_1 = arith.constant 0 : i32
    return %c0_i32, %c0_i32_0 : i32, i32
  }
  func.func @transform_10(%arg0: i32) -> (i32, i32) {
    %c0_i32 = arith.constant 0 : i32
    %c0_i32_0 = arith.constant 0 : i32
    %c0_i32_1 = arith.constant 0 : i32
    return %c0_i32, %c0_i32_0 : i32, i32
  }
  func.func @transform_11(%arg0: i32) -> (i32, i32) {
    %c0_i32 = arith.constant 0 : i32
    %c0_i32_0 = arith.constant 0 : i32
    %c0_i32_1 = arith.constant 0 : i32
    return %c0_i32, %c0_i32_0 : i32, i32
  }
  func.func @transform_12(%arg0: i32) -> (i32, i32) {
    %c0_i32 = arith.constant 0 : i32
    %c0_i32_0 = arith.constant 0 : i32
    %c0_i32_1 = arith.constant 0 : i32
    return %c0_i32, %c0_i32_0 : i32, i32
  }
  func.func @transform_13(%arg0: i32) -> (i32, i32) {
    %c0_i32 = arith.constant 0 : i32
    %c0_i32_0 = arith.constant 0 : i32
    %c0_i32_1 = arith.constant 0 : i32
    return %c0_i32, %c0_i32_0 : i32, i32
  }
  func.func @transform_14(%arg0: i32) -> (i32, i32) {
    %c0_i32 = arith.constant 0 : i32
    %c0_i32_0 = arith.constant 0 : i32
    %c0_i32_1 = arith.constant 0 : i32
    return %c0_i32, %c0_i32_0 : i32, i32
  }
  func.func @transform_15(%arg0: i32) -> (i32, i32) {
    %c0_i32 = arith.constant 0 : i32
    %c0_i32_0 = arith.constant 0 : i32
    %c0_i32_1 = arith.constant 0 : i32
    return %c0_i32, %c0_i32_0 : i32, i32
  }
  func.func @transform_16(%arg0: i32) -> (i32, i32) {
    %c0_i32 = arith.constant 0 : i32
    %c0_i32_0 = arith.constant 0 : i32
    return %arg0, %c0_i32 : i32, i32
  }
}

</mosaic_0001>

<llo_original>
// kernel: flip_model_forward.4
$region0: #{flip_model_forward.4}
  #allocation0 [shape = 'u32[]', space=smem, size = 0x4, offset = 0x4, fixed_abs, tag = 'smem constant byte address 0x4 - core index']
  #allocation1 [shape = 'u32[72,128]{1,0:T(1,128)}', space=vmem, size = 0x9000, scoped, tag = 'internal scratch']
  %s0 = inlined_call_operand.vmem [shape: f32[192,32], index: 0, kind: input, shape index: {}]
  %s1 = inlined_call_operand.vmem [shape: f32[96,96], index: 1, kind: input, shape index: {}]
  %s2 = inlined_call_operand.vmem [shape: f32[32,96], index: 2, kind: input, shape index: {}]
  %s3 = inlined_call_operand.vmem [shape: f32[1,96], index: 3, kind: input, shape index: {}]
  %s4 = inlined_call_operand.vmem [shape: f32[32,32], index: 4, kind: input, shape index: {}]
  %s5 = inlined_call_operand.vmem [shape: f32[1,32], index: 5, kind: input, shape index: {}]
  %s6 = inlined_call_operand.vmem [shape: f32[32,64], index: 6, kind: input, shape index: {}]
  %s7 = inlined_call_operand.vmem [shape: f32[1,64], index: 7, kind: input, shape index: {}]
  %s8 = inlined_call_operand.vmem [shape: f32[64,32], index: 8, kind: input, shape index: {}]
  %s9 = inlined_call_operand.vmem [shape: f32[1,32], index: 9, kind: input, shape index: {}]
  %s10 = inlined_call_operand.vmem [shape: f32[1,32], index: 10, kind: input, shape index: {}]
  %s11 = inlined_call_operand.vmem [shape: f32[1,32], index: 11, kind: input, shape index: {}]
  %s12 = inlined_call_operand.vmem [shape: f32[1,32], index: 12, kind: input, shape index: {}]
  %s13 = inlined_call_operand.vmem [shape: f32[1,32], index: 13, kind: input, shape index: {}]
  %s14 = inlined_call_operand.vmem [shape: f32[1,32], index: 14, kind: input, shape index: {}]
  %s15 = inlined_call_operand.vmem [shape: f32[1,32], index: 15, kind: input, shape index: {}]
  %s16 = inlined_call_operand.vmem [shape: f32[192,32], index: 16, kind: output, shape index: {}]
  %s17 = sld [smem:[#allocation0]]
  $region97: #{flip_model_forward.4} parent=0
    _
  %s19 = ssub.s32 1, %s17
  %s20 = scalar_select 0, %s19, %s17
  loop: start=0, step=1, limit=4
  $region2: #{flip_model_forward.4} parent=0 // loop_pre_header
    _
  $region3: #{flip_model_forward.4} parent=0 // loop_header
    %s22 = sphi 0, %s26
    %p23 = scmp.ge.s32.totalorder %s22, 4
    %s32 = sphi 0, %s34
    %s35 = sphi 0, %s32
    %s36 = sphi 0, %s35
    %s52 = sphi 0, %s36
    %s56 = sphi 0, %s56
    %s58 = sphi 0, %s56
    %s59 = sphi 0, %s58
    %s73 = sphi 0, %s59
    %s77 = sphi 0, %s77
    %s79 = sphi 0, %s77
    %s80 = sphi 0, %s79
    %s94 = sphi 0, %s80
    %s98 = sphi 0, %s98
    %s100 = sphi 0, %s98
    %s101 = sphi 0, %s100
    %s115 = sphi 0, %s101
    %s119 = sphi 0, %s119
    %s121 = sphi 0, %s119
    %s122 = sphi 0, %s121
    %s136 = sphi 0, %s122
    %s140 = sphi 0, %s140
    %s142 = sphi 0, %s140
    %s143 = sphi 0, %s142
    %s157 = sphi 0, %s143
    %s161 = sphi 0, %s161
    %s163 = sphi 0, %s161
    %s164 = sphi 0, %s163
    %s178 = sphi 0, %s164
    %s182 = sphi 0, %s182
    %s184 = sphi 0, %s182
    %s185 = sphi 0, %s184
    %s199 = sphi 0, %s185
    %s203 = sphi 0, %s203
    %s205 = sphi 0, %s203
    %s206 = sphi 0, %s205
    %s220 = sphi 0, %s206
    %s224 = sphi 0, %s224
    %s226 = sphi 0, %s224
    %s227 = sphi 0, %s226
    %s241 = sphi 0, %s227
    %s245 = sphi 0, %s245
    %s247 = sphi 0, %s245
    %s248 = sphi 0, %s247
    %s262 = sphi 0, %s248
    %s266 = sphi 0, %s266
    %s268 = sphi 0, %s266
    %s269 = sphi 0, %s268
    %s283 = sphi 0, %s269
    %s287 = sphi 0, %s287
    %s289 = sphi 0, %s287
    %s290 = sphi 0, %s289
    %s304 = sphi 0, %s290
    %s308 = sphi 0, %s308
    %s310 = sphi 0, %s308
    %s311 = sphi 0, %s310
    %s325 = sphi 0, %s311
    %s329 = sphi 0, %s329
    %s331 = sphi 0, %s329
    %s332 = sphi 0, %s331
    %s346 = sphi 0, %s332
    %s350 = sphi 0, %s350
    %s352 = sphi 0, %s350
    %s353 = sphi 0, %s352
    %s367 = sphi 0, %s353
    %s373 = sphi 0, %s375
    %s376 = sphi 0, %s373
    %s377 = sphi 0, %s376
    %s393 = sphi 0, %s377
  $region4: #{flip_model_forward.4} parent=0 // loop_header_branch
    %25 = sbr.rel (%p23) target = $region8
  $region5: #{flip_model_forward.4} parent=0 // loop_body
    %s27 = ssub.s32 %s22, 1
    %s28 = ssub.s32 %s22, 2
    %s29 = sadd.s32 %s22, 1
    %s30 = ssub.s32 %s22, %s29
    %p31 = scmp.eq.s32.totalorder %s30, 0
    %s33 = sadd.s32 %s32, 1
    %s34 = scalar_select %p31, %s32, %s33
    %p37 = pneg %p31
    %p38 = scmp.eq.s32.totalorder %s22, 1
    %p39 = por %p37, %p38
    %p40 = scmp.ne.s32.totalorder %s32, %s35
    %p41 = scmp.eq.s32.totalorder %s22, 0
    %p42 = por %p40, %p41
    %p43 = scmp.ne.s32.totalorder %s32, %s35
    %p44 = scmp.eq.s32.totalorder %s27, 1
    %p45 = por %p43, %p44
    %p46 = scmp.ne.s32.totalorder %s35, %s36
    %p47 = scmp.eq.s32.totalorder %s27, 0
    %p48 = por %p46, %p47
    %p49 = scmp.ne.s32.totalorder %s35, %s36
    %p50 = scmp.eq.s32.totalorder %s28, 1
    %p51 = por %p49, %p50
    %p53 = scmp.ne.s32.totalorder %s36, %s52
    %p54 = scmp.eq.s32.totalorder %s28, 0
    %p55 = por %p53, %p54
    %s57 = sadd.s32 %s56, 1
    %p60 = scmp.eq.s32.totalorder %s22, 1
    %p61 = scmp.ne.s32.totalorder %s56, %s58
    %p62 = scmp.eq.s32.totalorder %s22, 0
    %p63 = por %p61, %p62
    %p64 = scmp.ne.s32.totalorder %s56, %s58
    %p65 = scmp.eq.s32.totalorder %s27, 1
    %p66 = por %p64, %p65
    %p67 = scmp.ne.s32.totalorder %s58, %s59
    %p68 = scmp.eq.s32.totalorder %s27, 0
    %p69 = por %p67, %p68
    %p70 = scmp.ne.s32.totalorder %s58, %s59
    %p71 = scmp.eq.s32.totalorder %s28, 1
    %p72 = por %p70, %p71
    %p74 = scmp.ne.s32.totalorder %s59, %s73
    %p75 = scmp.eq.s32.totalorder %s28, 0
    %p76 = por %p74, %p75
    %s78 = sadd.s32 %s77, 1
    %p81 = scmp.eq.s32.totalorder %s22, 1
    %p82 = scmp.ne.s32.totalorder %s77, %s79
    %p83 = scmp.eq.s32.totalorder %s22, 0
    %p84 = por %p82, %p83
    %p85 = scmp.ne.s32.totalorder %s77, %s79
    %p86 = scmp.eq.s32.totalorder %s27, 1
    %p87 = por %p85, %p86
    %p88 = scmp.ne.s32.totalorder %s79, %s80
    %p89 = scmp.eq.s32.totalorder %s27, 0
    %p90 = por %p88, %p89
    %p91 = scmp.ne.s32.totalorder %s79, %s80
    %p92 = scmp.eq.s32.totalorder %s28, 1
    %p93 = por %p91, %p92
    %p95 = scmp.ne.s32.totalorder %s80, %s94
    %p96 = scmp.eq.s32.totalorder %s28, 0
    %p97 = por %p95, %p96
    %s99 = sadd.s32 %s98, 1
    %p102 = scmp.eq.s32.totalorder %s22, 1
    %p103 = scmp.ne.s32.totalorder %s98, %s100
    %p104 = scmp.eq.s32.totalorder %s22, 0
    %p105 = por %p103, %p104
    %p106 = scmp.ne.s32.totalorder %s98, %s100
    %p107 = scmp.eq.s32.totalorder %s27, 1
    %p108 = por %p106, %p107
    %p109 = scmp.ne.s32.totalorder %s100, %s101
    %p110 = scmp.eq.s32.totalorder %s27, 0
    %p111 = por %p109, %p110
    %p112 = scmp.ne.s32.totalorder %s100, %s101
    %p113 = scmp.eq.s32.totalorder %s28, 1
    %p114 = por %p112, %p113
    %p116 = scmp.ne.s32.totalorder %s101, %s115
    %p117 = scmp.eq.s32.totalorder %s28, 0
    %p118 = por %p116, %p117
    %s120 = sadd.s32 %s119, 1
    %p123 = scmp.eq.s32.totalorder %s22, 1
    %p124 = scmp.ne.s32.totalorder %s119, %s121
    %p125 = scmp.eq.s32.totalorder %s22, 0
    %p126 = por %p124, %p125
    %p127 = scmp.ne.s32.totalorder %s119, %s121
    %p128 = scmp.eq.s32.totalorder %s27, 1
    %p129 = por %p127, %p128
    %p130 = scmp.ne.s32.totalorder %s121, %s122
    %p131 = scmp.eq.s32.totalorder %s27, 0
    %p132 = por %p130, %p131
    %p133 = scmp.ne.s32.totalorder %s121, %s122
    %p134 = scmp.eq.s32.totalorder %s28, 1
    %p135 = por %p133, %p134
    %p137 = scmp.ne.s32.totalorder %s122, %s136
    %p138 = scmp.eq.s32.totalorder %s28, 0
    %p139 = por %p137, %p138
    %s141 = sadd.s32 %s140, 1
    %p144 = scmp.eq.s32.totalorder %s22, 1
    %p145 = scmp.ne.s32.totalorder %s140, %s142
    %p146 = scmp.eq.s32.totalorder %s22, 0
    %p147 = por %p145, %p146
    %p148 = scmp.ne.s32.totalorder %s140, %s142
    %p149 = scmp.eq.s32.totalorder %s27, 1
    %p150 = por %p148, %p149
    %p151 = scmp.ne.s32.totalorder %s142, %s143
    %p152 = scmp.eq.s32.totalorder %s27, 0
    %p153 = por %p151, %p152
    %p154 = scmp.ne.s32.totalorder %s142, %s143
    %p155 = scmp.eq.s32.totalorder %s28, 1
    %p156 = por %p154, %p155
    %p158 = scmp.ne.s32.totalorder %s143, %s157
    %p159 = scmp.eq.s32.totalorder %s28, 0
    %p160 = por %p158, %p159
    %s162 = sadd.s32 %s161, 1
    %p165 = scmp.eq.s32.totalorder %s22, 1
    %p166 = scmp.ne.s32.totalorder %s161, %s163
    %p167 = scmp.eq.s32.totalorder %s22, 0
    %p168 = por %p166, %p167
    %p169 = scmp.ne.s32.totalorder %s161, %s163
    %p170 = scmp.eq.s32.totalorder %s27, 1
    %p171 = por %p169, %p170
    %p172 = scmp.ne.s32.totalorder %s163, %s164
    %p173 = scmp.eq.s32.totalorder %s27, 0
    %p174 = por %p172, %p173
    %p175 = scmp.ne.s32.totalorder %s163, %s164
    %p176 = scmp.eq.s32.totalorder %s28, 1
    %p177 = por %p175, %p176
    %p179 = scmp.ne.s32.totalorder %s164, %s178
    %p180 = scmp.eq.s32.totalorder %s28, 0
    %p181 = por %p179, %p180
    %s183 = sadd.s32 %s182, 1
    %p186 = scmp.eq.s32.totalorder %s22, 1
    %p187 = scmp.ne.s32.totalorder %s182, %s184
    %p188 = scmp.eq.s32.totalorder %s22, 0
    %p189 = por %p187, %p188
    %p190 = scmp.ne.s32.totalorder %s182, %s184
    %p191 = scmp.eq.s32.totalorder %s27, 1
    %p192 = por %p190, %p191
    %p193 = scmp.ne.s32.totalorder %s184, %s185
    %p194 = scmp.eq.s32.totalorder %s27, 0
    %p195 = por %p193, %p194
    %p196 = scmp.ne.s32.totalorder %s184, %s185
    %p197 = scmp.eq.s32.totalorder %s28, 1
    %p198 = por %p196, %p197
    %p200 = scmp.ne.s32.totalorder %s185, %s199
    %p201 = scmp.eq.s32.totalorder %s28, 0
    %p202 = por %p200, %p201
    %s204 = sadd.s32 %s203, 1
    %p207 = scmp.eq.s32.totalorder %s22, 1
    %p208 = scmp.ne.s32.totalorder %s203, %s205
    %p209 = scmp.eq.s32.totalorder %s22, 0
    %p210 = por %p208, %p209
    %p211 = scmp.ne.s32.totalorder %s203, %s205
    %p212 = scmp.eq.s32.totalorder %s27, 1
    %p213 = por %p211, %p212
    %p214 = scmp.ne.s32.totalorder %s205, %s206
    %p215 = scmp.eq.s32.totalorder %s27, 0
    %p216 = por %p214, %p215
    %p217 = scmp.ne.s32.totalorder %s205, %s206
    %p218 = scmp.eq.s32.totalorder %s28, 1
    %p219 = por %p217, %p218
    %p221 = scmp.ne.s32.totalorder %s206, %s220
    %p222 = scmp.eq.s32.totalorder %s28, 0
    %p223 = por %p221, %p222
    %s225 = sadd.s32 %s224, 1
    %p228 = scmp.eq.s32.totalorder %s22, 1
    %p229 = scmp.ne.s32.totalorder %s224, %s226
    %p230 = scmp.eq.s32.totalorder %s22, 0
    %p231 = por %p229, %p230
    %p232 = scmp.ne.s32.totalorder %s224, %s226
    %p233 = scmp.eq.s32.totalorder %s27, 1
    %p234 = por %p232, %p233
    %p235 = scmp.ne.s32.totalorder %s226, %s227
    %p236 = scmp.eq.s32.totalorder %s27, 0
    %p237 = por %p235, %p236
    %p238 = scmp.ne.s32.totalorder %s226, %s227
    %p239 = scmp.eq.s32.totalorder %s28, 1
    %p240 = por %p238, %p239
    %p242 = scmp.ne.s32.totalorder %s227, %s241
    %p243 = scmp.eq.s32.totalorder %s28, 0
    %p244 = por %p242, %p243
    %s246 = sadd.s32 %s245, 1
    %p249 = scmp.eq.s32.totalorder %s22, 1
    %p250 = scmp.ne.s32.totalorder %s245, %s247
    %p251 = scmp.eq.s32.totalorder %s22, 0
    %p252 = por %p250, %p251
    %p253 = scmp.ne.s32.totalorder %s245, %s247
    %p254 = scmp.eq.s32.totalorder %s27, 1
    %p255 = por %p253, %p254
    %p256 = scmp.ne.s32.totalorder %s247, %s248
    %p257 = scmp.eq.s32.totalorder %s27, 0
    %p258 = por %p256, %p257
    %p259 = scmp.ne.s32.totalorder %s247, %s248
    %p260 = scmp.eq.s32.totalorder %s28, 1
    %p261 = por %p259, %p260
    %p263 = scmp.ne.s32.totalorder %s248, %s262
    %p264 = scmp.eq.s32.totalorder %s28, 0
    %p265 = por %p263, %p264
    %s267 = sadd.s32 %s266, 1
    %p270 = scmp.eq.s32.totalorder %s22, 1
    %p271 = scmp.ne.s32.totalorder %s266, %s268
    %p272 = scmp.eq.s32.totalorder %s22, 0
    %p273 = por %p271, %p272
    %p274 = scmp.ne.s32.totalorder %s266, %s268
    %p275 = scmp.eq.s32.totalorder %s27, 1
    %p276 = por %p274, %p275
    %p277 = scmp.ne.s32.totalorder %s268, %s269
    %p278 = scmp.eq.s32.totalorder %s27, 0
    %p279 = por %p277, %p278
    %p280 = scmp.ne.s32.totalorder %s268, %s269
    %p281 = scmp.eq.s32.totalorder %s28, 1
    %p282 = por %p280, %p281
    %p284 = scmp.ne.s32.totalorder %s269, %s283
    %p285 = scmp.eq.s32.totalorder %s28, 0
    %p286 = por %p284, %p285
    %s288 = sadd.s32 %s287, 1
    %p291 = scmp.eq.s32.totalorder %s22, 1
    %p292 = scmp.ne.s32.totalorder %s287, %s289
    %p293 = scmp.eq.s32.totalorder %s22, 0
    %p294 = por %p292, %p293
    %p295 = scmp.ne.s32.totalorder %s287, %s289
    %p296 = scmp.eq.s32.totalorder %s27, 1
    %p297 = por %p295, %p296
    %p298 = scmp.ne.s32.totalorder %s289, %s290
    %p299 = scmp.eq.s32.totalorder %s27, 0
    %p300 = por %p298, %p299
    %p301 = scmp.ne.s32.totalorder %s289, %s290
    %p302 = scmp.eq.s32.totalorder %s28, 1
    %p303 = por %p301, %p302
    %p305 = scmp.ne.s32.totalorder %s290, %s304
    %p306 = scmp.eq.s32.totalorder %s28, 0
    %p307 = por %p305, %p306
    %s309 = sadd.s32 %s308, 1
    %p312 = scmp.eq.s32.totalorder %s22, 1
    %p313 = scmp.ne.s32.totalorder %s308, %s310
    %p314 = scmp.eq.s32.totalorder %s22, 0
    %p315 = por %p313, %p314
    %p316 = scmp.ne.s32.totalorder %s308, %s310
    %p317 = scmp.eq.s32.totalorder %s27, 1
    %p318 = por %p316, %p317
    %p319 = scmp.ne.s32.totalorder %s310, %s311
    %p320 = scmp.eq.s32.totalorder %s27, 0
    %p321 = por %p319, %p320
    %p322 = scmp.ne.s32.totalorder %s310, %s311
    %p323 = scmp.eq.s32.totalorder %s28, 1
    %p324 = por %p322, %p323
    %p326 = scmp.ne.s32.totalorder %s311, %s325
    %p327 = scmp.eq.s32.totalorder %s28, 0
    %p328 = por %p326, %p327
    %s330 = sadd.s32 %s329, 1
    %p333 = scmp.eq.s32.totalorder %s22, 1
    %p334 = scmp.ne.s32.totalorder %s329, %s331
    %p335 = scmp.eq.s32.totalorder %s22, 0
    %p336 = por %p334, %p335
    %p337 = scmp.ne.s32.totalorder %s329, %s331
    %p338 = scmp.eq.s32.totalorder %s27, 1
    %p339 = por %p337, %p338
    %p340 = scmp.ne.s32.totalorder %s331, %s332
    %p341 = scmp.eq.s32.totalorder %s27, 0
    %p342 = por %p340, %p341
    %p343 = scmp.ne.s32.totalorder %s331, %s332
    %p344 = scmp.eq.s32.totalorder %s28, 1
    %p345 = por %p343, %p344
    %p347 = scmp.ne.s32.totalorder %s332, %s346
    %p348 = scmp.eq.s32.totalorder %s28, 0
    %p349 = por %p347, %p348
    %s351 = sadd.s32 %s350, 1
    %p354 = scmp.eq.s32.totalorder %s22, 1
    %p355 = scmp.ne.s32.totalorder %s350, %s352
    %p356 = scmp.eq.s32.totalorder %s22, 0
    %p357 = por %p355, %p356
    %p358 = scmp.ne.s32.totalorder %s350, %s352
    %p359 = scmp.eq.s32.totalorder %s27, 1
    %p360 = por %p358, %p359
    %p361 = scmp.ne.s32.totalorder %s352, %s353
    %p362 = scmp.eq.s32.totalorder %s27, 0
    %p363 = por %p361, %p362
    %p364 = scmp.ne.s32.totalorder %s352, %s353
    %p365 = scmp.eq.s32.totalorder %s28, 1
    %p366 = por %p364, %p365
    %p368 = scmp.ne.s32.totalorder %s353, %s367
    %p369 = scmp.eq.s32.totalorder %s28, 0
    %p370 = por %p368, %p369
    %s371 = ssub.s32 %s22, %s29
    %p372 = scmp.eq.s32.totalorder %s371, 0
    %s374 = sadd.s32 %s373, 1
    %s375 = scalar_select %p372, %s373, %s374
    %p378 = pneg %p372
    %p379 = scmp.eq.s32.totalorder %s22, 1
    %p380 = por %p378, %p379
    %p381 = scmp.ne.s32.totalorder %s373, %s376
    %p382 = scmp.eq.s32.totalorder %s22, 0
    %p383 = por %p381, %p382
    %p384 = scmp.ne.s32.totalorder %s373, %s376
    %p385 = scmp.eq.s32.totalorder %s27, 1
    %p386 = por %p384, %p385
    %p387 = scmp.ne.s32.totalorder %s376, %s377
    %p388 = scmp.eq.s32.totalorder %s27, 0
    %p389 = por %p387, %p388
    %p390 = scmp.ne.s32.totalorder %s376, %s377
    %p391 = scmp.eq.s32.totalorder %s28, 1
    %p392 = por %p390, %p391
    %p394 = scmp.ne.s32.totalorder %s377, %s393
    %p395 = scmp.eq.s32.totalorder %s28, 0
    %p396 = por %p394, %p395
    %p397 = scmp.le.s32.totalorder 1, %s22
    %p398 = scmp.lt.s32.totalorder %s22, 3
    %p399 = pnand %p397, %p398
    %p400 = pneg %p399
    // Predicated region
    $region9: #{flip_model_forward.4} parent=5 // pred_check
      _
    $region10: #{flip_model_forward.4} parent=5 // pred_check_branch
      %402 = sbr.rel (%p399) target = $region12
    $region11: #{flip_model_forward.4} parent=5 // pred_region
      %s403 = ssub.s32 %s22, 1
      // Predicated region
      $region13: #{flip_model_forward.4} parent=11 // pred_check
        %p404 = pneg %p69
      $region14: #{flip_model_forward.4} parent=11 // pred_check_branch
        %406 = sbr.rel (%p404) target = $region16
      $region15: #{flip_model_forward.4} parent=11 // pred_region
        _
      $region16: #{flip_model_forward.4} parent=11 // pred_fallthru
        _
      // Predicated region
      $region17: #{flip_model_forward.4} parent=11 // pred_check
        %p407 = pneg %p90
      $region18: #{flip_model_forward.4} parent=11 // pred_check_branch
        %409 = sbr.rel (%p407) target = $region20
      $region19: #{flip_model_forward.4} parent=11 // pred_region
        _
      $region20: #{flip_model_forward.4} parent=11 // pred_fallthru
        _
      // Predicated region
      $region21: #{flip_model_forward.4} parent=11 // pred_check
        %p410 = pneg %p111
      $region22: #{flip_model_forward.4} parent=11 // pred_check_branch
        %412 = sbr.rel (%p410) target = $region24
      $region23: #{flip_model_forward.4} parent=11 // pred_region
        _
      $region24: #{flip_model_forward.4} parent=11 // pred_fallthru
        _
      // Predicated region
      $region25: #{flip_model_forward.4} parent=11 // pred_check
        %p413 = pneg %p132
      $region26: #{flip_model_forward.4} parent=11 // pred_check_branch
        %415 = sbr.rel (%p413) target = $region28
      $region27: #{flip_model_forward.4} parent=11 // pred_region
        _
      $region28: #{flip_model_forward.4} parent=11 // pred_fallthru
        _
      // Predicated region
      $region29: #{flip_model_forward.4} parent=11 // pred_check
        %p416 = pneg %p153
      $region30: #{flip_model_forward.4} parent=11 // pred_check_branch
        %418 = sbr.rel (%p416) target = $region32
      $region31: #{flip_model_forward.4} parent=11 // pred_region
        _
      $region32: #{flip_model_forward.4} parent=11 // pred_fallthru
        _
      // Predicated region
      $region33: #{flip_model_forward.4} parent=11 // pred_check
        %p419 = pneg %p174
      $region34: #{flip_model_forward.4} parent=11 // pred_check_branch
        %421 = sbr.rel (%p419) target = $region36
      $region35: #{flip_model_forward.4} parent=11 // pred_region
        _
      $region36: #{flip_model_forward.4} parent=11 // pred_fallthru
        _
      // Predicated region
      $region37: #{flip_model_forward.4} parent=11 // pred_check
        %p422 = pneg %p195
      $region38: #{flip_model_forward.4} parent=11 // pred_check_branch
        %424 = sbr.rel (%p422) target = $region40
      $region39: #{flip_model_forward.4} parent=11 // pred_region
        _
      $region40: #{flip_model_forward.4} parent=11 // pred_fallthru
        _
      // Predicated region
      $region41: #{flip_model_forward.4} parent=11 // pred_check
        %p425 = pneg %p216
      $region42: #{flip_model_forward.4} parent=11 // pred_check_branch
        %427 = sbr.rel (%p425) target = $region44
      $region43: #{flip_model_forward.4} parent=11 // pred_region
        _
      $region44: #{flip_model_forward.4} parent=11 // pred_fallthru
        _
      // Predicated region
      $region45: #{flip_model_forward.4} parent=11 // pred_check
        %p428 = pneg %p237
      $region46: #{flip_model_forward.4} parent=11 // pred_check_branch
        %430 = sbr.rel (%p428) target = $region48
      $region47: #{flip_model_forward.4} parent=11 // pred_region
        _
      $region48: #{flip_model_forward.4} parent=11 // pred_fallthru
        _
      // Predicated region
      $region49: #{flip_model_forward.4} parent=11 // pred_check
        %p431 = pneg %p258
      $region50: #{flip_model_forward.4} parent=11 // pred_check_branch
        %433 = sbr.rel (%p431) target = $region52
      $region51: #{flip_model_forward.4} parent=11 // pred_region
        _
      $region52: #{flip_model_forward.4} parent=11 // pred_fallthru
        _
      // Predicated region
      $region53: #{flip_model_forward.4} parent=11 // pred_check
        %p434 = pneg %p279
      $region54: #{flip_model_forward.4} parent=11 // pred_check_branch
        %436 = sbr.rel (%p434) target = $region56
      $region55: #{flip_model_forward.4} parent=11 // pred_region
        _
      $region56: #{flip_model_forward.4} parent=11 // pred_fallthru
        _
      // Predicated region
      $region57: #{flip_model_forward.4} parent=11 // pred_check
        %p437 = pneg %p300
      $region58: #{flip_model_forward.4} parent=11 // pred_check_branch
        %439 = sbr.rel (%p437) target = $region60
      $region59: #{flip_model_forward.4} parent=11 // pred_region
        _
      $region60: #{flip_model_forward.4} parent=11 // pred_fallthru
        _
      // Predicated region
      $region61: #{flip_model_forward.4} parent=11 // pred_check
        %p440 = pneg %p321
      $region62: #{flip_model_forward.4} parent=11 // pred_check_branch
        %442 = sbr.rel (%p440) target = $region64
      $region63: #{flip_model_forward.4} parent=11 // pred_region
        _
      $region64: #{flip_model_forward.4} parent=11 // pred_fallthru
        _
      // Predicated region
      $region65: #{flip_model_forward.4} parent=11 // pred_check
        %p443 = pneg %p342
      $region66: #{flip_model_forward.4} parent=11 // pred_check_branch
        %445 = sbr.rel (%p443) target = $region68
      $region67: #{flip_model_forward.4} parent=11 // pred_region
        _
      $region68: #{flip_model_forward.4} parent=11 // pred_fallthru
        _
      // Predicated region
      $region69: #{flip_model_forward.4} parent=11 // pred_check
        %p446 = pneg %p363
      $region70: #{flip_model_forward.4} parent=11 // pred_check_branch
        %448 = sbr.rel (%p446) target = $region72
      $region71: #{flip_model_forward.4} parent=11 // pred_region
        _
      $region72: #{flip_model_forward.4} parent=11 // pred_fallthru
        _
    $region12: #{flip_model_forward.4} parent=5 // pred_fallthru
      _
    %p449 = scmp.lt.s32.totalorder %s22, 2
    // Predicated region
    $region73: #{flip_model_forward.4} parent=5 // pred_check
      %p450 = pneg %p449
    $region74: #{flip_model_forward.4} parent=5 // pred_check_branch
      %452 = sbr.rel (%p450) target = $region76
    $region75: #{flip_model_forward.4} parent=5 // pred_region
      // Predicated region
      $region77: #{flip_model_forward.4} parent=75 // pred_check
        %p453 = pneg %p42
      $region78: #{flip_model_forward.4} parent=75 // pred_check_branch
        %455 = sbr.rel (%p453) target = $region80
      $region79: #{flip_model_forward.4} parent=75 // pred_region
        %s456 = smul.u32 12, %s22
        %p457 = scmp.lt.s32.totalorder %s456, 23
        %s458 = scalar_select %p457, %s456, 23
        %s459 = smul.addr %s458, 8
        %s460 = scalar_lea.vmem %s0, %s459
        %s461 = smul.u32 12, %s22
      $region80: #{flip_model_forward.4} parent=75 // pred_fallthru
        _
    $region76: #{flip_model_forward.4} parent=5 // pred_fallthru
      _
    %p462 = scmp.le.s32.totalorder 1, %s22
    %p463 = scmp.lt.s32.totalorder %s22, 3
    %p464 = pnand %p462, %p463
    %p465 = pneg %p464
    // Predicated region
    $region81: #{flip_model_forward.4} parent=5 // pred_check
      _
    $region82: #{flip_model_forward.4} parent=5 // pred_check_branch
      %467 = sbr.rel (%p464) target = $region84
    $region83: #{flip_model_forward.4} parent=5 // pred_region
      %s468 = ssub.s32 %s22, 1
      %s469 = smul.u32 12, %s27
      %p470 = scmp.lt.s32.totalorder %s469, 23
      %s471 = scalar_select %p470, %s469, 23
      %s472 = smul.addr %s471, 8
      %s473 = scalar_lea.vmem %s0, %s472
      %p474 = pneg %p48
      %p475 = pneg %p45
      %p476 = pneg %p69
      %p477 = pneg %p66
      %p478 = pneg %p90
      %p479 = pneg %p87
      %p480 = pneg %p111
      %p481 = pneg %p108
      %p482 = pneg %p132
      %p483 = pneg %p129
      %p484 = pneg %p153
      %p485 = pneg %p150
      %p486 = pneg %p174
      %p487 = pneg %p171
      %p488 = pneg %p195
      %p489 = pneg %p192
      %p490 = pneg %p216
      %p491 = pneg %p213
      %p492 = pneg %p237
      %p493 = pneg %p234
      %p494 = pneg %p258
      %p495 = pneg %p255
      %p496 = pneg %p279
      %p497 = pneg %p276
      %p498 = pneg %p300
      %p499 = pneg %p297
      %p500 = pneg %p321
      %p501 = pneg %p318
      %p502 = pneg %p342
      %p503 = pneg %p339
      %p504 = pneg %p363
      %p505 = pneg %p360
      %p506 = pneg %p389
      %p507 = pneg %p386
      %s508 = smul.u32 12, %s27
      %p509 = scmp.lt.s32.totalorder %s508, 23
      %s510 = scalar_select %p509, %s508, 23
      %s511 = smul.addr %s510, 8
      %s512 = scalar_lea.vmem %s16, %s511
      %s513 = smul.u32 12, %s27
      %p514 = scmp.lt.s32.totalorder %s513, 23
      %s515 = scalar_select %p514, %s513, 23
      %s516 = smul.addr %s515, 8
      %s517 = scalar_lea.vmem %s0, %s516
      %s518 = smul.u32 12, %s27
      %s519 = smul.u32 12, %s27
      %p520 = scmp.lt.s32.totalorder %s519, 23
      %s521 = scalar_select %p520, %s519, 23
      %s522 = smul.addr %s521, 8
      %s523 = scalar_lea.vmem %s16, %s522
      %s524 = smul.u32 12, %s27
      %v525 = vld [vmem:[%s517] sm:$0xff]
      %v526 = vld [vmem:[%s517 + $0x8] sm:$0xff]
      %v527 = vld [vmem:[%s517 + $0x10] sm:$0xff]
      %v528 = vld [vmem:[%s517 + $0x18] sm:$0xff]
      %v529 = vld [vmem:[%s517 + $0x20] sm:$0xff]
      %v530 = vld [vmem:[%s517 + $0x28] sm:$0xff]
      %v531 = vld [vmem:[%s517 + $0x30] sm:$0xff]
      %v532 = vld [vmem:[%s517 + $0x38] sm:$0xff]
      %v533 = vld [vmem:[%s517 + $0x40] sm:$0xff]
      %v534 = vld [vmem:[%s517 + $0x48] sm:$0xff]
      %v535 = vld [vmem:[%s517 + $0x50] sm:$0xff]
      %v536 = vld [vmem:[%s517 + $0x58] sm:$0xff]
      %v537 = vld [vmem:[%s10] sm:$0x1]
      %v538 = vld [vmem:[%s11] sm:$0x1]
      %vm539 = vcmask 261120
      %v540 = vsel %vm539, %v525, 0.0
      %541 = vadd.xlane.f32.xlu0 %v540
      %v542 = vpop.xlane.xlu0 %541
      %v543 = vsel %vm539, %v526, 0.0
      %544 = vadd.xlane.f32.xlu0 %v543
      %v545 = vpop.xlane.xlu0 %544
      %v546 = vsel %vm539, %v527, 0.0
      %547 = vadd.xlane.f32.xlu0 %v546
      %v548 = vpop.xlane.xlu0 %547
      %v549 = vsel %vm539, %v528, 0.0
      %550 = vadd.xlane.f32.xlu0 %v549
      %v551 = vpop.xlane.xlu0 %550
      %v552 = vsel %vm539, %v529, 0.0
      %553 = vadd.xlane.f32.xlu0 %v552
      %v554 = vpop.xlane.xlu0 %553
      %v555 = vsel %vm539, %v530, 0.0
      %556 = vadd.xlane.f32.xlu0 %v555
      %v557 = vpop.xlane.xlu0 %556
      %v558 = vsel %vm539, %v531, 0.0
      %559 = vadd.xlane.f32.xlu0 %v558
      %v560 = vpop.xlane.xlu0 %559
      %v561 = vsel %vm539, %v532, 0.0
      %562 = vadd.xlane.f32.xlu0 %v561
      %v563 = vpop.xlane.xlu0 %562
      %v564 = vsel %vm539, %v533, 0.0
      %565 = vadd.xlane.f32.xlu0 %v564
      %v566 = vpop.xlane.xlu0 %565
      %v567 = vsel %vm539, %v534, 0.0
      %568 = vadd.xlane.f32.xlu0 %v567
      %v569 = vpop.xlane.xlu0 %568
      %v570 = vsel %vm539, %v535, 0.0
      %571 = vadd.xlane.f32.xlu0 %v570
      %v572 = vpop.xlane.xlu0 %571
      %v573 = vsel %vm539, %v536, 0.0
      %574 = vadd.xlane.f32.xlu0 %v573
      %v575 = vpop.xlane.xlu0 %574
      %v576 = vrcp.pop 32.0
      %v577 = vmul.f32 32.0, %v576
      %v578 = vsub.f32 1.0, %v577
      %v579 = vmul.f32 %v576, %v578
      %v580 = vadd.f32 %v576, %v579
      %vm581 = vweird.f32 %v576
      %v582 = vsel %vm581, %v576, %v580
      %v583 = vmul.f32 %v542, %v582
      %v584 = vmul.f32 %v545, %v582
      %v585 = vmul.f32 %v548, %v582
      %v586 = vmul.f32 %v551, %v582
      %v587 = vmul.f32 %v554, %v582
      %v588 = vmul.f32 %v557, %v582
      %v589 = vmul.f32 %v560, %v582
      %v590 = vmul.f32 %v563, %v582
      %v591 = vmul.f32 %v566, %v582
      %v592 = vmul.f32 %v569, %v582
      %v593 = vmul.f32 %v572, %v582
      %v594 = vmul.f32 %v575, %v582
      %v595 = vsub.f32 %v525, %v583
      %v596 = vsub.f32 %v526, %v584
      %v597 = vsub.f32 %v527, %v585
      %v598 = vsub.f32 %v528, %v586
      %v599 = vsub.f32 %v529, %v587
      %v600 = vsub.f32 %v530, %v588
      %v601 = vsub.f32 %v531, %v589
      %v602 = vsub.f32 %v532, %v590
      %v603 = vsub.f32 %v533, %v591
      %v604 = vsub.f32 %v534, %v592
      %v605 = vsub.f32 %v535, %v593
      %v606 = vsub.f32 %v536, %v594
      %v607 = vmul.f32 %v595, %v595
      %v608 = vmul.f32 %v596, %v596
      %v609 = vmul.f32 %v597, %v597
      %v610 = vmul.f32 %v598, %v598
      %v611 = vmul.f32 %v599, %v599
      %v612 = vmul.f32 %v600, %v600
      %v613 = vmul.f32 %v601, %v601
      %v614 = vmul.f32 %v602, %v602
      %v615 = vmul.f32 %v603, %v603
      %v616 = vmul.f32 %v604, %v604
      %v617 = vmul.f32 %v605, %v605
      %v618 = vmul.f32 %v606, %v606
      %v619 = vsel %vm539, %v607, 0.0
      %620 = vadd.xlane.f32.xlu0 %v619
      %v621 = vpop.xlane.xlu0 %620
      %v622 = vsel %vm539, %v608, 0.0
      %623 = vadd.xlane.f32.xlu0 %v622
      %v624 = vpop.xlane.xlu0 %623
      %v625 = vsel %vm539, %v609, 0.0
      %626 = vadd.xlane.f32.xlu0 %v625
      %v627 = vpop.xlane.xlu0 %626
      %v628 = vsel %vm539, %v610, 0.0
      %629 = vadd.xlane.f32.xlu0 %v628
      %v630 = vpop.xlane.xlu0 %629
      %v631 = vsel %vm539, %v611, 0.0
      %632 = vadd.xlane.f32.xlu0 %v631
      %v633 = vpop.xlane.xlu0 %632
      %v634 = vsel %vm539, %v612, 0.0
      %635 = vadd.xlane.f32.xlu0 %v634
      %v636 = vpop.xlane.xlu0 %635
      %v637 = vsel %vm539, %v613, 0.0
      %638 = vadd.xlane.f32.xlu0 %v637
      %v639 = vpop.xlane.xlu0 %638
      %v640 = vsel %vm539, %v614, 0.0
      %641 = vadd.xlane.f32.xlu0 %v640
      %v642 = vpop.xlane.xlu0 %641
      %v643 = vsel %vm539, %v615, 0.0
      %644 = vadd.xlane.f32.xlu0 %v643
      %v645 = vpop.xlane.xlu0 %644
      %v646 = vsel %vm539, %v616, 0.0
      %647 = vadd.xlane.f32.xlu0 %v646
      %v648 = vpop.xlane.xlu0 %647
      %v649 = vsel %vm539, %v617, 0.0
      %650 = vadd.xlane.f32.xlu0 %v649
      %v651 = vpop.xlane.xlu0 %650
      %v652 = vsel %vm539, %v618, 0.0
      %653 = vadd.xlane.f32.xlu0 %v652
      %v654 = vpop.xlane.xlu0 %653
      %v655 = vmul.f32 %v621, %v582
      %v656 = vmul.f32 %v624, %v582
      %v657 = vmul.f32 %v627, %v582
      %v658 = vmul.f32 %v630, %v582
      %v659 = vmul.f32 %v633, %v582
      %v660 = vmul.f32 %v636, %v582
      %v661 = vmul.f32 %v639, %v582
      %v662 = vmul.f32 %v642, %v582
      %v663 = vmul.f32 %v645, %v582
      %v664 = vmul.f32 %v648, %v582
      %v665 = vmul.f32 %v651, %v582
      %v666 = vmul.f32 %v654, %v582
      %v667 = vadd.f32 %v655, 1e-12
      %v668 = vadd.f32 %v656, 1e-12
      %v669 = vadd.f32 %v657, 1e-12
      %v670 = vadd.f32 %v658, 1e-12
      %v671 = vadd.f32 %v659, 1e-12
      %v672 = vadd.f32 %v660, 1e-12
      %v673 = vadd.f32 %v661, 1e-12
      %v674 = vadd.f32 %v662, 1e-12
      %v675 = vadd.f32 %v663, 1e-12
      %v676 = vadd.f32 %v664, 1e-12
      %v677 = vadd.f32 %v665, 1e-12
      %v678 = vadd.f32 %v666, 1e-12
      %v679 = vrsqrt.pop %v667
      %v680 = vmul.f32 %v679, %v667
      %v681 = vmul.f32 %v680, %v679
      %v682 = vmul.f32 0.5, %v681
      %v683 = vsub.f32 1.5, %v682
      %v684 = vmul.f32 %v679, %v683
      %vm685 = vweird.f32 %v667
      %vm686 = vweird.f32 %v679
      %vm687 = vmor %vm685, %vm686
      %v688 = vsel %vm687, %v679, %v684
      %v689 = vrsqrt.pop %v668
      %v690 = vmul.f32 %v689, %v668
      %v691 = vmul.f32 %v690, %v689
      %v692 = vmul.f32 0.5, %v691
      %v693 = vsub.f32 1.5, %v692
      %v694 = vmul.f32 %v689, %v693
      %vm695 = vweird.f32 %v668
      %vm696 = vweird.f32 %v689
      %vm697 = vmor %vm695, %vm696
      %v698 = vsel %vm697, %v689, %v694
      %v699 = vrsqrt.pop %v669
      %v700 = vmul.f32 %v699, %v669
      %v701 = vmul.f32 %v700, %v699
      %v702 = vmul.f32 0.5, %v701
      %v703 = vsub.f32 1.5, %v702
      %v704 = vmul.f32 %v699, %v703
      %vm705 = vweird.f32 %v669
      %vm706 = vweird.f32 %v699
      %vm707 = vmor %vm705, %vm706
      %v708 = vsel %vm707, %v699, %v704
      %v709 = vrsqrt.pop %v670
      %v710 = vmul.f32 %v709, %v670
      %v711 = vmul.f32 %v710, %v709
      %v712 = vmul.f32 0.5, %v711
      %v713 = vsub.f32 1.5, %v712
      %v714 = vmul.f32 %v709, %v713
      %vm715 = vweird.f32 %v670
      %vm716 = vweird.f32 %v709
      %vm717 = vmor %vm715, %vm716
      %v718 = vsel %vm717, %v709, %v714
      %v719 = vrsqrt.pop %v671
      %v720 = vmul.f32 %v719, %v671
      %v721 = vmul.f32 %v720, %v719
      %v722 = vmul.f32 0.5, %v721
      %v723 = vsub.f32 1.5, %v722
      %v724 = vmul.f32 %v719, %v723
      %vm725 = vweird.f32 %v671
      %vm726 = vweird.f32 %v719
      %vm727 = vmor %vm725, %vm726
      %v728 = vsel %vm727, %v719, %v724
      %v729 = vrsqrt.pop %v672
      %v730 = vmul.f32 %v729, %v672
      %v731 = vmul.f32 %v730, %v729
      %v732 = vmul.f32 0.5, %v731
      %v733 = vsub.f32 1.5, %v732
      %v734 = vmul.f32 %v729, %v733
      %vm735 = vweird.f32 %v672
      %vm736 = vweird.f32 %v729
      %vm737 = vmor %vm735, %vm736
      %v738 = vsel %vm737, %v729, %v734
      %v739 = vrsqrt.pop %v673
      %v740 = vmul.f32 %v739, %v673
      %v741 = vmul.f32 %v740, %v739
      %v742 = vmul.f32 0.5, %v741
      %v743 = vsub.f32 1.5, %v742
      %v744 = vmul.f32 %v739, %v743
      %vm745 = vweird.f32 %v673
      %vm746 = vweird.f32 %v739
      %vm747 = vmor %vm745, %vm746
      %v748 = vsel %vm747, %v739, %v744
      %v749 = vrsqrt.pop %v674
      %v750 = vmul.f32 %v749, %v674
      %v751 = vmul.f32 %v750, %v749
      %v752 = vmul.f32 0.5, %v751
      %v753 = vsub.f32 1.5, %v752
      %v754 = vmul.f32 %v749, %v753
      %vm755 = vweird.f32 %v674
      %vm756 = vweird.f32 %v749
      %vm757 = vmor %vm755, %vm756
      %v758 = vsel %vm757, %v749, %v754
      %v759 = vrsqrt.pop %v675
      %v760 = vmul.f32 %v759, %v675
      %v761 = vmul.f32 %v760, %v759
      %v762 = vmul.f32 0.5, %v761
      %v763 = vsub.f32 1.5, %v762
      %v764 = vmul.f32 %v759, %v763
      %vm765 = vweird.f32 %v675
      %vm766 = vweird.f32 %v759
      %vm767 = vmor %vm765, %vm766
      %v768 = vsel %vm767, %v759, %v764
      %v769 = vrsqrt.pop %v676
      %v770 = vmul.f32 %v769, %v676
      %v771 = vmul.f32 %v770, %v769
      %v772 = vmul.f32 0.5, %v771
      %v773 = vsub.f32 1.5, %v772
      %v774 = vmul.f32 %v769, %v773
      %vm775 = vweird.f32 %v676
      %vm776 = vweird.f32 %v769
      %vm777 = vmor %vm775, %vm776
      %v778 = vsel %vm777, %v769, %v774
      %v779 = vrsqrt.pop %v677
      %v780 = vmul.f32 %v779, %v677
      %v781 = vmul.f32 %v780, %v779
      %v782 = vmul.f32 0.5, %v781
      %v783 = vsub.f32 1.5, %v782
      %v784 = vmul.f32 %v779, %v783
      %vm785 = vweird.f32 %v677
      %vm786 = vweird.f32 %v779
      %vm787 = vmor %vm785, %vm786
      %v788 = vsel %vm787, %v779, %v784
      %v789 = vrsqrt.pop %v678
      %v790 = vmul.f32 %v789, %v678
      %v791 = vmul.f32 %v790, %v789
      %v792 = vmul.f32 0.5, %v791
      %v793 = vsub.f32 1.5, %v792
      %v794 = vmul.f32 %v789, %v793
      %vm795 = vweird.f32 %v678
      %vm796 = vweird.f32 %v789
      %vm797 = vmor %vm795, %vm796
      %v798 = vsel %vm797, %v789, %v794
      %v799 = vmul.f32 %v595, %v688
      %v800 = vmul.f32 %v596, %v698
      %v801 = vmul.f32 %v597, %v708
      %v802 = vmul.f32 %v598, %v718
      %v803 = vmul.f32 %v599, %v728
      %v804 = vmul.f32 %v600, %v738
      %v805 = vmul.f32 %v601, %v748
      %v806 = vmul.f32 %v602, %v758
      %v807 = vmul.f32 %v603, %v768
      %v808 = vmul.f32 %v604, %v778
      %v809 = vmul.f32 %v605, %v788
      %v810 = vmul.f32 %v606, %v798
      %v812 = vperm.slane %v537, 0
      %v814 = vmul.f32 %v799, %v812
      %v815 = vmul.f32 %v800, %v812
      %v816 = vmul.f32 %v801, %v812
      %v817 = vmul.f32 %v802, %v812
      %v818 = vmul.f32 %v803, %v812
      %v819 = vmul.f32 %v804, %v812
      %v820 = vmul.f32 %v805, %v812
      %v821 = vmul.f32 %v806, %v812
      %v822 = vmul.f32 %v807, %v812
      %v823 = vmul.f32 %v808, %v812
      %v824 = vmul.f32 %v809, %v812
      %v825 = vmul.f32 %v810, %v812
      %v827 = vperm.slane %v538, 0
      %v829 = vadd.f32 %v814, %v827
      %v830 = vadd.f32 %v815, %v827
      %v831 = vadd.f32 %v816, %v827
      %v832 = vadd.f32 %v817, %v827
      %v833 = vadd.f32 %v818, %v827
      %v834 = vadd.f32 %v819, %v827
      %v835 = vadd.f32 %v820, %v827
      %v836 = vadd.f32 %v821, %v827
      %v837 = vadd.f32 %v822, %v827
      %v838 = vadd.f32 %v823, %v827
      %v839 = vadd.f32 %v824, %v827
      %v840 = vadd.f32 %v825, %v827
      %v841 = vld [vmem:[%s2] sm:$0xff]
      %v842 = vld [vmem:[%s2 + $0x8] sm:$0xff]
      %v843 = vld [vmem:[%s2 + $0x10] sm:$0xff]
      %v844 = vld [vmem:[%s2 + $0x18] sm:$0xff]
      %v845 = vld [vmem:[%s3] sm:$0x1]
      %v847 = vperm.slane %v845, 0
      %v850 = vsel %vm539, %v829, 0
      %v853 = vsel %vm539, %v830, 0
      %v856 = vsel %vm539, %v831, 0
      %v859 = vsel %vm539, %v832, 0
      %v862 = vsel %vm539, %v833, 0
      %v865 = vsel %vm539, %v834, 0
      %v868 = vsel %vm539, %v835, 0
      %v871 = vsel %vm539, %v836, 0
      %v874 = vsel %vm539, %v837, 0
      %v877 = vsel %vm539, %v838, 0
      %v880 = vsel %vm539, %v839, 0
      %v883 = vsel %vm539, %v840, 0
      %885 = vmatpush.msra.mxu0 0.0
      %886 = vmatpush.msra.mxu0 0.0
      %887 = vmatpush.msra.mxu0 0.0
      %888 = vmatpush.msra.mxu0 0.0
      %889 = vmatpush.msra.mxu0 0.0
      %890 = vmatpush.msra.mxu0 0.0
      %891 = vmatpush.msra.mxu0 0.0
      %892 = vmatpush.msra.mxu0 0.0
      %893 = vmatpush.msra.mxu0 0.0
      %894 = vmatpush.msra.mxu0 0.0
      %895 = vmatpush.msra.mxu0 0.0
      %896 = vmatpush.msra.mxu0 0.0
      %897 = vmatpush.msra.mxu0 %v844
      %898 = vmatpush.msra.mxu0 %v843
      %899 = vmatpush.msra.mxu0 %v842
      %900 = vmatpush.msra.mxu0 %v841
      %901 = vmatmul.f32.gmra.mxu0 %v850
      %v902 = vpop.f32.mrf.mxu0
      %v903 = vadd.f32 %v847, %v902
      %904 = vmatmul.f32.gmra.mxu0 %v853
      %v905 = vpop.f32.mrf.mxu0
      %v906 = vadd.f32 %v847, %v905
      %907 = vmatmul.f32.gmra.mxu0 %v856
      %v908 = vpop.f32.mrf.mxu0
      %v909 = vadd.f32 %v847, %v908
      %910 = vmatmul.f32.gmra.mxu0 %v859
      %v911 = vpop.f32.mrf.mxu0
      %v912 = vadd.f32 %v847, %v911
      %913 = vmatmul.f32.gmra.mxu0 %v862
      %v914 = vpop.f32.mrf.mxu0
      %v915 = vadd.f32 %v847, %v914
      %916 = vmatmul.f32.gmra.mxu0 %v865
      %v917 = vpop.f32.mrf.mxu0
      %v918 = vadd.f32 %v847, %v917
      %919 = vmatmul.f32.gmra.mxu0 %v868
      %v920 = vpop.f32.mrf.mxu0
      %v921 = vadd.f32 %v847, %v920
      %922 = vmatmul.f32.gmra.mxu0 %v871
      %v923 = vpop.f32.mrf.mxu0
      %v924 = vadd.f32 %v847, %v923
      %925 = vmatmul.f32.gmra.mxu0 %v874
      %v926 = vpop.f32.mrf.mxu0
      %v927 = vadd.f32 %v847, %v926
      %928 = vmatmul.f32.gmra.mxu0 %v877
      %v929 = vpop.f32.mrf.mxu0
      %v930 = vadd.f32 %v847, %v929
      %931 = vmatmul.f32.gmra.mxu0 %v880
      %v932 = vpop.f32.mrf.mxu0
      %v933 = vadd.f32 %v847, %v932
      %934 = vmatmul.f32.gmra.mxu0 %v883
      %v935 = vpop.f32.mrf.mxu0
      %v936 = vadd.f32 %v847, %v935
      %937 = vdwg.mxu0
      %v938 = vld [vmem:[%s1] sm:$0xff]
      %v939 = vld [vmem:[%s1 + $0x8] sm:$0xff]
      %v940 = vld [vmem:[%s1 + $0x10] sm:$0xff]
      %v941 = vld [vmem:[%s1 + $0x18] sm:$0xff]
      %v942 = vld [vmem:[%s1 + $0x20] sm:$0xff]
      %v943 = vld [vmem:[%s1 + $0x28] sm:$0xff]
      %v944 = vld [vmem:[%s1 + $0x30] sm:$0xff]
      %v945 = vld [vmem:[%s1 + $0x38] sm:$0xff]
      %v946 = vld [vmem:[%s1 + $0x40] sm:$0xff]
      %v947 = vld [vmem:[%s1 + $0x48] sm:$0xff]
      %v948 = vld [vmem:[%s1 + $0x50] sm:$0xff]
      %v949 = vld [vmem:[%s1 + $0x58] sm:$0xff]
      %v950 = vld [vmem:[%s4] sm:$0xff]
      %v951 = vld [vmem:[%s4 + $0x8] sm:$0xff]
      %v952 = vld [vmem:[%s4 + $0x10] sm:$0xff]
      %v953 = vld [vmem:[%s4 + $0x18] sm:$0xff]
      %966 = vrot.lane.b32.xlu0 %v903, 96
      %v967 = vpop.permute.xlu0 %966
      %968 = vrot.lane.b32.xlu0 %v906, 96
      %v969 = vpop.permute.xlu0 %968
      %970 = vrot.lane.b32.xlu0 %v909, 96
      %v971 = vpop.permute.xlu0 %970
      %972 = vrot.lane.b32.xlu0 %v912, 96
      %v973 = vpop.permute.xlu0 %972
      %974 = vrot.lane.b32.xlu0 %v915, 96
      %v975 = vpop.permute.xlu0 %974
      %976 = vrot.lane.b32.xlu0 %v918, 96
      %v977 = vpop.permute.xlu0 %976
      %978 = vrot.lane.b32.xlu0 %v921, 96
      %v979 = vpop.permute.xlu0 %978
      %980 = vrot.lane.b32.xlu0 %v924, 96
      %v981 = vpop.permute.xlu0 %980
      %982 = vrot.lane.b32.xlu0 %v927, 96
      %v983 = vpop.permute.xlu0 %982
      %984 = vrot.lane.b32.xlu0 %v930, 96
      %v985 = vpop.permute.xlu0 %984
      %986 = vrot.lane.b32.xlu0 %v933, 96
      %v987 = vpop.permute.xlu0 %986
      %988 = vrot.lane.b32.xlu0 %v936, 96
      %v989 = vpop.permute.xlu0 %988
      %vm990 = vcmask 64512
      %v991 = vsel %vm990, %v903, 0
      %v993 = vsel %vm990, %v906, 0
      %v995 = vsel %vm990, %v909, 0
      %v997 = vsel %vm990, %v912, 0
      %v999 = vsel %vm990, %v915, 0
      %v1001 = vsel %vm990, %v918, 0
      %v1003 = vsel %vm990, %v921, 0
      %v1005 = vsel %vm990, %v924, 0
      %v1007 = vsel %vm990, %v927, 0
      %v1009 = vsel %vm990, %v930, 0
      %v1011 = vsel %vm990, %v933, 0
      %v1013 = vsel %vm990, %v936, 0
      %v1015 = vsel %vm990, %v967, 0
      %v1017 = vsel %vm990, %v969, 0
      %v1019 = vsel %vm990, %v971, 0
      %v1021 = vsel %vm990, %v973, 0
      %v1023 = vsel %vm990, %v975, 0
      %v1025 = vsel %vm990, %v977, 0
      %v1027 = vsel %vm990, %v979, 0
      %v1029 = vsel %vm990, %v981, 0
      %v1031 = vsel %vm990, %v983, 0
      %v1033 = vsel %vm990, %v985, 0
      %v1035 = vsel %vm990, %v987, 0
      %v1037 = vsel %vm990, %v989, 0
      %1039 = vmatpush.xpose.msra.mxu0 0.0
      %1040 = vmatpush.xpose.msra.mxu0 0.0
      %1041 = vmatpush.xpose.msra.mxu0 0.0
      %1042 = vmatpush.xpose.msra.mxu0 0.0
      %1043 = vmatpush.xpose.msra.mxu0 %v1037
      %1044 = vmatpush.xpose.msra.mxu0 %v1035
      %1045 = vmatpush.xpose.msra.mxu0 %v1033
      %1046 = vmatpush.xpose.msra.mxu0 %v1031
      %1047 = vmatpush.xpose.msra.mxu0 %v1029
      %1048 = vmatpush.xpose.msra.mxu0 %v1027
      %1049 = vmatpush.xpose.msra.mxu0 %v1025
      %1050 = vmatpush.xpose.msra.mxu0 %v1023
      %1051 = vmatpush.xpose.msra.mxu0 %v1021
      %1052 = vmatpush.xpose.msra.mxu0 %v1019
      %1053 = vmatpush.xpose.msra.mxu0 %v1017
      %1054 = vmatpush.xpose.msra.mxu0 %v1015
      %1055 = vmatmul.f32.gmra.mxu0 %v991
      %v1056 = vpop.f32.mrf.mxu0
      %v1057 = vadd.f32 0.0, %v1056
      %1058 = vmatmul.f32.gmra.mxu0 %v993
      %v1059 = vpop.f32.mrf.mxu0
      %v1060 = vadd.f32 0.0, %v1059
      %1061 = vmatmul.f32.gmra.mxu0 %v995
      %v1062 = vpop.f32.mrf.mxu0
      %v1063 = vadd.f32 0.0, %v1062
      %1064 = vmatmul.f32.gmra.mxu0 %v997
      %v1065 = vpop.f32.mrf.mxu0
      %v1066 = vadd.f32 0.0, %v1065
      %1067 = vmatmul.f32.gmra.mxu0 %v999
      %v1068 = vpop.f32.mrf.mxu0
      %v1069 = vadd.f32 0.0, %v1068
      %1070 = vmatmul.f32.gmra.mxu0 %v1001
      %v1071 = vpop.f32.mrf.mxu0
      %v1072 = vadd.f32 0.0, %v1071
      %1073 = vmatmul.f32.gmra.mxu0 %v1003
      %v1074 = vpop.f32.mrf.mxu0
      %v1075 = vadd.f32 0.0, %v1074
      %1076 = vmatmul.f32.gmra.mxu0 %v1005
      %v1077 = vpop.f32.mrf.mxu0
      %v1078 = vadd.f32 0.0, %v1077
      %1079 = vmatmul.f32.gmra.mxu0 %v1007
      %v1080 = vpop.f32.mrf.mxu0
      %v1081 = vadd.f32 0.0, %v1080
      %1082 = vmatmul.f32.gmra.mxu0 %v1009
      %v1083 = vpop.f32.mrf.mxu0
      %v1084 = vadd.f32 0.0, %v1083
      %1085 = vmatmul.f32.gmra.mxu0 %v1011
      %v1086 = vpop.f32.mrf.mxu0
      %v1087 = vadd.f32 0.0, %v1086
      %1088 = vmatmul.f32.gmra.mxu0 %v1013
      %v1089 = vpop.f32.mrf.mxu0
      %v1090 = vadd.f32 0.0, %v1089
      %1091 = vdwg.mxu0
      %v1092 = vmul.f32 %v1057, 0.35355338
      %v1093 = vmul.f32 %v1060, 0.35355338
      %v1094 = vmul.f32 %v1063, 0.35355338
      %v1095 = vmul.f32 %v1066, 0.35355338
      %v1096 = vmul.f32 %v1069, 0.35355338
      %v1097 = vmul.f32 %v1072, 0.35355338
      %v1098 = vmul.f32 %v1075, 0.35355338
      %v1099 = vmul.f32 %v1078, 0.35355338
      %v1100 = vmul.f32 %v1081, 0.35355338
      %v1101 = vmul.f32 %v1084, 0.35355338
      %v1102 = vmul.f32 %v1087, 0.35355338
      %v1103 = vmul.f32 %v1090, 0.35355338
      %v1104 = vadd.f32 %v1092, %v938
      %v1105 = vadd.f32 %v1093, %v939
      %v1106 = vadd.f32 %v1094, %v940
      %v1107 = vadd.f32 %v1095, %v941
      %v1108 = vadd.f32 %v1096, %v942
      %v1109 = vadd.f32 %v1097, %v943
      %v1110 = vadd.f32 %v1098, %v944
      %v1111 = vadd.f32 %v1099, %v945
      %v1112 = vadd.f32 %v1100, %v946
      %v1113 = vadd.f32 %v1101, %v947
      %v1114 = vadd.f32 %v1102, %v948
      %v1115 = vadd.f32 %v1103, %v949
      %vm1116 = vcmask 785408
      %v1117 = vsel %vm1116, %v1104, -inf
      %1118 = vmax.xlane.f32.xlu0 %v1117
      %v1119 = vpop.xlane.xlu0 %1118
      %v1120 = vsel %vm1116, %v1105, -inf
      %1121 = vmax.xlane.f32.xlu0 %v1120
      %v1122 = vpop.xlane.xlu0 %1121
      %v1123 = vsel %vm1116, %v1106, -inf
      %1124 = vmax.xlane.f32.xlu0 %v1123
      %v1125 = vpop.xlane.xlu0 %1124
      %v1126 = vsel %vm1116, %v1107, -inf
      %1127 = vmax.xlane.f32.xlu0 %v1126
      %v1128 = vpop.xlane.xlu0 %1127
      %v1129 = vsel %vm1116, %v1108, -inf
      %1130 = vmax.xlane.f32.xlu0 %v1129
      %v1131 = vpop.xlane.xlu0 %1130
      %v1132 = vsel %vm1116, %v1109, -inf
      %1133 = vmax.xlane.f32.xlu0 %v1132
      %v1134 = vpop.xlane.xlu0 %1133
      %v1135 = vsel %vm1116, %v1110, -inf
      %1136 = vmax.xlane.f32.xlu0 %v1135
      %v1137 = vpop.xlane.xlu0 %1136
      %v1138 = vsel %vm1116, %v1111, -inf
      %1139 = vmax.xlane.f32.xlu0 %v1138
      %v1140 = vpop.xlane.xlu0 %1139
      %v1141 = vsel %vm1116, %v1112, -inf
      %1142 = vmax.xlane.f32.xlu0 %v1141
      %v1143 = vpop.xlane.xlu0 %1142
      %v1144 = vsel %vm1116, %v1113, -inf
      %1145 = vmax.xlane.f32.xlu0 %v1144
      %v1146 = vpop.xlane.xlu0 %1145
      %v1147 = vsel %vm1116, %v1114, -inf
      %1148 = vmax.xlane.f32.xlu0 %v1147
      %v1149 = vpop.xlane.xlu0 %1148
      %v1150 = vsel %vm1116, %v1115, -inf
      %1151 = vmax.xlane.f32.xlu0 %v1150
      %v1152 = vpop.xlane.xlu0 %1151
      %v1153 = vsub.f32 %v1104, %v1119
      %v1154 = vsub.f32 %v1105, %v1122
      %v1155 = vsub.f32 %v1106, %v1125
      %v1156 = vsub.f32 %v1107, %v1128
      %v1157 = vsub.f32 %v1108, %v1131
      %v1158 = vsub.f32 %v1109, %v1134
      %v1159 = vsub.f32 %v1110, %v1137
      %v1160 = vsub.f32 %v1111, %v1140
      %v1161 = vsub.f32 %v1112, %v1143
      %v1162 = vsub.f32 %v1113, %v1146
      %v1163 = vsub.f32 %v1114, %v1149
      %v1164 = vsub.f32 %v1115, %v1152
      %v1165 = vmul.f32 %v1153, 1.442695
      %v1166 = vpow.pop %v1165
      %v1167 = vmul.f32 %v1154, 1.442695
      %v1168 = vpow.pop %v1167
      %v1169 = vmul.f32 %v1155, 1.442695
      %v1170 = vpow.pop %v1169
      %v1171 = vmul.f32 %v1156, 1.442695
      %v1172 = vpow.pop %v1171
      %v1173 = vmul.f32 %v1157, 1.442695
      %v1174 = vpow.pop %v1173
      %v1175 = vmul.f32 %v1158, 1.442695
      %v1176 = vpow.pop %v1175
      %v1177 = vmul.f32 %v1159, 1.442695
      %v1178 = vpow.pop %v1177
      %v1179 = vmul.f32 %v1160, 1.442695
      %v1180 = vpow.pop %v1179
      %v1181 = vmul.f32 %v1161, 1.442695
      %v1182 = vpow.pop %v1181
      %v1183 = vmul.f32 %v1162, 1.442695
      %v1184 = vpow.pop %v1183
      %v1185 = vmul.f32 %v1163, 1.442695
      %v1186 = vpow.pop %v1185
      %v1187 = vmul.f32 %v1164, 1.442695
      %v1188 = vpow.pop %v1187
      %v1189 = vsel %vm1116, %v1166, 0.0
      %1190 = vadd.xlane.f32.xlu0 %v1189
      %v1191 = vpop.xlane.xlu0 %1190
      %v1192 = vsel %vm1116, %v1168, 0.0
      %1193 = vadd.xlane.f32.xlu0 %v1192
      %v1194 = vpop.xlane.xlu0 %1193
      %v1195 = vsel %vm1116, %v1170, 0.0
      %1196 = vadd.xlane.f32.xlu0 %v1195
      %v1197 = vpop.xlane.xlu0 %1196
      %v1198 = vsel %vm1116, %v1172, 0.0
      %1199 = vadd.xlane.f32.xlu0 %v1198
      %v1200 = vpop.xlane.xlu0 %1199
      %v1201 = vsel %vm1116, %v1174, 0.0
      %1202 = vadd.xlane.f32.xlu0 %v1201
      %v1203 = vpop.xlane.xlu0 %1202
      %v1204 = vsel %vm1116, %v1176, 0.0
      %1205 = vadd.xlane.f32.xlu0 %v1204
      %v1206 = vpop.xlane.xlu0 %1205
      %v1207 = vsel %vm1116, %v1178, 0.0
      %1208 = vadd.xlane.f32.xlu0 %v1207
      %v1209 = vpop.xlane.xlu0 %1208
      %v1210 = vsel %vm1116, %v1180, 0.0
      %1211 = vadd.xlane.f32.xlu0 %v1210
      %v1212 = vpop.xlane.xlu0 %1211
      %v1213 = vsel %vm1116, %v1182, 0.0
      %1214 = vadd.xlane.f32.xlu0 %v1213
      %v1215 = vpop.xlane.xlu0 %1214
      %v1216 = vsel %vm1116, %v1184, 0.0
      %1217 = vadd.xlane.f32.xlu0 %v1216
      %v1218 = vpop.xlane.xlu0 %1217
      %v1219 = vsel %vm1116, %v1186, 0.0
      %1220 = vadd.xlane.f32.xlu0 %v1219
      %v1221 = vpop.xlane.xlu0 %1220
      %v1222 = vsel %vm1116, %v1188, 0.0
      %1223 = vadd.xlane.f32.xlu0 %v1222
      %v1224 = vpop.xlane.xlu0 %1223
      %v1225 = vrcp.pop %v1191
      %v1226 = vrcp.pop %v1194
      %v1227 = vrcp.pop %v1197
      %v1228 = vrcp.pop %v1200
      %v1229 = vrcp.pop %v1203
      %v1230 = vrcp.pop %v1206
      %v1231 = vrcp.pop %v1209
      %v1232 = vrcp.pop %v1212
      %v1233 = vrcp.pop %v1215
      %v1234 = vrcp.pop %v1218
      %v1235 = vrcp.pop %v1221
      %v1236 = vrcp.pop %v1224
      %v1237 = vmul.f32 %v1166, %v1225
      %v1238 = vmul.f32 %v1168, %v1226
      %v1239 = vmul.f32 %v1170, %v1227
      %v1240 = vmul.f32 %v1172, %v1228
      %v1241 = vmul.f32 %v1174, %v1229
      %v1242 = vmul.f32 %v1176, %v1230
      %v1243 = vmul.f32 %v1178, %v1231
      %v1244 = vmul.f32 %v1180, %v1232
      %v1245 = vmul.f32 %v1182, %v1233
      %v1246 = vmul.f32 %v1184, %v1234
      %v1247 = vmul.f32 %v1186, %v1235
      %v1248 = vmul.f32 %v1188, %v1236
      %1249 = vrot.lane.b32.xlu0 %v903, 64
      %v1250 = vpop.permute.xlu0 %1249
      %1251 = vrot.lane.b32.xlu0 %v906, 64
      %v1252 = vpop.permute.xlu0 %1251
      %1253 = vrot.lane.b32.xlu0 %v909, 64
      %v1254 = vpop.permute.xlu0 %1253
      %1255 = vrot.lane.b32.xlu0 %v912, 64
      %v1256 = vpop.permute.xlu0 %1255
      %1257 = vrot.lane.b32.xlu0 %v915, 64
      %v1258 = vpop.permute.xlu0 %1257
      %1259 = vrot.lane.b32.xlu0 %v918, 64
      %v1260 = vpop.permute.xlu0 %1259
      %1261 = vrot.lane.b32.xlu0 %v921, 64
      %v1262 = vpop.permute.xlu0 %1261
      %1263 = vrot.lane.b32.xlu0 %v924, 64
      %v1264 = vpop.permute.xlu0 %1263
      %1265 = vrot.lane.b32.xlu0 %v927, 64
      %v1266 = vpop.permute.xlu0 %1265
      %1267 = vrot.lane.b32.xlu0 %v930, 64
      %v1268 = vpop.permute.xlu0 %1267
      %1269 = vrot.lane.b32.xlu0 %v933, 64
      %v1270 = vpop.permute.xlu0 %1269
      %1271 = vrot.lane.b32.xlu0 %v936, 64
      %v1272 = vpop.permute.xlu0 %1271
      %v1286 = vsel %vm1116, %v1237, 0
      %v1289 = vsel %vm1116, %v1238, 0
      %v1292 = vsel %vm1116, %v1239, 0
      %v1295 = vsel %vm1116, %v1240, 0
      %v1298 = vsel %vm1116, %v1241, 0
      %v1301 = vsel %vm1116, %v1242, 0
      %v1304 = vsel %vm1116, %v1243, 0
      %v1307 = vsel %vm1116, %v1244, 0
      %v1310 = vsel %vm1116, %v1245, 0
      %v1313 = vsel %vm1116, %v1246, 0
      %v1316 = vsel %vm1116, %v1247, 0
      %v1319 = vsel %vm1116, %v1248, 0
      %1321 = vmatpush.msra.mxu0 0.0
      %1322 = vmatpush.msra.mxu0 0.0
      %1323 = vmatpush.msra.mxu0 0.0
      %1324 = vmatpush.msra.mxu0 0.0
      %1325 = vmatpush.msra.mxu0 %v1272
      %1326 = vmatpush.msra.mxu0 %v1270
      %1327 = vmatpush.msra.mxu0 %v1268
      %1328 = vmatpush.msra.mxu0 %v1266
      %1329 = vmatpush.msra.mxu0 %v1264
      %1330 = vmatpush.msra.mxu0 %v1262
      %1331 = vmatpush.msra.mxu0 %v1260
      %1332 = vmatpush.msra.mxu0 %v1258
      %1333 = vmatpush.msra.mxu0 %v1256
      %1334 = vmatpush.msra.mxu0 %v1254
      %1335 = vmatpush.msra.mxu0 %v1252
      %1336 = vmatpush.msra.mxu0 %v1250
      %1337 = vmatmul.f32.gmra.mxu0 %v1286
      %v1338 = vpop.f32.mrf.mxu0
      %v1339 = vadd.f32 0.0, %v1338
      %1340 = vmatmul.f32.gmra.mxu0 %v1289
      %v1341 = vpop.f32.mrf.mxu0
      %v1342 = vadd.f32 0.0, %v1341
      %1343 = vmatmul.f32.gmra.mxu0 %v1292
      %v1344 = vpop.f32.mrf.mxu0
      %v1345 = vadd.f32 0.0, %v1344
      %1346 = vmatmul.f32.gmra.mxu0 %v1295
      %v1347 = vpop.f32.mrf.mxu0
      %v1348 = vadd.f32 0.0, %v1347
      %1349 = vmatmul.f32.gmra.mxu0 %v1298
      %v1350 = vpop.f32.mrf.mxu0
      %v1351 = vadd.f32 0.0, %v1350
      %1352 = vmatmul.f32.gmra.mxu0 %v1301
      %v1353 = vpop.f32.mrf.mxu0
      %v1354 = vadd.f32 0.0, %v1353
      %1355 = vmatmul.f32.gmra.mxu0 %v1304
      %v1356 = vpop.f32.mrf.mxu0
      %v1357 = vadd.f32 0.0, %v1356
      %1358 = vmatmul.f32.gmra.mxu0 %v1307
      %v1359 = vpop.f32.mrf.mxu0
      %v1360 = vadd.f32 0.0, %v1359
      %1361 = vmatmul.f32.gmra.mxu0 %v1310
      %v1362 = vpop.f32.mrf.mxu0
      %v1363 = vadd.f32 0.0, %v1362
      %1364 = vmatmul.f32.gmra.mxu0 %v1313
      %v1365 = vpop.f32.mrf.mxu0
      %v1366 = vadd.f32 0.0, %v1365
      %1367 = vmatmul.f32.gmra.mxu0 %v1316
      %v1368 = vpop.f32.mrf.mxu0
      %v1369 = vadd.f32 0.0, %v1368
      %1370 = vmatmul.f32.gmra.mxu0 %v1319
      %v1371 = vpop.f32.mrf.mxu0
      %v1372 = vadd.f32 0.0, %v1371
      %1373 = vdwg.mxu0
      %1374 = vrot.lane.b32.xlu0 %v903, 120
      %v1375 = vpop.permute.xlu0 %1374
      %1376 = vrot.lane.b32.xlu0 %v906, 120
      %v1377 = vpop.permute.xlu0 %1376
      %1378 = vrot.lane.b32.xlu0 %v909, 120
      %v1379 = vpop.permute.xlu0 %1378
      %1380 = vrot.lane.b32.xlu0 %v912, 120
      %v1381 = vpop.permute.xlu0 %1380
      %1382 = vrot.lane.b32.xlu0 %v915, 120
      %v1383 = vpop.permute.xlu0 %1382
      %1384 = vrot.lane.b32.xlu0 %v918, 120
      %v1385 = vpop.permute.xlu0 %1384
      %1386 = vrot.lane.b32.xlu0 %v921, 120
      %v1387 = vpop.permute.xlu0 %1386
      %1388 = vrot.lane.b32.xlu0 %v924, 120
      %v1389 = vpop.permute.xlu0 %1388
      %1390 = vrot.lane.b32.xlu0 %v927, 120
      %v1391 = vpop.permute.xlu0 %1390
      %1392 = vrot.lane.b32.xlu0 %v930, 120
      %v1393 = vpop.permute.xlu0 %1392
      %1394 = vrot.lane.b32.xlu0 %v933, 120
      %v1395 = vpop.permute.xlu0 %1394
      %1396 = vrot.lane.b32.xlu0 %v936, 120
      %v1397 = vpop.permute.xlu0 %1396
      %1398 = vrot.lane.b32.xlu0 %v903, 88
      %v1399 = vpop.permute.xlu0 %1398
      %1400 = vrot.lane.b32.xlu0 %v906, 88
      %v1401 = vpop.permute.xlu0 %1400
      %1402 = vrot.lane.b32.xlu0 %v909, 88
      %v1403 = vpop.permute.xlu0 %1402
      %1404 = vrot.lane.b32.xlu0 %v912, 88
      %v1405 = vpop.permute.xlu0 %1404
      %1406 = vrot.lane.b32.xlu0 %v915, 88
      %v1407 = vpop.permute.xlu0 %1406
      %1408 = vrot.lane.b32.xlu0 %v918, 88
      %v1409 = vpop.permute.xlu0 %1408
      %1410 = vrot.lane.b32.xlu0 %v921, 88
      %v1411 = vpop.permute.xlu0 %1410
      %1412 = vrot.lane.b32.xlu0 %v924, 88
      %v1413 = vpop.permute.xlu0 %1412
      %1414 = vrot.lane.b32.xlu0 %v927, 88
      %v1415 = vpop.permute.xlu0 %1414
      %1416 = vrot.lane.b32.xlu0 %v930, 88
      %v1417 = vpop.permute.xlu0 %1416
      %1418 = vrot.lane.b32.xlu0 %v933, 88
      %v1419 = vpop.permute.xlu0 %1418
      %1420 = vrot.lane.b32.xlu0 %v936, 88
      %v1421 = vpop.permute.xlu0 %1420
      %v1422 = vsel %vm990, %v1375, 0
      %v1424 = vsel %vm990, %v1377, 0
      %v1426 = vsel %vm990, %v1379, 0
      %v1428 = vsel %vm990, %v1381, 0
      %v1430 = vsel %vm990, %v1383, 0
      %v1432 = vsel %vm990, %v1385, 0
      %v1434 = vsel %vm990, %v1387, 0
      %v1436 = vsel %vm990, %v1389, 0
      %v1438 = vsel %vm990, %v1391, 0
      %v1440 = vsel %vm990, %v1393, 0
      %v1442 = vsel %vm990, %v1395, 0
      %v1444 = vsel %vm990, %v1397, 0
      %v1446 = vsel %vm990, %v1399, 0
      %v1448 = vsel %vm990, %v1401, 0
      %v1450 = vsel %vm990, %v1403, 0
      %v1452 = vsel %vm990, %v1405, 0
      %v1454 = vsel %vm990, %v1407, 0
      %v1456 = vsel %vm990, %v1409, 0
      %v1458 = vsel %vm990, %v1411, 0
      %v1460 = vsel %vm990, %v1413, 0
      %v1462 = vsel %vm990, %v1415, 0
      %v1464 = vsel %vm990, %v1417, 0
      %v1466 = vsel %vm990, %v1419, 0
      %v1468 = vsel %vm990, %v1421, 0
      %1470 = vmatpush.xpose.msra.mxu0 0.0
      %1471 = vmatpush.xpose.msra.mxu0 0.0
      %1472 = vmatpush.xpose.msra.mxu0 0.0
      %1473 = vmatpush.xpose.msra.mxu0 0.0
      %1474 = vmatpush.xpose.msra.mxu0 %v1468
      %1475 = vmatpush.xpose.msra.mxu0 %v1466
      %1476 = vmatpush.xpose.msra.mxu0 %v1464
      %1477 = vmatpush.xpose.msra.mxu0 %v1462
      %1478 = vmatpush.xpose.msra.mxu0 %v1460
      %1479 = vmatpush.xpose.msra.mxu0 %v1458
      %1480 = vmatpush.xpose.msra.mxu0 %v1456
      %1481 = vmatpush.xpose.msra.mxu0 %v1454
      %1482 = vmatpush.xpose.msra.mxu0 %v1452
      %1483 = vmatpush.xpose.msra.mxu0 %v1450
      %1484 = vmatpush.xpose.msra.mxu0 %v1448
      %1485 = vmatpush.xpose.msra.mxu0 %v1446
      %1486 = vmatmul.f32.gmra.mxu0 %v1422
      %v1487 = vpop.f32.mrf.mxu0
      %v1488 = vadd.f32 0.0, %v1487
      %1489 = vmatmul.f32.gmra.mxu0 %v1424
      %v1490 = vpop.f32.mrf.mxu0
      %v1491 = vadd.f32 0.0, %v1490
      %1492 = vmatmul.f32.gmra.mxu0 %v1426
      %v1493 = vpop.f32.mrf.mxu0
      %v1494 = vadd.f32 0.0, %v1493
      %1495 = vmatmul.f32.gmra.mxu0 %v1428
      %v1496 = vpop.f32.mrf.mxu0
      %v1497 = vadd.f32 0.0, %v1496
      %1498 = vmatmul.f32.gmra.mxu0 %v1430
      %v1499 = vpop.f32.mrf.mxu0
      %v1500 = vadd.f32 0.0, %v1499
      %1501 = vmatmul.f32.gmra.mxu0 %v1432
      %v1502 = vpop.f32.mrf.mxu0
      %v1503 = vadd.f32 0.0, %v1502
      %1504 = vmatmul.f32.gmra.mxu0 %v1434
      %v1505 = vpop.f32.mrf.mxu0
      %v1506 = vadd.f32 0.0, %v1505
      %1507 = vmatmul.f32.gmra.mxu0 %v1436
      %v1508 = vpop.f32.mrf.mxu0
      %v1509 = vadd.f32 0.0, %v1508
      %1510 = vmatmul.f32.gmra.mxu0 %v1438
      %v1511 = vpop.f32.mrf.mxu0
      %v1512 = vadd.f32 0.0, %v1511
      %1513 = vmatmul.f32.gmra.mxu0 %v1440
      %v1514 = vpop.f32.mrf.mxu0
      %v1515 = vadd.f32 0.0, %v1514
      %1516 = vmatmul.f32.gmra.mxu0 %v1442
      %v1517 = vpop.f32.mrf.mxu0
      %v1518 = vadd.f32 0.0, %v1517
      %1519 = vmatmul.f32.gmra.mxu0 %v1444
      %v1520 = vpop.f32.mrf.mxu0
      %v1521 = vadd.f32 0.0, %v1520
      %1522 = vdwg.mxu0
      %v1523 = vmul.f32 %v1488, 0.35355338
      %v1524 = vmul.f32 %v1491, 0.35355338
      %v1525 = vmul.f32 %v1494, 0.35355338
      %v1526 = vmul.f32 %v1497, 0.35355338
      %v1527 = vmul.f32 %v1500, 0.35355338
      %v1528 = vmul.f32 %v1503, 0.35355338
      %v1529 = vmul.f32 %v1506, 0.35355338
      %v1530 = vmul.f32 %v1509, 0.35355338
      %v1531 = vmul.f32 %v1512, 0.35355338
      %v1532 = vmul.f32 %v1515, 0.35355338
      %v1533 = vmul.f32 %v1518, 0.35355338
      %v1534 = vmul.f32 %v1521, 0.35355338
      %v1535 = vadd.f32 %v1523, %v938
      %v1536 = vadd.f32 %v1524, %v939
      %v1537 = vadd.f32 %v1525, %v940
      %v1538 = vadd.f32 %v1526, %v941
      %v1539 = vadd.f32 %v1527, %v942
      %v1540 = vadd.f32 %v1528, %v943
      %v1541 = vadd.f32 %v1529, %v944
      %v1542 = vadd.f32 %v1530, %v945
      %v1543 = vadd.f32 %v1531, %v946
      %v1544 = vadd.f32 %v1532, %v947
      %v1545 = vadd.f32 %v1533, %v948
      %v1546 = vadd.f32 %v1534, %v949
      %v1547 = vsel %vm1116, %v1535, -inf
      %1548 = vmax.xlane.f32.xlu0 %v1547
      %v1549 = vpop.xlane.xlu0 %1548
      %v1550 = vsel %vm1116, %v1536, -inf
      %1551 = vmax.xlane.f32.xlu0 %v1550
      %v1552 = vpop.xlane.xlu0 %1551
      %v1553 = vsel %vm1116, %v1537, -inf
      %1554 = vmax.xlane.f32.xlu0 %v1553
      %v1555 = vpop.xlane.xlu0 %1554
      %v1556 = vsel %vm1116, %v1538, -inf
      %1557 = vmax.xlane.f32.xlu0 %v1556
      %v1558 = vpop.xlane.xlu0 %1557
      %v1559 = vsel %vm1116, %v1539, -inf
      %1560 = vmax.xlane.f32.xlu0 %v1559
      %v1561 = vpop.xlane.xlu0 %1560
      %v1562 = vsel %vm1116, %v1540, -inf
      %1563 = vmax.xlane.f32.xlu0 %v1562
      %v1564 = vpop.xlane.xlu0 %1563
      %v1565 = vsel %vm1116, %v1541, -inf
      %1566 = vmax.xlane.f32.xlu0 %v1565
      %v1567 = vpop.xlane.xlu0 %1566
      %v1568 = vsel %vm1116, %v1542, -inf
      %1569 = vmax.xlane.f32.xlu0 %v1568
      %v1570 = vpop.xlane.xlu0 %1569
      %v1571 = vsel %vm1116, %v1543, -inf
      %1572 = vmax.xlane.f32.xlu0 %v1571
      %v1573 = vpop.xlane.xlu0 %1572
      %v1574 = vsel %vm1116, %v1544, -inf
      %1575 = vmax.xlane.f32.xlu0 %v1574
      %v1576 = vpop.xlane.xlu0 %1575
      %v1577 = vsel %vm1116, %v1545, -inf
      %1578 = vmax.xlane.f32.xlu0 %v1577
      %v1579 = vpop.xlane.xlu0 %1578
      %v1580 = vsel %vm1116, %v1546, -inf
      %1581 = vmax.xlane.f32.xlu0 %v1580
      %v1582 = vpop.xlane.xlu0 %1581
      %v1583 = vsub.f32 %v1535, %v1549
      %v1584 = vsub.f32 %v1536, %v1552
      %v1585 = vsub.f32 %v1537, %v1555
      %v1586 = vsub.f32 %v1538, %v1558
      %v1587 = vsub.f32 %v1539, %v1561
      %v1588 = vsub.f32 %v1540, %v1564
      %v1589 = vsub.f32 %v1541, %v1567
      %v1590 = vsub.f32 %v1542, %v1570
      %v1591 = vsub.f32 %v1543, %v1573
      %v1592 = vsub.f32 %v1544, %v1576
      %v1593 = vsub.f32 %v1545, %v1579
      %v1594 = vsub.f32 %v1546, %v1582
      %v1595 = vmul.f32 %v1583, 1.442695
      %v1596 = vpow.pop %v1595
      %v1597 = vmul.f32 %v1584, 1.442695
      %v1598 = vpow.pop %v1597
      %v1599 = vmul.f32 %v1585, 1.442695
      %v1600 = vpow.pop %v1599
      %v1601 = vmul.f32 %v1586, 1.442695
      %v1602 = vpow.pop %v1601
      %v1603 = vmul.f32 %v1587, 1.442695
      %v1604 = vpow.pop %v1603
      %v1605 = vmul.f32 %v1588, 1.442695
      %v1606 = vpow.pop %v1605
      %v1607 = vmul.f32 %v1589, 1.442695
      %v1608 = vpow.pop %v1607
      %v1609 = vmul.f32 %v1590, 1.442695
      %v1610 = vpow.pop %v1609
      %v1611 = vmul.f32 %v1591, 1.442695
      %v1612 = vpow.pop %v1611
      %v1613 = vmul.f32 %v1592, 1.442695
      %v1614 = vpow.pop %v1613
      %v1615 = vmul.f32 %v1593, 1.442695
      %v1616 = vpow.pop %v1615
      %v1617 = vmul.f32 %v1594, 1.442695
      %v1618 = vpow.pop %v1617
      %v1619 = vsel %vm1116, %v1596, 0.0
      %1620 = vadd.xlane.f32.xlu0 %v1619
      %v1621 = vpop.xlane.xlu0 %1620
      %v1622 = vsel %vm1116, %v1598, 0.0
      %1623 = vadd.xlane.f32.xlu0 %v1622
      %v1624 = vpop.xlane.xlu0 %1623
      %v1625 = vsel %vm1116, %v1600, 0.0
      %1626 = vadd.xlane.f32.xlu0 %v1625
      %v1627 = vpop.xlane.xlu0 %1626
      %v1628 = vsel %vm1116, %v1602, 0.0
      %1629 = vadd.xlane.f32.xlu0 %v1628
      %v1630 = vpop.xlane.xlu0 %1629
      %v1631 = vsel %vm1116, %v1604, 0.0
      %1632 = vadd.xlane.f32.xlu0 %v1631
      %v1633 = vpop.xlane.xlu0 %1632
      %v1634 = vsel %vm1116, %v1606, 0.0
      %1635 = vadd.xlane.f32.xlu0 %v1634
      %v1636 = vpop.xlane.xlu0 %1635
      %v1637 = vsel %vm1116, %v1608, 0.0
      %1638 = vadd.xlane.f32.xlu0 %v1637
      %v1639 = vpop.xlane.xlu0 %1638
      %v1640 = vsel %vm1116, %v1610, 0.0
      %1641 = vadd.xlane.f32.xlu0 %v1640
      %v1642 = vpop.xlane.xlu0 %1641
      %v1643 = vsel %vm1116, %v1612, 0.0
      %1644 = vadd.xlane.f32.xlu0 %v1643
      %v1645 = vpop.xlane.xlu0 %1644
      %v1646 = vsel %vm1116, %v1614, 0.0
      %1647 = vadd.xlane.f32.xlu0 %v1646
      %v1648 = vpop.xlane.xlu0 %1647
      %v1649 = vsel %vm1116, %v1616, 0.0
      %1650 = vadd.xlane.f32.xlu0 %v1649
      %v1651 = vpop.xlane.xlu0 %1650
      %v1652 = vsel %vm1116, %v1618, 0.0
      %1653 = vadd.xlane.f32.xlu0 %v1652
      %v1654 = vpop.xlane.xlu0 %1653
      %v1655 = vrcp.pop %v1621
      %v1656 = vrcp.pop %v1624
      %v1657 = vrcp.pop %v1627
      %v1658 = vrcp.pop %v1630
      %v1659 = vrcp.pop %v1633
      %v1660 = vrcp.pop %v1636
      %v1661 = vrcp.pop %v1639
      %v1662 = vrcp.pop %v1642
      %v1663 = vrcp.pop %v1645
      %v1664 = vrcp.pop %v1648
      %v1665 = vrcp.pop %v1651
      %v1666 = vrcp.pop %v1654
      %v1667 = vmul.f32 %v1596, %v1655
      %v1668 = vmul.f32 %v1598, %v1656
      %v1669 = vmul.f32 %v1600, %v1657
      %v1670 = vmul.f32 %v1602, %v1658
      %v1671 = vmul.f32 %v1604, %v1659
      %v1672 = vmul.f32 %v1606, %v1660
      %v1673 = vmul.f32 %v1608, %v1661
      %v1674 = vmul.f32 %v1610, %v1662
      %v1675 = vmul.f32 %v1612, %v1663
      %v1676 = vmul.f32 %v1614, %v1664
      %v1677 = vmul.f32 %v1616, %v1665
      %v1678 = vmul.f32 %v1618, %v1666
      %1679 = vrot.lane.b32.xlu0 %v903, 56
      %v1680 = vpop.permute.xlu0 %1679
      %1681 = vrot.lane.b32.xlu0 %v906, 56
      %v1682 = vpop.permute.xlu0 %1681
      %1683 = vrot.lane.b32.xlu0 %v909, 56
      %v1684 = vpop.permute.xlu0 %1683
      %1685 = vrot.lane.b32.xlu0 %v912, 56
      %v1686 = vpop.permute.xlu0 %1685
      %1687 = vrot.lane.b32.xlu0 %v915, 56
      %v1688 = vpop.permute.xlu0 %1687
      %1689 = vrot.lane.b32.xlu0 %v918, 56
      %v1690 = vpop.permute.xlu0 %1689
      %1691 = vrot.lane.b32.xlu0 %v921, 56
      %v1692 = vpop.permute.xlu0 %1691
      %1693 = vrot.lane.b32.xlu0 %v924, 56
      %v1694 = vpop.permute.xlu0 %1693
      %1695 = vrot.lane.b32.xlu0 %v927, 56
      %v1696 = vpop.permute.xlu0 %1695
      %1697 = vrot.lane.b32.xlu0 %v930, 56
      %v1698 = vpop.permute.xlu0 %1697
      %1699 = vrot.lane.b32.xlu0 %v933, 56
      %v1700 = vpop.permute.xlu0 %1699
      %1701 = vrot.lane.b32.xlu0 %v936, 56
      %v1702 = vpop.permute.xlu0 %1701
      %v1716 = vsel %vm1116, %v1667, 0
      %v1719 = vsel %vm1116, %v1668, 0
      %v1722 = vsel %vm1116, %v1669, 0
      %v1725 = vsel %vm1116, %v1670, 0
      %v1728 = vsel %vm1116, %v1671, 0
      %v1731 = vsel %vm1116, %v1672, 0
      %v1734 = vsel %vm1116, %v1673, 0
      %v1737 = vsel %vm1116, %v1674, 0
      %v1740 = vsel %vm1116, %v1675, 0
      %v1743 = vsel %vm1116, %v1676, 0
      %v1746 = vsel %vm1116, %v1677, 0
      %v1749 = vsel %vm1116, %v1678, 0
      %1751 = vmatpush.msra.mxu0 0.0
      %1752 = vmatpush.msra.mxu0 0.0
      %1753 = vmatpush.msra.mxu0 0.0
      %1754 = vmatpush.msra.mxu0 0.0
      %1755 = vmatpush.msra.mxu0 %v1702
      %1756 = vmatpush.msra.mxu0 %v1700
      %1757 = vmatpush.msra.mxu0 %v1698
      %1758 = vmatpush.msra.mxu0 %v1696
      %1759 = vmatpush.msra.mxu0 %v1694
      %1760 = vmatpush.msra.mxu0 %v1692
      %1761 = vmatpush.msra.mxu0 %v1690
      %1762 = vmatpush.msra.mxu0 %v1688
      %1763 = vmatpush.msra.mxu0 %v1686
      %1764 = vmatpush.msra.mxu0 %v1684
      %1765 = vmatpush.msra.mxu0 %v1682
      %1766 = vmatpush.msra.mxu0 %v1680
      %1767 = vmatmul.f32.gmra.mxu0 %v1716
      %v1768 = vpop.f32.mrf.mxu0
      %v1769 = vadd.f32 0.0, %v1768
      %1770 = vmatmul.f32.gmra.mxu0 %v1719
      %v1771 = vpop.f32.mrf.mxu0
      %v1772 = vadd.f32 0.0, %v1771
      %1773 = vmatmul.f32.gmra.mxu0 %v1722
      %v1774 = vpop.f32.mrf.mxu0
      %v1775 = vadd.f32 0.0, %v1774
      %1776 = vmatmul.f32.gmra.mxu0 %v1725
      %v1777 = vpop.f32.mrf.mxu0
      %v1778 = vadd.f32 0.0, %v1777
      %1779 = vmatmul.f32.gmra.mxu0 %v1728
      %v1780 = vpop.f32.mrf.mxu0
      %v1781 = vadd.f32 0.0, %v1780
      %1782 = vmatmul.f32.gmra.mxu0 %v1731
      %v1783 = vpop.f32.mrf.mxu0
      %v1784 = vadd.f32 0.0, %v1783
      %1785 = vmatmul.f32.gmra.mxu0 %v1734
      %v1786 = vpop.f32.mrf.mxu0
      %v1787 = vadd.f32 0.0, %v1786
      %1788 = vmatmul.f32.gmra.mxu0 %v1737
      %v1789 = vpop.f32.mrf.mxu0
      %v1790 = vadd.f32 0.0, %v1789
      %1791 = vmatmul.f32.gmra.mxu0 %v1740
      %v1792 = vpop.f32.mrf.mxu0
      %v1793 = vadd.f32 0.0, %v1792
      %1794 = vmatmul.f32.gmra.mxu0 %v1743
      %v1795 = vpop.f32.mrf.mxu0
      %v1796 = vadd.f32 0.0, %v1795
      %1797 = vmatmul.f32.gmra.mxu0 %v1746
      %v1798 = vpop.f32.mrf.mxu0
      %v1799 = vadd.f32 0.0, %v1798
      %1800 = vmatmul.f32.gmra.mxu0 %v1749
      %v1801 = vpop.f32.mrf.mxu0
      %v1802 = vadd.f32 0.0, %v1801
      %1803 = vdwg.mxu0
      %v1805 = vsel %vm990, %v1769, 0
      %v1808 = vsel %vm990, %v1772, 0
      %v1811 = vsel %vm990, %v1775, 0
      %v1814 = vsel %vm990, %v1778, 0
      %v1817 = vsel %vm990, %v1781, 0
      %v1820 = vsel %vm990, %v1784, 0
      %v1823 = vsel %vm990, %v1787, 0
      %v1826 = vsel %vm990, %v1790, 0
      %v1829 = vsel %vm990, %v1793, 0
      %v1832 = vsel %vm990, %v1796, 0
      %v1835 = vsel %vm990, %v1799, 0
      %v1838 = vsel %vm990, %v1802, 0
      %1840 = vmatpush.msra.mxu0 0.0
      %1841 = vmatpush.msra.mxu0 0.0
      %1842 = vmatpush.msra.mxu0 0.0
      %1843 = vmatpush.msra.mxu0 0.0
      %1844 = vmatpush.msra.mxu0 0.0
      %1845 = vmatpush.msra.mxu0 0.0
      %1846 = vmatpush.msra.mxu0 0.0
      %1847 = vmatpush.msra.mxu0 0.0
      %1848 = vmatpush.msra.mxu0 0.0
      %1849 = vmatpush.msra.mxu0 0.0
      %1850 = vmatpush.msra.mxu0 0.0
      %1851 = vmatpush.msra.mxu0 0.0
      %1852 = vmatpush.msra.mxu0 0.0
      %1853 = vmatpush.msra.mxu0 0.0
      %1854 = vmatpush.msra.mxu0 0.0
      %1855 = vmatpush.msra.mxu0 %v951
      %1856 = vmatmul.f32.gmra.mxu0 %v1805
      %v1857 = vpop.f32.mrf.mxu0
      %v1858 = vadd.f32 0.0, %v1857
      %1859 = vmatmul.f32.gmra.mxu0 %v1808
      %v1860 = vpop.f32.mrf.mxu0
      %v1861 = vadd.f32 0.0, %v1860
      %1862 = vmatmul.f32.gmra.mxu0 %v1811
      %v1863 = vpop.f32.mrf.mxu0
      %v1864 = vadd.f32 0.0, %v1863
      %1865 = vmatmul.f32.gmra.mxu0 %v1814
      %v1866 = vpop.f32.mrf.mxu0
      %v1867 = vadd.f32 0.0, %v1866
      %1868 = vmatmul.f32.gmra.mxu0 %v1817
      %v1869 = vpop.f32.mrf.mxu0
      %v1870 = vadd.f32 0.0, %v1869
      %1871 = vmatmul.f32.gmra.mxu0 %v1820
      %v1872 = vpop.f32.mrf.mxu0
      %v1873 = vadd.f32 0.0, %v1872
      %1874 = vmatmul.f32.gmra.mxu0 %v1823
      %v1875 = vpop.f32.mrf.mxu0
      %v1876 = vadd.f32 0.0, %v1875
      %1877 = vmatmul.f32.gmra.mxu0 %v1826
      %v1878 = vpop.f32.mrf.mxu0
      %v1879 = vadd.f32 0.0, %v1878
      %1880 = vmatmul.f32.gmra.mxu0 %v1829
      %v1881 = vpop.f32.mrf.mxu0
      %v1882 = vadd.f32 0.0, %v1881
      %1883 = vmatmul.f32.gmra.mxu0 %v1832
      %v1884 = vpop.f32.mrf.mxu0
      %v1885 = vadd.f32 0.0, %v1884
      %1886 = vmatmul.f32.gmra.mxu0 %v1835
      %v1887 = vpop.f32.mrf.mxu0
      %v1888 = vadd.f32 0.0, %v1887
      %1889 = vmatmul.f32.gmra.mxu0 %v1838
      %v1890 = vpop.f32.mrf.mxu0
      %v1891 = vadd.f32 0.0, %v1890
      %1892 = vdwg.mxu0
      %v1894 = vsel %vm990, %v1339, 0
      %v1897 = vsel %vm990, %v1342, 0
      %v1900 = vsel %vm990, %v1345, 0
      %v1903 = vsel %vm990, %v1348, 0
      %v1906 = vsel %vm990, %v1351, 0
      %v1909 = vsel %vm990, %v1354, 0
      %v1912 = vsel %vm990, %v1357, 0
      %v1915 = vsel %vm990, %v1360, 0
      %v1918 = vsel %vm990, %v1363, 0
      %v1921 = vsel %vm990, %v1366, 0
      %v1924 = vsel %vm990, %v1369, 0
      %v1927 = vsel %vm990, %v1372, 0
      %1929 = vmatpush.msra.mxu0 0.0
      %1930 = vmatpush.msra.mxu0 0.0
      %1931 = vmatpush.msra.mxu0 0.0
      %1932 = vmatpush.msra.mxu0 0.0
      %1933 = vmatpush.msra.mxu0 0.0
      %1934 = vmatpush.msra.mxu0 0.0
      %1935 = vmatpush.msra.mxu0 0.0
      %1936 = vmatpush.msra.mxu0 0.0
      %1937 = vmatpush.msra.mxu0 0.0
      %1938 = vmatpush.msra.mxu0 0.0
      %1939 = vmatpush.msra.mxu0 0.0
      %1940 = vmatpush.msra.mxu0 0.0
      %1941 = vmatpush.msra.mxu0 0.0
      %1942 = vmatpush.msra.mxu0 0.0
      %1943 = vmatpush.msra.mxu0 0.0
      %1944 = vmatpush.msra.mxu0 %v950
      %1945 = vmatmul.f32.gmra.mxu0 %v1894
      %v1946 = vpop.f32.mrf.mxu0
      %v1947 = vadd.f32 %v1858, %v1946
      %1948 = vmatmul.f32.gmra.mxu0 %v1897
      %v1949 = vpop.f32.mrf.mxu0
      %v1950 = vadd.f32 %v1861, %v1949
      %1951 = vmatmul.f32.gmra.mxu0 %v1900
      %v1952 = vpop.f32.mrf.mxu0
      %v1953 = vadd.f32 %v1864, %v1952
      %1954 = vmatmul.f32.gmra.mxu0 %v1903
      %v1955 = vpop.f32.mrf.mxu0
      %v1956 = vadd.f32 %v1867, %v1955
      %1957 = vmatmul.f32.gmra.mxu0 %v1906
      %v1958 = vpop.f32.mrf.mxu0
      %v1959 = vadd.f32 %v1870, %v1958
      %1960 = vmatmul.f32.gmra.mxu0 %v1909
      %v1961 = vpop.f32.mrf.mxu0
      %v1962 = vadd.f32 %v1873, %v1961
      %1963 = vmatmul.f32.gmra.mxu0 %v1912
      %v1964 = vpop.f32.mrf.mxu0
      %v1965 = vadd.f32 %v1876, %v1964
      %1966 = vmatmul.f32.gmra.mxu0 %v1915
      %v1967 = vpop.f32.mrf.mxu0
      %v1968 = vadd.f32 %v1879, %v1967
      %1969 = vmatmul.f32.gmra.mxu0 %v1918
      %v1970 = vpop.f32.mrf.mxu0
      %v1971 = vadd.f32 %v1882, %v1970
      %1972 = vmatmul.f32.gmra.mxu0 %v1921
      %v1973 = vpop.f32.mrf.mxu0
      %v1974 = vadd.f32 %v1885, %v1973
      %1975 = vmatmul.f32.gmra.mxu0 %v1924
      %v1976 = vpop.f32.mrf.mxu0
      %v1977 = vadd.f32 %v1888, %v1976
      %1978 = vmatmul.f32.gmra.mxu0 %v1927
      %v1979 = vpop.f32.mrf.mxu0
      %v1980 = vadd.f32 %v1891, %v1979
      %1981 = vdwg.mxu0
      %1982 = vrot.lane.b32.xlu0 %v903, 112
      %v1983 = vpop.permute.xlu0 %1982
      %1984 = vrot.lane.b32.xlu0 %v906, 112
      %v1985 = vpop.permute.xlu0 %1984
      %1986 = vrot.lane.b32.xlu0 %v909, 112
      %v1987 = vpop.permute.xlu0 %1986
      %1988 = vrot.lane.b32.xlu0 %v912, 112
      %v1989 = vpop.permute.xlu0 %1988
      %1990 = vrot.lane.b32.xlu0 %v915, 112
      %v1991 = vpop.permute.xlu0 %1990
      %1992 = vrot.lane.b32.xlu0 %v918, 112
      %v1993 = vpop.permute.xlu0 %1992
      %1994 = vrot.lane.b32.xlu0 %v921, 112
      %v1995 = vpop.permute.xlu0 %1994
      %1996 = vrot.lane.b32.xlu0 %v924, 112
      %v1997 = vpop.permute.xlu0 %1996
      %1998 = vrot.lane.b32.xlu0 %v927, 112
      %v1999 = vpop.permute.xlu0 %1998
      %2000 = vrot.lane.b32.xlu0 %v930, 112
      %v2001 = vpop.permute.xlu0 %2000
      %2002 = vrot.lane.b32.xlu0 %v933, 112
      %v2003 = vpop.permute.xlu0 %2002
      %2004 = vrot.lane.b32.xlu0 %v936, 112
      %v2005 = vpop.permute.xlu0 %2004
      %2006 = vrot.lane.b32.xlu0 %v903, 80
      %v2007 = vpop.permute.xlu0 %2006
      %2008 = vrot.lane.b32.xlu0 %v906, 80
      %v2009 = vpop.permute.xlu0 %2008
      %2010 = vrot.lane.b32.xlu0 %v909, 80
      %v2011 = vpop.permute.xlu0 %2010
      %2012 = vrot.lane.b32.xlu0 %v912, 80
      %v2013 = vpop.permute.xlu0 %2012
      %2014 = vrot.lane.b32.xlu0 %v915, 80
      %v2015 = vpop.permute.xlu0 %2014
      %2016 = vrot.lane.b32.xlu0 %v918, 80
      %v2017 = vpop.permute.xlu0 %2016
      %2018 = vrot.lane.b32.xlu0 %v921, 80
      %v2019 = vpop.permute.xlu0 %2018
      %2020 = vrot.lane.b32.xlu0 %v924, 80
      %v2021 = vpop.permute.xlu0 %2020
      %2022 = vrot.lane.b32.xlu0 %v927, 80
      %v2023 = vpop.permute.xlu0 %2022
      %2024 = vrot.lane.b32.xlu0 %v930, 80
      %v2025 = vpop.permute.xlu0 %2024
      %2026 = vrot.lane.b32.xlu0 %v933, 80
      %v2027 = vpop.permute.xlu0 %2026
      %2028 = vrot.lane.b32.xlu0 %v936, 80
      %v2029 = vpop.permute.xlu0 %2028
      %v2030 = vsel %vm990, %v1983, 0
      %v2032 = vsel %vm990, %v1985, 0
      %v2034 = vsel %vm990, %v1987, 0
      %v2036 = vsel %vm990, %v1989, 0
      %v2038 = vsel %vm990, %v1991, 0
      %v2040 = vsel %vm990, %v1993, 0
      %v2042 = vsel %vm990, %v1995, 0
      %v2044 = vsel %vm990, %v1997, 0
      %v2046 = vsel %vm990, %v1999, 0
      %v2048 = vsel %vm990, %v2001, 0
      %v2050 = vsel %vm990, %v2003, 0
      %v2052 = vsel %vm990, %v2005, 0
      %v2054 = vsel %vm990, %v2007, 0
      %v2056 = vsel %vm990, %v2009, 0
      %v2058 = vsel %vm990, %v2011, 0
      %v2060 = vsel %vm990, %v2013, 0
      %v2062 = vsel %vm990, %v2015, 0
      %v2064 = vsel %vm990, %v2017, 0
      %v2066 = vsel %vm990, %v2019, 0
      %v2068 = vsel %vm990, %v2021, 0
      %v2070 = vsel %vm990, %v2023, 0
      %v2072 = vsel %vm990, %v2025, 0
      %v2074 = vsel %vm990, %v2027, 0
      %v2076 = vsel %vm990, %v2029, 0
      %2078 = vmatpush.xpose.msra.mxu0 0.0
      %2079 = vmatpush.xpose.msra.mxu0 0.0
      %2080 = vmatpush.xpose.msra.mxu0 0.0
      %2081 = vmatpush.xpose.msra.mxu0 0.0
      %2082 = vmatpush.xpose.msra.mxu0 %v2076
      %2083 = vmatpush.xpose.msra.mxu0 %v2074
      %2084 = vmatpush.xpose.msra.mxu0 %v2072
      %2085 = vmatpush.xpose.msra.mxu0 %v2070
      %2086 = vmatpush.xpose.msra.mxu0 %v2068
      %2087 = vmatpush.xpose.msra.mxu0 %v2066
      %2088 = vmatpush.xpose.msra.mxu0 %v2064
      %2089 = vmatpush.xpose.msra.mxu0 %v2062
      %2090 = vmatpush.xpose.msra.mxu0 %v2060
      %2091 = vmatpush.xpose.msra.mxu0 %v2058
      %2092 = vmatpush.xpose.msra.mxu0 %v2056
      %2093 = vmatpush.xpose.msra.mxu0 %v2054
      %2094 = vmatmul.f32.gmra.mxu0 %v2030
      %v2095 = vpop.f32.mrf.mxu0
      %v2096 = vadd.f32 0.0, %v2095
      %2097 = vmatmul.f32.gmra.mxu0 %v2032
      %v2098 = vpop.f32.mrf.mxu0
      %v2099 = vadd.f32 0.0, %v2098
      %2100 = vmatmul.f32.gmra.mxu0 %v2034
      %v2101 = vpop.f32.mrf.mxu0
      %v2102 = vadd.f32 0.0, %v2101
      %2103 = vmatmul.f32.gmra.mxu0 %v2036
      %v2104 = vpop.f32.mrf.mxu0
      %v2105 = vadd.f32 0.0, %v2104
      %2106 = vmatmul.f32.gmra.mxu0 %v2038
      %v2107 = vpop.f32.mrf.mxu0
      %v2108 = vadd.f32 0.0, %v2107
      %2109 = vmatmul.f32.gmra.mxu0 %v2040
      %v2110 = vpop.f32.mrf.mxu0
      %v2111 = vadd.f32 0.0, %v2110
      %2112 = vmatmul.f32.gmra.mxu0 %v2042
      %v2113 = vpop.f32.mrf.mxu0
      %v2114 = vadd.f32 0.0, %v2113
      %2115 = vmatmul.f32.gmra.mxu0 %v2044
      %v2116 = vpop.f32.mrf.mxu0
      %v2117 = vadd.f32 0.0, %v2116
      %2118 = vmatmul.f32.gmra.mxu0 %v2046
      %v2119 = vpop.f32.mrf.mxu0
      %v2120 = vadd.f32 0.0, %v2119
      %2121 = vmatmul.f32.gmra.mxu0 %v2048
      %v2122 = vpop.f32.mrf.mxu0
      %v2123 = vadd.f32 0.0, %v2122
      %2124 = vmatmul.f32.gmra.mxu0 %v2050
      %v2125 = vpop.f32.mrf.mxu0
      %v2126 = vadd.f32 0.0, %v2125
      %2127 = vmatmul.f32.gmra.mxu0 %v2052
      %v2128 = vpop.f32.mrf.mxu0
      %v2129 = vadd.f32 0.0, %v2128
      %2130 = vdwg.mxu0
      %v2131 = vmul.f32 %v2096, 0.35355338
      %v2132 = vmul.f32 %v2099, 0.35355338
      %v2133 = vmul.f32 %v2102, 0.35355338
      %v2134 = vmul.f32 %v2105, 0.35355338
      %v2135 = vmul.f32 %v2108, 0.35355338
      %v2136 = vmul.f32 %v2111, 0.35355338
      %v2137 = vmul.f32 %v2114, 0.35355338
      %v2138 = vmul.f32 %v2117, 0.35355338
      %v2139 = vmul.f32 %v2120, 0.35355338
      %v2140 = vmul.f32 %v2123, 0.35355338
      %v2141 = vmul.f32 %v2126, 0.35355338
      %v2142 = vmul.f32 %v2129, 0.35355338
      %v2143 = vadd.f32 %v2131, %v938
      %v2144 = vadd.f32 %v2132, %v939
      %v2145 = vadd.f32 %v2133, %v940
      %v2146 = vadd.f32 %v2134, %v941
      %v2147 = vadd.f32 %v2135, %v942
      %v2148 = vadd.f32 %v2136, %v943
      %v2149 = vadd.f32 %v2137, %v944
      %v2150 = vadd.f32 %v2138, %v945
      %v2151 = vadd.f32 %v2139, %v946
      %v2152 = vadd.f32 %v2140, %v947
      %v2153 = vadd.f32 %v2141, %v948
      %v2154 = vadd.f32 %v2142, %v949
      %v2155 = vsel %vm1116, %v2143, -inf
      %2156 = vmax.xlane.f32.xlu0 %v2155
      %v2157 = vpop.xlane.xlu0 %2156
      %v2158 = vsel %vm1116, %v2144, -inf
      %2159 = vmax.xlane.f32.xlu0 %v2158
      %v2160 = vpop.xlane.xlu0 %2159
      %v2161 = vsel %vm1116, %v2145, -inf
      %2162 = vmax.xlane.f32.xlu0 %v2161
      %v2163 = vpop.xlane.xlu0 %2162
      %v2164 = vsel %vm1116, %v2146, -inf
      %2165 = vmax.xlane.f32.xlu0 %v2164
      %v2166 = vpop.xlane.xlu0 %2165
      %v2167 = vsel %vm1116, %v2147, -inf
      %2168 = vmax.xlane.f32.xlu0 %v2167
      %v2169 = vpop.xlane.xlu0 %2168
      %v2170 = vsel %vm1116, %v2148, -inf
      %2171 = vmax.xlane.f32.xlu0 %v2170
      %v2172 = vpop.xlane.xlu0 %2171
      %v2173 = vsel %vm1116, %v2149, -inf
      %2174 = vmax.xlane.f32.xlu0 %v2173
      %v2175 = vpop.xlane.xlu0 %2174
      %v2176 = vsel %vm1116, %v2150, -inf
      %2177 = vmax.xlane.f32.xlu0 %v2176
      %v2178 = vpop.xlane.xlu0 %2177
      %v2179 = vsel %vm1116, %v2151, -inf
      %2180 = vmax.xlane.f32.xlu0 %v2179
      %v2181 = vpop.xlane.xlu0 %2180
      %v2182 = vsel %vm1116, %v2152, -inf
      %2183 = vmax.xlane.f32.xlu0 %v2182
      %v2184 = vpop.xlane.xlu0 %2183
      %v2185 = vsel %vm1116, %v2153, -inf
      %2186 = vmax.xlane.f32.xlu0 %v2185
      %v2187 = vpop.xlane.xlu0 %2186
      %v2188 = vsel %vm1116, %v2154, -inf
      %2189 = vmax.xlane.f32.xlu0 %v2188
      %v2190 = vpop.xlane.xlu0 %2189
      %v2191 = vsub.f32 %v2143, %v2157
      %v2192 = vsub.f32 %v2144, %v2160
      %v2193 = vsub.f32 %v2145, %v2163
      %v2194 = vsub.f32 %v2146, %v2166
      %v2195 = vsub.f32 %v2147, %v2169
      %v2196 = vsub.f32 %v2148, %v2172
      %v2197 = vsub.f32 %v2149, %v2175
      %v2198 = vsub.f32 %v2150, %v2178
      %v2199 = vsub.f32 %v2151, %v2181
      %v2200 = vsub.f32 %v2152, %v2184
      %v2201 = vsub.f32 %v2153, %v2187
      %v2202 = vsub.f32 %v2154, %v2190
      %v2203 = vmul.f32 %v2191, 1.442695
      %v2204 = vpow.pop %v2203
      %v2205 = vmul.f32 %v2192, 1.442695
      %v2206 = vpow.pop %v2205
      %v2207 = vmul.f32 %v2193, 1.442695
      %v2208 = vpow.pop %v2207
      %v2209 = vmul.f32 %v2194, 1.442695
      %v2210 = vpow.pop %v2209
      %v2211 = vmul.f32 %v2195, 1.442695
      %v2212 = vpow.pop %v2211
      %v2213 = vmul.f32 %v2196, 1.442695
      %v2214 = vpow.pop %v2213
      %v2215 = vmul.f32 %v2197, 1.442695
      %v2216 = vpow.pop %v2215
      %v2217 = vmul.f32 %v2198, 1.442695
      %v2218 = vpow.pop %v2217
      %v2219 = vmul.f32 %v2199, 1.442695
      %v2220 = vpow.pop %v2219
      %v2221 = vmul.f32 %v2200, 1.442695
      %v2222 = vpow.pop %v2221
      %v2223 = vmul.f32 %v2201, 1.442695
      %v2224 = vpow.pop %v2223
      %v2225 = vmul.f32 %v2202, 1.442695
      %v2226 = vpow.pop %v2225
      %v2227 = vsel %vm1116, %v2204, 0.0
      %2228 = vadd.xlane.f32.xlu0 %v2227
      %v2229 = vpop.xlane.xlu0 %2228
      %v2230 = vsel %vm1116, %v2206, 0.0
      %2231 = vadd.xlane.f32.xlu0 %v2230
      %v2232 = vpop.xlane.xlu0 %2231
      %v2233 = vsel %vm1116, %v2208, 0.0
      %2234 = vadd.xlane.f32.xlu0 %v2233
      %v2235 = vpop.xlane.xlu0 %2234
      %v2236 = vsel %vm1116, %v2210, 0.0
      %2237 = vadd.xlane.f32.xlu0 %v2236
      %v2238 = vpop.xlane.xlu0 %2237
      %v2239 = vsel %vm1116, %v2212, 0.0
      %2240 = vadd.xlane.f32.xlu0 %v2239
      %v2241 = vpop.xlane.xlu0 %2240
      %v2242 = vsel %vm1116, %v2214, 0.0
      %2243 = vadd.xlane.f32.xlu0 %v2242
      %v2244 = vpop.xlane.xlu0 %2243
      %v2245 = vsel %vm1116, %v2216, 0.0
      %2246 = vadd.xlane.f32.xlu0 %v2245
      %v2247 = vpop.xlane.xlu0 %2246
      %v2248 = vsel %vm1116, %v2218, 0.0
      %2249 = vadd.xlane.f32.xlu0 %v2248
      %v2250 = vpop.xlane.xlu0 %2249
      %v2251 = vsel %vm1116, %v2220, 0.0
      %2252 = vadd.xlane.f32.xlu0 %v2251
      %v2253 = vpop.xlane.xlu0 %2252
      %v2254 = vsel %vm1116, %v2222, 0.0
      %2255 = vadd.xlane.f32.xlu0 %v2254
      %v2256 = vpop.xlane.xlu0 %2255
      %v2257 = vsel %vm1116, %v2224, 0.0
      %2258 = vadd.xlane.f32.xlu0 %v2257
      %v2259 = vpop.xlane.xlu0 %2258
      %v2260 = vsel %vm1116, %v2226, 0.0
      %2261 = vadd.xlane.f32.xlu0 %v2260
      %v2262 = vpop.xlane.xlu0 %2261
      %v2263 = vrcp.pop %v2229
      %v2264 = vrcp.pop %v2232
      %v2265 = vrcp.pop %v2235
      %v2266 = vrcp.pop %v2238
      %v2267 = vrcp.pop %v2241
      %v2268 = vrcp.pop %v2244
      %v2269 = vrcp.pop %v2247
      %v2270 = vrcp.pop %v2250
      %v2271 = vrcp.pop %v2253
      %v2272 = vrcp.pop %v2256
      %v2273 = vrcp.pop %v2259
      %v2274 = vrcp.pop %v2262
      %v2275 = vmul.f32 %v2204, %v2263
      %v2276 = vmul.f32 %v2206, %v2264
      %v2277 = vmul.f32 %v2208, %v2265
      %v2278 = vmul.f32 %v2210, %v2266
      %v2279 = vmul.f32 %v2212, %v2267
      %v2280 = vmul.f32 %v2214, %v2268
      %v2281 = vmul.f32 %v2216, %v2269
      %v2282 = vmul.f32 %v2218, %v2270
      %v2283 = vmul.f32 %v2220, %v2271
      %v2284 = vmul.f32 %v2222, %v2272
      %v2285 = vmul.f32 %v2224, %v2273
      %v2286 = vmul.f32 %v2226, %v2274
      %2287 = vrot.lane.b32.xlu0 %v903, 48
      %v2288 = vpop.permute.xlu0 %2287
      %2289 = vrot.lane.b32.xlu0 %v906, 48
      %v2290 = vpop.permute.xlu0 %2289
      %2291 = vrot.lane.b32.xlu0 %v909, 48
      %v2292 = vpop.permute.xlu0 %2291
      %2293 = vrot.lane.b32.xlu0 %v912, 48
      %v2294 = vpop.permute.xlu0 %2293
      %2295 = vrot.lane.b32.xlu0 %v915, 48
      %v2296 = vpop.permute.xlu0 %2295
      %2297 = vrot.lane.b32.xlu0 %v918, 48
      %v2298 = vpop.permute.xlu0 %2297
      %2299 = vrot.lane.b32.xlu0 %v921, 48
      %v2300 = vpop.permute.xlu0 %2299
      %2301 = vrot.lane.b32.xlu0 %v924, 48
      %v2302 = vpop.permute.xlu0 %2301
      %2303 = vrot.lane.b32.xlu0 %v927, 48
      %v2304 = vpop.permute.xlu0 %2303
      %2305 = vrot.lane.b32.xlu0 %v930, 48
      %v2306 = vpop.permute.xlu0 %2305
      %2307 = vrot.lane.b32.xlu0 %v933, 48
      %v2308 = vpop.permute.xlu0 %2307
      %2309 = vrot.lane.b32.xlu0 %v936, 48
      %v2310 = vpop.permute.xlu0 %2309
      %v2324 = vsel %vm1116, %v2275, 0
      %v2327 = vsel %vm1116, %v2276, 0
      %v2330 = vsel %vm1116, %v2277, 0
      %v2333 = vsel %vm1116, %v2278, 0
      %v2336 = vsel %vm1116, %v2279, 0
      %v2339 = vsel %vm1116, %v2280, 0
      %v2342 = vsel %vm1116, %v2281, 0
      %v2345 = vsel %vm1116, %v2282, 0
      %v2348 = vsel %vm1116, %v2283, 0
      %v2351 = vsel %vm1116, %v2284, 0
      %v2354 = vsel %vm1116, %v2285, 0
      %v2357 = vsel %vm1116, %v2286, 0
      %2359 = vmatpush.msra.mxu0 0.0
      %2360 = vmatpush.msra.mxu0 0.0
      %2361 = vmatpush.msra.mxu0 0.0
      %2362 = vmatpush.msra.mxu0 0.0
      %2363 = vmatpush.msra.mxu0 %v2310
      %2364 = vmatpush.msra.mxu0 %v2308
      %2365 = vmatpush.msra.mxu0 %v2306
      %2366 = vmatpush.msra.mxu0 %v2304
      %2367 = vmatpush.msra.mxu0 %v2302
      %2368 = vmatpush.msra.mxu0 %v2300
      %2369 = vmatpush.msra.mxu0 %v2298
      %2370 = vmatpush.msra.mxu0 %v2296
      %2371 = vmatpush.msra.mxu0 %v2294
      %2372 = vmatpush.msra.mxu0 %v2292
      %2373 = vmatpush.msra.mxu0 %v2290
      %2374 = vmatpush.msra.mxu0 %v2288
      %2375 = vmatmul.f32.gmra.mxu0 %v2324
      %v2376 = vpop.f32.mrf.mxu0
      %v2377 = vadd.f32 0.0, %v2376
      %2378 = vmatmul.f32.gmra.mxu0 %v2327
      %v2379 = vpop.f32.mrf.mxu0
      %v2380 = vadd.f32 0.0, %v2379
      %2381 = vmatmul.f32.gmra.mxu0 %v2330
      %v2382 = vpop.f32.mrf.mxu0
      %v2383 = vadd.f32 0.0, %v2382
      %2384 = vmatmul.f32.gmra.mxu0 %v2333
      %v2385 = vpop.f32.mrf.mxu0
      %v2386 = vadd.f32 0.0, %v2385
      %2387 = vmatmul.f32.gmra.mxu0 %v2336
      %v2388 = vpop.f32.mrf.mxu0
      %v2389 = vadd.f32 0.0, %v2388
      %2390 = vmatmul.f32.gmra.mxu0 %v2339
      %v2391 = vpop.f32.mrf.mxu0
      %v2392 = vadd.f32 0.0, %v2391
      %2393 = vmatmul.f32.gmra.mxu0 %v2342
      %v2394 = vpop.f32.mrf.mxu0
      %v2395 = vadd.f32 0.0, %v2394
      %2396 = vmatmul.f32.gmra.mxu0 %v2345
      %v2397 = vpop.f32.mrf.mxu0
      %v2398 = vadd.f32 0.0, %v2397
      %2399 = vmatmul.f32.gmra.mxu0 %v2348
      %v2400 = vpop.f32.mrf.mxu0
      %v2401 = vadd.f32 0.0, %v2400
      %2402 = vmatmul.f32.gmra.mxu0 %v2351
      %v2403 = vpop.f32.mrf.mxu0
      %v2404 = vadd.f32 0.0, %v2403
      %2405 = vmatmul.f32.gmra.mxu0 %v2354
      %v2406 = vpop.f32.mrf.mxu0
      %v2407 = vadd.f32 0.0, %v2406
      %2408 = vmatmul.f32.gmra.mxu0 %v2357
      %v2409 = vpop.f32.mrf.mxu0
      %v2410 = vadd.f32 0.0, %v2409
      %2411 = vdwg.mxu0
      %v2413 = vsel %vm990, %v2377, 0
      %v2416 = vsel %vm990, %v2380, 0
      %v2419 = vsel %vm990, %v2383, 0
      %v2422 = vsel %vm990, %v2386, 0
      %v2425 = vsel %vm990, %v2389, 0
      %v2428 = vsel %vm990, %v2392, 0
      %v2431 = vsel %vm990, %v2395, 0
      %v2434 = vsel %vm990, %v2398, 0
      %v2437 = vsel %vm990, %v2401, 0
      %v2440 = vsel %vm990, %v2404, 0
      %v2443 = vsel %vm990, %v2407, 0
      %v2446 = vsel %vm990, %v2410, 0
      %2448 = vmatpush.msra.mxu0 0.0
      %2449 = vmatpush.msra.mxu0 0.0
      %2450 = vmatpush.msra.mxu0 0.0
      %2451 = vmatpush.msra.mxu0 0.0
      %2452 = vmatpush.msra.mxu0 0.0
      %2453 = vmatpush.msra.mxu0 0.0
      %2454 = vmatpush.msra.mxu0 0.0
      %2455 = vmatpush.msra.mxu0 0.0
      %2456 = vmatpush.msra.mxu0 0.0
      %2457 = vmatpush.msra.mxu0 0.0
      %2458 = vmatpush.msra.mxu0 0.0
      %2459 = vmatpush.msra.mxu0 0.0
      %2460 = vmatpush.msra.mxu0 0.0
      %2461 = vmatpush.msra.mxu0 0.0
      %2462 = vmatpush.msra.mxu0 0.0
      %2463 = vmatpush.msra.mxu0 %v952
      %2464 = vmatmul.f32.gmra.mxu0 %v2413
      %v2465 = vpop.f32.mrf.mxu0
      %v2466 = vadd.f32 0.0, %v2465
      %2467 = vmatmul.f32.gmra.mxu0 %v2416
      %v2468 = vpop.f32.mrf.mxu0
      %v2469 = vadd.f32 0.0, %v2468
      %2470 = vmatmul.f32.gmra.mxu0 %v2419
      %v2471 = vpop.f32.mrf.mxu0
      %v2472 = vadd.f32 0.0, %v2471
      %2473 = vmatmul.f32.gmra.mxu0 %v2422
      %v2474 = vpop.f32.mrf.mxu0
      %v2475 = vadd.f32 0.0, %v2474
      %2476 = vmatmul.f32.gmra.mxu0 %v2425
      %v2477 = vpop.f32.mrf.mxu0
      %v2478 = vadd.f32 0.0, %v2477
      %2479 = vmatmul.f32.gmra.mxu0 %v2428
      %v2480 = vpop.f32.mrf.mxu0
      %v2481 = vadd.f32 0.0, %v2480
      %2482 = vmatmul.f32.gmra.mxu0 %v2431
      %v2483 = vpop.f32.mrf.mxu0
      %v2484 = vadd.f32 0.0, %v2483
      %2485 = vmatmul.f32.gmra.mxu0 %v2434
      %v2486 = vpop.f32.mrf.mxu0
      %v2487 = vadd.f32 0.0, %v2486
      %2488 = vmatmul.f32.gmra.mxu0 %v2437
      %v2489 = vpop.f32.mrf.mxu0
      %v2490 = vadd.f32 0.0, %v2489
      %2491 = vmatmul.f32.gmra.mxu0 %v2440
      %v2492 = vpop.f32.mrf.mxu0
      %v2493 = vadd.f32 0.0, %v2492
      %2494 = vmatmul.f32.gmra.mxu0 %v2443
      %v2495 = vpop.f32.mrf.mxu0
      %v2496 = vadd.f32 0.0, %v2495
      %2497 = vmatmul.f32.gmra.mxu0 %v2446
      %v2498 = vpop.f32.mrf.mxu0
      %v2499 = vadd.f32 0.0, %v2498
      %2500 = vdwg.mxu0
      %v2501 = vadd.f32 %v1947, %v2466
      %v2502 = vadd.f32 %v1950, %v2469
      %v2503 = vadd.f32 %v1953, %v2472
      %v2504 = vadd.f32 %v1956, %v2475
      %v2505 = vadd.f32 %v1959, %v2478
      %v2506 = vadd.f32 %v1962, %v2481
      %v2507 = vadd.f32 %v1965, %v2484
      %v2508 = vadd.f32 %v1968, %v2487
      %v2509 = vadd.f32 %v1971, %v2490
      %v2510 = vadd.f32 %v1974, %v2493
      %v2511 = vadd.f32 %v1977, %v2496
      %v2512 = vadd.f32 %v1980, %v2499
      %2513 = vrot.lane.b32.xlu0 %v903, 104
      %v2514 = vpop.permute.xlu0 %2513
      %2515 = vrot.lane.b32.xlu0 %v906, 104
      %v2516 = vpop.permute.xlu0 %2515
      %2517 = vrot.lane.b32.xlu0 %v909, 104
      %v2518 = vpop.permute.xlu0 %2517
      %2519 = vrot.lane.b32.xlu0 %v912, 104
      %v2520 = vpop.permute.xlu0 %2519
      %2521 = vrot.lane.b32.xlu0 %v915, 104
      %v2522 = vpop.permute.xlu0 %2521
      %2523 = vrot.lane.b32.xlu0 %v918, 104
      %v2524 = vpop.permute.xlu0 %2523
      %2525 = vrot.lane.b32.xlu0 %v921, 104
      %v2526 = vpop.permute.xlu0 %2525
      %2527 = vrot.lane.b32.xlu0 %v924, 104
      %v2528 = vpop.permute.xlu0 %2527
      %2529 = vrot.lane.b32.xlu0 %v927, 104
      %v2530 = vpop.permute.xlu0 %2529
      %2531 = vrot.lane.b32.xlu0 %v930, 104
      %v2532 = vpop.permute.xlu0 %2531
      %2533 = vrot.lane.b32.xlu0 %v933, 104
      %v2534 = vpop.permute.xlu0 %2533
      %2535 = vrot.lane.b32.xlu0 %v936, 104
      %v2536 = vpop.permute.xlu0 %2535
      %2537 = vrot.lane.b32.xlu0 %v903, 72
      %v2538 = vpop.permute.xlu0 %2537
      %2539 = vrot.lane.b32.xlu0 %v906, 72
      %v2540 = vpop.permute.xlu0 %2539
      %2541 = vrot.lane.b32.xlu0 %v909, 72
      %v2542 = vpop.permute.xlu0 %2541
      %2543 = vrot.lane.b32.xlu0 %v912, 72
      %v2544 = vpop.permute.xlu0 %2543
      %2545 = vrot.lane.b32.xlu0 %v915, 72
      %v2546 = vpop.permute.xlu0 %2545
      %2547 = vrot.lane.b32.xlu0 %v918, 72
      %v2548 = vpop.permute.xlu0 %2547
      %2549 = vrot.lane.b32.xlu0 %v921, 72
      %v2550 = vpop.permute.xlu0 %2549
      %2551 = vrot.lane.b32.xlu0 %v924, 72
      %v2552 = vpop.permute.xlu0 %2551
      %2553 = vrot.lane.b32.xlu0 %v927, 72
      %v2554 = vpop.permute.xlu0 %2553
      %2555 = vrot.lane.b32.xlu0 %v930, 72
      %v2556 = vpop.permute.xlu0 %2555
      %2557 = vrot.lane.b32.xlu0 %v933, 72
      %v2558 = vpop.permute.xlu0 %2557
      %2559 = vrot.lane.b32.xlu0 %v936, 72
      %v2560 = vpop.permute.xlu0 %2559
      %v2561 = vsel %vm990, %v2514, 0
      %v2563 = vsel %vm990, %v2516, 0
      %v2565 = vsel %vm990, %v2518, 0
      %v2567 = vsel %vm990, %v2520, 0
      %v2569 = vsel %vm990, %v2522, 0
      %v2571 = vsel %vm990, %v2524, 0
      %v2573 = vsel %vm990, %v2526, 0
      %v2575 = vsel %vm990, %v2528, 0
      %v2577 = vsel %vm990, %v2530, 0
      %v2579 = vsel %vm990, %v2532, 0
      %v2581 = vsel %vm990, %v2534, 0
      %v2583 = vsel %vm990, %v2536, 0
      %v2585 = vsel %vm990, %v2538, 0
      %v2587 = vsel %vm990, %v2540, 0
      %v2589 = vsel %vm990, %v2542, 0
      %v2591 = vsel %vm990, %v2544, 0
      %v2593 = vsel %vm990, %v2546, 0
      %v2595 = vsel %vm990, %v2548, 0
      %v2597 = vsel %vm990, %v2550, 0
      %v2599 = vsel %vm990, %v2552, 0
      %v2601 = vsel %vm990, %v2554, 0
      %v2603 = vsel %vm990, %v2556, 0
      %v2605 = vsel %vm990, %v2558, 0
      %v2607 = vsel %vm990, %v2560, 0
      %2609 = vmatpush.xpose.msra.mxu0 0.0
      %2610 = vmatpush.xpose.msra.mxu0 0.0
      %2611 = vmatpush.xpose.msra.mxu0 0.0
      %2612 = vmatpush.xpose.msra.mxu0 0.0
      %2613 = vmatpush.xpose.msra.mxu0 %v2607
      %2614 = vmatpush.xpose.msra.mxu0 %v2605
      %2615 = vmatpush.xpose.msra.mxu0 %v2603
      %2616 = vmatpush.xpose.msra.mxu0 %v2601
      %2617 = vmatpush.xpose.msra.mxu0 %v2599
      %2618 = vmatpush.xpose.msra.mxu0 %v2597
      %2619 = vmatpush.xpose.msra.mxu0 %v2595
      %2620 = vmatpush.xpose.msra.mxu0 %v2593
      %2621 = vmatpush.xpose.msra.mxu0 %v2591
      %2622 = vmatpush.xpose.msra.mxu0 %v2589
      %2623 = vmatpush.xpose.msra.mxu0 %v2587
      %2624 = vmatpush.xpose.msra.mxu0 %v2585
      %2625 = vmatmul.f32.gmra.mxu0 %v2561
      %v2626 = vpop.f32.mrf.mxu0
      %v2627 = vadd.f32 0.0, %v2626
      %2628 = vmatmul.f32.gmra.mxu0 %v2563
      %v2629 = vpop.f32.mrf.mxu0
      %v2630 = vadd.f32 0.0, %v2629
      %2631 = vmatmul.f32.gmra.mxu0 %v2565
      %v2632 = vpop.f32.mrf.mxu0
      %v2633 = vadd.f32 0.0, %v2632
      %2634 = vmatmul.f32.gmra.mxu0 %v2567
      %v2635 = vpop.f32.mrf.mxu0
      %v2636 = vadd.f32 0.0, %v2635
      %2637 = vmatmul.f32.gmra.mxu0 %v2569
      %v2638 = vpop.f32.mrf.mxu0
      %v2639 = vadd.f32 0.0, %v2638
      %2640 = vmatmul.f32.gmra.mxu0 %v2571
      %v2641 = vpop.f32.mrf.mxu0
      %v2642 = vadd.f32 0.0, %v2641
      %2643 = vmatmul.f32.gmra.mxu0 %v2573
      %v2644 = vpop.f32.mrf.mxu0
      %v2645 = vadd.f32 0.0, %v2644
      %2646 = vmatmul.f32.gmra.mxu0 %v2575
      %v2647 = vpop.f32.mrf.mxu0
      %v2648 = vadd.f32 0.0, %v2647
      %2649 = vmatmul.f32.gmra.mxu0 %v2577
      %v2650 = vpop.f32.mrf.mxu0
      %v2651 = vadd.f32 0.0, %v2650
      %2652 = vmatmul.f32.gmra.mxu0 %v2579
      %v2653 = vpop.f32.mrf.mxu0
      %v2654 = vadd.f32 0.0, %v2653
      %2655 = vmatmul.f32.gmra.mxu0 %v2581
      %v2656 = vpop.f32.mrf.mxu0
      %v2657 = vadd.f32 0.0, %v2656
      %2658 = vmatmul.f32.gmra.mxu0 %v2583
      %v2659 = vpop.f32.mrf.mxu0
      %v2660 = vadd.f32 0.0, %v2659
      %2661 = vdwg.mxu0
      %v2662 = vmul.f32 %v2627, 0.35355338
      %v2663 = vmul.f32 %v2630, 0.35355338
      %v2664 = vmul.f32 %v2633, 0.35355338
      %v2665 = vmul.f32 %v2636, 0.35355338
      %v2666 = vmul.f32 %v2639, 0.35355338
      %v2667 = vmul.f32 %v2642, 0.35355338
      %v2668 = vmul.f32 %v2645, 0.35355338
      %v2669 = vmul.f32 %v2648, 0.35355338
      %v2670 = vmul.f32 %v2651, 0.35355338
      %v2671 = vmul.f32 %v2654, 0.35355338
      %v2672 = vmul.f32 %v2657, 0.35355338
      %v2673 = vmul.f32 %v2660, 0.35355338
      %v2674 = vadd.f32 %v2662, %v938
      %v2675 = vadd.f32 %v2663, %v939
      %v2676 = vadd.f32 %v2664, %v940
      %v2677 = vadd.f32 %v2665, %v941
      %v2678 = vadd.f32 %v2666, %v942
      %v2679 = vadd.f32 %v2667, %v943
      %v2680 = vadd.f32 %v2668, %v944
      %v2681 = vadd.f32 %v2669, %v945
      %v2682 = vadd.f32 %v2670, %v946
      %v2683 = vadd.f32 %v2671, %v947
      %v2684 = vadd.f32 %v2672, %v948
      %v2685 = vadd.f32 %v2673, %v949
      %v2686 = vsel %vm1116, %v2674, -inf
      %2687 = vmax.xlane.f32.xlu0 %v2686
      %v2688 = vpop.xlane.xlu0 %2687
      %v2689 = vsel %vm1116, %v2675, -inf
      %2690 = vmax.xlane.f32.xlu0 %v2689
      %v2691 = vpop.xlane.xlu0 %2690
      %v2692 = vsel %vm1116, %v2676, -inf
      %2693 = vmax.xlane.f32.xlu0 %v2692
      %v2694 = vpop.xlane.xlu0 %2693
      %v2695 = vsel %vm1116, %v2677, -inf
      %2696 = vmax.xlane.f32.xlu0 %v2695
      %v2697 = vpop.xlane.xlu0 %2696
      %v2698 = vsel %vm1116, %v2678, -inf
      %2699 = vmax.xlane.f32.xlu0 %v2698
      %v2700 = vpop.xlane.xlu0 %2699
      %v2701 = vsel %vm1116, %v2679, -inf
      %2702 = vmax.xlane.f32.xlu0 %v2701
      %v2703 = vpop.xlane.xlu0 %2702
      %v2704 = vsel %vm1116, %v2680, -inf
      %2705 = vmax.xlane.f32.xlu0 %v2704
      %v2706 = vpop.xlane.xlu0 %2705
      %v2707 = vsel %vm1116, %v2681, -inf
      %2708 = vmax.xlane.f32.xlu0 %v2707
      %v2709 = vpop.xlane.xlu0 %2708
      %v2710 = vsel %vm1116, %v2682, -inf
      %2711 = vmax.xlane.f32.xlu0 %v2710
      %v2712 = vpop.xlane.xlu0 %2711
      %v2713 = vsel %vm1116, %v2683, -inf
      %2714 = vmax.xlane.f32.xlu0 %v2713
      %v2715 = vpop.xlane.xlu0 %2714
      %v2716 = vsel %vm1116, %v2684, -inf
      %2717 = vmax.xlane.f32.xlu0 %v2716
      %v2718 = vpop.xlane.xlu0 %2717
      %v2719 = vsel %vm1116, %v2685, -inf
      %2720 = vmax.xlane.f32.xlu0 %v2719
      %v2721 = vpop.xlane.xlu0 %2720
      %v2722 = vsub.f32 %v2674, %v2688
      %v2723 = vsub.f32 %v2675, %v2691
      %v2724 = vsub.f32 %v2676, %v2694
      %v2725 = vsub.f32 %v2677, %v2697
      %v2726 = vsub.f32 %v2678, %v2700
      %v2727 = vsub.f32 %v2679, %v2703
      %v2728 = vsub.f32 %v2680, %v2706
      %v2729 = vsub.f32 %v2681, %v2709
      %v2730 = vsub.f32 %v2682, %v2712
      %v2731 = vsub.f32 %v2683, %v2715
      %v2732 = vsub.f32 %v2684, %v2718
      %v2733 = vsub.f32 %v2685, %v2721
      %v2734 = vmul.f32 %v2722, 1.442695
      %v2735 = vpow.pop %v2734
      %v2736 = vmul.f32 %v2723, 1.442695
      %v2737 = vpow.pop %v2736
      %v2738 = vmul.f32 %v2724, 1.442695
      %v2739 = vpow.pop %v2738
      %v2740 = vmul.f32 %v2725, 1.442695
      %v2741 = vpow.pop %v2740
      %v2742 = vmul.f32 %v2726, 1.442695
      %v2743 = vpow.pop %v2742
      %v2744 = vmul.f32 %v2727, 1.442695
      %v2745 = vpow.pop %v2744
      %v2746 = vmul.f32 %v2728, 1.442695
      %v2747 = vpow.pop %v2746
      %v2748 = vmul.f32 %v2729, 1.442695
      %v2749 = vpow.pop %v2748
      %v2750 = vmul.f32 %v2730, 1.442695
      %v2751 = vpow.pop %v2750
      %v2752 = vmul.f32 %v2731, 1.442695
      %v2753 = vpow.pop %v2752
      %v2754 = vmul.f32 %v2732, 1.442695
      %v2755 = vpow.pop %v2754
      %v2756 = vmul.f32 %v2733, 1.442695
      %v2757 = vpow.pop %v2756
      %v2758 = vsel %vm1116, %v2735, 0.0
      %2759 = vadd.xlane.f32.xlu0 %v2758
      %v2760 = vpop.xlane.xlu0 %2759
      %v2761 = vsel %vm1116, %v2737, 0.0
      %2762 = vadd.xlane.f32.xlu0 %v2761
      %v2763 = vpop.xlane.xlu0 %2762
      %v2764 = vsel %vm1116, %v2739, 0.0
      %2765 = vadd.xlane.f32.xlu0 %v2764
      %v2766 = vpop.xlane.xlu0 %2765
      %v2767 = vsel %vm1116, %v2741, 0.0
      %2768 = vadd.xlane.f32.xlu0 %v2767
      %v2769 = vpop.xlane.xlu0 %2768
      %v2770 = vsel %vm1116, %v2743, 0.0
      %2771 = vadd.xlane.f32.xlu0 %v2770
      %v2772 = vpop.xlane.xlu0 %2771
      %v2773 = vsel %vm1116, %v2745, 0.0
      %2774 = vadd.xlane.f32.xlu0 %v2773
      %v2775 = vpop.xlane.xlu0 %2774
      %v2776 = vsel %vm1116, %v2747, 0.0
      %2777 = vadd.xlane.f32.xlu0 %v2776
      %v2778 = vpop.xlane.xlu0 %2777
      %v2779 = vsel %vm1116, %v2749, 0.0
      %2780 = vadd.xlane.f32.xlu0 %v2779
      %v2781 = vpop.xlane.xlu0 %2780
      %v2782 = vsel %vm1116, %v2751, 0.0
      %2783 = vadd.xlane.f32.xlu0 %v2782
      %v2784 = vpop.xlane.xlu0 %2783
      %v2785 = vsel %vm1116, %v2753, 0.0
      %2786 = vadd.xlane.f32.xlu0 %v2785
      %v2787 = vpop.xlane.xlu0 %2786
      %v2788 = vsel %vm1116, %v2755, 0.0
      %2789 = vadd.xlane.f32.xlu0 %v2788
      %v2790 = vpop.xlane.xlu0 %2789
      %v2791 = vsel %vm1116, %v2757, 0.0
      %2792 = vadd.xlane.f32.xlu0 %v2791
      %v2793 = vpop.xlane.xlu0 %2792
      %v2794 = vrcp.pop %v2760
      %v2795 = vrcp.pop %v2763
      %v2796 = vrcp.pop %v2766
      %v2797 = vrcp.pop %v2769
      %v2798 = vrcp.pop %v2772
      %v2799 = vrcp.pop %v2775
      %v2800 = vrcp.pop %v2778
      %v2801 = vrcp.pop %v2781
      %v2802 = vrcp.pop %v2784
      %v2803 = vrcp.pop %v2787
      %v2804 = vrcp.pop %v2790
      %v2805 = vrcp.pop %v2793
      %v2806 = vmul.f32 %v2735, %v2794
      %v2807 = vmul.f32 %v2737, %v2795
      %v2808 = vmul.f32 %v2739, %v2796
      %v2809 = vmul.f32 %v2741, %v2797
      %v2810 = vmul.f32 %v2743, %v2798
      %v2811 = vmul.f32 %v2745, %v2799
      %v2812 = vmul.f32 %v2747, %v2800
      %v2813 = vmul.f32 %v2749, %v2801
      %v2814 = vmul.f32 %v2751, %v2802
      %v2815 = vmul.f32 %v2753, %v2803
      %v2816 = vmul.f32 %v2755, %v2804
      %v2817 = vmul.f32 %v2757, %v2805
      %2818 = vrot.lane.b32.xlu0 %v903, 40
      %v2819 = vpop.permute.xlu0 %2818
      %2820 = vrot.lane.b32.xlu0 %v906, 40
      %v2821 = vpop.permute.xlu0 %2820
      %2822 = vrot.lane.b32.xlu0 %v909, 40
      %v2823 = vpop.permute.xlu0 %2822
      %2824 = vrot.lane.b32.xlu0 %v912, 40
      %v2825 = vpop.permute.xlu0 %2824
      %2826 = vrot.lane.b32.xlu0 %v915, 40
      %v2827 = vpop.permute.xlu0 %2826
      %2828 = vrot.lane.b32.xlu0 %v918, 40
      %v2829 = vpop.permute.xlu0 %2828
      %2830 = vrot.lane.b32.xlu0 %v921, 40
      %v2831 = vpop.permute.xlu0 %2830
      %2832 = vrot.lane.b32.xlu0 %v924, 40
      %v2833 = vpop.permute.xlu0 %2832
      %2834 = vrot.lane.b32.xlu0 %v927, 40
      %v2835 = vpop.permute.xlu0 %2834
      %2836 = vrot.lane.b32.xlu0 %v930, 40
      %v2837 = vpop.permute.xlu0 %2836
      %2838 = vrot.lane.b32.xlu0 %v933, 40
      %v2839 = vpop.permute.xlu0 %2838
      %2840 = vrot.lane.b32.xlu0 %v936, 40
      %v2841 = vpop.permute.xlu0 %2840
      %v2855 = vsel %vm1116, %v2806, 0
      %v2858 = vsel %vm1116, %v2807, 0
      %v2861 = vsel %vm1116, %v2808, 0
      %v2864 = vsel %vm1116, %v2809, 0
      %v2867 = vsel %vm1116, %v2810, 0
      %v2870 = vsel %vm1116, %v2811, 0
      %v2873 = vsel %vm1116, %v2812, 0
      %v2876 = vsel %vm1116, %v2813, 0
      %v2879 = vsel %vm1116, %v2814, 0
      %v2882 = vsel %vm1116, %v2815, 0
      %v2885 = vsel %vm1116, %v2816, 0
      %v2888 = vsel %vm1116, %v2817, 0
      %2890 = vmatpush.msra.mxu0 0.0
      %2891 = vmatpush.msra.mxu0 0.0
      %2892 = vmatpush.msra.mxu0 0.0
      %2893 = vmatpush.msra.mxu0 0.0
      %2894 = vmatpush.msra.mxu0 %v2841
      %2895 = vmatpush.msra.mxu0 %v2839
      %2896 = vmatpush.msra.mxu0 %v2837
      %2897 = vmatpush.msra.mxu0 %v2835
      %2898 = vmatpush.msra.mxu0 %v2833
      %2899 = vmatpush.msra.mxu0 %v2831
      %2900 = vmatpush.msra.mxu0 %v2829
      %2901 = vmatpush.msra.mxu0 %v2827
      %2902 = vmatpush.msra.mxu0 %v2825
      %2903 = vmatpush.msra.mxu0 %v2823
      %2904 = vmatpush.msra.mxu0 %v2821
      %2905 = vmatpush.msra.mxu0 %v2819
      %2906 = vmatmul.f32.gmra.mxu0 %v2855
      %v2907 = vpop.f32.mrf.mxu0
      %v2908 = vadd.f32 0.0, %v2907
      %2909 = vmatmul.f32.gmra.mxu0 %v2858
      %v2910 = vpop.f32.mrf.mxu0
      %v2911 = vadd.f32 0.0, %v2910
      %2912 = vmatmul.f32.gmra.mxu0 %v2861
      %v2913 = vpop.f32.mrf.mxu0
      %v2914 = vadd.f32 0.0, %v2913
      %2915 = vmatmul.f32.gmra.mxu0 %v2864
      %v2916 = vpop.f32.mrf.mxu0
      %v2917 = vadd.f32 0.0, %v2916
      %2918 = vmatmul.f32.gmra.mxu0 %v2867
      %v2919 = vpop.f32.mrf.mxu0
      %v2920 = vadd.f32 0.0, %v2919
      %2921 = vmatmul.f32.gmra.mxu0 %v2870
      %v2922 = vpop.f32.mrf.mxu0
      %v2923 = vadd.f32 0.0, %v2922
      %2924 = vmatmul.f32.gmra.mxu0 %v2873
      %v2925 = vpop.f32.mrf.mxu0
      %v2926 = vadd.f32 0.0, %v2925
      %2927 = vmatmul.f32.gmra.mxu0 %v2876
      %v2928 = vpop.f32.mrf.mxu0
      %v2929 = vadd.f32 0.0, %v2928
      %2930 = vmatmul.f32.gmra.mxu0 %v2879
      %v2931 = vpop.f32.mrf.mxu0
      %v2932 = vadd.f32 0.0, %v2931
      %2933 = vmatmul.f32.gmra.mxu0 %v2882
      %v2934 = vpop.f32.mrf.mxu0
      %v2935 = vadd.f32 0.0, %v2934
      %2936 = vmatmul.f32.gmra.mxu0 %v2885
      %v2937 = vpop.f32.mrf.mxu0
      %v2938 = vadd.f32 0.0, %v2937
      %2939 = vmatmul.f32.gmra.mxu0 %v2888
      %v2940 = vpop.f32.mrf.mxu0
      %v2941 = vadd.f32 0.0, %v2940
      %2942 = vdwg.mxu0
      %v2944 = vsel %vm990, %v2908, 0
      %v2947 = vsel %vm990, %v2911, 0
      %v2950 = vsel %vm990, %v2914, 0
      %v2953 = vsel %vm990, %v2917, 0
      %v2956 = vsel %vm990, %v2920, 0
      %v2959 = vsel %vm990, %v2923, 0
      %v2962 = vsel %vm990, %v2926, 0
      %v2965 = vsel %vm990, %v2929, 0
      %v2968 = vsel %vm990, %v2932, 0
      %v2971 = vsel %vm990, %v2935, 0
      %v2974 = vsel %vm990, %v2938, 0
      %v2977 = vsel %vm990, %v2941, 0
      %2979 = vmatpush.msra.mxu0 0.0
      %2980 = vmatpush.msra.mxu0 0.0
      %2981 = vmatpush.msra.mxu0 0.0
      %2982 = vmatpush.msra.mxu0 0.0
      %2983 = vmatpush.msra.mxu0 0.0
      %2984 = vmatpush.msra.mxu0 0.0
      %2985 = vmatpush.msra.mxu0 0.0
      %2986 = vmatpush.msra.mxu0 0.0
      %2987 = vmatpush.msra.mxu0 0.0
      %2988 = vmatpush.msra.mxu0 0.0
      %2989 = vmatpush.msra.mxu0 0.0
      %2990 = vmatpush.msra.mxu0 0.0
      %2991 = vmatpush.msra.mxu0 0.0
      %2992 = vmatpush.msra.mxu0 0.0
      %2993 = vmatpush.msra.mxu0 0.0
      %2994 = vmatpush.msra.mxu0 %v953
      %2995 = vmatmul.f32.gmra.mxu0 %v2944
      %v2996 = vpop.f32.mrf.mxu0
      %v2997 = vadd.f32 0.0, %v2996
      %2998 = vmatmul.f32.gmra.mxu0 %v2947
      %v2999 = vpop.f32.mrf.mxu0
      %v3000 = vadd.f32 0.0, %v2999
      %3001 = vmatmul.f32.gmra.mxu0 %v2950
      %v3002 = vpop.f32.mrf.mxu0
      %v3003 = vadd.f32 0.0, %v3002
      %3004 = vmatmul.f32.gmra.mxu0 %v2953
      %v3005 = vpop.f32.mrf.mxu0
      %v3006 = vadd.f32 0.0, %v3005
      %3007 = vmatmul.f32.gmra.mxu0 %v2956
      %v3008 = vpop.f32.mrf.mxu0
      %v3009 = vadd.f32 0.0, %v3008
      %3010 = vmatmul.f32.gmra.mxu0 %v2959
      %v3011 = vpop.f32.mrf.mxu0
      %v3012 = vadd.f32 0.0, %v3011
      %3013 = vmatmul.f32.gmra.mxu0 %v2962
      %v3014 = vpop.f32.mrf.mxu0
      %v3015 = vadd.f32 0.0, %v3014
      %3016 = vmatmul.f32.gmra.mxu0 %v2965
      %v3017 = vpop.f32.mrf.mxu0
      %v3018 = vadd.f32 0.0, %v3017
      %3019 = vmatmul.f32.gmra.mxu0 %v2968
      %v3020 = vpop.f32.mrf.mxu0
      %v3021 = vadd.f32 0.0, %v3020
      %3022 = vmatmul.f32.gmra.mxu0 %v2971
      %v3023 = vpop.f32.mrf.mxu0
      %v3024 = vadd.f32 0.0, %v3023
      %3025 = vmatmul.f32.gmra.mxu0 %v2974
      %v3026 = vpop.f32.mrf.mxu0
      %v3027 = vadd.f32 0.0, %v3026
      %3028 = vmatmul.f32.gmra.mxu0 %v2977
      %v3029 = vpop.f32.mrf.mxu0
      %v3030 = vadd.f32 0.0, %v3029
      %3031 = vdwg.mxu0
      %v3032 = vadd.f32 %v2501, %v2997
      %v3033 = vadd.f32 %v2502, %v3000
      %v3034 = vadd.f32 %v2503, %v3003
      %v3035 = vadd.f32 %v2504, %v3006
      %v3036 = vadd.f32 %v2505, %v3009
      %v3037 = vadd.f32 %v2506, %v3012
      %v3038 = vadd.f32 %v2507, %v3015
      %v3039 = vadd.f32 %v2508, %v3018
      %v3040 = vadd.f32 %v2509, %v3021
      %v3041 = vadd.f32 %v2510, %v3024
      %v3042 = vadd.f32 %v2511, %v3027
      %v3043 = vadd.f32 %v2512, %v3030
      %v3044 = vadd.f32 %v525, %v3032
      %v3045 = vadd.f32 %v526, %v3033
      %v3046 = vadd.f32 %v527, %v3034
      %v3047 = vadd.f32 %v528, %v3035
      %v3048 = vadd.f32 %v529, %v3036
      %v3049 = vadd.f32 %v530, %v3037
      %v3050 = vadd.f32 %v531, %v3038
      %v3051 = vadd.f32 %v532, %v3039
      %v3052 = vadd.f32 %v533, %v3040
      %v3053 = vadd.f32 %v534, %v3041
      %v3054 = vadd.f32 %v535, %v3042
      %v3055 = vadd.f32 %v536, %v3043
      %v3056 = vld [vmem:[%s5] sm:$0x1]
      %v3058 = vperm.slane %v3056, 0
      %v3060 = vadd.f32 %v3044, %v3058
      %v3061 = vadd.f32 %v3045, %v3058
      %v3062 = vadd.f32 %v3046, %v3058
      %v3063 = vadd.f32 %v3047, %v3058
      %v3064 = vadd.f32 %v3048, %v3058
      %v3065 = vadd.f32 %v3049, %v3058
      %v3066 = vadd.f32 %v3050, %v3058
      %v3067 = vadd.f32 %v3051, %v3058
      %v3068 = vadd.f32 %v3052, %v3058
      %v3069 = vadd.f32 %v3053, %v3058
      %v3070 = vadd.f32 %v3054, %v3058
      %v3071 = vadd.f32 %v3055, %v3058
      %v3072 = vld [vmem:[%s12] sm:$0x1]
      %v3073 = vld [vmem:[%s13] sm:$0x1]
      %v3074 = vsel %vm539, %v3060, 0.0
      %3075 = vadd.xlane.f32.xlu0 %v3074
      %v3076 = vpop.xlane.xlu0 %3075
      %v3077 = vsel %vm539, %v3061, 0.0
      %3078 = vadd.xlane.f32.xlu0 %v3077
      %v3079 = vpop.xlane.xlu0 %3078
      %v3080 = vsel %vm539, %v3062, 0.0
      %3081 = vadd.xlane.f32.xlu0 %v3080
      %v3082 = vpop.xlane.xlu0 %3081
      %v3083 = vsel %vm539, %v3063, 0.0
      %3084 = vadd.xlane.f32.xlu0 %v3083
      %v3085 = vpop.xlane.xlu0 %3084
      %v3086 = vsel %vm539, %v3064, 0.0
      %3087 = vadd.xlane.f32.xlu0 %v3086
      %v3088 = vpop.xlane.xlu0 %3087
      %v3089 = vsel %vm539, %v3065, 0.0
      %3090 = vadd.xlane.f32.xlu0 %v3089
      %v3091 = vpop.xlane.xlu0 %3090
      %v3092 = vsel %vm539, %v3066, 0.0
      %3093 = vadd.xlane.f32.xlu0 %v3092
      %v3094 = vpop.xlane.xlu0 %3093
      %v3095 = vsel %vm539, %v3067, 0.0
      %3096 = vadd.xlane.f32.xlu0 %v3095
      %v3097 = vpop.xlane.xlu0 %3096
      %v3098 = vsel %vm539, %v3068, 0.0
      %3099 = vadd.xlane.f32.xlu0 %v3098
      %v3100 = vpop.xlane.xlu0 %3099
      %v3101 = vsel %vm539, %v3069, 0.0
      %3102 = vadd.xlane.f32.xlu0 %v3101
      %v3103 = vpop.xlane.xlu0 %3102
      %v3104 = vsel %vm539, %v3070, 0.0
      %3105 = vadd.xlane.f32.xlu0 %v3104
      %v3106 = vpop.xlane.xlu0 %3105
      %v3107 = vsel %vm539, %v3071, 0.0
      %3108 = vadd.xlane.f32.xlu0 %v3107
      %v3109 = vpop.xlane.xlu0 %3108
      %v3110 = vmul.f32 %v3076, %v582
      %v3111 = vmul.f32 %v3079, %v582
      %v3112 = vmul.f32 %v3082, %v582
      %v3113 = vmul.f32 %v3085, %v582
      %v3114 = vmul.f32 %v3088, %v582
      %v3115 = vmul.f32 %v3091, %v582
      %v3116 = vmul.f32 %v3094, %v582
      %v3117 = vmul.f32 %v3097, %v582
      %v3118 = vmul.f32 %v3100, %v582
      %v3119 = vmul.f32 %v3103, %v582
      %v3120 = vmul.f32 %v3106, %v582
      %v3121 = vmul.f32 %v3109, %v582
      %v3122 = vsub.f32 %v3060, %v3110
      %v3123 = vsub.f32 %v3061, %v3111
      %v3124 = vsub.f32 %v3062, %v3112
      %v3125 = vsub.f32 %v3063, %v3113
      %v3126 = vsub.f32 %v3064, %v3114
      %v3127 = vsub.f32 %v3065, %v3115
      %v3128 = vsub.f32 %v3066, %v3116
      %v3129 = vsub.f32 %v3067, %v3117
      %v3130 = vsub.f32 %v3068, %v3118
      %v3131 = vsub.f32 %v3069, %v3119
      %v3132 = vsub.f32 %v3070, %v3120
      %v3133 = vsub.f32 %v3071, %v3121
      %v3134 = vmul.f32 %v3122, %v3122
      %v3135 = vmul.f32 %v3123, %v3123
      %v3136 = vmul.f32 %v3124, %v3124
      %v3137 = vmul.f32 %v3125, %v3125
      %v3138 = vmul.f32 %v3126, %v3126
      %v3139 = vmul.f32 %v3127, %v3127
      %v3140 = vmul.f32 %v3128, %v3128
      %v3141 = vmul.f32 %v3129, %v3129
      %v3142 = vmul.f32 %v3130, %v3130
      %v3143 = vmul.f32 %v3131, %v3131
      %v3144 = vmul.f32 %v3132, %v3132
      %v3145 = vmul.f32 %v3133, %v3133
      %v3146 = vsel %vm539, %v3134, 0.0
      %3147 = vadd.xlane.f32.xlu0 %v3146
      %v3148 = vpop.xlane.xlu0 %3147
      %v3149 = vsel %vm539, %v3135, 0.0
      %3150 = vadd.xlane.f32.xlu0 %v3149
      %v3151 = vpop.xlane.xlu0 %3150
      %v3152 = vsel %vm539, %v3136, 0.0
      %3153 = vadd.xlane.f32.xlu0 %v3152
      %v3154 = vpop.xlane.xlu0 %3153
      %v3155 = vsel %vm539, %v3137, 0.0
      %3156 = vadd.xlane.f32.xlu0 %v3155
      %v3157 = vpop.xlane.xlu0 %3156
      %v3158 = vsel %vm539, %v3138, 0.0
      %3159 = vadd.xlane.f32.xlu0 %v3158
      %v3160 = vpop.xlane.xlu0 %3159
      %v3161 = vsel %vm539, %v3139, 0.0
      %3162 = vadd.xlane.f32.xlu0 %v3161
      %v3163 = vpop.xlane.xlu0 %3162
      %v3164 = vsel %vm539, %v3140, 0.0
      %3165 = vadd.xlane.f32.xlu0 %v3164
      %v3166 = vpop.xlane.xlu0 %3165
      %v3167 = vsel %vm539, %v3141, 0.0
      %3168 = vadd.xlane.f32.xlu0 %v3167
      %v3169 = vpop.xlane.xlu0 %3168
      %v3170 = vsel %vm539, %v3142, 0.0
      %3171 = vadd.xlane.f32.xlu0 %v3170
      %v3172 = vpop.xlane.xlu0 %3171
      %v3173 = vsel %vm539, %v3143, 0.0
      %3174 = vadd.xlane.f32.xlu0 %v3173
      %v3175 = vpop.xlane.xlu0 %3174
      %v3176 = vsel %vm539, %v3144, 0.0
      %3177 = vadd.xlane.f32.xlu0 %v3176
      %v3178 = vpop.xlane.xlu0 %3177
      %v3179 = vsel %vm539, %v3145, 0.0
      %3180 = vadd.xlane.f32.xlu0 %v3179
      %v3181 = vpop.xlane.xlu0 %3180
      %v3182 = vmul.f32 %v3148, %v582
      %v3183 = vmul.f32 %v3151, %v582
      %v3184 = vmul.f32 %v3154, %v582
      %v3185 = vmul.f32 %v3157, %v582
      %v3186 = vmul.f32 %v3160, %v582
      %v3187 = vmul.f32 %v3163, %v582
      %v3188 = vmul.f32 %v3166, %v582
      %v3189 = vmul.f32 %v3169, %v582
      %v3190 = vmul.f32 %v3172, %v582
      %v3191 = vmul.f32 %v3175, %v582
      %v3192 = vmul.f32 %v3178, %v582
      %v3193 = vmul.f32 %v3181, %v582
      %v3194 = vadd.f32 %v3182, 1e-12
      %v3195 = vadd.f32 %v3183, 1e-12
      %v3196 = vadd.f32 %v3184, 1e-12
      %v3197 = vadd.f32 %v3185, 1e-12
      %v3198 = vadd.f32 %v3186, 1e-12
      %v3199 = vadd.f32 %v3187, 1e-12
      %v3200 = vadd.f32 %v3188, 1e-12
      %v3201 = vadd.f32 %v3189, 1e-12
      %v3202 = vadd.f32 %v3190, 1e-12
      %v3203 = vadd.f32 %v3191, 1e-12
      %v3204 = vadd.f32 %v3192, 1e-12
      %v3205 = vadd.f32 %v3193, 1e-12
      %v3206 = vrsqrt.pop %v3194
      %v3207 = vmul.f32 %v3206, %v3194
      %v3208 = vmul.f32 %v3207, %v3206
      %v3209 = vmul.f32 0.5, %v3208
      %v3210 = vsub.f32 1.5, %v3209
      %v3211 = vmul.f32 %v3206, %v3210
      %vm3212 = vweird.f32 %v3194
      %vm3213 = vweird.f32 %v3206
      %vm3214 = vmor %vm3212, %vm3213
      %v3215 = vsel %vm3214, %v3206, %v3211
      %v3216 = vrsqrt.pop %v3195
      %v3217 = vmul.f32 %v3216, %v3195
      %v3218 = vmul.f32 %v3217, %v3216
      %v3219 = vmul.f32 0.5, %v3218
      %v3220 = vsub.f32 1.5, %v3219
      %v3221 = vmul.f32 %v3216, %v3220
      %vm3222 = vweird.f32 %v3195
      %vm3223 = vweird.f32 %v3216
      %vm3224 = vmor %vm3222, %vm3223
      %v3225 = vsel %vm3224, %v3216, %v3221
      %v3226 = vrsqrt.pop %v3196
      %v3227 = vmul.f32 %v3226, %v3196
      %v3228 = vmul.f32 %v3227, %v3226
      %v3229 = vmul.f32 0.5, %v3228
      %v3230 = vsub.f32 1.5, %v3229
      %v3231 = vmul.f32 %v3226, %v3230
      %vm3232 = vweird.f32 %v3196
      %vm3233 = vweird.f32 %v3226
      %vm3234 = vmor %vm3232, %vm3233
      %v3235 = vsel %vm3234, %v3226, %v3231
      %v3236 = vrsqrt.pop %v3197
      %v3237 = vmul.f32 %v3236, %v3197
      %v3238 = vmul.f32 %v3237, %v3236
      %v3239 = vmul.f32 0.5, %v3238
      %v3240 = vsub.f32 1.5, %v3239
      %v3241 = vmul.f32 %v3236, %v3240
      %vm3242 = vweird.f32 %v3197
      %vm3243 = vweird.f32 %v3236
      %vm3244 = vmor %vm3242, %vm3243
      %v3245 = vsel %vm3244, %v3236, %v3241
      %v3246 = vrsqrt.pop %v3198
      %v3247 = vmul.f32 %v3246, %v3198
      %v3248 = vmul.f32 %v3247, %v3246
      %v3249 = vmul.f32 0.5, %v3248
      %v3250 = vsub.f32 1.5, %v3249
      %v3251 = vmul.f32 %v3246, %v3250
      %vm3252 = vweird.f32 %v3198
      %vm3253 = vweird.f32 %v3246
      %vm3254 = vmor %vm3252, %vm3253
      %v3255 = vsel %vm3254, %v3246, %v3251
      %v3256 = vrsqrt.pop %v3199
      %v3257 = vmul.f32 %v3256, %v3199
      %v3258 = vmul.f32 %v3257, %v3256
      %v3259 = vmul.f32 0.5, %v3258
      %v3260 = vsub.f32 1.5, %v3259
      %v3261 = vmul.f32 %v3256, %v3260
      %vm3262 = vweird.f32 %v3199
      %vm3263 = vweird.f32 %v3256
      %vm3264 = vmor %vm3262, %vm3263
      %v3265 = vsel %vm3264, %v3256, %v3261
      %v3266 = vrsqrt.pop %v3200
      %v3267 = vmul.f32 %v3266, %v3200
      %v3268 = vmul.f32 %v3267, %v3266
      %v3269 = vmul.f32 0.5, %v3268
      %v3270 = vsub.f32 1.5, %v3269
      %v3271 = vmul.f32 %v3266, %v3270
      %vm3272 = vweird.f32 %v3200
      %vm3273 = vweird.f32 %v3266
      %vm3274 = vmor %vm3272, %vm3273
      %v3275 = vsel %vm3274, %v3266, %v3271
      %v3276 = vrsqrt.pop %v3201
      %v3277 = vmul.f32 %v3276, %v3201
      %v3278 = vmul.f32 %v3277, %v3276
      %v3279 = vmul.f32 0.5, %v3278
      %v3280 = vsub.f32 1.5, %v3279
      %v3281 = vmul.f32 %v3276, %v3280
      %vm3282 = vweird.f32 %v3201
      %vm3283 = vweird.f32 %v3276
      %vm3284 = vmor %vm3282, %vm3283
      %v3285 = vsel %vm3284, %v3276, %v3281
      %v3286 = vrsqrt.pop %v3202
      %v3287 = vmul.f32 %v3286, %v3202
      %v3288 = vmul.f32 %v3287, %v3286
      %v3289 = vmul.f32 0.5, %v3288
      %v3290 = vsub.f32 1.5, %v3289
      %v3291 = vmul.f32 %v3286, %v3290
      %vm3292 = vweird.f32 %v3202
      %vm3293 = vweird.f32 %v3286
      %vm3294 = vmor %vm3292, %vm3293
      %v3295 = vsel %vm3294, %v3286, %v3291
      %v3296 = vrsqrt.pop %v3203
      %v3297 = vmul.f32 %v3296, %v3203
      %v3298 = vmul.f32 %v3297, %v3296
      %v3299 = vmul.f32 0.5, %v3298
      %v3300 = vsub.f32 1.5, %v3299
      %v3301 = vmul.f32 %v3296, %v3300
      %vm3302 = vweird.f32 %v3203
      %vm3303 = vweird.f32 %v3296
      %vm3304 = vmor %vm3302, %vm3303
      %v3305 = vsel %vm3304, %v3296, %v3301
      %v3306 = vrsqrt.pop %v3204
      %v3307 = vmul.f32 %v3306, %v3204
      %v3308 = vmul.f32 %v3307, %v3306
      %v3309 = vmul.f32 0.5, %v3308
      %v3310 = vsub.f32 1.5, %v3309
      %v3311 = vmul.f32 %v3306, %v3310
      %vm3312 = vweird.f32 %v3204
      %vm3313 = vweird.f32 %v3306
      %vm3314 = vmor %vm3312, %vm3313
      %v3315 = vsel %vm3314, %v3306, %v3311
      %v3316 = vrsqrt.pop %v3205
      %v3317 = vmul.f32 %v3316, %v3205
      %v3318 = vmul.f32 %v3317, %v3316
      %v3319 = vmul.f32 0.5, %v3318
      %v3320 = vsub.f32 1.5, %v3319
      %v3321 = vmul.f32 %v3316, %v3320
      %vm3322 = vweird.f32 %v3205
      %vm3323 = vweird.f32 %v3316
      %vm3324 = vmor %vm3322, %vm3323
      %v3325 = vsel %vm3324, %v3316, %v3321
      %v3326 = vmul.f32 %v3122, %v3215
      %v3327 = vmul.f32 %v3123, %v3225
      %v3328 = vmul.f32 %v3124, %v3235
      %v3329 = vmul.f32 %v3125, %v3245
      %v3330 = vmul.f32 %v3126, %v3255
      %v3331 = vmul.f32 %v3127, %v3265
      %v3332 = vmul.f32 %v3128, %v3275
      %v3333 = vmul.f32 %v3129, %v3285
      %v3334 = vmul.f32 %v3130, %v3295
      %v3335 = vmul.f32 %v3131, %v3305
      %v3336 = vmul.f32 %v3132, %v3315
      %v3337 = vmul.f32 %v3133, %v3325
      %v3339 = vperm.slane %v3072, 0
      %v3341 = vmul.f32 %v3326, %v3339
      %v3342 = vmul.f32 %v3327, %v3339
      %v3343 = vmul.f32 %v3328, %v3339
      %v3344 = vmul.f32 %v3329, %v3339
      %v3345 = vmul.f32 %v3330, %v3339
      %v3346 = vmul.f32 %v3331, %v3339
      %v3347 = vmul.f32 %v3332, %v3339
      %v3348 = vmul.f32 %v3333, %v3339
      %v3349 = vmul.f32 %v3334, %v3339
      %v3350 = vmul.f32 %v3335, %v3339
      %v3351 = vmul.f32 %v3336, %v3339
      %v3352 = vmul.f32 %v3337, %v3339
      %v3354 = vperm.slane %v3073, 0
      %v3356 = vadd.f32 %v3341, %v3354
      %v3357 = vadd.f32 %v3342, %v3354
      %v3358 = vadd.f32 %v3343, %v3354
      %v3359 = vadd.f32 %v3344, %v3354
      %v3360 = vadd.f32 %v3345, %v3354
      %v3361 = vadd.f32 %v3346, %v3354
      %v3362 = vadd.f32 %v3347, %v3354
      %v3363 = vadd.f32 %v3348, %v3354
      %v3364 = vadd.f32 %v3349, %v3354
      %v3365 = vadd.f32 %v3350, %v3354
      %v3366 = vadd.f32 %v3351, %v3354
      %v3367 = vadd.f32 %v3352, %v3354
      %v3368 = vld [vmem:[%s6] sm:$0xff]
      %v3369 = vld [vmem:[%s6 + $0x8] sm:$0xff]
      %v3370 = vld [vmem:[%s6 + $0x10] sm:$0xff]
      %v3371 = vld [vmem:[%s6 + $0x18] sm:$0xff]
      %v3372 = vld [vmem:[%s7] sm:$0x1]
      %v3374 = vperm.slane %v3372, 0
      %v3377 = vsel %vm539, %v3356, 0
      %v3380 = vsel %vm539, %v3357, 0
      %v3383 = vsel %vm539, %v3358, 0
      %v3386 = vsel %vm539, %v3359, 0
      %v3389 = vsel %vm539, %v3360, 0
      %v3392 = vsel %vm539, %v3361, 0
      %v3395 = vsel %vm539, %v3362, 0
      %v3398 = vsel %vm539, %v3363, 0
      %v3401 = vsel %vm539, %v3364, 0
      %v3404 = vsel %vm539, %v3365, 0
      %v3407 = vsel %vm539, %v3366, 0
      %v3410 = vsel %vm539, %v3367, 0
      %3412 = vmatpush.msra.mxu0 0.0
      %3413 = vmatpush.msra.mxu0 0.0
      %3414 = vmatpush.msra.mxu0 0.0
      %3415 = vmatpush.msra.mxu0 0.0
      %3416 = vmatpush.msra.mxu0 0.0
      %3417 = vmatpush.msra.mxu0 0.0
      %3418 = vmatpush.msra.mxu0 0.0
      %3419 = vmatpush.msra.mxu0 0.0
      %3420 = vmatpush.msra.mxu0 0.0
      %3421 = vmatpush.msra.mxu0 0.0
      %3422 = vmatpush.msra.mxu0 0.0
      %3423 = vmatpush.msra.mxu0 0.0
      %3424 = vmatpush.msra.mxu0 %v3371
      %3425 = vmatpush.msra.mxu0 %v3370
      %3426 = vmatpush.msra.mxu0 %v3369
      %3427 = vmatpush.msra.mxu0 %v3368
      %3428 = vmatmul.f32.gmra.mxu0 %v3377
      %v3429 = vpop.f32.mrf.mxu0
      %v3430 = vadd.f32 %v3374, %v3429
      %3431 = vmatmul.f32.gmra.mxu0 %v3380
      %v3432 = vpop.f32.mrf.mxu0
      %v3433 = vadd.f32 %v3374, %v3432
      %3434 = vmatmul.f32.gmra.mxu0 %v3383
      %v3435 = vpop.f32.mrf.mxu0
      %v3436 = vadd.f32 %v3374, %v3435
      %3437 = vmatmul.f32.gmra.mxu0 %v3386
      %v3438 = vpop.f32.mrf.mxu0
      %v3439 = vadd.f32 %v3374, %v3438
      %3440 = vmatmul.f32.gmra.mxu0 %v3389
      %v3441 = vpop.f32.mrf.mxu0
      %v3442 = vadd.f32 %v3374, %v3441
      %3443 = vmatmul.f32.gmra.mxu0 %v3392
      %v3444 = vpop.f32.mrf.mxu0
      %v3445 = vadd.f32 %v3374, %v3444
      %3446 = vmatmul.f32.gmra.mxu0 %v3395
      %v3447 = vpop.f32.mrf.mxu0
      %v3448 = vadd.f32 %v3374, %v3447
      %3449 = vmatmul.f32.gmra.mxu0 %v3398
      %v3450 = vpop.f32.mrf.mxu0
      %v3451 = vadd.f32 %v3374, %v3450
      %3452 = vmatmul.f32.gmra.mxu0 %v3401
      %v3453 = vpop.f32.mrf.mxu0
      %v3454 = vadd.f32 %v3374, %v3453
      %3455 = vmatmul.f32.gmra.mxu0 %v3404
      %v3456 = vpop.f32.mrf.mxu0
      %v3457 = vadd.f32 %v3374, %v3456
      %3458 = vmatmul.f32.gmra.mxu0 %v3407
      %v3459 = vpop.f32.mrf.mxu0
      %v3460 = vadd.f32 %v3374, %v3459
      %3461 = vmatmul.f32.gmra.mxu0 %v3410
      %v3462 = vpop.f32.mrf.mxu0
      %v3463 = vadd.f32 %v3374, %v3462
      %3464 = vdwg.mxu0
      %v3465 = vmul.f32 %v3430, %v3430
      %v3466 = vmul.f32 %v3433, %v3433
      %v3467 = vmul.f32 %v3436, %v3436
      %v3468 = vmul.f32 %v3439, %v3439
      %v3469 = vmul.f32 %v3442, %v3442
      %v3470 = vmul.f32 %v3445, %v3445
      %v3471 = vmul.f32 %v3448, %v3448
      %v3472 = vmul.f32 %v3451, %v3451
      %v3473 = vmul.f32 %v3454, %v3454
      %v3474 = vmul.f32 %v3457, %v3457
      %v3475 = vmul.f32 %v3460, %v3460
      %v3476 = vmul.f32 %v3463, %v3463
      %v3477 = vmul.f32 %v3430, %v3465
      %v3478 = vmul.f32 %v3433, %v3466
      %v3479 = vmul.f32 %v3436, %v3467
      %v3480 = vmul.f32 %v3439, %v3468
      %v3481 = vmul.f32 %v3442, %v3469
      %v3482 = vmul.f32 %v3445, %v3470
      %v3483 = vmul.f32 %v3448, %v3471
      %v3484 = vmul.f32 %v3451, %v3472
      %v3485 = vmul.f32 %v3454, %v3473
      %v3486 = vmul.f32 %v3457, %v3474
      %v3487 = vmul.f32 %v3460, %v3475
      %v3488 = vmul.f32 %v3463, %v3476
      %v3489 = vmul.f32 %v3477, 0.044715
      %v3490 = vmul.f32 %v3478, 0.044715
      %v3491 = vmul.f32 %v3479, 0.044715
      %v3492 = vmul.f32 %v3480, 0.044715
      %v3493 = vmul.f32 %v3481, 0.044715
      %v3494 = vmul.f32 %v3482, 0.044715
      %v3495 = vmul.f32 %v3483, 0.044715
      %v3496 = vmul.f32 %v3484, 0.044715
      %v3497 = vmul.f32 %v3485, 0.044715
      %v3498 = vmul.f32 %v3486, 0.044715
      %v3499 = vmul.f32 %v3487, 0.044715
      %v3500 = vmul.f32 %v3488, 0.044715
      %v3501 = vadd.f32 %v3430, %v3489
      %v3502 = vadd.f32 %v3433, %v3490
      %v3503 = vadd.f32 %v3436, %v3491
      %v3504 = vadd.f32 %v3439, %v3492
      %v3505 = vadd.f32 %v3442, %v3493
      %v3506 = vadd.f32 %v3445, %v3494
      %v3507 = vadd.f32 %v3448, %v3495
      %v3508 = vadd.f32 %v3451, %v3496
      %v3509 = vadd.f32 %v3454, %v3497
      %v3510 = vadd.f32 %v3457, %v3498
      %v3511 = vadd.f32 %v3460, %v3499
      %v3512 = vadd.f32 %v3463, %v3500
      %v3513 = vmul.f32 %v3501, 0.7978846
      %v3514 = vmul.f32 %v3502, 0.7978846
      %v3515 = vmul.f32 %v3503, 0.7978846
      %v3516 = vmul.f32 %v3504, 0.7978846
      %v3517 = vmul.f32 %v3505, 0.7978846
      %v3518 = vmul.f32 %v3506, 0.7978846
      %v3519 = vmul.f32 %v3507, 0.7978846
      %v3520 = vmul.f32 %v3508, 0.7978846
      %v3521 = vmul.f32 %v3509, 0.7978846
      %v3522 = vmul.f32 %v3510, 0.7978846
      %v3523 = vmul.f32 %v3511, 0.7978846
      %v3524 = vmul.f32 %v3512, 0.7978846
      %v3525 = vtanh.pop %v3513
      %v3526 = vtanh.pop %v3514
      %v3527 = vtanh.pop %v3515
      %v3528 = vtanh.pop %v3516
      %v3529 = vtanh.pop %v3517
      %v3530 = vtanh.pop %v3518
      %v3531 = vtanh.pop %v3519
      %v3532 = vtanh.pop %v3520
      %v3533 = vtanh.pop %v3521
      %v3534 = vtanh.pop %v3522
      %v3535 = vtanh.pop %v3523
      %v3536 = vtanh.pop %v3524
      %v3537 = vadd.f32 %v3525, 1.0
      %v3538 = vadd.f32 %v3526, 1.0
      %v3539 = vadd.f32 %v3527, 1.0
      %v3540 = vadd.f32 %v3528, 1.0
      %v3541 = vadd.f32 %v3529, 1.0
      %v3542 = vadd.f32 %v3530, 1.0
      %v3543 = vadd.f32 %v3531, 1.0
      %v3544 = vadd.f32 %v3532, 1.0
      %v3545 = vadd.f32 %v3533, 1.0
      %v3546 = vadd.f32 %v3534, 1.0
      %v3547 = vadd.f32 %v3535, 1.0
      %v3548 = vadd.f32 %v3536, 1.0
      %v3549 = vmul.f32 %v3537, 0.5
      %v3550 = vmul.f32 %v3538, 0.5
      %v3551 = vmul.f32 %v3539, 0.5
      %v3552 = vmul.f32 %v3540, 0.5
      %v3553 = vmul.f32 %v3541, 0.5
      %v3554 = vmul.f32 %v3542, 0.5
      %v3555 = vmul.f32 %v3543, 0.5
      %v3556 = vmul.f32 %v3544, 0.5
      %v3557 = vmul.f32 %v3545, 0.5
      %v3558 = vmul.f32 %v3546, 0.5
      %v3559 = vmul.f32 %v3547, 0.5
      %v3560 = vmul.f32 %v3548, 0.5
      %v3561 = vmul.f32 %v3430, %v3549
      %v3562 = vmul.f32 %v3433, %v3550
      %v3563 = vmul.f32 %v3436, %v3551
      %v3564 = vmul.f32 %v3439, %v3552
      %v3565 = vmul.f32 %v3442, %v3553
      %v3566 = vmul.f32 %v3445, %v3554
      %v3567 = vmul.f32 %v3448, %v3555
      %v3568 = vmul.f32 %v3451, %v3556
      %v3569 = vmul.f32 %v3454, %v3557
      %v3570 = vmul.f32 %v3457, %v3558
      %v3571 = vmul.f32 %v3460, %v3559
      %v3572 = vmul.f32 %v3463, %v3560
      %v3573 = vld [vmem:[%s8] sm:$0xff]
      %v3574 = vld [vmem:[%s8 + $0x8] sm:$0xff]
      %v3575 = vld [vmem:[%s8 + $0x10] sm:$0xff]
      %v3576 = vld [vmem:[%s8 + $0x18] sm:$0xff]
      %v3577 = vld [vmem:[%s8 + $0x20] sm:$0xff]
      %v3578 = vld [vmem:[%s8 + $0x28] sm:$0xff]
      %v3579 = vld [vmem:[%s8 + $0x30] sm:$0xff]
      %v3580 = vld [vmem:[%s8 + $0x38] sm:$0xff]
      %v3581 = vld [vmem:[%s9] sm:$0x1]
      %v3583 = vperm.slane %v3581, 0
      %vm3585 = vcmask 523264
      %v3587 = vsel %vm3585, %v3561, 0
      %v3590 = vsel %vm3585, %v3562, 0
      %v3593 = vsel %vm3585, %v3563, 0
      %v3596 = vsel %vm3585, %v3564, 0
      %v3599 = vsel %vm3585, %v3565, 0
      %v3602 = vsel %vm3585, %v3566, 0
      %v3605 = vsel %vm3585, %v3567, 0
      %v3608 = vsel %vm3585, %v3568, 0
      %v3611 = vsel %vm3585, %v3569, 0
      %v3614 = vsel %vm3585, %v3570, 0
      %v3617 = vsel %vm3585, %v3571, 0
      %v3620 = vsel %vm3585, %v3572, 0
      %3622 = vmatpush.msra.mxu0 0.0
      %3623 = vmatpush.msra.mxu0 0.0
      %3624 = vmatpush.msra.mxu0 0.0
      %3625 = vmatpush.msra.mxu0 0.0
      %3626 = vmatpush.msra.mxu0 0.0
      %3627 = vmatpush.msra.mxu0 0.0
      %3628 = vmatpush.msra.mxu0 0.0
      %3629 = vmatpush.msra.mxu0 0.0
      %3630 = vmatpush.msra.mxu0 %v3580
      %3631 = vmatpush.msra.mxu0 %v3579
      %3632 = vmatpush.msra.mxu0 %v3578
      %3633 = vmatpush.msra.mxu0 %v3577
      %3634 = vmatpush.msra.mxu0 %v3576
      %3635 = vmatpush.msra.mxu0 %v3575
      %3636 = vmatpush.msra.mxu0 %v3574
      %3637 = vmatpush.msra.mxu0 %v3573
      %3638 = vmatmul.f32.gmra.mxu0 %v3587
      %v3639 = vpop.f32.mrf.mxu0
      %v3640 = vadd.f32 %v3583, %v3639
      %3641 = vmatmul.f32.gmra.mxu0 %v3590
      %v3642 = vpop.f32.mrf.mxu0
      %v3643 = vadd.f32 %v3583, %v3642
      %3644 = vmatmul.f32.gmra.mxu0 %v3593
      %v3645 = vpop.f32.mrf.mxu0
      %v3646 = vadd.f32 %v3583, %v3645
      %3647 = vmatmul.f32.gmra.mxu0 %v3596
      %v3648 = vpop.f32.mrf.mxu0
      %v3649 = vadd.f32 %v3583, %v3648
      %3650 = vmatmul.f32.gmra.mxu0 %v3599
      %v3651 = vpop.f32.mrf.mxu0
      %v3652 = vadd.f32 %v3583, %v3651
      %3653 = vmatmul.f32.gmra.mxu0 %v3602
      %v3654 = vpop.f32.mrf.mxu0
      %v3655 = vadd.f32 %v3583, %v3654
      %3656 = vmatmul.f32.gmra.mxu0 %v3605
      %v3657 = vpop.f32.mrf.mxu0
      %v3658 = vadd.f32 %v3583, %v3657
      %3659 = vmatmul.f32.gmra.mxu0 %v3608
      %v3660 = vpop.f32.mrf.mxu0
      %v3661 = vadd.f32 %v3583, %v3660
      %3662 = vmatmul.f32.gmra.mxu0 %v3611
      %v3663 = vpop.f32.mrf.mxu0
      %v3664 = vadd.f32 %v3583, %v3663
      %3665 = vmatmul.f32.gmra.mxu0 %v3614
      %v3666 = vpop.f32.mrf.mxu0
      %v3667 = vadd.f32 %v3583, %v3666
      %3668 = vmatmul.f32.gmra.mxu0 %v3617
      %v3669 = vpop.f32.mrf.mxu0
      %v3670 = vadd.f32 %v3583, %v3669
      %3671 = vmatmul.f32.gmra.mxu0 %v3620
      %v3672 = vpop.f32.mrf.mxu0
      %v3673 = vadd.f32 %v3583, %v3672
      %3674 = vdwg.mxu0
      %v3675 = vadd.f32 %v3060, %v3640
      %v3676 = vadd.f32 %v3061, %v3643
      %v3677 = vadd.f32 %v3062, %v3646
      %v3678 = vadd.f32 %v3063, %v3649
      %v3679 = vadd.f32 %v3064, %v3652
      %v3680 = vadd.f32 %v3065, %v3655
      %v3681 = vadd.f32 %v3066, %v3658
      %v3682 = vadd.f32 %v3067, %v3661
      %v3683 = vadd.f32 %v3068, %v3664
      %v3684 = vadd.f32 %v3069, %v3667
      %v3685 = vadd.f32 %v3070, %v3670
      %v3686 = vadd.f32 %v3071, %v3673
      %3687 = vst.msk [vmem:[%s523] sm:$0xff] %vm539, %v3675
      %3688 = vst.msk [vmem:[%s523 + $0x8] sm:$0xff] %vm539, %v3676
      %3689 = vst.msk [vmem:[%s523 + $0x10] sm:$0xff] %vm539, %v3677
      %3690 = vst.msk [vmem:[%s523 + $0x18] sm:$0xff] %vm539, %v3678
      %3691 = vst.msk [vmem:[%s523 + $0x20] sm:$0xff] %vm539, %v3679
      %3692 = vst.msk [vmem:[%s523 + $0x28] sm:$0xff] %vm539, %v3680
      %3693 = vst.msk [vmem:[%s523 + $0x30] sm:$0xff] %vm539, %v3681
      %3694 = vst.msk [vmem:[%s523 + $0x38] sm:$0xff] %vm539, %v3682
      %3695 = vst.msk [vmem:[%s523 + $0x40] sm:$0xff] %vm539, %v3683
      %3696 = vst.msk [vmem:[%s523 + $0x48] sm:$0xff] %vm539, %v3684
      %3697 = vst.msk [vmem:[%s523 + $0x50] sm:$0xff] %vm539, %v3685
      %3698 = vst.msk [vmem:[%s523 + $0x58] sm:$0xff] %vm539, %v3686
      %s3699 = smul.u32 12, %s27
      %p3700 = scmp.lt.s32.totalorder %s3699, 23
      %s3701 = scalar_select %p3700, %s3699, 23
      %s3702 = smul.addr %s3701, 8
      %s3703 = scalar_lea.vmem %s16, %s3702
      // Predicated region
      $region85: #{flip_model_forward.4} parent=83 // pred_check
        %p3704 = pneg %p386
      $region86: #{flip_model_forward.4} parent=83 // pred_check_branch
        %3706 = sbr.rel (%p3704) target = $region88
      $region87: #{flip_model_forward.4} parent=83 // pred_region
        %s3707 = smul.u32 12, %s27
      $region88: #{flip_model_forward.4} parent=83 // pred_fallthru
        _
    $region84: #{flip_model_forward.4} parent=5 // pred_fallthru
      _
    %p3708 = scmp.le.s32.totalorder 2, %s22
    // Predicated region
    $region89: #{flip_model_forward.4} parent=5 // pred_check
      %p3709 = pneg %p3708
    $region90: #{flip_model_forward.4} parent=5 // pred_check_branch
      %3711 = sbr.rel (%p3709) target = $region92
    $region91: #{flip_model_forward.4} parent=5 // pred_region
      %s3712 = ssub.s32 %s22, 2
      // Predicated region
      $region93: #{flip_model_forward.4} parent=91 // pred_check
        %p3713 = pneg %p392
      $region94: #{flip_model_forward.4} parent=91 // pred_check_branch
        %3715 = sbr.rel (%p3713) target = $region96
      $region95: #{flip_model_forward.4} parent=91 // pred_region
        %s3716 = smul.u32 12, %s28
        %p3717 = scmp.lt.s32.totalorder %s3716, 23
        %s3718 = scalar_select %p3717, %s3716, 23
        %s3719 = smul.addr %s3718, 8
        %s3720 = scalar_lea.vmem %s16, %s3719
      $region96: #{flip_model_forward.4} parent=91 // pred_fallthru
        _
    $region92: #{flip_model_forward.4} parent=5 // pred_fallthru
      _
  $region6: #{flip_model_forward.4} parent=0 // loop_footer
    %s26 = sadd.s32 1, %s22
  $region7: #{flip_model_forward.4} parent=0 // loop_footer_branch
    %21 = sbr.rel target = $region3
  $region8: #{flip_model_forward.4} parent=0 // loop_exit
    _

// kernel: flip_model_forward.6
$region0: #{flip_model_forward.6}
  #allocation0 [shape = 'u32[]', space=smem, size = 0x4, offset = 0x4, fixed_abs, tag = 'smem constant byte address 0x4 - core index']
  #allocation1 [shape = 'u32[72,128]{1,0:T(1,128)}', space=vmem, size = 0x9000, scoped, tag = 'internal scratch']
  %s0 = inlined_call_operand.vmem [shape: f32[48,32], index: 0, kind: input, shape index: {}]
  %s1 = inlined_call_operand.vmem [shape: f32[24,24], index: 1, kind: input, shape index: {}]
  %s2 = inlined_call_operand.vmem [shape: f32[32,96], index: 2, kind: input, shape index: {}]
  %s3 = inlined_call_operand.vmem [shape: f32[1,96], index: 3, kind: input, shape index: {}]
  %s4 = inlined_call_operand.vmem [shape: f32[32,32], index: 4, kind: input, shape index: {}]
  %s5 = inlined_call_operand.vmem [shape: f32[1,32], index: 5, kind: input, shape index: {}]
  %s6 = inlined_call_operand.vmem [shape: f32[32,64], index: 6, kind: input, shape index: {}]
  %s7 = inlined_call_operand.vmem [shape: f32[1,64], index: 7, kind: input, shape index: {}]
  %s8 = inlined_call_operand.vmem [shape: f32[64,32], index: 8, kind: input, shape index: {}]
  %s9 = inlined_call_operand.vmem [shape: f32[1,32], index: 9, kind: input, shape index: {}]
  %s10 = inlined_call_operand.vmem [shape: f32[1,32], index: 10, kind: input, shape index: {}]
  %s11 = inlined_call_operand.vmem [shape: f32[1,32], index: 11, kind: input, shape index: {}]
  %s12 = inlined_call_operand.vmem [shape: f32[1,32], index: 12, kind: input, shape index: {}]
  %s13 = inlined_call_operand.vmem [shape: f32[1,32], index: 13, kind: input, shape index: {}]
  %s14 = inlined_call_operand.vmem [shape: f32[1,32], index: 14, kind: input, shape index: {}]
  %s15 = inlined_call_operand.vmem [shape: f32[1,32], index: 15, kind: input, shape index: {}]
  %s16 = inlined_call_operand.vmem [shape: f32[48,32], index: 16, kind: output, shape index: {}]
  %s17 = sld [smem:[#allocation0]]
  $region97: #{flip_model_forward.6} parent=0
    _
  %s19 = ssub.s32 1, %s17
  %s20 = scalar_select 0, %s19, %s17
  loop: start=0, step=1, limit=4
  $region2: #{flip_model_forward.6} parent=0 // loop_pre_header
    _
  $region3: #{flip_model_forward.6} parent=0 // loop_header
    %s22 = sphi 0, %s26
    %p23 = scmp.ge.s32.totalorder %s22, 4
    %s32 = sphi 0, %s34
    %s35 = sphi 0, %s32
    %s36 = sphi 0, %s35
    %s52 = sphi 0, %s36
    %s56 = sphi 0, %s56
    %s58 = sphi 0, %s56
    %s59 = sphi 0, %s58
    %s73 = sphi 0, %s59
    %s77 = sphi 0, %s77
    %s79 = sphi 0, %s77
    %s80 = sphi 0, %s79
    %s94 = sphi 0, %s80
    %s98 = sphi 0, %s98
    %s100 = sphi 0, %s98
    %s101 = sphi 0, %s100
    %s115 = sphi 0, %s101
    %s119 = sphi 0, %s119
    %s121 = sphi 0, %s119
    %s122 = sphi 0, %s121
    %s136 = sphi 0, %s122
    %s140 = sphi 0, %s140
    %s142 = sphi 0, %s140
    %s143 = sphi 0, %s142
    %s157 = sphi 0, %s143
    %s161 = sphi 0, %s161
    %s163 = sphi 0, %s161
    %s164 = sphi 0, %s163
    %s178 = sphi 0, %s164
    %s182 = sphi 0, %s182
    %s184 = sphi 0, %s182
    %s185 = sphi 0, %s184
    %s199 = sphi 0, %s185
    %s203 = sphi 0, %s203
    %s205 = sphi 0, %s203
    %s206 = sphi 0, %s205
    %s220 = sphi 0, %s206
    %s224 = sphi 0, %s224
    %s226 = sphi 0, %s224
    %s227 = sphi 0, %s226
    %s241 = sphi 0, %s227
    %s245 = sphi 0, %s245
    %s247 = sphi 0, %s245
    %s248 = sphi 0, %s247
    %s262 = sphi 0, %s248
    %s266 = sphi 0, %s266
    %s268 = sphi 0, %s266
    %s269 = sphi 0, %s268
    %s283 = sphi 0, %s269
    %s287 = sphi 0, %s287
    %s289 = sphi 0, %s287
    %s290 = sphi 0, %s289
    %s304 = sphi 0, %s290
    %s308 = sphi 0, %s308
    %s310 = sphi 0, %s308
    %s311 = sphi 0, %s310
    %s325 = sphi 0, %s311
    %s329 = sphi 0, %s329
    %s331 = sphi 0, %s329
    %s332 = sphi 0, %s331
    %s346 = sphi 0, %s332
    %s350 = sphi 0, %s350
    %s352 = sphi 0, %s350
    %s353 = sphi 0, %s352
    %s367 = sphi 0, %s353
    %s373 = sphi 0, %s375
    %s376 = sphi 0, %s373
    %s377 = sphi 0, %s376
    %s393 = sphi 0, %s377
  $region4: #{flip_model_forward.6} parent=0 // loop_header_branch
    %25 = sbr.rel (%p23) target = $region8
  $region5: #{flip_model_forward.6} parent=0 // loop_body
    %s27 = ssub.s32 %s22, 1
    %s28 = ssub.s32 %s22, 2
    %s29 = sadd.s32 %s22, 1
    %s30 = ssub.s32 %s22, %s29
    %p31 = scmp.eq.s32.totalorder %s30, 0
    %s33 = sadd.s32 %s32, 1
    %s34 = scalar_select %p31, %s32, %s33
    %p37 = pneg %p31
    %p38 = scmp.eq.s32.totalorder %s22, 1
    %p39 = por %p37, %p38
    %p40 = scmp.ne.s32.totalorder %s32, %s35
    %p41 = scmp.eq.s32.totalorder %s22, 0
    %p42 = por %p40, %p41
    %p43 = scmp.ne.s32.totalorder %s32, %s35
    %p44 = scmp.eq.s32.totalorder %s27, 1
    %p45 = por %p43, %p44
    %p46 = scmp.ne.s32.totalorder %s35, %s36
    %p47 = scmp.eq.s32.totalorder %s27, 0
    %p48 = por %p46, %p47
    %p49 = scmp.ne.s32.totalorder %s35, %s36
    %p50 = scmp.eq.s32.totalorder %s28, 1
    %p51 = por %p49, %p50
    %p53 = scmp.ne.s32.totalorder %s36, %s52
    %p54 = scmp.eq.s32.totalorder %s28, 0
    %p55 = por %p53, %p54
    %s57 = sadd.s32 %s56, 1
    %p60 = scmp.eq.s32.totalorder %s22, 1
    %p61 = scmp.ne.s32.totalorder %s56, %s58
    %p62 = scmp.eq.s32.totalorder %s22, 0
    %p63 = por %p61, %p62
    %p64 = scmp.ne.s32.totalorder %s56, %s58
    %p65 = scmp.eq.s32.totalorder %s27, 1
    %p66 = por %p64, %p65
    %p67 = scmp.ne.s32.totalorder %s58, %s59
    %p68 = scmp.eq.s32.totalorder %s27, 0
    %p69 = por %p67, %p68
    %p70 = scmp.ne.s32.totalorder %s58, %s59
    %p71 = scmp.eq.s32.totalorder %s28, 1
    %p72 = por %p70, %p71
    %p74 = scmp.ne.s32.totalorder %s59, %s73
    %p75 = scmp.eq.s32.totalorder %s28, 0
    %p76 = por %p74, %p75
    %s78 = sadd.s32 %s77, 1
    %p81 = scmp.eq.s32.totalorder %s22, 1
    %p82 = scmp.ne.s32.totalorder %s77, %s79
    %p83 = scmp.eq.s32.totalorder %s22, 0
    %p84 = por %p82, %p83
    %p85 = scmp.ne.s32.totalorder %s77, %s79
    %p86 = scmp.eq.s32.totalorder %s27, 1
    %p87 = por %p85, %p86
    %p88 = scmp.ne.s32.totalorder %s79, %s80
    %p89 = scmp.eq.s32.totalorder %s27, 0
    %p90 = por %p88, %p89
    %p91 = scmp.ne.s32.totalorder %s79, %s80
    %p92 = scmp.eq.s32.totalorder %s28, 1
    %p93 = por %p91, %p92
    %p95 = scmp.ne.s32.totalorder %s80, %s94
    %p96 = scmp.eq.s32.totalorder %s28, 0
    %p97 = por %p95, %p96
    %s99 = sadd.s32 %s98, 1
    %p102 = scmp.eq.s32.totalorder %s22, 1
    %p103 = scmp.ne.s32.totalorder %s98, %s100
    %p104 = scmp.eq.s32.totalorder %s22, 0
    %p105 = por %p103, %p104
    %p106 = scmp.ne.s32.totalorder %s98, %s100
    %p107 = scmp.eq.s32.totalorder %s27, 1
    %p108 = por %p106, %p107
    %p109 = scmp.ne.s32.totalorder %s100, %s101
    %p110 = scmp.eq.s32.totalorder %s27, 0
    %p111 = por %p109, %p110
    %p112 = scmp.ne.s32.totalorder %s100, %s101
    %p113 = scmp.eq.s32.totalorder %s28, 1
    %p114 = por %p112, %p113
    %p116 = scmp.ne.s32.totalorder %s101, %s115
    %p117 = scmp.eq.s32.totalorder %s28, 0
    %p118 = por %p116, %p117
    %s120 = sadd.s32 %s119, 1
    %p123 = scmp.eq.s32.totalorder %s22, 1
    %p124 = scmp.ne.s32.totalorder %s119, %s121
    %p125 = scmp.eq.s32.totalorder %s22, 0
    %p126 = por %p124, %p125
    %p127 = scmp.ne.s32.totalorder %s119, %s121
    %p128 = scmp.eq.s32.totalorder %s27, 1
    %p129 = por %p127, %p128
    %p130 = scmp.ne.s32.totalorder %s121, %s122
    %p131 = scmp.eq.s32.totalorder %s27, 0
    %p132 = por %p130, %p131
    %p133 = scmp.ne.s32.totalorder %s121, %s122
    %p134 = scmp.eq.s32.totalorder %s28, 1
    %p135 = por %p133, %p134
    %p137 = scmp.ne.s32.totalorder %s122, %s136
    %p138 = scmp.eq.s32.totalorder %s28, 0
    %p139 = por %p137, %p138
    %s141 = sadd.s32 %s140, 1
    %p144 = scmp.eq.s32.totalorder %s22, 1
    %p145 = scmp.ne.s32.totalorder %s140, %s142
    %p146 = scmp.eq.s32.totalorder %s22, 0
    %p147 = por %p145, %p146
    %p148 = scmp.ne.s32.totalorder %s140, %s142
    %p149 = scmp.eq.s32.totalorder %s27, 1
    %p150 = por %p148, %p149
    %p151 = scmp.ne.s32.totalorder %s142, %s143
    %p152 = scmp.eq.s32.totalorder %s27, 0
    %p153 = por %p151, %p152
    %p154 = scmp.ne.s32.totalorder %s142, %s143
    %p155 = scmp.eq.s32.totalorder %s28, 1
    %p156 = por %p154, %p155
    %p158 = scmp.ne.s32.totalorder %s143, %s157
    %p159 = scmp.eq.s32.totalorder %s28, 0
    %p160 = por %p158, %p159
    %s162 = sadd.s32 %s161, 1
    %p165 = scmp.eq.s32.totalorder %s22, 1
    %p166 = scmp.ne.s32.totalorder %s161, %s163
    %p167 = scmp.eq.s32.totalorder %s22, 0
    %p168 = por %p166, %p167
    %p169 = scmp.ne.s32.totalorder %s161, %s163
    %p170 = scmp.eq.s32.totalorder %s27, 1
    %p171 = por %p169, %p170
    %p172 = scmp.ne.s32.totalorder %s163, %s164
    %p173 = scmp.eq.s32.totalorder %s27, 0
    %p174 = por %p172, %p173
    %p175 = scmp.ne.s32.totalorder %s163, %s164
    %p176 = scmp.eq.s32.totalorder %s28, 1
    %p177 = por %p175, %p176
    %p179 = scmp.ne.s32.totalorder %s164, %s178
    %p180 = scmp.eq.s32.totalorder %s28, 0
    %p181 = por %p179, %p180
    %s183 = sadd.s32 %s182, 1
    %p186 = scmp.eq.s32.totalorder %s22, 1
    %p187 = scmp.ne.s32.totalorder %s182, %s184
    %p188 = scmp.eq.s32.totalorder %s22, 0
    %p189 = por %p187, %p188
    %p190 = scmp.ne.s32.totalorder %s182, %s184
    %p191 = scmp.eq.s32.totalorder %s27, 1
    %p192 = por %p190, %p191
    %p193 = scmp.ne.s32.totalorder %s184, %s185
    %p194 = scmp.eq.s32.totalorder %s27, 0
    %p195 = por %p193, %p194
    %p196 = scmp.ne.s32.totalorder %s184, %s185
    %p197 = scmp.eq.s32.totalorder %s28, 1
    %p198 = por %p196, %p197
    %p200 = scmp.ne.s32.totalorder %s185, %s199
    %p201 = scmp.eq.s32.totalorder %s28, 0
    %p202 = por %p200, %p201
    %s204 = sadd.s32 %s203, 1
    %p207 = scmp.eq.s32.totalorder %s22, 1
    %p208 = scmp.ne.s32.totalorder %s203, %s205
    %p209 = scmp.eq.s32.totalorder %s22, 0
    %p210 = por %p208, %p209
    %p211 = scmp.ne.s32.totalorder %s203, %s205
    %p212 = scmp.eq.s32.totalorder %s27, 1
    %p213 = por %p211, %p212
    %p214 = scmp.ne.s32.totalorder %s205, %s206
    %p215 = scmp.eq.s32.totalorder %s27, 0
    %p216 = por %p214, %p215
    %p217 = scmp.ne.s32.totalorder %s205, %s206
    %p218 = scmp.eq.s32.totalorder %s28, 1
    %p219 = por %p217, %p218
    %p221 = scmp.ne.s32.totalorder %s206, %s220
    %p222 = scmp.eq.s32.totalorder %s28, 0
    %p223 = por %p221, %p222
    %s225 = sadd.s32 %s224, 1
    %p228 = scmp.eq.s32.totalorder %s22, 1
    %p229 = scmp.ne.s32.totalorder %s224, %s226
    %p230 = scmp.eq.s32.totalorder %s22, 0
    %p231 = por %p229, %p230
    %p232 = scmp.ne.s32.totalorder %s224, %s226
    %p233 = scmp.eq.s32.totalorder %s27, 1
    %p234 = por %p232, %p233
    %p235 = scmp.ne.s32.totalorder %s226, %s227
    %p236 = scmp.eq.s32.totalorder %s27, 0
    %p237 = por %p235, %p236
    %p238 = scmp.ne.s32.totalorder %s226, %s227
    %p239 = scmp.eq.s32.totalorder %s28, 1
    %p240 = por %p238, %p239
    %p242 = scmp.ne.s32.totalorder %s227, %s241
    %p243 = scmp.eq.s32.totalorder %s28, 0
    %p244 = por %p242, %p243
    %s246 = sadd.s32 %s245, 1
    %p249 = scmp.eq.s32.totalorder %s22, 1
    %p250 = scmp.ne.s32.totalorder %s245, %s247
    %p251 = scmp.eq.s32.totalorder %s22, 0
    %p252 = por %p250, %p251
    %p253 = scmp.ne.s32.totalorder %s245, %s247
    %p254 = scmp.eq.s32.totalorder %s27, 1
    %p255 = por %p253, %p254
    %p256 = scmp.ne.s32.totalorder %s247, %s248
    %p257 = scmp.eq.s32.totalorder %s27, 0
    %p258 = por %p256, %p257
    %p259 = scmp.ne.s32.totalorder %s247, %s248
    %p260 = scmp.eq.s32.totalorder %s28, 1
    %p261 = por %p259, %p260
    %p263 = scmp.ne.s32.totalorder %s248, %s262
    %p264 = scmp.eq.s32.totalorder %s28, 0
    %p265 = por %p263, %p264
    %s267 = sadd.s32 %s266, 1
    %p270 = scmp.eq.s32.totalorder %s22, 1
    %p271 = scmp.ne.s32.totalorder %s266, %s268
    %p272 = scmp.eq.s32.totalorder %s22, 0
    %p273 = por %p271, %p272
    %p274 = scmp.ne.s32.totalorder %s266, %s268
    %p275 = scmp.eq.s32.totalorder %s27, 1
    %p276 = por %p274, %p275
    %p277 = scmp.ne.s32.totalorder %s268, %s269
    %p278 = scmp.eq.s32.totalorder %s27, 0
    %p279 = por %p277, %p278
    %p280 = scmp.ne.s32.totalorder %s268, %s269
    %p281 = scmp.eq.s32.totalorder %s28, 1
    %p282 = por %p280, %p281
    %p284 = scmp.ne.s32.totalorder %s269, %s283
    %p285 = scmp.eq.s32.totalorder %s28, 0
    %p286 = por %p284, %p285
    %s288 = sadd.s32 %s287, 1
    %p291 = scmp.eq.s32.totalorder %s22, 1
    %p292 = scmp.ne.s32.totalorder %s287, %s289
    %p293 = scmp.eq.s32.totalorder %s22, 0
    %p294 = por %p292, %p293
    %p295 = scmp.ne.s32.totalorder %s287, %s289
    %p296 = scmp.eq.s32.totalorder %s27, 1
    %p297 = por %p295, %p296
    %p298 = scmp.ne.s32.totalorder %s289, %s290
    %p299 = scmp.eq.s32.totalorder %s27, 0
    %p300 = por %p298, %p299
    %p301 = scmp.ne.s32.totalorder %s289, %s290
    %p302 = scmp.eq.s32.totalorder %s28, 1
    %p303 = por %p301, %p302
    %p305 = scmp.ne.s32.totalorder %s290, %s304
    %p306 = scmp.eq.s32.totalorder %s28, 0
    %p307 = por %p305, %p306
    %s309 = sadd.s32 %s308, 1
    %p312 = scmp.eq.s32.totalorder %s22, 1
    %p313 = scmp.ne.s32.totalorder %s308, %s310
    %p314 = scmp.eq.s32.totalorder %s22, 0
    %p315 = por %p313, %p314
    %p316 = scmp.ne.s32.totalorder %s308, %s310
    %p317 = scmp.eq.s32.totalorder %s27, 1
    %p318 = por %p316, %p317
    %p319 = scmp.ne.s32.totalorder %s310, %s311
    %p320 = scmp.eq.s32.totalorder %s27, 0
    %p321 = por %p319, %p320
    %p322 = scmp.ne.s32.totalorder %s310, %s311
    %p323 = scmp.eq.s32.totalorder %s28, 1
    %p324 = por %p322, %p323
    %p326 = scmp.ne.s32.totalorder %s311, %s325
    %p327 = scmp.eq.s32.totalorder %s28, 0
    %p328 = por %p326, %p327
    %s330 = sadd.s32 %s329, 1
    %p333 = scmp.eq.s32.totalorder %s22, 1
    %p334 = scmp.ne.s32.totalorder %s329, %s331
    %p335 = scmp.eq.s32.totalorder %s22, 0
    %p336 = por %p334, %p335
    %p337 = scmp.ne.s32.totalorder %s329, %s331
    %p338 = scmp.eq.s32.totalorder %s27, 1
    %p339 = por %p337, %p338
    %p340 = scmp.ne.s32.totalorder %s331, %s332
    %p341 = scmp.eq.s32.totalorder %s27, 0
    %p342 = por %p340, %p341
    %p343 = scmp.ne.s32.totalorder %s331, %s332
    %p344 = scmp.eq.s32.totalorder %s28, 1
    %p345 = por %p343, %p344
    %p347 = scmp.ne.s32.totalorder %s332, %s346
    %p348 = scmp.eq.s32.totalorder %s28, 0
    %p349 = por %p347, %p348
    %s351 = sadd.s32 %s350, 1
    %p354 = scmp.eq.s32.totalorder %s22, 1
    %p355 = scmp.ne.s32.totalorder %s350, %s352
    %p356 = scmp.eq.s32.totalorder %s22, 0
    %p357 = por %p355, %p356
    %p358 = scmp.ne.s32.totalorder %s350, %s352
    %p359 = scmp.eq.s32.totalorder %s27, 1
    %p360 = por %p358, %p359
    %p361 = scmp.ne.s32.totalorder %s352, %s353
    %p362 = scmp.eq.s32.totalorder %s27, 0
    %p363 = por %p361, %p362
    %p364 = scmp.ne.s32.totalorder %s352, %s353
    %p365 = scmp.eq.s32.totalorder %s28, 1
    %p366 = por %p364, %p365
    %p368 = scmp.ne.s32.totalorder %s353, %s367
    %p369 = scmp.eq.s32.totalorder %s28, 0
    %p370 = por %p368, %p369
    %s371 = ssub.s32 %s22, %s29
    %p372 = scmp.eq.s32.totalorder %s371, 0
    %s374 = sadd.s32 %s373, 1
    %s375 = scalar_select %p372, %s373, %s374
    %p378 = pneg %p372
    %p379 = scmp.eq.s32.totalorder %s22, 1
    %p380 = por %p378, %p379
    %p381 = scmp.ne.s32.totalorder %s373, %s376
    %p382 = scmp.eq.s32.totalorder %s22, 0
    %p383 = por %p381, %p382
    %p384 = scmp.ne.s32.totalorder %s373, %s376
    %p385 = scmp.eq.s32.totalorder %s27, 1
    %p386 = por %p384, %p385
    %p387 = scmp.ne.s32.totalorder %s376, %s377
    %p388 = scmp.eq.s32.totalorder %s27, 0
    %p389 = por %p387, %p388
    %p390 = scmp.ne.s32.totalorder %s376, %s377
    %p391 = scmp.eq.s32.totalorder %s28, 1
    %p392 = por %p390, %p391
    %p394 = scmp.ne.s32.totalorder %s377, %s393
    %p395 = scmp.eq.s32.totalorder %s28, 0
    %p396 = por %p394, %p395
    %p397 = scmp.le.s32.totalorder 1, %s22
    %p398 = scmp.lt.s32.totalorder %s22, 3
    %p399 = pnand %p397, %p398
    %p400 = pneg %p399
    // Predicated region
    $region9: #{flip_model_forward.6} parent=5 // pred_check
      _
    $region10: #{flip_model_forward.6} parent=5 // pred_check_branch
      %402 = sbr.rel (%p399) target = $region12
    $region11: #{flip_model_forward.6} parent=5 // pred_region
      %s403 = ssub.s32 %s22, 1
      // Predicated region
      $region13: #{flip_model_forward.6} parent=11 // pred_check
        %p404 = pneg %p69
      $region14: #{flip_model_forward.6} parent=11 // pred_check_branch
        %406 = sbr.rel (%p404) target = $region16
      $region15: #{flip_model_forward.6} parent=11 // pred_region
        _
      $region16: #{flip_model_forward.6} parent=11 // pred_fallthru
        _
      // Predicated region
      $region17: #{flip_model_forward.6} parent=11 // pred_check
        %p407 = pneg %p90
      $region18: #{flip_model_forward.6} parent=11 // pred_check_branch
        %409 = sbr.rel (%p407) target = $region20
      $region19: #{flip_model_forward.6} parent=11 // pred_region
        _
      $region20: #{flip_model_forward.6} parent=11 // pred_fallthru
        _
      // Predicated region
      $region21: #{flip_model_forward.6} parent=11 // pred_check
        %p410 = pneg %p111
      $region22: #{flip_model_forward.6} parent=11 // pred_check_branch
        %412 = sbr.rel (%p410) target = $region24
      $region23: #{flip_model_forward.6} parent=11 // pred_region
        _
      $region24: #{flip_model_forward.6} parent=11 // pred_fallthru
        _
      // Predicated region
      $region25: #{flip_model_forward.6} parent=11 // pred_check
        %p413 = pneg %p132
      $region26: #{flip_model_forward.6} parent=11 // pred_check_branch
        %415 = sbr.rel (%p413) target = $region28
      $region27: #{flip_model_forward.6} parent=11 // pred_region
        _
      $region28: #{flip_model_forward.6} parent=11 // pred_fallthru
        _
      // Predicated region
      $region29: #{flip_model_forward.6} parent=11 // pred_check
        %p416 = pneg %p153
      $region30: #{flip_model_forward.6} parent=11 // pred_check_branch
        %418 = sbr.rel (%p416) target = $region32
      $region31: #{flip_model_forward.6} parent=11 // pred_region
        _
      $region32: #{flip_model_forward.6} parent=11 // pred_fallthru
        _
      // Predicated region
      $region33: #{flip_model_forward.6} parent=11 // pred_check
        %p419 = pneg %p174
      $region34: #{flip_model_forward.6} parent=11 // pred_check_branch
        %421 = sbr.rel (%p419) target = $region36
      $region35: #{flip_model_forward.6} parent=11 // pred_region
        _
      $region36: #{flip_model_forward.6} parent=11 // pred_fallthru
        _
      // Predicated region
      $region37: #{flip_model_forward.6} parent=11 // pred_check
        %p422 = pneg %p195
      $region38: #{flip_model_forward.6} parent=11 // pred_check_branch
        %424 = sbr.rel (%p422) target = $region40
      $region39: #{flip_model_forward.6} parent=11 // pred_region
        _
      $region40: #{flip_model_forward.6} parent=11 // pred_fallthru
        _
      // Predicated region
      $region41: #{flip_model_forward.6} parent=11 // pred_check
        %p425 = pneg %p216
      $region42: #{flip_model_forward.6} parent=11 // pred_check_branch
        %427 = sbr.rel (%p425) target = $region44
      $region43: #{flip_model_forward.6} parent=11 // pred_region
        _
      $region44: #{flip_model_forward.6} parent=11 // pred_fallthru
        _
      // Predicated region
      $region45: #{flip_model_forward.6} parent=11 // pred_check
        %p428 = pneg %p237
      $region46: #{flip_model_forward.6} parent=11 // pred_check_branch
        %430 = sbr.rel (%p428) target = $region48
      $region47: #{flip_model_forward.6} parent=11 // pred_region
        _
      $region48: #{flip_model_forward.6} parent=11 // pred_fallthru
        _
      // Predicated region
      $region49: #{flip_model_forward.6} parent=11 // pred_check
        %p431 = pneg %p258
      $region50: #{flip_model_forward.6} parent=11 // pred_check_branch
        %433 = sbr.rel (%p431) target = $region52
      $region51: #{flip_model_forward.6} parent=11 // pred_region
        _
      $region52: #{flip_model_forward.6} parent=11 // pred_fallthru
        _
      // Predicated region
      $region53: #{flip_model_forward.6} parent=11 // pred_check
        %p434 = pneg %p279
      $region54: #{flip_model_forward.6} parent=11 // pred_check_branch
        %436 = sbr.rel (%p434) target = $region56
      $region55: #{flip_model_forward.6} parent=11 // pred_region
        _
      $region56: #{flip_model_forward.6} parent=11 // pred_fallthru
        _
      // Predicated region
      $region57: #{flip_model_forward.6} parent=11 // pred_check
        %p437 = pneg %p300
      $region58: #{flip_model_forward.6} parent=11 // pred_check_branch
        %439 = sbr.rel (%p437) target = $region60
      $region59: #{flip_model_forward.6} parent=11 // pred_region
        _
      $region60: #{flip_model_forward.6} parent=11 // pred_fallthru
        _
      // Predicated region
      $region61: #{flip_model_forward.6} parent=11 // pred_check
        %p440 = pneg %p321
      $region62: #{flip_model_forward.6} parent=11 // pred_check_branch
        %442 = sbr.rel (%p440) target = $region64
      $region63: #{flip_model_forward.6} parent=11 // pred_region
        _
      $region64: #{flip_model_forward.6} parent=11 // pred_fallthru
        _
      // Predicated region
      $region65: #{flip_model_forward.6} parent=11 // pred_check
        %p443 = pneg %p342
      $region66: #{flip_model_forward.6} parent=11 // pred_check_branch
        %445 = sbr.rel (%p443) target = $region68
      $region67: #{flip_model_forward.6} parent=11 // pred_region
        _
      $region68: #{flip_model_forward.6} parent=11 // pred_fallthru
        _
      // Predicated region
      $region69: #{flip_model_forward.6} parent=11 // pred_check
        %p446 = pneg %p363
      $region70: #{flip_model_forward.6} parent=11 // pred_check_branch
        %448 = sbr.rel (%p446) target = $region72
      $region71: #{flip_model_forward.6} parent=11 // pred_region
        _
      $region72: #{flip_model_forward.6} parent=11 // pred_fallthru
        _
    $region12: #{flip_model_forward.6} parent=5 // pred_fallthru
      _
    %p449 = scmp.lt.s32.totalorder %s22, 2
    // Predicated region
    $region73: #{flip_model_forward.6} parent=5 // pred_check
      %p450 = pneg %p449
    $region74: #{flip_model_forward.6} parent=5 // pred_check_branch
      %452 = sbr.rel (%p450) target = $region76
    $region75: #{flip_model_forward.6} parent=5 // pred_region
      // Predicated region
      $region77: #{flip_model_forward.6} parent=75 // pred_check
        %p453 = pneg %p42
      $region78: #{flip_model_forward.6} parent=75 // pred_check_branch
        %455 = sbr.rel (%p453) target = $region80
      $region79: #{flip_model_forward.6} parent=75 // pred_region
        %s456 = smul.u32 3, %s22
        %p457 = scmp.lt.s32.totalorder %s456, 5
        %s458 = scalar_select %p457, %s456, 5
        %s459 = smul.addr %s458, 8
        %s460 = scalar_lea.vmem %s0, %s459
        %s461 = smul.u32 3, %s22
      $region80: #{flip_model_forward.6} parent=75 // pred_fallthru
        _
    $region76: #{flip_model_forward.6} parent=5 // pred_fallthru
      _
    %p462 = scmp.le.s32.totalorder 1, %s22
    %p463 = scmp.lt.s32.totalorder %s22, 3
    %p464 = pnand %p462, %p463
    %p465 = pneg %p464
    // Predicated region
    $region81: #{flip_model_forward.6} parent=5 // pred_check
      _
    $region82: #{flip_model_forward.6} parent=5 // pred_check_branch
      %467 = sbr.rel (%p464) target = $region84
    $region83: #{flip_model_forward.6} parent=5 // pred_region
      %s468 = ssub.s32 %s22, 1
      %s469 = smul.u32 3, %s27
      %p470 = scmp.lt.s32.totalorder %s469, 5
      %s471 = scalar_select %p470, %s469, 5
      %s472 = smul.addr %s471, 8
      %s473 = scalar_lea.vmem %s0, %s472
      %p474 = pneg %p48
      %p475 = pneg %p45
      %p476 = pneg %p69
      %p477 = pneg %p66
      %p478 = pneg %p90
      %p479 = pneg %p87
      %p480 = pneg %p111
      %p481 = pneg %p108
      %p482 = pneg %p132
      %p483 = pneg %p129
      %p484 = pneg %p153
      %p485 = pneg %p150
      %p486 = pneg %p174
      %p487 = pneg %p171
      %p488 = pneg %p195
      %p489 = pneg %p192
      %p490 = pneg %p216
      %p491 = pneg %p213
      %p492 = pneg %p237
      %p493 = pneg %p234
      %p494 = pneg %p258
      %p495 = pneg %p255
      %p496 = pneg %p279
      %p497 = pneg %p276
      %p498 = pneg %p300
      %p499 = pneg %p297
      %p500 = pneg %p321
      %p501 = pneg %p318
      %p502 = pneg %p342
      %p503 = pneg %p339
      %p504 = pneg %p363
      %p505 = pneg %p360
      %p506 = pneg %p389
      %p507 = pneg %p386
      %s508 = smul.u32 3, %s27
      %p509 = scmp.lt.s32.totalorder %s508, 5
      %s510 = scalar_select %p509, %s508, 5
      %s511 = smul.addr %s510, 8
      %s512 = scalar_lea.vmem %s16, %s511
      %s513 = smul.u32 3, %s27
      %p514 = scmp.lt.s32.totalorder %s513, 5
      %s515 = scalar_select %p514, %s513, 5
      %s516 = smul.addr %s515, 8
      %s517 = scalar_lea.vmem %s0, %s516
      %s518 = smul.u32 3, %s27
      %s519 = smul.u32 3, %s27
      %p520 = scmp.lt.s32.totalorder %s519, 5
      %s521 = scalar_select %p520, %s519, 5
      %s522 = smul.addr %s521, 8
      %s523 = scalar_lea.vmem %s16, %s522
      %s524 = smul.u32 3, %s27
      %v525 = vld [vmem:[%s517] sm:$0xff]
      %v526 = vld [vmem:[%s517 + $0x8] sm:$0xff]
      %v527 = vld [vmem:[%s517 + $0x10] sm:$0xff]
      %v528 = vld [vmem:[%s10] sm:$0x1]
      %v529 = vld [vmem:[%s11] sm:$0x1]
      %vm530 = vcmask 261120
      %v531 = vsel %vm530, %v525, 0.0
      %532 = vadd.xlane.f32.xlu0 %v531
      %v533 = vpop.xlane.xlu0 %532
      %v534 = vsel %vm530, %v526, 0.0
      %535 = vadd.xlane.f32.xlu0 %v534
      %v536 = vpop.xlane.xlu0 %535
      %v537 = vsel %vm530, %v527, 0.0
      %538 = vadd.xlane.f32.xlu0 %v537
      %v539 = vpop.xlane.xlu0 %538
      %v540 = vrcp.pop 32.0
      %v541 = vmul.f32 32.0, %v540
      %v542 = vsub.f32 1.0, %v541
      %v543 = vmul.f32 %v540, %v542
      %v544 = vadd.f32 %v540, %v543
      %vm545 = vweird.f32 %v540
      %v546 = vsel %vm545, %v540, %v544
      %v547 = vmul.f32 %v533, %v546
      %v548 = vmul.f32 %v536, %v546
      %v549 = vmul.f32 %v539, %v546
      %v550 = vsub.f32 %v525, %v547
      %v551 = vsub.f32 %v526, %v548
      %v552 = vsub.f32 %v527, %v549
      %v553 = vmul.f32 %v550, %v550
      %v554 = vmul.f32 %v551, %v551
      %v555 = vmul.f32 %v552, %v552
      %v556 = vsel %vm530, %v553, 0.0
      %557 = vadd.xlane.f32.xlu0 %v556
      %v558 = vpop.xlane.xlu0 %557
      %v559 = vsel %vm530, %v554, 0.0
      %560 = vadd.xlane.f32.xlu0 %v559
      %v561 = vpop.xlane.xlu0 %560
      %v562 = vsel %vm530, %v555, 0.0
      %563 = vadd.xlane.f32.xlu0 %v562
      %v564 = vpop.xlane.xlu0 %563
      %v565 = vmul.f32 %v558, %v546
      %v566 = vmul.f32 %v561, %v546
      %v567 = vmul.f32 %v564, %v546
      %v568 = vadd.f32 %v565, 1e-12
      %v569 = vadd.f32 %v566, 1e-12
      %v570 = vadd.f32 %v567, 1e-12
      %v571 = vrsqrt.pop %v568
      %v572 = vmul.f32 %v571, %v568
      %v573 = vmul.f32 %v572, %v571
      %v574 = vmul.f32 0.5, %v573
      %v575 = vsub.f32 1.5, %v574
      %v576 = vmul.f32 %v571, %v575
      %vm577 = vweird.f32 %v568
      %vm578 = vweird.f32 %v571
      %vm579 = vmor %vm577, %vm578
      %v580 = vsel %vm579, %v571, %v576
      %v581 = vrsqrt.pop %v569
      %v582 = vmul.f32 %v581, %v569
      %v583 = vmul.f32 %v582, %v581
      %v584 = vmul.f32 0.5, %v583
      %v585 = vsub.f32 1.5, %v584
      %v586 = vmul.f32 %v581, %v585
      %vm587 = vweird.f32 %v569
      %vm588 = vweird.f32 %v581
      %vm589 = vmor %vm587, %vm588
      %v590 = vsel %vm589, %v581, %v586
      %v591 = vrsqrt.pop %v570
      %v592 = vmul.f32 %v591, %v570
      %v593 = vmul.f32 %v592, %v591
      %v594 = vmul.f32 0.5, %v593
      %v595 = vsub.f32 1.5, %v594
      %v596 = vmul.f32 %v591, %v595
      %vm597 = vweird.f32 %v570
      %vm598 = vweird.f32 %v591
      %vm599 = vmor %vm597, %vm598
      %v600 = vsel %vm599, %v591, %v596
      %v601 = vmul.f32 %v550, %v580
      %v602 = vmul.f32 %v551, %v590
      %v603 = vmul.f32 %v552, %v600
      %v605 = vperm.slane %v528, 0
      %v607 = vmul.f32 %v601, %v605
      %v608 = vmul.f32 %v602, %v605
      %v609 = vmul.f32 %v603, %v605
      %v611 = vperm.slane %v529, 0
      %v613 = vadd.f32 %v607, %v611
      %v614 = vadd.f32 %v608, %v611
      %v615 = vadd.f32 %v609, %v611
      %v616 = vld [vmem:[%s2] sm:$0xff]
      %v617 = vld [vmem:[%s2 + $0x8] sm:$0xff]
      %v618 = vld [vmem:[%s2 + $0x10] sm:$0xff]
      %v619 = vld [vmem:[%s2 + $0x18] sm:$0xff]
      %v620 = vld [vmem:[%s3] sm:$0x1]
      %v622 = vperm.slane %v620, 0
      %v625 = vsel %vm530, %v613, 0
      %v628 = vsel %vm530, %v614, 0
      %v631 = vsel %vm530, %v615, 0
      %633 = vmatpush.msra.mxu0 0.0
      %634 = vmatpush.msra.mxu0 0.0
      %635 = vmatpush.msra.mxu0 0.0
      %636 = vmatpush.msra.mxu0 0.0
      %637 = vmatpush.msra.mxu0 0.0
      %638 = vmatpush.msra.mxu0 0.0
      %639 = vmatpush.msra.mxu0 0.0
      %640 = vmatpush.msra.mxu0 0.0
      %641 = vmatpush.msra.mxu0 0.0
      %642 = vmatpush.msra.mxu0 0.0
      %643 = vmatpush.msra.mxu0 0.0
      %644 = vmatpush.msra.mxu0 0.0
      %645 = vmatpush.msra.mxu0 %v619
      %646 = vmatpush.msra.mxu0 %v618
      %647 = vmatpush.msra.mxu0 %v617
      %648 = vmatpush.msra.mxu0 %v616
      %649 = vmatmul.f32.gmra.mxu0 %v625
      %v650 = vpop.f32.mrf.mxu0
      %v651 = vadd.f32 %v622, %v650
      %652 = vmatmul.f32.gmra.mxu0 %v628
      %v653 = vpop.f32.mrf.mxu0
      %v654 = vadd.f32 %v622, %v653
      %655 = vmatmul.f32.gmra.mxu0 %v631
      %v656 = vpop.f32.mrf.mxu0
      %v657 = vadd.f32 %v622, %v656
      %658 = vdwg.mxu0
      %v659 = vld [vmem:[%s1] sm:$0xff]
      %v660 = vld [vmem:[%s1 + $0x8] sm:$0xff]
      %v661 = vld [vmem:[%s1 + $0x10] sm:$0xff]
      %v662 = vld [vmem:[%s4] sm:$0xff]
      %v663 = vld [vmem:[%s4 + $0x8] sm:$0xff]
      %v664 = vld [vmem:[%s4 + $0x10] sm:$0xff]
      %v665 = vld [vmem:[%s4 + $0x18] sm:$0xff]
      %669 = vrot.lane.b32.xlu0 %v651, 96
      %v670 = vpop.permute.xlu0 %669
      %671 = vrot.lane.b32.xlu0 %v654, 96
      %v672 = vpop.permute.xlu0 %671
      %673 = vrot.lane.b32.xlu0 %v657, 96
      %v674 = vpop.permute.xlu0 %673
      %vm675 = vcmask 64512
      %v676 = vsel %vm675, %v651, 0
      %v678 = vsel %vm675, %v654, 0
      %v680 = vsel %vm675, %v657, 0
      %v682 = vsel %vm675, %v670, 0
      %v684 = vsel %vm675, %v672, 0
      %v686 = vsel %vm675, %v674, 0
      %688 = vmatpush.xpose.msra.mxu0 0.0
      %689 = vmatpush.xpose.msra.mxu0 0.0
      %690 = vmatpush.xpose.msra.mxu0 0.0
      %691 = vmatpush.xpose.msra.mxu0 0.0
      %692 = vmatpush.xpose.msra.mxu0 0.0
      %693 = vmatpush.xpose.msra.mxu0 0.0
      %694 = vmatpush.xpose.msra.mxu0 0.0
      %695 = vmatpush.xpose.msra.mxu0 0.0
      %696 = vmatpush.xpose.msra.mxu0 0.0
      %697 = vmatpush.xpose.msra.mxu0 0.0
      %698 = vmatpush.xpose.msra.mxu0 0.0
      %699 = vmatpush.xpose.msra.mxu0 0.0
      %700 = vmatpush.xpose.msra.mxu0 0.0
      %701 = vmatpush.xpose.msra.mxu0 %v686
      %702 = vmatpush.xpose.msra.mxu0 %v684
      %703 = vmatpush.xpose.msra.mxu0 %v682
      %704 = vmatmul.f32.gmra.mxu0 %v676
      %v705 = vpop.f32.mrf.mxu0
      %v706 = vadd.f32 0.0, %v705
      %707 = vmatmul.f32.gmra.mxu0 %v678
      %v708 = vpop.f32.mrf.mxu0
      %v709 = vadd.f32 0.0, %v708
      %710 = vmatmul.f32.gmra.mxu0 %v680
      %v711 = vpop.f32.mrf.mxu0
      %v712 = vadd.f32 0.0, %v711
      %713 = vdwg.mxu0
      %v714 = vmul.f32 %v706, 0.35355338
      %v715 = vmul.f32 %v709, 0.35355338
      %v716 = vmul.f32 %v712, 0.35355338
      %v717 = vadd.f32 %v714, %v659
      %v718 = vadd.f32 %v715, %v660
      %v719 = vadd.f32 %v716, %v661
      %vm720 = vcmask 195584
      %v721 = vsel %vm720, %v717, -inf
      %722 = vmax.xlane.f32.xlu0 %v721
      %v723 = vpop.xlane.xlu0 %722
      %v724 = vsel %vm720, %v718, -inf
      %725 = vmax.xlane.f32.xlu0 %v724
      %v726 = vpop.xlane.xlu0 %725
      %v727 = vsel %vm720, %v719, -inf
      %728 = vmax.xlane.f32.xlu0 %v727
      %v729 = vpop.xlane.xlu0 %728
      %v730 = vsub.f32 %v717, %v723
      %v731 = vsub.f32 %v718, %v726
      %v732 = vsub.f32 %v719, %v729
      %v733 = vmul.f32 %v730, 1.442695
      %v734 = vpow.pop %v733
      %v735 = vmul.f32 %v731, 1.442695
      %v736 = vpow.pop %v735
      %v737 = vmul.f32 %v732, 1.442695
      %v738 = vpow.pop %v737
      %v739 = vsel %vm720, %v734, 0.0
      %740 = vadd.xlane.f32.xlu0 %v739
      %v741 = vpop.xlane.xlu0 %740
      %v742 = vsel %vm720, %v736, 0.0
      %743 = vadd.xlane.f32.xlu0 %v742
      %v744 = vpop.xlane.xlu0 %743
      %v745 = vsel %vm720, %v738, 0.0
      %746 = vadd.xlane.f32.xlu0 %v745
      %v747 = vpop.xlane.xlu0 %746
      %v748 = vrcp.pop %v741
      %v749 = vrcp.pop %v744
      %v750 = vrcp.pop %v747
      %v751 = vmul.f32 %v734, %v748
      %v752 = vmul.f32 %v736, %v749
      %v753 = vmul.f32 %v738, %v750
      %754 = vrot.lane.b32.xlu0 %v651, 64
      %v755 = vpop.permute.xlu0 %754
      %756 = vrot.lane.b32.xlu0 %v654, 64
      %v757 = vpop.permute.xlu0 %756
      %758 = vrot.lane.b32.xlu0 %v657, 64
      %v759 = vpop.permute.xlu0 %758
      %v764 = vsel %vm720, %v751, 0
      %v767 = vsel %vm720, %v752, 0
      %v770 = vsel %vm720, %v753, 0
      %772 = vmatpush.msra.mxu0 0.0
      %773 = vmatpush.msra.mxu0 0.0
      %774 = vmatpush.msra.mxu0 0.0
      %775 = vmatpush.msra.mxu0 0.0
      %776 = vmatpush.msra.mxu0 0.0
      %777 = vmatpush.msra.mxu0 0.0
      %778 = vmatpush.msra.mxu0 0.0
      %779 = vmatpush.msra.mxu0 0.0
      %780 = vmatpush.msra.mxu0 0.0
      %781 = vmatpush.msra.mxu0 0.0
      %782 = vmatpush.msra.mxu0 0.0
      %783 = vmatpush.msra.mxu0 0.0
      %784 = vmatpush.msra.mxu0 0.0
      %785 = vmatpush.msra.mxu0 %v759
      %786 = vmatpush.msra.mxu0 %v757
      %787 = vmatpush.msra.mxu0 %v755
      %788 = vmatmul.f32.gmra.mxu0 %v764
      %v789 = vpop.f32.mrf.mxu0
      %v790 = vadd.f32 0.0, %v789
      %791 = vmatmul.f32.gmra.mxu0 %v767
      %v792 = vpop.f32.mrf.mxu0
      %v793 = vadd.f32 0.0, %v792
      %794 = vmatmul.f32.gmra.mxu0 %v770
      %v795 = vpop.f32.mrf.mxu0
      %v796 = vadd.f32 0.0, %v795
      %797 = vdwg.mxu0
      %798 = vrot.lane.b32.xlu0 %v651, 120
      %v799 = vpop.permute.xlu0 %798
      %800 = vrot.lane.b32.xlu0 %v654, 120
      %v801 = vpop.permute.xlu0 %800
      %802 = vrot.lane.b32.xlu0 %v657, 120
      %v803 = vpop.permute.xlu0 %802
      %804 = vrot.lane.b32.xlu0 %v651, 88
      %v805 = vpop.permute.xlu0 %804
      %806 = vrot.lane.b32.xlu0 %v654, 88
      %v807 = vpop.permute.xlu0 %806
      %808 = vrot.lane.b32.xlu0 %v657, 88
      %v809 = vpop.permute.xlu0 %808
      %v810 = vsel %vm675, %v799, 0
      %v812 = vsel %vm675, %v801, 0
      %v814 = vsel %vm675, %v803, 0
      %v816 = vsel %vm675, %v805, 0
      %v818 = vsel %vm675, %v807, 0
      %v820 = vsel %vm675, %v809, 0
      %822 = vmatpush.xpose.msra.mxu0 0.0
      %823 = vmatpush.xpose.msra.mxu0 0.0
      %824 = vmatpush.xpose.msra.mxu0 0.0
      %825 = vmatpush.xpose.msra.mxu0 0.0
      %826 = vmatpush.xpose.msra.mxu0 0.0
      %827 = vmatpush.xpose.msra.mxu0 0.0
      %828 = vmatpush.xpose.msra.mxu0 0.0
      %829 = vmatpush.xpose.msra.mxu0 0.0
      %830 = vmatpush.xpose.msra.mxu0 0.0
      %831 = vmatpush.xpose.msra.mxu0 0.0
      %832 = vmatpush.xpose.msra.mxu0 0.0
      %833 = vmatpush.xpose.msra.mxu0 0.0
      %834 = vmatpush.xpose.msra.mxu0 0.0
      %835 = vmatpush.xpose.msra.mxu0 %v820
      %836 = vmatpush.xpose.msra.mxu0 %v818
      %837 = vmatpush.xpose.msra.mxu0 %v816
      %838 = vmatmul.f32.gmra.mxu0 %v810
      %v839 = vpop.f32.mrf.mxu0
      %v840 = vadd.f32 0.0, %v839
      %841 = vmatmul.f32.gmra.mxu0 %v812
      %v842 = vpop.f32.mrf.mxu0
      %v843 = vadd.f32 0.0, %v842
      %844 = vmatmul.f32.gmra.mxu0 %v814
      %v845 = vpop.f32.mrf.mxu0
      %v846 = vadd.f32 0.0, %v845
      %847 = vdwg.mxu0
      %v848 = vmul.f32 %v840, 0.35355338
      %v849 = vmul.f32 %v843, 0.35355338
      %v850 = vmul.f32 %v846, 0.35355338
      %v851 = vadd.f32 %v848, %v659
      %v852 = vadd.f32 %v849, %v660
      %v853 = vadd.f32 %v850, %v661
      %v854 = vsel %vm720, %v851, -inf
      %855 = vmax.xlane.f32.xlu0 %v854
      %v856 = vpop.xlane.xlu0 %855
      %v857 = vsel %vm720, %v852, -inf
      %858 = vmax.xlane.f32.xlu0 %v857
      %v859 = vpop.xlane.xlu0 %858
      %v860 = vsel %vm720, %v853, -inf
      %861 = vmax.xlane.f32.xlu0 %v860
      %v862 = vpop.xlane.xlu0 %861
      %v863 = vsub.f32 %v851, %v856
      %v864 = vsub.f32 %v852, %v859
      %v865 = vsub.f32 %v853, %v862
      %v866 = vmul.f32 %v863, 1.442695
      %v867 = vpow.pop %v866
      %v868 = vmul.f32 %v864, 1.442695
      %v869 = vpow.pop %v868
      %v870 = vmul.f32 %v865, 1.442695
      %v871 = vpow.pop %v870
      %v872 = vsel %vm720, %v867, 0.0
      %873 = vadd.xlane.f32.xlu0 %v872
      %v874 = vpop.xlane.xlu0 %873
      %v875 = vsel %vm720, %v869, 0.0
      %876 = vadd.xlane.f32.xlu0 %v875
      %v877 = vpop.xlane.xlu0 %876
      %v878 = vsel %vm720, %v871, 0.0
      %879 = vadd.xlane.f32.xlu0 %v878
      %v880 = vpop.xlane.xlu0 %879
      %v881 = vrcp.pop %v874
      %v882 = vrcp.pop %v877
      %v883 = vrcp.pop %v880
      %v884 = vmul.f32 %v867, %v881
      %v885 = vmul.f32 %v869, %v882
      %v886 = vmul.f32 %v871, %v883
      %887 = vrot.lane.b32.xlu0 %v651, 56
      %v888 = vpop.permute.xlu0 %887
      %889 = vrot.lane.b32.xlu0 %v654, 56
      %v890 = vpop.permute.xlu0 %889
      %891 = vrot.lane.b32.xlu0 %v657, 56
      %v892 = vpop.permute.xlu0 %891
      %v897 = vsel %vm720, %v884, 0
      %v900 = vsel %vm720, %v885, 0
      %v903 = vsel %vm720, %v886, 0
      %905 = vmatpush.msra.mxu0 0.0
      %906 = vmatpush.msra.mxu0 0.0
      %907 = vmatpush.msra.mxu0 0.0
      %908 = vmatpush.msra.mxu0 0.0
      %909 = vmatpush.msra.mxu0 0.0
      %910 = vmatpush.msra.mxu0 0.0
      %911 = vmatpush.msra.mxu0 0.0
      %912 = vmatpush.msra.mxu0 0.0
      %913 = vmatpush.msra.mxu0 0.0
      %914 = vmatpush.msra.mxu0 0.0
      %915 = vmatpush.msra.mxu0 0.0
      %916 = vmatpush.msra.mxu0 0.0
      %917 = vmatpush.msra.mxu0 0.0
      %918 = vmatpush.msra.mxu0 %v892
      %919 = vmatpush.msra.mxu0 %v890
      %920 = vmatpush.msra.mxu0 %v888
      %921 = vmatmul.f32.gmra.mxu0 %v897
      %v922 = vpop.f32.mrf.mxu0
      %v923 = vadd.f32 0.0, %v922
      %924 = vmatmul.f32.gmra.mxu0 %v900
      %v925 = vpop.f32.mrf.mxu0
      %v926 = vadd.f32 0.0, %v925
      %927 = vmatmul.f32.gmra.mxu0 %v903
      %v928 = vpop.f32.mrf.mxu0
      %v929 = vadd.f32 0.0, %v928
      %930 = vdwg.mxu0
      %v932 = vsel %vm675, %v923, 0
      %v935 = vsel %vm675, %v926, 0
      %v938 = vsel %vm675, %v929, 0
      %940 = vmatpush.msra.mxu0 0.0
      %941 = vmatpush.msra.mxu0 0.0
      %942 = vmatpush.msra.mxu0 0.0
      %943 = vmatpush.msra.mxu0 0.0
      %944 = vmatpush.msra.mxu0 0.0
      %945 = vmatpush.msra.mxu0 0.0
      %946 = vmatpush.msra.mxu0 0.0
      %947 = vmatpush.msra.mxu0 0.0
      %948 = vmatpush.msra.mxu0 0.0
      %949 = vmatpush.msra.mxu0 0.0
      %950 = vmatpush.msra.mxu0 0.0
      %951 = vmatpush.msra.mxu0 0.0
      %952 = vmatpush.msra.mxu0 0.0
      %953 = vmatpush.msra.mxu0 0.0
      %954 = vmatpush.msra.mxu0 0.0
      %955 = vmatpush.msra.mxu0 %v663
      %956 = vmatmul.f32.gmra.mxu0 %v932
      %v957 = vpop.f32.mrf.mxu0
      %v958 = vadd.f32 0.0, %v957
      %959 = vmatmul.f32.gmra.mxu0 %v935
      %v960 = vpop.f32.mrf.mxu0
      %v961 = vadd.f32 0.0, %v960
      %962 = vmatmul.f32.gmra.mxu0 %v938
      %v963 = vpop.f32.mrf.mxu0
      %v964 = vadd.f32 0.0, %v963
      %965 = vdwg.mxu0
      %v967 = vsel %vm675, %v790, 0
      %v970 = vsel %vm675, %v793, 0
      %v973 = vsel %vm675, %v796, 0
      %975 = vmatpush.msra.mxu0 0.0
      %976 = vmatpush.msra.mxu0 0.0
      %977 = vmatpush.msra.mxu0 0.0
      %978 = vmatpush.msra.mxu0 0.0
      %979 = vmatpush.msra.mxu0 0.0
      %980 = vmatpush.msra.mxu0 0.0
      %981 = vmatpush.msra.mxu0 0.0
      %982 = vmatpush.msra.mxu0 0.0
      %983 = vmatpush.msra.mxu0 0.0
      %984 = vmatpush.msra.mxu0 0.0
      %985 = vmatpush.msra.mxu0 0.0
      %986 = vmatpush.msra.mxu0 0.0
      %987 = vmatpush.msra.mxu0 0.0
      %988 = vmatpush.msra.mxu0 0.0
      %989 = vmatpush.msra.mxu0 0.0
      %990 = vmatpush.msra.mxu0 %v662
      %991 = vmatmul.f32.gmra.mxu0 %v967
      %v992 = vpop.f32.mrf.mxu0
      %v993 = vadd.f32 %v958, %v992
      %994 = vmatmul.f32.gmra.mxu0 %v970
      %v995 = vpop.f32.mrf.mxu0
      %v996 = vadd.f32 %v961, %v995
      %997 = vmatmul.f32.gmra.mxu0 %v973
      %v998 = vpop.f32.mrf.mxu0
      %v999 = vadd.f32 %v964, %v998
      %1000 = vdwg.mxu0
      %1001 = vrot.lane.b32.xlu0 %v651, 112
      %v1002 = vpop.permute.xlu0 %1001
      %1003 = vrot.lane.b32.xlu0 %v654, 112
      %v1004 = vpop.permute.xlu0 %1003
      %1005 = vrot.lane.b32.xlu0 %v657, 112
      %v1006 = vpop.permute.xlu0 %1005
      %1007 = vrot.lane.b32.xlu0 %v651, 80
      %v1008 = vpop.permute.xlu0 %1007
      %1009 = vrot.lane.b32.xlu0 %v654, 80
      %v1010 = vpop.permute.xlu0 %1009
      %1011 = vrot.lane.b32.xlu0 %v657, 80
      %v1012 = vpop.permute.xlu0 %1011
      %v1013 = vsel %vm675, %v1002, 0
      %v1015 = vsel %vm675, %v1004, 0
      %v1017 = vsel %vm675, %v1006, 0
      %v1019 = vsel %vm675, %v1008, 0
      %v1021 = vsel %vm675, %v1010, 0
      %v1023 = vsel %vm675, %v1012, 0
      %1025 = vmatpush.xpose.msra.mxu0 0.0
      %1026 = vmatpush.xpose.msra.mxu0 0.0
      %1027 = vmatpush.xpose.msra.mxu0 0.0
      %1028 = vmatpush.xpose.msra.mxu0 0.0
      %1029 = vmatpush.xpose.msra.mxu0 0.0
      %1030 = vmatpush.xpose.msra.mxu0 0.0
      %1031 = vmatpush.xpose.msra.mxu0 0.0
      %1032 = vmatpush.xpose.msra.mxu0 0.0
      %1033 = vmatpush.xpose.msra.mxu0 0.0
      %1034 = vmatpush.xpose.msra.mxu0 0.0
      %1035 = vmatpush.xpose.msra.mxu0 0.0
      %1036 = vmatpush.xpose.msra.mxu0 0.0
      %1037 = vmatpush.xpose.msra.mxu0 0.0
      %1038 = vmatpush.xpose.msra.mxu0 %v1023
      %1039 = vmatpush.xpose.msra.mxu0 %v1021
      %1040 = vmatpush.xpose.msra.mxu0 %v1019
      %1041 = vmatmul.f32.gmra.mxu0 %v1013
      %v1042 = vpop.f32.mrf.mxu0
      %v1043 = vadd.f32 0.0, %v1042
      %1044 = vmatmul.f32.gmra.mxu0 %v1015
      %v1045 = vpop.f32.mrf.mxu0
      %v1046 = vadd.f32 0.0, %v1045
      %1047 = vmatmul.f32.gmra.mxu0 %v1017
      %v1048 = vpop.f32.mrf.mxu0
      %v1049 = vadd.f32 0.0, %v1048
      %1050 = vdwg.mxu0
      %v1051 = vmul.f32 %v1043, 0.35355338
      %v1052 = vmul.f32 %v1046, 0.35355338
      %v1053 = vmul.f32 %v1049, 0.35355338
      %v1054 = vadd.f32 %v1051, %v659
      %v1055 = vadd.f32 %v1052, %v660
      %v1056 = vadd.f32 %v1053, %v661
      %v1057 = vsel %vm720, %v1054, -inf
      %1058 = vmax.xlane.f32.xlu0 %v1057
      %v1059 = vpop.xlane.xlu0 %1058
      %v1060 = vsel %vm720, %v1055, -inf
      %1061 = vmax.xlane.f32.xlu0 %v1060
      %v1062 = vpop.xlane.xlu0 %1061
      %v1063 = vsel %vm720, %v1056, -inf
      %1064 = vmax.xlane.f32.xlu0 %v1063
      %v1065 = vpop.xlane.xlu0 %1064
      %v1066 = vsub.f32 %v1054, %v1059
      %v1067 = vsub.f32 %v1055, %v1062
      %v1068 = vsub.f32 %v1056, %v1065
      %v1069 = vmul.f32 %v1066, 1.442695
      %v1070 = vpow.pop %v1069
      %v1071 = vmul.f32 %v1067, 1.442695
      %v1072 = vpow.pop %v1071
      %v1073 = vmul.f32 %v1068, 1.442695
      %v1074 = vpow.pop %v1073
      %v1075 = vsel %vm720, %v1070, 0.0
      %1076 = vadd.xlane.f32.xlu0 %v1075
      %v1077 = vpop.xlane.xlu0 %1076
      %v1078 = vsel %vm720, %v1072, 0.0
      %1079 = vadd.xlane.f32.xlu0 %v1078
      %v1080 = vpop.xlane.xlu0 %1079
      %v1081 = vsel %vm720, %v1074, 0.0
      %1082 = vadd.xlane.f32.xlu0 %v1081
      %v1083 = vpop.xlane.xlu0 %1082
      %v1084 = vrcp.pop %v1077
      %v1085 = vrcp.pop %v1080
      %v1086 = vrcp.pop %v1083
      %v1087 = vmul.f32 %v1070, %v1084
      %v1088 = vmul.f32 %v1072, %v1085
      %v1089 = vmul.f32 %v1074, %v1086
      %1090 = vrot.lane.b32.xlu0 %v651, 48
      %v1091 = vpop.permute.xlu0 %1090
      %1092 = vrot.lane.b32.xlu0 %v654, 48
      %v1093 = vpop.permute.xlu0 %1092
      %1094 = vrot.lane.b32.xlu0 %v657, 48
      %v1095 = vpop.permute.xlu0 %1094
      %v1100 = vsel %vm720, %v1087, 0
      %v1103 = vsel %vm720, %v1088, 0
      %v1106 = vsel %vm720, %v1089, 0
      %1108 = vmatpush.msra.mxu0 0.0
      %1109 = vmatpush.msra.mxu0 0.0
      %1110 = vmatpush.msra.mxu0 0.0
      %1111 = vmatpush.msra.mxu0 0.0
      %1112 = vmatpush.msra.mxu0 0.0
      %1113 = vmatpush.msra.mxu0 0.0
      %1114 = vmatpush.msra.mxu0 0.0
      %1115 = vmatpush.msra.mxu0 0.0
      %1116 = vmatpush.msra.mxu0 0.0
      %1117 = vmatpush.msra.mxu0 0.0
      %1118 = vmatpush.msra.mxu0 0.0
      %1119 = vmatpush.msra.mxu0 0.0
      %1120 = vmatpush.msra.mxu0 0.0
      %1121 = vmatpush.msra.mxu0 %v1095
      %1122 = vmatpush.msra.mxu0 %v1093
      %1123 = vmatpush.msra.mxu0 %v1091
      %1124 = vmatmul.f32.gmra.mxu0 %v1100
      %v1125 = vpop.f32.mrf.mxu0
      %v1126 = vadd.f32 0.0, %v1125
      %1127 = vmatmul.f32.gmra.mxu0 %v1103
      %v1128 = vpop.f32.mrf.mxu0
      %v1129 = vadd.f32 0.0, %v1128
      %1130 = vmatmul.f32.gmra.mxu0 %v1106
      %v1131 = vpop.f32.mrf.mxu0
      %v1132 = vadd.f32 0.0, %v1131
      %1133 = vdwg.mxu0
      %v1135 = vsel %vm675, %v1126, 0
      %v1138 = vsel %vm675, %v1129, 0
      %v1141 = vsel %vm675, %v1132, 0
      %1143 = vmatpush.msra.mxu0 0.0
      %1144 = vmatpush.msra.mxu0 0.0
      %1145 = vmatpush.msra.mxu0 0.0
      %1146 = vmatpush.msra.mxu0 0.0
      %1147 = vmatpush.msra.mxu0 0.0
      %1148 = vmatpush.msra.mxu0 0.0
      %1149 = vmatpush.msra.mxu0 0.0
      %1150 = vmatpush.msra.mxu0 0.0
      %1151 = vmatpush.msra.mxu0 0.0
      %1152 = vmatpush.msra.mxu0 0.0
      %1153 = vmatpush.msra.mxu0 0.0
      %1154 = vmatpush.msra.mxu0 0.0
      %1155 = vmatpush.msra.mxu0 0.0
      %1156 = vmatpush.msra.mxu0 0.0
      %1157 = vmatpush.msra.mxu0 0.0
      %1158 = vmatpush.msra.mxu0 %v664
      %1159 = vmatmul.f32.gmra.mxu0 %v1135
      %v1160 = vpop.f32.mrf.mxu0
      %v1161 = vadd.f32 0.0, %v1160
      %1162 = vmatmul.f32.gmra.mxu0 %v1138
      %v1163 = vpop.f32.mrf.mxu0
      %v1164 = vadd.f32 0.0, %v1163
      %1165 = vmatmul.f32.gmra.mxu0 %v1141
      %v1166 = vpop.f32.mrf.mxu0
      %v1167 = vadd.f32 0.0, %v1166
      %1168 = vdwg.mxu0
      %v1169 = vadd.f32 %v993, %v1161
      %v1170 = vadd.f32 %v996, %v1164
      %v1171 = vadd.f32 %v999, %v1167
      %1172 = vrot.lane.b32.xlu0 %v651, 104
      %v1173 = vpop.permute.xlu0 %1172
      %1174 = vrot.lane.b32.xlu0 %v654, 104
      %v1175 = vpop.permute.xlu0 %1174
      %1176 = vrot.lane.b32.xlu0 %v657, 104
      %v1177 = vpop.permute.xlu0 %1176
      %1178 = vrot.lane.b32.xlu0 %v651, 72
      %v1179 = vpop.permute.xlu0 %1178
      %1180 = vrot.lane.b32.xlu0 %v654, 72
      %v1181 = vpop.permute.xlu0 %1180
      %1182 = vrot.lane.b32.xlu0 %v657, 72
      %v1183 = vpop.permute.xlu0 %1182
      %v1184 = vsel %vm675, %v1173, 0
      %v1186 = vsel %vm675, %v1175, 0
      %v1188 = vsel %vm675, %v1177, 0
      %v1190 = vsel %vm675, %v1179, 0
      %v1192 = vsel %vm675, %v1181, 0
      %v1194 = vsel %vm675, %v1183, 0
      %1196 = vmatpush.xpose.msra.mxu0 0.0
      %1197 = vmatpush.xpose.msra.mxu0 0.0
      %1198 = vmatpush.xpose.msra.mxu0 0.0
      %1199 = vmatpush.xpose.msra.mxu0 0.0
      %1200 = vmatpush.xpose.msra.mxu0 0.0
      %1201 = vmatpush.xpose.msra.mxu0 0.0
      %1202 = vmatpush.xpose.msra.mxu0 0.0
      %1203 = vmatpush.xpose.msra.mxu0 0.0
      %1204 = vmatpush.xpose.msra.mxu0 0.0
      %1205 = vmatpush.xpose.msra.mxu0 0.0
      %1206 = vmatpush.xpose.msra.mxu0 0.0
      %1207 = vmatpush.xpose.msra.mxu0 0.0
      %1208 = vmatpush.xpose.msra.mxu0 0.0
      %1209 = vmatpush.xpose.msra.mxu0 %v1194
      %1210 = vmatpush.xpose.msra.mxu0 %v1192
      %1211 = vmatpush.xpose.msra.mxu0 %v1190
      %1212 = vmatmul.f32.gmra.mxu0 %v1184
      %v1213 = vpop.f32.mrf.mxu0
      %v1214 = vadd.f32 0.0, %v1213
      %1215 = vmatmul.f32.gmra.mxu0 %v1186
      %v1216 = vpop.f32.mrf.mxu0
      %v1217 = vadd.f32 0.0, %v1216
      %1218 = vmatmul.f32.gmra.mxu0 %v1188
      %v1219 = vpop.f32.mrf.mxu0
      %v1220 = vadd.f32 0.0, %v1219
      %1221 = vdwg.mxu0
      %v1222 = vmul.f32 %v1214, 0.35355338
      %v1223 = vmul.f32 %v1217, 0.35355338
      %v1224 = vmul.f32 %v1220, 0.35355338
      %v1225 = vadd.f32 %v1222, %v659
      %v1226 = vadd.f32 %v1223, %v660
      %v1227 = vadd.f32 %v1224, %v661
      %v1228 = vsel %vm720, %v1225, -inf
      %1229 = vmax.xlane.f32.xlu0 %v1228
      %v1230 = vpop.xlane.xlu0 %1229
      %v1231 = vsel %vm720, %v1226, -inf
      %1232 = vmax.xlane.f32.xlu0 %v1231
      %v1233 = vpop.xlane.xlu0 %1232
      %v1234 = vsel %vm720, %v1227, -inf
      %1235 = vmax.xlane.f32.xlu0 %v1234
      %v1236 = vpop.xlane.xlu0 %1235
      %v1237 = vsub.f32 %v1225, %v1230
      %v1238 = vsub.f32 %v1226, %v1233
      %v1239 = vsub.f32 %v1227, %v1236
      %v1240 = vmul.f32 %v1237, 1.442695
      %v1241 = vpow.pop %v1240
      %v1242 = vmul.f32 %v1238, 1.442695
      %v1243 = vpow.pop %v1242
      %v1244 = vmul.f32 %v1239, 1.442695
      %v1245 = vpow.pop %v1244
      %v1246 = vsel %vm720, %v1241, 0.0
      %1247 = vadd.xlane.f32.xlu0 %v1246
      %v1248 = vpop.xlane.xlu0 %1247
      %v1249 = vsel %vm720, %v1243, 0.0
      %1250 = vadd.xlane.f32.xlu0 %v1249
      %v1251 = vpop.xlane.xlu0 %1250
      %v1252 = vsel %vm720, %v1245, 0.0
      %1253 = vadd.xlane.f32.xlu0 %v1252
      %v1254 = vpop.xlane.xlu0 %1253
      %v1255 = vrcp.pop %v1248
      %v1256 = vrcp.pop %v1251
      %v1257 = vrcp.pop %v1254
      %v1258 = vmul.f32 %v1241, %v1255
      %v1259 = vmul.f32 %v1243, %v1256
      %v1260 = vmul.f32 %v1245, %v1257
      %1261 = vrot.lane.b32.xlu0 %v651, 40
      %v1262 = vpop.permute.xlu0 %1261
      %1263 = vrot.lane.b32.xlu0 %v654, 40
      %v1264 = vpop.permute.xlu0 %1263
      %1265 = vrot.lane.b32.xlu0 %v657, 40
      %v1266 = vpop.permute.xlu0 %1265
      %v1271 = vsel %vm720, %v1258, 0
      %v1274 = vsel %vm720, %v1259, 0
      %v1277 = vsel %vm720, %v1260, 0
      %1279 = vmatpush.msra.mxu0 0.0
      %1280 = vmatpush.msra.mxu0 0.0
      %1281 = vmatpush.msra.mxu0 0.0
      %1282 = vmatpush.msra.mxu0 0.0
      %1283 = vmatpush.msra.mxu0 0.0
      %1284 = vmatpush.msra.mxu0 0.0
      %1285 = vmatpush.msra.mxu0 0.0
      %1286 = vmatpush.msra.mxu0 0.0
      %1287 = vmatpush.msra.mxu0 0.0
      %1288 = vmatpush.msra.mxu0 0.0
      %1289 = vmatpush.msra.mxu0 0.0
      %1290 = vmatpush.msra.mxu0 0.0
      %1291 = vmatpush.msra.mxu0 0.0
      %1292 = vmatpush.msra.mxu0 %v1266
      %1293 = vmatpush.msra.mxu0 %v1264
      %1294 = vmatpush.msra.mxu0 %v1262
      %1295 = vmatmul.f32.gmra.mxu0 %v1271
      %v1296 = vpop.f32.mrf.mxu0
      %v1297 = vadd.f32 0.0, %v1296
      %1298 = vmatmul.f32.gmra.mxu0 %v1274
      %v1299 = vpop.f32.mrf.mxu0
      %v1300 = vadd.f32 0.0, %v1299
      %1301 = vmatmul.f32.gmra.mxu0 %v1277
      %v1302 = vpop.f32.mrf.mxu0
      %v1303 = vadd.f32 0.0, %v1302
      %1304 = vdwg.mxu0
      %v1306 = vsel %vm675, %v1297, 0
      %v1309 = vsel %vm675, %v1300, 0
      %v1312 = vsel %vm675, %v1303, 0
      %1314 = vmatpush.msra.mxu0 0.0
      %1315 = vmatpush.msra.mxu0 0.0
      %1316 = vmatpush.msra.mxu0 0.0
      %1317 = vmatpush.msra.mxu0 0.0
      %1318 = vmatpush.msra.mxu0 0.0
      %1319 = vmatpush.msra.mxu0 0.0
      %1320 = vmatpush.msra.mxu0 0.0
      %1321 = vmatpush.msra.mxu0 0.0
      %1322 = vmatpush.msra.mxu0 0.0
      %1323 = vmatpush.msra.mxu0 0.0
      %1324 = vmatpush.msra.mxu0 0.0
      %1325 = vmatpush.msra.mxu0 0.0
      %1326 = vmatpush.msra.mxu0 0.0
      %1327 = vmatpush.msra.mxu0 0.0
      %1328 = vmatpush.msra.mxu0 0.0
      %1329 = vmatpush.msra.mxu0 %v665
      %1330 = vmatmul.f32.gmra.mxu0 %v1306
      %v1331 = vpop.f32.mrf.mxu0
      %v1332 = vadd.f32 0.0, %v1331
      %1333 = vmatmul.f32.gmra.mxu0 %v1309
      %v1334 = vpop.f32.mrf.mxu0
      %v1335 = vadd.f32 0.0, %v1334
      %1336 = vmatmul.f32.gmra.mxu0 %v1312
      %v1337 = vpop.f32.mrf.mxu0
      %v1338 = vadd.f32 0.0, %v1337
      %1339 = vdwg.mxu0
      %v1340 = vadd.f32 %v1169, %v1332
      %v1341 = vadd.f32 %v1170, %v1335
      %v1342 = vadd.f32 %v1171, %v1338
      %v1343 = vadd.f32 %v525, %v1340
      %v1344 = vadd.f32 %v526, %v1341
      %v1345 = vadd.f32 %v527, %v1342
      %v1346 = vld [vmem:[%s5] sm:$0x1]
      %v1348 = vperm.slane %v1346, 0
      %v1350 = vadd.f32 %v1343, %v1348
      %v1351 = vadd.f32 %v1344, %v1348
      %v1352 = vadd.f32 %v1345, %v1348
      %v1353 = vld [vmem:[%s12] sm:$0x1]
      %v1354 = vld [vmem:[%s13] sm:$0x1]
      %v1355 = vsel %vm530, %v1350, 0.0
      %1356 = vadd.xlane.f32.xlu0 %v1355
      %v1357 = vpop.xlane.xlu0 %1356
      %v1358 = vsel %vm530, %v1351, 0.0
      %1359 = vadd.xlane.f32.xlu0 %v1358
      %v1360 = vpop.xlane.xlu0 %1359
      %v1361 = vsel %vm530, %v1352, 0.0
      %1362 = vadd.xlane.f32.xlu0 %v1361
      %v1363 = vpop.xlane.xlu0 %1362
      %v1364 = vmul.f32 %v1357, %v546
      %v1365 = vmul.f32 %v1360, %v546
      %v1366 = vmul.f32 %v1363, %v546
      %v1367 = vsub.f32 %v1350, %v1364
      %v1368 = vsub.f32 %v1351, %v1365
      %v1369 = vsub.f32 %v1352, %v1366
      %v1370 = vmul.f32 %v1367, %v1367
      %v1371 = vmul.f32 %v1368, %v1368
      %v1372 = vmul.f32 %v1369, %v1369
      %v1373 = vsel %vm530, %v1370, 0.0
      %1374 = vadd.xlane.f32.xlu0 %v1373
      %v1375 = vpop.xlane.xlu0 %1374
      %v1376 = vsel %vm530, %v1371, 0.0
      %1377 = vadd.xlane.f32.xlu0 %v1376
      %v1378 = vpop.xlane.xlu0 %1377
      %v1379 = vsel %vm530, %v1372, 0.0
      %1380 = vadd.xlane.f32.xlu0 %v1379
      %v1381 = vpop.xlane.xlu0 %1380
      %v1382 = vmul.f32 %v1375, %v546
      %v1383 = vmul.f32 %v1378, %v546
      %v1384 = vmul.f32 %v1381, %v546
      %v1385 = vadd.f32 %v1382, 1e-12
      %v1386 = vadd.f32 %v1383, 1e-12
      %v1387 = vadd.f32 %v1384, 1e-12
      %v1388 = vrsqrt.pop %v1385
      %v1389 = vmul.f32 %v1388, %v1385
      %v1390 = vmul.f32 %v1389, %v1388
      %v1391 = vmul.f32 0.5, %v1390
      %v1392 = vsub.f32 1.5, %v1391
      %v1393 = vmul.f32 %v1388, %v1392
      %vm1394 = vweird.f32 %v1385
      %vm1395 = vweird.f32 %v1388
      %vm1396 = vmor %vm1394, %vm1395
      %v1397 = vsel %vm1396, %v1388, %v1393
      %v1398 = vrsqrt.pop %v1386
      %v1399 = vmul.f32 %v1398, %v1386
      %v1400 = vmul.f32 %v1399, %v1398
      %v1401 = vmul.f32 0.5, %v1400
      %v1402 = vsub.f32 1.5, %v1401
      %v1403 = vmul.f32 %v1398, %v1402
      %vm1404 = vweird.f32 %v1386
      %vm1405 = vweird.f32 %v1398
      %vm1406 = vmor %vm1404, %vm1405
      %v1407 = vsel %vm1406, %v1398, %v1403
      %v1408 = vrsqrt.pop %v1387
      %v1409 = vmul.f32 %v1408, %v1387
      %v1410 = vmul.f32 %v1409, %v1408
      %v1411 = vmul.f32 0.5, %v1410
      %v1412 = vsub.f32 1.5, %v1411
      %v1413 = vmul.f32 %v1408, %v1412
      %vm1414 = vweird.f32 %v1387
      %vm1415 = vweird.f32 %v1408
      %vm1416 = vmor %vm1414, %vm1415
      %v1417 = vsel %vm1416, %v1408, %v1413
      %v1418 = vmul.f32 %v1367, %v1397
      %v1419 = vmul.f32 %v1368, %v1407
      %v1420 = vmul.f32 %v1369, %v1417
      %v1422 = vperm.slane %v1353, 0
      %v1424 = vmul.f32 %v1418, %v1422
      %v1425 = vmul.f32 %v1419, %v1422
      %v1426 = vmul.f32 %v1420, %v1422
      %v1428 = vperm.slane %v1354, 0
      %v1430 = vadd.f32 %v1424, %v1428
      %v1431 = vadd.f32 %v1425, %v1428
      %v1432 = vadd.f32 %v1426, %v1428
      %v1433 = vld [vmem:[%s6] sm:$0xff]
      %v1434 = vld [vmem:[%s6 + $0x8] sm:$0xff]
      %v1435 = vld [vmem:[%s6 + $0x10] sm:$0xff]
      %v1436 = vld [vmem:[%s6 + $0x18] sm:$0xff]
      %v1437 = vld [vmem:[%s7] sm:$0x1]
      %v1439 = vperm.slane %v1437, 0
      %v1442 = vsel %vm530, %v1430, 0
      %v1445 = vsel %vm530, %v1431, 0
      %v1448 = vsel %vm530, %v1432, 0
      %1450 = vmatpush.msra.mxu0 0.0
      %1451 = vmatpush.msra.mxu0 0.0
      %1452 = vmatpush.msra.mxu0 0.0
      %1453 = vmatpush.msra.mxu0 0.0
      %1454 = vmatpush.msra.mxu0 0.0
      %1455 = vmatpush.msra.mxu0 0.0
      %1456 = vmatpush.msra.mxu0 0.0
      %1457 = vmatpush.msra.mxu0 0.0
      %1458 = vmatpush.msra.mxu0 0.0
      %1459 = vmatpush.msra.mxu0 0.0
      %1460 = vmatpush.msra.mxu0 0.0
      %1461 = vmatpush.msra.mxu0 0.0
      %1462 = vmatpush.msra.mxu0 %v1436
      %1463 = vmatpush.msra.mxu0 %v1435
      %1464 = vmatpush.msra.mxu0 %v1434
      %1465 = vmatpush.msra.mxu0 %v1433
      %1466 = vmatmul.f32.gmra.mxu0 %v1442
      %v1467 = vpop.f32.mrf.mxu0
      %v1468 = vadd.f32 %v1439, %v1467
      %1469 = vmatmul.f32.gmra.mxu0 %v1445
      %v1470 = vpop.f32.mrf.mxu0
      %v1471 = vadd.f32 %v1439, %v1470
      %1472 = vmatmul.f32.gmra.mxu0 %v1448
      %v1473 = vpop.f32.mrf.mxu0
      %v1474 = vadd.f32 %v1439, %v1473
      %1475 = vdwg.mxu0
      %v1476 = vmul.f32 %v1468, %v1468
      %v1477 = vmul.f32 %v1471, %v1471
      %v1478 = vmul.f32 %v1474, %v1474
      %v1479 = vmul.f32 %v1468, %v1476
      %v1480 = vmul.f32 %v1471, %v1477
      %v1481 = vmul.f32 %v1474, %v1478
      %v1482 = vmul.f32 %v1479, 0.044715
      %v1483 = vmul.f32 %v1480, 0.044715
      %v1484 = vmul.f32 %v1481, 0.044715
      %v1485 = vadd.f32 %v1468, %v1482
      %v1486 = vadd.f32 %v1471, %v1483
      %v1487 = vadd.f32 %v1474, %v1484
      %v1488 = vmul.f32 %v1485, 0.7978846
      %v1489 = vmul.f32 %v1486, 0.7978846
      %v1490 = vmul.f32 %v1487, 0.7978846
      %v1491 = vtanh.pop %v1488
      %v1492 = vtanh.pop %v1489
      %v1493 = vtanh.pop %v1490
      %v1494 = vadd.f32 %v1491, 1.0
      %v1495 = vadd.f32 %v1492, 1.0
      %v1496 = vadd.f32 %v1493, 1.0
      %v1497 = vmul.f32 %v1494, 0.5
      %v1498 = vmul.f32 %v1495, 0.5
      %v1499 = vmul.f32 %v1496, 0.5
      %v1500 = vmul.f32 %v1468, %v1497
      %v1501 = vmul.f32 %v1471, %v1498
      %v1502 = vmul.f32 %v1474, %v1499
      %v1503 = vld [vmem:[%s8] sm:$0xff]
      %v1504 = vld [vmem:[%s8 + $0x8] sm:$0xff]
      %v1505 = vld [vmem:[%s8 + $0x10] sm:$0xff]
      %v1506 = vld [vmem:[%s8 + $0x18] sm:$0xff]
      %v1507 = vld [vmem:[%s8 + $0x20] sm:$0xff]
      %v1508 = vld [vmem:[%s8 + $0x28] sm:$0xff]
      %v1509 = vld [vmem:[%s8 + $0x30] sm:$0xff]
      %v1510 = vld [vmem:[%s8 + $0x38] sm:$0xff]
      %v1511 = vld [vmem:[%s9] sm:$0x1]
      %v1513 = vperm.slane %v1511, 0
      %vm1515 = vcmask 523264
      %v1517 = vsel %vm1515, %v1500, 0
      %v1520 = vsel %vm1515, %v1501, 0
      %v1523 = vsel %vm1515, %v1502, 0
      %1525 = vmatpush.msra.mxu0 0.0
      %1526 = vmatpush.msra.mxu0 0.0
      %1527 = vmatpush.msra.mxu0 0.0
      %1528 = vmatpush.msra.mxu0 0.0
      %1529 = vmatpush.msra.mxu0 0.0
      %1530 = vmatpush.msra.mxu0 0.0
      %1531 = vmatpush.msra.mxu0 0.0
      %1532 = vmatpush.msra.mxu0 0.0
      %1533 = vmatpush.msra.mxu0 %v1510
      %1534 = vmatpush.msra.mxu0 %v1509
      %1535 = vmatpush.msra.mxu0 %v1508
      %1536 = vmatpush.msra.mxu0 %v1507
      %1537 = vmatpush.msra.mxu0 %v1506
      %1538 = vmatpush.msra.mxu0 %v1505
      %1539 = vmatpush.msra.mxu0 %v1504
      %1540 = vmatpush.msra.mxu0 %v1503
      %1541 = vmatmul.f32.gmra.mxu0 %v1517
      %v1542 = vpop.f32.mrf.mxu0
      %v1543 = vadd.f32 %v1513, %v1542
      %1544 = vmatmul.f32.gmra.mxu0 %v1520
      %v1545 = vpop.f32.mrf.mxu0
      %v1546 = vadd.f32 %v1513, %v1545
      %1547 = vmatmul.f32.gmra.mxu0 %v1523
      %v1548 = vpop.f32.mrf.mxu0
      %v1549 = vadd.f32 %v1513, %v1548
      %1550 = vdwg.mxu0
      %v1551 = vadd.f32 %v1350, %v1543
      %v1552 = vadd.f32 %v1351, %v1546
      %v1553 = vadd.f32 %v1352, %v1549
      %1554 = vst.msk [vmem:[%s523] sm:$0xff] %vm530, %v1551
      %1555 = vst.msk [vmem:[%s523 + $0x8] sm:$0xff] %vm530, %v1552
      %1556 = vst.msk [vmem:[%s523 + $0x10] sm:$0xff] %vm530, %v1553
      %s1557 = smul.u32 3, %s27
      %p1558 = scmp.lt.s32.totalorder %s1557, 5
      %s1559 = scalar_select %p1558, %s1557, 5
      %s1560 = smul.addr %s1559, 8
      %s1561 = scalar_lea.vmem %s16, %s1560
      // Predicated region
      $region85: #{flip_model_forward.6} parent=83 // pred_check
        %p1562 = pneg %p386
      $region86: #{flip_model_forward.6} parent=83 // pred_check_branch
        %1564 = sbr.rel (%p1562) target = $region88
      $region87: #{flip_model_forward.6} parent=83 // pred_region
        %s1565 = smul.u32 3, %s27
      $region88: #{flip_model_forward.6} parent=83 // pred_fallthru
        _
    $region84: #{flip_model_forward.6} parent=5 // pred_fallthru
      _
    %p1566 = scmp.le.s32.totalorder 2, %s22
    // Predicated region
    $region89: #{flip_model_forward.6} parent=5 // pred_check
      %p1567 = pneg %p1566
    $region90: #{flip_model_forward.6} parent=5 // pred_check_branch
      %1569 = sbr.rel (%p1567) target = $region92
    $region91: #{flip_model_forward.6} parent=5 // pred_region
      %s1570 = ssub.s32 %s22, 2
      // Predicated region
      $region93: #{flip_model_forward.6} parent=91 // pred_check
        %p1571 = pneg %p392
      $region94: #{flip_model_forward.6} parent=91 // pred_check_branch
        %1573 = sbr.rel (%p1571) target = $region96
      $region95: #{flip_model_forward.6} parent=91 // pred_region
        %s1574 = smul.u32 3, %s28
        %p1575 = scmp.lt.s32.totalorder %s1574, 5
        %s1576 = scalar_select %p1575, %s1574, 5
        %s1577 = smul.addr %s1576, 8
        %s1578 = scalar_lea.vmem %s16, %s1577
      $region96: #{flip_model_forward.6} parent=91 // pred_fallthru
        _
    $region92: #{flip_model_forward.6} parent=5 // pred_fallthru
      _
  $region6: #{flip_model_forward.6} parent=0 // loop_footer
    %s26 = sadd.s32 1, %s22
  $region7: #{flip_model_forward.6} parent=0 // loop_footer_branch
    %21 = sbr.rel target = $region3
  $region8: #{flip_model_forward.6} parent=0 // loop_exit
    _

// kernel: flip_model_forward.7
$region0: #{flip_model_forward.7}
  #allocation0 [shape = 'u32[]', space=smem, size = 0x4, offset = 0x4, fixed_abs, tag = 'smem constant byte address 0x4 - core index']
  #allocation1 [shape = 'u32[72,128]{1,0:T(1,128)}', space=vmem, size = 0x9000, scoped, tag = 'internal scratch']
  %s0 = inlined_call_operand.vmem [shape: f32[48,32], index: 0, kind: input, shape index: {}]
  %s1 = inlined_call_operand.vmem [shape: f32[24,24], index: 1, kind: input, shape index: {}]
  %s2 = inlined_call_operand.vmem [shape: f32[32,96], index: 2, kind: input, shape index: {}]
  %s3 = inlined_call_operand.vmem [shape: f32[1,96], index: 3, kind: input, shape index: {}]
  %s4 = inlined_call_operand.vmem [shape: f32[32,32], index: 4, kind: input, shape index: {}]
  %s5 = inlined_call_operand.vmem [shape: f32[1,32], index: 5, kind: input, shape index: {}]
  %s6 = inlined_call_operand.vmem [shape: f32[32,64], index: 6, kind: input, shape index: {}]
  %s7 = inlined_call_operand.vmem [shape: f32[1,64], index: 7, kind: input, shape index: {}]
  %s8 = inlined_call_operand.vmem [shape: f32[64,32], index: 8, kind: input, shape index: {}]
  %s9 = inlined_call_operand.vmem [shape: f32[1,32], index: 9, kind: input, shape index: {}]
  %s10 = inlined_call_operand.vmem [shape: f32[1,32], index: 10, kind: input, shape index: {}]
  %s11 = inlined_call_operand.vmem [shape: f32[1,32], index: 11, kind: input, shape index: {}]
  %s12 = inlined_call_operand.vmem [shape: f32[1,32], index: 12, kind: input, shape index: {}]
  %s13 = inlined_call_operand.vmem [shape: f32[1,32], index: 13, kind: input, shape index: {}]
  %s14 = inlined_call_operand.vmem [shape: f32[1,32], index: 14, kind: input, shape index: {}]
  %s15 = inlined_call_operand.vmem [shape: f32[1,32], index: 15, kind: input, shape index: {}]
  %s16 = inlined_call_operand.vmem [shape: f32[48,32], index: 16, kind: output, shape index: {}]
  %s17 = sld [smem:[#allocation0]]
  $region97: #{flip_model_forward.7} parent=0
    _
  %s19 = ssub.s32 1, %s17
  %s20 = scalar_select 0, %s19, %s17
  loop: start=0, step=1, limit=4
  $region2: #{flip_model_forward.7} parent=0 // loop_pre_header
    _
  $region3: #{flip_model_forward.7} parent=0 // loop_header
    %s22 = sphi 0, %s26
    %p23 = scmp.ge.s32.totalorder %s22, 4
    %s32 = sphi 0, %s34
    %s35 = sphi 0, %s32
    %s36 = sphi 0, %s35
    %s52 = sphi 0, %s36
    %s56 = sphi 0, %s56
    %s58 = sphi 0, %s56
    %s59 = sphi 0, %s58
    %s73 = sphi 0, %s59
    %s77 = sphi 0, %s77
    %s79 = sphi 0, %s77
    %s80 = sphi 0, %s79
    %s94 = sphi 0, %s80
    %s98 = sphi 0, %s98
    %s100 = sphi 0, %s98
    %s101 = sphi 0, %s100
    %s115 = sphi 0, %s101
    %s119 = sphi 0, %s119
    %s121 = sphi 0, %s119
    %s122 = sphi 0, %s121
    %s136 = sphi 0, %s122
    %s140 = sphi 0, %s140
    %s142 = sphi 0, %s140
    %s143 = sphi 0, %s142
    %s157 = sphi 0, %s143
    %s161 = sphi 0, %s161
    %s163 = sphi 0, %s161
    %s164 = sphi 0, %s163
    %s178 = sphi 0, %s164
    %s182 = sphi 0, %s182
    %s184 = sphi 0, %s182
    %s185 = sphi 0, %s184
    %s199 = sphi 0, %s185
    %s203 = sphi 0, %s203
    %s205 = sphi 0, %s203
    %s206 = sphi 0, %s205
    %s220 = sphi 0, %s206
    %s224 = sphi 0, %s224
    %s226 = sphi 0, %s224
    %s227 = sphi 0, %s226
    %s241 = sphi 0, %s227
    %s245 = sphi 0, %s245
    %s247 = sphi 0, %s245
    %s248 = sphi 0, %s247
    %s262 = sphi 0, %s248
    %s266 = sphi 0, %s266
    %s268 = sphi 0, %s266
    %s269 = sphi 0, %s268
    %s283 = sphi 0, %s269
    %s287 = sphi 0, %s287
    %s289 = sphi 0, %s287
    %s290 = sphi 0, %s289
    %s304 = sphi 0, %s290
    %s308 = sphi 0, %s308
    %s310 = sphi 0, %s308
    %s311 = sphi 0, %s310
    %s325 = sphi 0, %s311
    %s329 = sphi 0, %s329
    %s331 = sphi 0, %s329
    %s332 = sphi 0, %s331
    %s346 = sphi 0, %s332
    %s350 = sphi 0, %s350
    %s352 = sphi 0, %s350
    %s353 = sphi 0, %s352
    %s367 = sphi 0, %s353
    %s373 = sphi 0, %s375
    %s376 = sphi 0, %s373
    %s377 = sphi 0, %s376
    %s393 = sphi 0, %s377
  $region4: #{flip_model_forward.7} parent=0 // loop_header_branch
    %25 = sbr.rel (%p23) target = $region8
  $region5: #{flip_model_forward.7} parent=0 // loop_body
    %s27 = ssub.s32 %s22, 1
    %s28 = ssub.s32 %s22, 2
    %s29 = sadd.s32 %s22, 1
    %s30 = ssub.s32 %s22, %s29
    %p31 = scmp.eq.s32.totalorder %s30, 0
    %s33 = sadd.s32 %s32, 1
    %s34 = scalar_select %p31, %s32, %s33
    %p37 = pneg %p31
    %p38 = scmp.eq.s32.totalorder %s22, 1
    %p39 = por %p37, %p38
    %p40 = scmp.ne.s32.totalorder %s32, %s35
    %p41 = scmp.eq.s32.totalorder %s22, 0
    %p42 = por %p40, %p41
    %p43 = scmp.ne.s32.totalorder %s32, %s35
    %p44 = scmp.eq.s32.totalorder %s27, 1
    %p45 = por %p43, %p44
    %p46 = scmp.ne.s32.totalorder %s35, %s36
    %p47 = scmp.eq.s32.totalorder %s27, 0
    %p48 = por %p46, %p47
    %p49 = scmp.ne.s32.totalorder %s35, %s36
    %p50 = scmp.eq.s32.totalorder %s28, 1
    %p51 = por %p49, %p50
    %p53 = scmp.ne.s32.totalorder %s36, %s52
    %p54 = scmp.eq.s32.totalorder %s28, 0
    %p55 = por %p53, %p54
    %s57 = sadd.s32 %s56, 1
    %p60 = scmp.eq.s32.totalorder %s22, 1
    %p61 = scmp.ne.s32.totalorder %s56, %s58
    %p62 = scmp.eq.s32.totalorder %s22, 0
    %p63 = por %p61, %p62
    %p64 = scmp.ne.s32.totalorder %s56, %s58
    %p65 = scmp.eq.s32.totalorder %s27, 1
    %p66 = por %p64, %p65
    %p67 = scmp.ne.s32.totalorder %s58, %s59
    %p68 = scmp.eq.s32.totalorder %s27, 0
    %p69 = por %p67, %p68
    %p70 = scmp.ne.s32.totalorder %s58, %s59
    %p71 = scmp.eq.s32.totalorder %s28, 1
    %p72 = por %p70, %p71
    %p74 = scmp.ne.s32.totalorder %s59, %s73
    %p75 = scmp.eq.s32.totalorder %s28, 0
    %p76 = por %p74, %p75
    %s78 = sadd.s32 %s77, 1
    %p81 = scmp.eq.s32.totalorder %s22, 1
    %p82 = scmp.ne.s32.totalorder %s77, %s79
    %p83 = scmp.eq.s32.totalorder %s22, 0
    %p84 = por %p82, %p83
    %p85 = scmp.ne.s32.totalorder %s77, %s79
    %p86 = scmp.eq.s32.totalorder %s27, 1
    %p87 = por %p85, %p86
    %p88 = scmp.ne.s32.totalorder %s79, %s80
    %p89 = scmp.eq.s32.totalorder %s27, 0
    %p90 = por %p88, %p89
    %p91 = scmp.ne.s32.totalorder %s79, %s80
    %p92 = scmp.eq.s32.totalorder %s28, 1
    %p93 = por %p91, %p92
    %p95 = scmp.ne.s32.totalorder %s80, %s94
    %p96 = scmp.eq.s32.totalorder %s28, 0
    %p97 = por %p95, %p96
    %s99 = sadd.s32 %s98, 1
    %p102 = scmp.eq.s32.totalorder %s22, 1
    %p103 = scmp.ne.s32.totalorder %s98, %s100
    %p104 = scmp.eq.s32.totalorder %s22, 0
    %p105 = por %p103, %p104
    %p106 = scmp.ne.s32.totalorder %s98, %s100
    %p107 = scmp.eq.s32.totalorder %s27, 1
    %p108 = por %p106, %p107
    %p109 = scmp.ne.s32.totalorder %s100, %s101
    %p110 = scmp.eq.s32.totalorder %s27, 0
    %p111 = por %p109, %p110
    %p112 = scmp.ne.s32.totalorder %s100, %s101
    %p113 = scmp.eq.s32.totalorder %s28, 1
    %p114 = por %p112, %p113
    %p116 = scmp.ne.s32.totalorder %s101, %s115
    %p117 = scmp.eq.s32.totalorder %s28, 0
    %p118 = por %p116, %p117
    %s120 = sadd.s32 %s119, 1
    %p123 = scmp.eq.s32.totalorder %s22, 1
    %p124 = scmp.ne.s32.totalorder %s119, %s121
    %p125 = scmp.eq.s32.totalorder %s22, 0
    %p126 = por %p124, %p125
    %p127 = scmp.ne.s32.totalorder %s119, %s121
    %p128 = scmp.eq.s32.totalorder %s27, 1
    %p129 = por %p127, %p128
    %p130 = scmp.ne.s32.totalorder %s121, %s122
    %p131 = scmp.eq.s32.totalorder %s27, 0
    %p132 = por %p130, %p131
    %p133 = scmp.ne.s32.totalorder %s121, %s122
    %p134 = scmp.eq.s32.totalorder %s28, 1
    %p135 = por %p133, %p134
    %p137 = scmp.ne.s32.totalorder %s122, %s136
    %p138 = scmp.eq.s32.totalorder %s28, 0
    %p139 = por %p137, %p138
    %s141 = sadd.s32 %s140, 1
    %p144 = scmp.eq.s32.totalorder %s22, 1
    %p145 = scmp.ne.s32.totalorder %s140, %s142
    %p146 = scmp.eq.s32.totalorder %s22, 0
    %p147 = por %p145, %p146
    %p148 = scmp.ne.s32.totalorder %s140, %s142
    %p149 = scmp.eq.s32.totalorder %s27, 1
    %p150 = por %p148, %p149
    %p151 = scmp.ne.s32.totalorder %s142, %s143
    %p152 = scmp.eq.s32.totalorder %s27, 0
    %p153 = por %p151, %p152
    %p154 = scmp.ne.s32.totalorder %s142, %s143
    %p155 = scmp.eq.s32.totalorder %s28, 1
    %p156 = por %p154, %p155
    %p158 = scmp.ne.s32.totalorder %s143, %s157
    %p159 = scmp.eq.s32.totalorder %s28, 0
    %p160 = por %p158, %p159
    %s162 = sadd.s32 %s161, 1
    %p165 = scmp.eq.s32.totalorder %s22, 1
    %p166 = scmp.ne.s32.totalorder %s161, %s163
    %p167 = scmp.eq.s32.totalorder %s22, 0
    %p168 = por %p166, %p167
    %p169 = scmp.ne.s32.totalorder %s161, %s163
    %p170 = scmp.eq.s32.totalorder %s27, 1
    %p171 = por %p169, %p170
    %p172 = scmp.ne.s32.totalorder %s163, %s164
    %p173 = scmp.eq.s32.totalorder %s27, 0
    %p174 = por %p172, %p173
    %p175 = scmp.ne.s32.totalorder %s163, %s164
    %p176 = scmp.eq.s32.totalorder %s28, 1
    %p177 = por %p175, %p176
    %p179 = scmp.ne.s32.totalorder %s164, %s178
    %p180 = scmp.eq.s32.totalorder %s28, 0
    %p181 = por %p179, %p180
    %s183 = sadd.s32 %s182, 1
    %p186 = scmp.eq.s32.totalorder %s22, 1
    %p187 = scmp.ne.s32.totalorder %s182, %s184
    %p188 = scmp.eq.s32.totalorder %s22, 0
    %p189 = por %p187, %p188
    %p190 = scmp.ne.s32.totalorder %s182, %s184
    %p191 = scmp.eq.s32.totalorder %s27, 1
    %p192 = por %p190, %p191
    %p193 = scmp.ne.s32.totalorder %s184, %s185
    %p194 = scmp.eq.s32.totalorder %s27, 0
    %p195 = por %p193, %p194
    %p196 = scmp.ne.s32.totalorder %s184, %s185
    %p197 = scmp.eq.s32.totalorder %s28, 1
    %p198 = por %p196, %p197
    %p200 = scmp.ne.s32.totalorder %s185, %s199
    %p201 = scmp.eq.s32.totalorder %s28, 0
    %p202 = por %p200, %p201
    %s204 = sadd.s32 %s203, 1
    %p207 = scmp.eq.s32.totalorder %s22, 1
    %p208 = scmp.ne.s32.totalorder %s203, %s205
    %p209 = scmp.eq.s32.totalorder %s22, 0
    %p210 = por %p208, %p209
    %p211 = scmp.ne.s32.totalorder %s203, %s205
    %p212 = scmp.eq.s32.totalorder %s27, 1
    %p213 = por %p211, %p212
    %p214 = scmp.ne.s32.totalorder %s205, %s206
    %p215 = scmp.eq.s32.totalorder %s27, 0
    %p216 = por %p214, %p215
    %p217 = scmp.ne.s32.totalorder %s205, %s206
    %p218 = scmp.eq.s32.totalorder %s28, 1
    %p219 = por %p217, %p218
    %p221 = scmp.ne.s32.totalorder %s206, %s220
    %p222 = scmp.eq.s32.totalorder %s28, 0
    %p223 = por %p221, %p222
    %s225 = sadd.s32 %s224, 1
    %p228 = scmp.eq.s32.totalorder %s22, 1
    %p229 = scmp.ne.s32.totalorder %s224, %s226
    %p230 = scmp.eq.s32.totalorder %s22, 0
    %p231 = por %p229, %p230
    %p232 = scmp.ne.s32.totalorder %s224, %s226
    %p233 = scmp.eq.s32.totalorder %s27, 1
    %p234 = por %p232, %p233
    %p235 = scmp.ne.s32.totalorder %s226, %s227
    %p236 = scmp.eq.s32.totalorder %s27, 0
    %p237 = por %p235, %p236
    %p238 = scmp.ne.s32.totalorder %s226, %s227
    %p239 = scmp.eq.s32.totalorder %s28, 1
    %p240 = por %p238, %p239
    %p242 = scmp.ne.s32.totalorder %s227, %s241
    %p243 = scmp.eq.s32.totalorder %s28, 0
    %p244 = por %p242, %p243
    %s246 = sadd.s32 %s245, 1
    %p249 = scmp.eq.s32.totalorder %s22, 1
    %p250 = scmp.ne.s32.totalorder %s245, %s247
    %p251 = scmp.eq.s32.totalorder %s22, 0
    %p252 = por %p250, %p251
    %p253 = scmp.ne.s32.totalorder %s245, %s247
    %p254 = scmp.eq.s32.totalorder %s27, 1
    %p255 = por %p253, %p254
    %p256 = scmp.ne.s32.totalorder %s247, %s248
    %p257 = scmp.eq.s32.totalorder %s27, 0
    %p258 = por %p256, %p257
    %p259 = scmp.ne.s32.totalorder %s247, %s248
    %p260 = scmp.eq.s32.totalorder %s28, 1
    %p261 = por %p259, %p260
    %p263 = scmp.ne.s32.totalorder %s248, %s262
    %p264 = scmp.eq.s32.totalorder %s28, 0
    %p265 = por %p263, %p264
    %s267 = sadd.s32 %s266, 1
    %p270 = scmp.eq.s32.totalorder %s22, 1
    %p271 = scmp.ne.s32.totalorder %s266, %s268
    %p272 = scmp.eq.s32.totalorder %s22, 0
    %p273 = por %p271, %p272
    %p274 = scmp.ne.s32.totalorder %s266, %s268
    %p275 = scmp.eq.s32.totalorder %s27, 1
    %p276 = por %p274, %p275
    %p277 = scmp.ne.s32.totalorder %s268, %s269
    %p278 = scmp.eq.s32.totalorder %s27, 0
    %p279 = por %p277, %p278
    %p280 = scmp.ne.s32.totalorder %s268, %s269
    %p281 = scmp.eq.s32.totalorder %s28, 1
    %p282 = por %p280, %p281
    %p284 = scmp.ne.s32.totalorder %s269, %s283
    %p285 = scmp.eq.s32.totalorder %s28, 0
    %p286 = por %p284, %p285
    %s288 = sadd.s32 %s287, 1
    %p291 = scmp.eq.s32.totalorder %s22, 1
    %p292 = scmp.ne.s32.totalorder %s287, %s289
    %p293 = scmp.eq.s32.totalorder %s22, 0
    %p294 = por %p292, %p293
    %p295 = scmp.ne.s32.totalorder %s287, %s289
    %p296 = scmp.eq.s32.totalorder %s27, 1
    %p297 = por %p295, %p296
    %p298 = scmp.ne.s32.totalorder %s289, %s290
    %p299 = scmp.eq.s32.totalorder %s27, 0
    %p300 = por %p298, %p299
    %p301 = scmp.ne.s32.totalorder %s289, %s290
    %p302 = scmp.eq.s32.totalorder %s28, 1
    %p303 = por %p301, %p302
    %p305 = scmp.ne.s32.totalorder %s290, %s304
    %p306 = scmp.eq.s32.totalorder %s28, 0
    %p307 = por %p305, %p306
    %s309 = sadd.s32 %s308, 1
    %p312 = scmp.eq.s32.totalorder %s22, 1
    %p313 = scmp.ne.s32.totalorder %s308, %s310
    %p314 = scmp.eq.s32.totalorder %s22, 0
    %p315 = por %p313, %p314
    %p316 = scmp.ne.s32.totalorder %s308, %s310
    %p317 = scmp.eq.s32.totalorder %s27, 1
    %p318 = por %p316, %p317
    %p319 = scmp.ne.s32.totalorder %s310, %s311
    %p320 = scmp.eq.s32.totalorder %s27, 0
    %p321 = por %p319, %p320
    %p322 = scmp.ne.s32.totalorder %s310, %s311
    %p323 = scmp.eq.s32.totalorder %s28, 1
    %p324 = por %p322, %p323
    %p326 = scmp.ne.s32.totalorder %s311, %s325
    %p327 = scmp.eq.s32.totalorder %s28, 0
    %p328 = por %p326, %p327
    %s330 = sadd.s32 %s329, 1
    %p333 = scmp.eq.s32.totalorder %s22, 1
    %p334 = scmp.ne.s32.totalorder %s329, %s331
    %p335 = scmp.eq.s32.totalorder %s22, 0
    %p336 = por %p334, %p335
    %p337 = scmp.ne.s32.totalorder %s329, %s331
    %p338 = scmp.eq.s32.totalorder %s27, 1
    %p339 = por %p337, %p338
    %p340 = scmp.ne.s32.totalorder %s331, %s332
    %p341 = scmp.eq.s32.totalorder %s27, 0
    %p342 = por %p340, %p341
    %p343 = scmp.ne.s32.totalorder %s331, %s332
    %p344 = scmp.eq.s32.totalorder %s28, 1
    %p345 = por %p343, %p344
    %p347 = scmp.ne.s32.totalorder %s332, %s346
    %p348 = scmp.eq.s32.totalorder %s28, 0
    %p349 = por %p347, %p348
    %s351 = sadd.s32 %s350, 1
    %p354 = scmp.eq.s32.totalorder %s22, 1
    %p355 = scmp.ne.s32.totalorder %s350, %s352
    %p356 = scmp.eq.s32.totalorder %s22, 0
    %p357 = por %p355, %p356
    %p358 = scmp.ne.s32.totalorder %s350, %s352
    %p359 = scmp.eq.s32.totalorder %s27, 1
    %p360 = por %p358, %p359
    %p361 = scmp.ne.s32.totalorder %s352, %s353
    %p362 = scmp.eq.s32.totalorder %s27, 0
    %p363 = por %p361, %p362
    %p364 = scmp.ne.s32.totalorder %s352, %s353
    %p365 = scmp.eq.s32.totalorder %s28, 1
    %p366 = por %p364, %p365
    %p368 = scmp.ne.s32.totalorder %s353, %s367
    %p369 = scmp.eq.s32.totalorder %s28, 0
    %p370 = por %p368, %p369
    %s371 = ssub.s32 %s22, %s29
    %p372 = scmp.eq.s32.totalorder %s371, 0
    %s374 = sadd.s32 %s373, 1
    %s375 = scalar_select %p372, %s373, %s374
    %p378 = pneg %p372
    %p379 = scmp.eq.s32.totalorder %s22, 1
    %p380 = por %p378, %p379
    %p381 = scmp.ne.s32.totalorder %s373, %s376
    %p382 = scmp.eq.s32.totalorder %s22, 0
    %p383 = por %p381, %p382
    %p384 = scmp.ne.s32.totalorder %s373, %s376
    %p385 = scmp.eq.s32.totalorder %s27, 1
    %p386 = por %p384, %p385
    %p387 = scmp.ne.s32.totalorder %s376, %s377
    %p388 = scmp.eq.s32.totalorder %s27, 0
    %p389 = por %p387, %p388
    %p390 = scmp.ne.s32.totalorder %s376, %s377
    %p391 = scmp.eq.s32.totalorder %s28, 1
    %p392 = por %p390, %p391
    %p394 = scmp.ne.s32.totalorder %s377, %s393
    %p395 = scmp.eq.s32.totalorder %s28, 0
    %p396 = por %p394, %p395
    %p397 = scmp.le.s32.totalorder 1, %s22
    %p398 = scmp.lt.s32.totalorder %s22, 3
    %p399 = pnand %p397, %p398
    %p400 = pneg %p399
    // Predicated region
    $region9: #{flip_model_forward.7} parent=5 // pred_check
      _
    $region10: #{flip_model_forward.7} parent=5 // pred_check_branch
      %402 = sbr.rel (%p399) target = $region12
    $region11: #{flip_model_forward.7} parent=5 // pred_region
      %s403 = ssub.s32 %s22, 1
      // Predicated region
      $region13: #{flip_model_forward.7} parent=11 // pred_check
        %p404 = pneg %p69
      $region14: #{flip_model_forward.7} parent=11 // pred_check_branch
        %406 = sbr.rel (%p404) target = $region16
      $region15: #{flip_model_forward.7} parent=11 // pred_region
        _
      $region16: #{flip_model_forward.7} parent=11 // pred_fallthru
        _
      // Predicated region
      $region17: #{flip_model_forward.7} parent=11 // pred_check
        %p407 = pneg %p90
      $region18: #{flip_model_forward.7} parent=11 // pred_check_branch
        %409 = sbr.rel (%p407) target = $region20
      $region19: #{flip_model_forward.7} parent=11 // pred_region
        _
      $region20: #{flip_model_forward.7} parent=11 // pred_fallthru
        _
      // Predicated region
      $region21: #{flip_model_forward.7} parent=11 // pred_check
        %p410 = pneg %p111
      $region22: #{flip_model_forward.7} parent=11 // pred_check_branch
        %412 = sbr.rel (%p410) target = $region24
      $region23: #{flip_model_forward.7} parent=11 // pred_region
        _
      $region24: #{flip_model_forward.7} parent=11 // pred_fallthru
        _
      // Predicated region
      $region25: #{flip_model_forward.7} parent=11 // pred_check
        %p413 = pneg %p132
      $region26: #{flip_model_forward.7} parent=11 // pred_check_branch
        %415 = sbr.rel (%p413) target = $region28
      $region27: #{flip_model_forward.7} parent=11 // pred_region
        _
      $region28: #{flip_model_forward.7} parent=11 // pred_fallthru
        _
      // Predicated region
      $region29: #{flip_model_forward.7} parent=11 // pred_check
        %p416 = pneg %p153
      $region30: #{flip_model_forward.7} parent=11 // pred_check_branch
        %418 = sbr.rel (%p416) target = $region32
      $region31: #{flip_model_forward.7} parent=11 // pred_region
        _
      $region32: #{flip_model_forward.7} parent=11 // pred_fallthru
        _
      // Predicated region
      $region33: #{flip_model_forward.7} parent=11 // pred_check
        %p419 = pneg %p174
      $region34: #{flip_model_forward.7} parent=11 // pred_check_branch
        %421 = sbr.rel (%p419) target = $region36
      $region35: #{flip_model_forward.7} parent=11 // pred_region
        _
      $region36: #{flip_model_forward.7} parent=11 // pred_fallthru
        _
      // Predicated region
      $region37: #{flip_model_forward.7} parent=11 // pred_check
        %p422 = pneg %p195
      $region38: #{flip_model_forward.7} parent=11 // pred_check_branch
        %424 = sbr.rel (%p422) target = $region40
      $region39: #{flip_model_forward.7} parent=11 // pred_region
        _
      $region40: #{flip_model_forward.7} parent=11 // pred_fallthru
        _
      // Predicated region
      $region41: #{flip_model_forward.7} parent=11 // pred_check
        %p425 = pneg %p216
      $region42: #{flip_model_forward.7} parent=11 // pred_check_branch
        %427 = sbr.rel (%p425) target = $region44
      $region43: #{flip_model_forward.7} parent=11 // pred_region
        _
      $region44: #{flip_model_forward.7} parent=11 // pred_fallthru
        _
      // Predicated region
      $region45: #{flip_model_forward.7} parent=11 // pred_check
        %p428 = pneg %p237
      $region46: #{flip_model_forward.7} parent=11 // pred_check_branch
        %430 = sbr.rel (%p428) target = $region48
      $region47: #{flip_model_forward.7} parent=11 // pred_region
        _
      $region48: #{flip_model_forward.7} parent=11 // pred_fallthru
        _
      // Predicated region
      $region49: #{flip_model_forward.7} parent=11 // pred_check
        %p431 = pneg %p258
      $region50: #{flip_model_forward.7} parent=11 // pred_check_branch
        %433 = sbr.rel (%p431) target = $region52
      $region51: #{flip_model_forward.7} parent=11 // pred_region
        _
      $region52: #{flip_model_forward.7} parent=11 // pred_fallthru
        _
      // Predicated region
      $region53: #{flip_model_forward.7} parent=11 // pred_check
        %p434 = pneg %p279
      $region54: #{flip_model_forward.7} parent=11 // pred_check_branch
        %436 = sbr.rel (%p434) target = $region56
      $region55: #{flip_model_forward.7} parent=11 // pred_region
        _
      $region56: #{flip_model_forward.7} parent=11 // pred_fallthru
        _
      // Predicated region
      $region57: #{flip_model_forward.7} parent=11 // pred_check
        %p437 = pneg %p300
      $region58: #{flip_model_forward.7} parent=11 // pred_check_branch
        %439 = sbr.rel (%p437) target = $region60
      $region59: #{flip_model_forward.7} parent=11 // pred_region
        _
      $region60: #{flip_model_forward.7} parent=11 // pred_fallthru
        _
      // Predicated region
      $region61: #{flip_model_forward.7} parent=11 // pred_check
        %p440 = pneg %p321
      $region62: #{flip_model_forward.7} parent=11 // pred_check_branch
        %442 = sbr.rel (%p440) target = $region64
      $region63: #{flip_model_forward.7} parent=11 // pred_region
        _
      $region64: #{flip_model_forward.7} parent=11 // pred_fallthru
        _
      // Predicated region
      $region65: #{flip_model_forward.7} parent=11 // pred_check
        %p443 = pneg %p342
      $region66: #{flip_model_forward.7} parent=11 // pred_check_branch
        %445 = sbr.rel (%p443) target = $region68
      $region67: #{flip_model_forward.7} parent=11 // pred_region
        _
      $region68: #{flip_model_forward.7} parent=11 // pred_fallthru
        _
      // Predicated region
      $region69: #{flip_model_forward.7} parent=11 // pred_check
        %p446 = pneg %p363
      $region70: #{flip_model_forward.7} parent=11 // pred_check_branch
        %448 = sbr.rel (%p446) target = $region72
      $region71: #{flip_model_forward.7} parent=11 // pred_region
        _
      $region72: #{flip_model_forward.7} parent=11 // pred_fallthru
        _
    $region12: #{flip_model_forward.7} parent=5 // pred_fallthru
      _
    %p449 = scmp.lt.s32.totalorder %s22, 2
    // Predicated region
    $region73: #{flip_model_forward.7} parent=5 // pred_check
      %p450 = pneg %p449
    $region74: #{flip_model_forward.7} parent=5 // pred_check_branch
      %452 = sbr.rel (%p450) target = $region76
    $region75: #{flip_model_forward.7} parent=5 // pred_region
      // Predicated region
      $region77: #{flip_model_forward.7} parent=75 // pred_check
        %p453 = pneg %p42
      $region78: #{flip_model_forward.7} parent=75 // pred_check_branch
        %455 = sbr.rel (%p453) target = $region80
      $region79: #{flip_model_forward.7} parent=75 // pred_region
        %s456 = smul.u32 3, %s22
        %p457 = scmp.lt.s32.totalorder %s456, 5
        %s458 = scalar_select %p457, %s456, 5
        %s459 = smul.addr %s458, 8
        %s460 = scalar_lea.vmem %s0, %s459
        %s461 = smul.u32 3, %s22
      $region80: #{flip_model_forward.7} parent=75 // pred_fallthru
        _
    $region76: #{flip_model_forward.7} parent=5 // pred_fallthru
      _
    %p462 = scmp.le.s32.totalorder 1, %s22
    %p463 = scmp.lt.s32.totalorder %s22, 3
    %p464 = pnand %p462, %p463
    %p465 = pneg %p464
    // Predicated region
    $region81: #{flip_model_forward.7} parent=5 // pred_check
      _
    $region82: #{flip_model_forward.7} parent=5 // pred_check_branch
      %467 = sbr.rel (%p464) target = $region84
    $region83: #{flip_model_forward.7} parent=5 // pred_region
      %s468 = ssub.s32 %s22, 1
      %s469 = smul.u32 3, %s27
      %p470 = scmp.lt.s32.totalorder %s469, 5
      %s471 = scalar_select %p470, %s469, 5
      %s472 = smul.addr %s471, 8
      %s473 = scalar_lea.vmem %s0, %s472
      %p474 = pneg %p48
      %p475 = pneg %p45
      %p476 = pneg %p69
      %p477 = pneg %p66
      %p478 = pneg %p90
      %p479 = pneg %p87
      %p480 = pneg %p111
      %p481 = pneg %p108
      %p482 = pneg %p132
      %p483 = pneg %p129
      %p484 = pneg %p153
      %p485 = pneg %p150
      %p486 = pneg %p174
      %p487 = pneg %p171
      %p488 = pneg %p195
      %p489 = pneg %p192
      %p490 = pneg %p216
      %p491 = pneg %p213
      %p492 = pneg %p237
      %p493 = pneg %p234
      %p494 = pneg %p258
      %p495 = pneg %p255
      %p496 = pneg %p279
      %p497 = pneg %p276
      %p498 = pneg %p300
      %p499 = pneg %p297
      %p500 = pneg %p321
      %p501 = pneg %p318
      %p502 = pneg %p342
      %p503 = pneg %p339
      %p504 = pneg %p363
      %p505 = pneg %p360
      %p506 = pneg %p389
      %p507 = pneg %p386
      %s508 = smul.u32 3, %s27
      %p509 = scmp.lt.s32.totalorder %s508, 5
      %s510 = scalar_select %p509, %s508, 5
      %s511 = smul.addr %s510, 8
      %s512 = scalar_lea.vmem %s16, %s511
      %s513 = smul.u32 3, %s27
      %p514 = scmp.lt.s32.totalorder %s513, 5
      %s515 = scalar_select %p514, %s513, 5
      %s516 = smul.addr %s515, 8
      %s517 = scalar_lea.vmem %s0, %s516
      %s518 = smul.u32 3, %s27
      %s519 = smul.u32 3, %s27
      %p520 = scmp.lt.s32.totalorder %s519, 5
      %s521 = scalar_select %p520, %s519, 5
      %s522 = smul.addr %s521, 8
      %s523 = scalar_lea.vmem %s16, %s522
      %s524 = smul.u32 3, %s27
      %v525 = vld [vmem:[%s517] sm:$0xff]
      %v526 = vld [vmem:[%s517 + $0x8] sm:$0xff]
      %v527 = vld [vmem:[%s517 + $0x10] sm:$0xff]
      %v528 = vld [vmem:[%s10] sm:$0x1]
      %v529 = vld [vmem:[%s11] sm:$0x1]
      %vm530 = vcmask 261120
      %v531 = vsel %vm530, %v525, 0.0
      %532 = vadd.xlane.f32.xlu0 %v531
      %v533 = vpop.xlane.xlu0 %532
      %v534 = vsel %vm530, %v526, 0.0
      %535 = vadd.xlane.f32.xlu0 %v534
      %v536 = vpop.xlane.xlu0 %535
      %v537 = vsel %vm530, %v527, 0.0
      %538 = vadd.xlane.f32.xlu0 %v537
      %v539 = vpop.xlane.xlu0 %538
      %v540 = vrcp.pop 32.0
      %v541 = vmul.f32 32.0, %v540
      %v542 = vsub.f32 1.0, %v541
      %v543 = vmul.f32 %v540, %v542
      %v544 = vadd.f32 %v540, %v543
      %vm545 = vweird.f32 %v540
      %v546 = vsel %vm545, %v540, %v544
      %v547 = vmul.f32 %v533, %v546
      %v548 = vmul.f32 %v536, %v546
      %v549 = vmul.f32 %v539, %v546
      %v550 = vsub.f32 %v525, %v547
      %v551 = vsub.f32 %v526, %v548
      %v552 = vsub.f32 %v527, %v549
      %v553 = vmul.f32 %v550, %v550
      %v554 = vmul.f32 %v551, %v551
      %v555 = vmul.f32 %v552, %v552
      %v556 = vsel %vm530, %v553, 0.0
      %557 = vadd.xlane.f32.xlu0 %v556
      %v558 = vpop.xlane.xlu0 %557
      %v559 = vsel %vm530, %v554, 0.0
      %560 = vadd.xlane.f32.xlu0 %v559
      %v561 = vpop.xlane.xlu0 %560
      %v562 = vsel %vm530, %v555, 0.0
      %563 = vadd.xlane.f32.xlu0 %v562
      %v564 = vpop.xlane.xlu0 %563
      %v565 = vmul.f32 %v558, %v546
      %v566 = vmul.f32 %v561, %v546
      %v567 = vmul.f32 %v564, %v546
      %v568 = vadd.f32 %v565, 1e-12
      %v569 = vadd.f32 %v566, 1e-12
      %v570 = vadd.f32 %v567, 1e-12
      %v571 = vrsqrt.pop %v568
      %v572 = vmul.f32 %v571, %v568
      %v573 = vmul.f32 %v572, %v571
      %v574 = vmul.f32 0.5, %v573
      %v575 = vsub.f32 1.5, %v574
      %v576 = vmul.f32 %v571, %v575
      %vm577 = vweird.f32 %v568
      %vm578 = vweird.f32 %v571
      %vm579 = vmor %vm577, %vm578
      %v580 = vsel %vm579, %v571, %v576
      %v581 = vrsqrt.pop %v569
      %v582 = vmul.f32 %v581, %v569
      %v583 = vmul.f32 %v582, %v581
      %v584 = vmul.f32 0.5, %v583
      %v585 = vsub.f32 1.5, %v584
      %v586 = vmul.f32 %v581, %v585
      %vm587 = vweird.f32 %v569
      %vm588 = vweird.f32 %v581
      %vm589 = vmor %vm587, %vm588
      %v590 = vsel %vm589, %v581, %v586
      %v591 = vrsqrt.pop %v570
      %v592 = vmul.f32 %v591, %v570
      %v593 = vmul.f32 %v592, %v591
      %v594 = vmul.f32 0.5, %v593
      %v595 = vsub.f32 1.5, %v594
      %v596 = vmul.f32 %v591, %v595
      %vm597 = vweird.f32 %v570
      %vm598 = vweird.f32 %v591
      %vm599 = vmor %vm597, %vm598
      %v600 = vsel %vm599, %v591, %v596
      %v601 = vmul.f32 %v550, %v580
      %v602 = vmul.f32 %v551, %v590
      %v603 = vmul.f32 %v552, %v600
      %v605 = vperm.slane %v528, 0
      %v607 = vmul.f32 %v601, %v605
      %v608 = vmul.f32 %v602, %v605
      %v609 = vmul.f32 %v603, %v605
      %v611 = vperm.slane %v529, 0
      %v613 = vadd.f32 %v607, %v611
      %v614 = vadd.f32 %v608, %v611
      %v615 = vadd.f32 %v609, %v611
      %v616 = vld [vmem:[%s2] sm:$0xff]
      %v617 = vld [vmem:[%s2 + $0x8] sm:$0xff]
      %v618 = vld [vmem:[%s2 + $0x10] sm:$0xff]
      %v619 = vld [vmem:[%s2 + $0x18] sm:$0xff]
      %v620 = vld [vmem:[%s3] sm:$0x1]
      %v622 = vperm.slane %v620, 0
      %v625 = vsel %vm530, %v613, 0
      %v628 = vsel %vm530, %v614, 0
      %v631 = vsel %vm530, %v615, 0
      %633 = vmatpush.msra.mxu0 0.0
      %634 = vmatpush.msra.mxu0 0.0
      %635 = vmatpush.msra.mxu0 0.0
      %636 = vmatpush.msra.mxu0 0.0
      %637 = vmatpush.msra.mxu0 0.0
      %638 = vmatpush.msra.mxu0 0.0
      %639 = vmatpush.msra.mxu0 0.0
      %640 = vmatpush.msra.mxu0 0.0
      %641 = vmatpush.msra.mxu0 0.0
      %642 = vmatpush.msra.mxu0 0.0
      %643 = vmatpush.msra.mxu0 0.0
      %644 = vmatpush.msra.mxu0 0.0
      %645 = vmatpush.msra.mxu0 %v619
      %646 = vmatpush.msra.mxu0 %v618
      %647 = vmatpush.msra.mxu0 %v617
      %648 = vmatpush.msra.mxu0 %v616
      %649 = vmatmul.f32.gmra.mxu0 %v625
      %v650 = vpop.f32.mrf.mxu0
      %v651 = vadd.f32 %v622, %v650
      %652 = vmatmul.f32.gmra.mxu0 %v628
      %v653 = vpop.f32.mrf.mxu0
      %v654 = vadd.f32 %v622, %v653
      %655 = vmatmul.f32.gmra.mxu0 %v631
      %v656 = vpop.f32.mrf.mxu0
      %v657 = vadd.f32 %v622, %v656
      %658 = vdwg.mxu0
      %v659 = vld [vmem:[%s1] sm:$0xff]
      %v660 = vld [vmem:[%s1 + $0x8] sm:$0xff]
      %v661 = vld [vmem:[%s1 + $0x10] sm:$0xff]
      %v662 = vld [vmem:[%s4] sm:$0xff]
      %v663 = vld [vmem:[%s4 + $0x8] sm:$0xff]
      %v664 = vld [vmem:[%s4 + $0x10] sm:$0xff]
      %v665 = vld [vmem:[%s4 + $0x18] sm:$0xff]
      %669 = vrot.lane.b32.xlu0 %v651, 96
      %v670 = vpop.permute.xlu0 %669
      %671 = vrot.lane.b32.xlu0 %v654, 96
      %v672 = vpop.permute.xlu0 %671
      %673 = vrot.lane.b32.xlu0 %v657, 96
      %v674 = vpop.permute.xlu0 %673
      %vm675 = vcmask 64512
      %v676 = vsel %vm675, %v651, 0
      %v678 = vsel %vm675, %v654, 0
      %v680 = vsel %vm675, %v657, 0
      %v682 = vsel %vm675, %v670, 0
      %v684 = vsel %vm675, %v672, 0
      %v686 = vsel %vm675, %v674, 0
      %688 = vmatpush.xpose.msra.mxu0 0.0
      %689 = vmatpush.xpose.msra.mxu0 0.0
      %690 = vmatpush.xpose.msra.mxu0 0.0
      %691 = vmatpush.xpose.msra.mxu0 0.0
      %692 = vmatpush.xpose.msra.mxu0 0.0
      %693 = vmatpush.xpose.msra.mxu0 0.0
      %694 = vmatpush.xpose.msra.mxu0 0.0
      %695 = vmatpush.xpose.msra.mxu0 0.0
      %696 = vmatpush.xpose.msra.mxu0 0.0
      %697 = vmatpush.xpose.msra.mxu0 0.0
      %698 = vmatpush.xpose.msra.mxu0 0.0
      %699 = vmatpush.xpose.msra.mxu0 0.0
      %700 = vmatpush.xpose.msra.mxu0 0.0
      %701 = vmatpush.xpose.msra.mxu0 %v686
      %702 = vmatpush.xpose.msra.mxu0 %v684
      %703 = vmatpush.xpose.msra.mxu0 %v682
      %704 = vmatmul.f32.gmra.mxu0 %v676
      %v705 = vpop.f32.mrf.mxu0
      %v706 = vadd.f32 0.0, %v705
      %707 = vmatmul.f32.gmra.mxu0 %v678
      %v708 = vpop.f32.mrf.mxu0
      %v709 = vadd.f32 0.0, %v708
      %710 = vmatmul.f32.gmra.mxu0 %v680
      %v711 = vpop.f32.mrf.mxu0
      %v712 = vadd.f32 0.0, %v711
      %713 = vdwg.mxu0
      %v714 = vmul.f32 %v706, 0.35355338
      %v715 = vmul.f32 %v709, 0.35355338
      %v716 = vmul.f32 %v712, 0.35355338
      %v717 = vadd.f32 %v714, %v659
      %v718 = vadd.f32 %v715, %v660
      %v719 = vadd.f32 %v716, %v661
      %vm720 = vcmask 195584
      %v721 = vsel %vm720, %v717, -inf
      %722 = vmax.xlane.f32.xlu0 %v721
      %v723 = vpop.xlane.xlu0 %722
      %v724 = vsel %vm720, %v718, -inf
      %725 = vmax.xlane.f32.xlu0 %v724
      %v726 = vpop.xlane.xlu0 %725
      %v727 = vsel %vm720, %v719, -inf
      %728 = vmax.xlane.f32.xlu0 %v727
      %v729 = vpop.xlane.xlu0 %728
      %v730 = vsub.f32 %v717, %v723
      %v731 = vsub.f32 %v718, %v726
      %v732 = vsub.f32 %v719, %v729
      %v733 = vmul.f32 %v730, 1.442695
      %v734 = vpow.pop %v733
      %v735 = vmul.f32 %v731, 1.442695
      %v736 = vpow.pop %v735
      %v737 = vmul.f32 %v732, 1.442695
      %v738 = vpow.pop %v737
      %v739 = vsel %vm720, %v734, 0.0
      %740 = vadd.xlane.f32.xlu0 %v739
      %v741 = vpop.xlane.xlu0 %740
      %v742 = vsel %vm720, %v736, 0.0
      %743 = vadd.xlane.f32.xlu0 %v742
      %v744 = vpop.xlane.xlu0 %743
      %v745 = vsel %vm720, %v738, 0.0
      %746 = vadd.xlane.f32.xlu0 %v745
      %v747 = vpop.xlane.xlu0 %746
      %v748 = vrcp.pop %v741
      %v749 = vrcp.pop %v744
      %v750 = vrcp.pop %v747
      %v751 = vmul.f32 %v734, %v748
      %v752 = vmul.f32 %v736, %v749
      %v753 = vmul.f32 %v738, %v750
      %754 = vrot.lane.b32.xlu0 %v651, 64
      %v755 = vpop.permute.xlu0 %754
      %756 = vrot.lane.b32.xlu0 %v654, 64
      %v757 = vpop.permute.xlu0 %756
      %758 = vrot.lane.b32.xlu0 %v657, 64
      %v759 = vpop.permute.xlu0 %758
      %v764 = vsel %vm720, %v751, 0
      %v767 = vsel %vm720, %v752, 0
      %v770 = vsel %vm720, %v753, 0
      %772 = vmatpush.msra.mxu0 0.0
      %773 = vmatpush.msra.mxu0 0.0
      %774 = vmatpush.msra.mxu0 0.0
      %775 = vmatpush.msra.mxu0 0.0
      %776 = vmatpush.msra.mxu0 0.0
      %777 = vmatpush.msra.mxu0 0.0
      %778 = vmatpush.msra.mxu0 0.0
      %779 = vmatpush.msra.mxu0 0.0
      %780 = vmatpush.msra.mxu0 0.0
      %781 = vmatpush.msra.mxu0 0.0
      %782 = vmatpush.msra.mxu0 0.0
      %783 = vmatpush.msra.mxu0 0.0
      %784 = vmatpush.msra.mxu0 0.0
      %785 = vmatpush.msra.mxu0 %v759
      %786 = vmatpush.msra.mxu0 %v757
      %787 = vmatpush.msra.mxu0 %v755
      %788 = vmatmul.f32.gmra.mxu0 %v764
      %v789 = vpop.f32.mrf.mxu0
      %v790 = vadd.f32 0.0, %v789
      %791 = vmatmul.f32.gmra.mxu0 %v767
      %v792 = vpop.f32.mrf.mxu0
      %v793 = vadd.f32 0.0, %v792
      %794 = vmatmul.f32.gmra.mxu0 %v770
      %v795 = vpop.f32.mrf.mxu0
      %v796 = vadd.f32 0.0, %v795
      %797 = vdwg.mxu0
      %798 = vrot.lane.b32.xlu0 %v651, 120
      %v799 = vpop.permute.xlu0 %798
      %800 = vrot.lane.b32.xlu0 %v654, 120
      %v801 = vpop.permute.xlu0 %800
      %802 = vrot.lane.b32.xlu0 %v657, 120
      %v803 = vpop.permute.xlu0 %802
      %804 = vrot.lane.b32.xlu0 %v651, 88
      %v805 = vpop.permute.xlu0 %804
      %806 = vrot.lane.b32.xlu0 %v654, 88
      %v807 = vpop.permute.xlu0 %806
      %808 = vrot.lane.b32.xlu0 %v657, 88
      %v809 = vpop.permute.xlu0 %808
      %v810 = vsel %vm675, %v799, 0
      %v812 = vsel %vm675, %v801, 0
      %v814 = vsel %vm675, %v803, 0
      %v816 = vsel %vm675, %v805, 0
      %v818 = vsel %vm675, %v807, 0
      %v820 = vsel %vm675, %v809, 0
      %822 = vmatpush.xpose.msra.mxu0 0.0
      %823 = vmatpush.xpose.msra.mxu0 0.0
      %824 = vmatpush.xpose.msra.mxu0 0.0
      %825 = vmatpush.xpose.msra.mxu0 0.0
      %826 = vmatpush.xpose.msra.mxu0 0.0
      %827 = vmatpush.xpose.msra.mxu0 0.0
      %828 = vmatpush.xpose.msra.mxu0 0.0
      %829 = vmatpush.xpose.msra.mxu0 0.0
      %830 = vmatpush.xpose.msra.mxu0 0.0
      %831 = vmatpush.xpose.msra.mxu0 0.0
      %832 = vmatpush.xpose.msra.mxu0 0.0
      %833 = vmatpush.xpose.msra.mxu0 0.0
      %834 = vmatpush.xpose.msra.mxu0 0.0
      %835 = vmatpush.xpose.msra.mxu0 %v820
      %836 = vmatpush.xpose.msra.mxu0 %v818
      %837 = vmatpush.xpose.msra.mxu0 %v816
      %838 = vmatmul.f32.gmra.mxu0 %v810
      %v839 = vpop.f32.mrf.mxu0
      %v840 = vadd.f32 0.0, %v839
      %841 = vmatmul.f32.gmra.mxu0 %v812
      %v842 = vpop.f32.mrf.mxu0
      %v843 = vadd.f32 0.0, %v842
      %844 = vmatmul.f32.gmra.mxu0 %v814
      %v845 = vpop.f32.mrf.mxu0
      %v846 = vadd.f32 0.0, %v845
      %847 = vdwg.mxu0
      %v848 = vmul.f32 %v840, 0.35355338
      %v849 = vmul.f32 %v843, 0.35355338
      %v850 = vmul.f32 %v846, 0.35355338
      %v851 = vadd.f32 %v848, %v659
      %v852 = vadd.f32 %v849, %v660
      %v853 = vadd.f32 %v850, %v661
      %v854 = vsel %vm720, %v851, -inf
      %855 = vmax.xlane.f32.xlu0 %v854
      %v856 = vpop.xlane.xlu0 %855
      %v857 = vsel %vm720, %v852, -inf
      %858 = vmax.xlane.f32.xlu0 %v857
      %v859 = vpop.xlane.xlu0 %858
      %v860 = vsel %vm720, %v853, -inf
      %861 = vmax.xlane.f32.xlu0 %v860
      %v862 = vpop.xlane.xlu0 %861
      %v863 = vsub.f32 %v851, %v856
      %v864 = vsub.f32 %v852, %v859
      %v865 = vsub.f32 %v853, %v862
      %v866 = vmul.f32 %v863, 1.442695
      %v867 = vpow.pop %v866
      %v868 = vmul.f32 %v864, 1.442695
      %v869 = vpow.pop %v868
      %v870 = vmul.f32 %v865, 1.442695
      %v871 = vpow.pop %v870
      %v872 = vsel %vm720, %v867, 0.0
      %873 = vadd.xlane.f32.xlu0 %v872
      %v874 = vpop.xlane.xlu0 %873
      %v875 = vsel %vm720, %v869, 0.0
      %876 = vadd.xlane.f32.xlu0 %v875
      %v877 = vpop.xlane.xlu0 %876
      %v878 = vsel %vm720, %v871, 0.0
      %879 = vadd.xlane.f32.xlu0 %v878
      %v880 = vpop.xlane.xlu0 %879
      %v881 = vrcp.pop %v874
      %v882 = vrcp.pop %v877
      %v883 = vrcp.pop %v880
      %v884 = vmul.f32 %v867, %v881
      %v885 = vmul.f32 %v869, %v882
      %v886 = vmul.f32 %v871, %v883
      %887 = vrot.lane.b32.xlu0 %v651, 56
      %v888 = vpop.permute.xlu0 %887
      %889 = vrot.lane.b32.xlu0 %v654, 56
      %v890 = vpop.permute.xlu0 %889
      %891 = vrot.lane.b32.xlu0 %v657, 56
      %v892 = vpop.permute.xlu0 %891
      %v897 = vsel %vm720, %v884, 0
      %v900 = vsel %vm720, %v885, 0
      %v903 = vsel %vm720, %v886, 0
      %905 = vmatpush.msra.mxu0 0.0
      %906 = vmatpush.msra.mxu0 0.0
      %907 = vmatpush.msra.mxu0 0.0
      %908 = vmatpush.msra.mxu0 0.0
      %909 = vmatpush.msra.mxu0 0.0
      %910 = vmatpush.msra.mxu0 0.0
      %911 = vmatpush.msra.mxu0 0.0
      %912 = vmatpush.msra.mxu0 0.0
      %913 = vmatpush.msra.mxu0 0.0
      %914 = vmatpush.msra.mxu0 0.0
      %915 = vmatpush.msra.mxu0 0.0
      %916 = vmatpush.msra.mxu0 0.0
      %917 = vmatpush.msra.mxu0 0.0
      %918 = vmatpush.msra.mxu0 %v892
      %919 = vmatpush.msra.mxu0 %v890
      %920 = vmatpush.msra.mxu0 %v888
      %921 = vmatmul.f32.gmra.mxu0 %v897
      %v922 = vpop.f32.mrf.mxu0
      %v923 = vadd.f32 0.0, %v922
      %924 = vmatmul.f32.gmra.mxu0 %v900
      %v925 = vpop.f32.mrf.mxu0
      %v926 = vadd.f32 0.0, %v925
      %927 = vmatmul.f32.gmra.mxu0 %v903
      %v928 = vpop.f32.mrf.mxu0
      %v929 = vadd.f32 0.0, %v928
      %930 = vdwg.mxu0
      %v932 = vsel %vm675, %v923, 0
      %v935 = vsel %vm675, %v926, 0
      %v938 = vsel %vm675, %v929, 0
      %940 = vmatpush.msra.mxu0 0.0
      %941 = vmatpush.msra.mxu0 0.0
      %942 = vmatpush.msra.mxu0 0.0
      %943 = vmatpush.msra.mxu0 0.0
      %944 = vmatpush.msra.mxu0 0.0
      %945 = vmatpush.msra.mxu0 0.0
      %946 = vmatpush.msra.mxu0 0.0
      %947 = vmatpush.msra.mxu0 0.0
      %948 = vmatpush.msra.mxu0 0.0
      %949 = vmatpush.msra.mxu0 0.0
      %950 = vmatpush.msra.mxu0 0.0
      %951 = vmatpush.msra.mxu0 0.0
      %952 = vmatpush.msra.mxu0 0.0
      %953 = vmatpush.msra.mxu0 0.0
      %954 = vmatpush.msra.mxu0 0.0
      %955 = vmatpush.msra.mxu0 %v663
      %956 = vmatmul.f32.gmra.mxu0 %v932
      %v957 = vpop.f32.mrf.mxu0
      %v958 = vadd.f32 0.0, %v957
      %959 = vmatmul.f32.gmra.mxu0 %v935
      %v960 = vpop.f32.mrf.mxu0
      %v961 = vadd.f32 0.0, %v960
      %962 = vmatmul.f32.gmra.mxu0 %v938
      %v963 = vpop.f32.mrf.mxu0
      %v964 = vadd.f32 0.0, %v963
      %965 = vdwg.mxu0
      %v967 = vsel %vm675, %v790, 0
      %v970 = vsel %vm675, %v793, 0
      %v973 = vsel %vm675, %v796, 0
      %975 = vmatpush.msra.mxu0 0.0
      %976 = vmatpush.msra.mxu0 0.0
      %977 = vmatpush.msra.mxu0 0.0
      %978 = vmatpush.msra.mxu0 0.0
      %979 = vmatpush.msra.mxu0 0.0
      %980 = vmatpush.msra.mxu0 0.0
      %981 = vmatpush.msra.mxu0 0.0
      %982 = vmatpush.msra.mxu0 0.0
      %983 = vmatpush.msra.mxu0 0.0
      %984 = vmatpush.msra.mxu0 0.0
      %985 = vmatpush.msra.mxu0 0.0
      %986 = vmatpush.msra.mxu0 0.0
      %987 = vmatpush.msra.mxu0 0.0
      %988 = vmatpush.msra.mxu0 0.0
      %989 = vmatpush.msra.mxu0 0.0
      %990 = vmatpush.msra.mxu0 %v662
      %991 = vmatmul.f32.gmra.mxu0 %v967
      %v992 = vpop.f32.mrf.mxu0
      %v993 = vadd.f32 %v958, %v992
      %994 = vmatmul.f32.gmra.mxu0 %v970
      %v995 = vpop.f32.mrf.mxu0
      %v996 = vadd.f32 %v961, %v995
      %997 = vmatmul.f32.gmra.mxu0 %v973
      %v998 = vpop.f32.mrf.mxu0
      %v999 = vadd.f32 %v964, %v998
      %1000 = vdwg.mxu0
      %1001 = vrot.lane.b32.xlu0 %v651, 112
      %v1002 = vpop.permute.xlu0 %1001
      %1003 = vrot.lane.b32.xlu0 %v654, 112
      %v1004 = vpop.permute.xlu0 %1003
      %1005 = vrot.lane.b32.xlu0 %v657, 112
      %v1006 = vpop.permute.xlu0 %1005
      %1007 = vrot.lane.b32.xlu0 %v651, 80
      %v1008 = vpop.permute.xlu0 %1007
      %1009 = vrot.lane.b32.xlu0 %v654, 80
      %v1010 = vpop.permute.xlu0 %1009
      %1011 = vrot.lane.b32.xlu0 %v657, 80
      %v1012 = vpop.permute.xlu0 %1011
      %v1013 = vsel %vm675, %v1002, 0
      %v1015 = vsel %vm675, %v1004, 0
      %v1017 = vsel %vm675, %v1006, 0
      %v1019 = vsel %vm675, %v1008, 0
      %v1021 = vsel %vm675, %v1010, 0
      %v1023 = vsel %vm675, %v1012, 0
      %1025 = vmatpush.xpose.msra.mxu0 0.0
      %1026 = vmatpush.xpose.msra.mxu0 0.0
      %1027 = vmatpush.xpose.msra.mxu0 0.0
      %1028 = vmatpush.xpose.msra.mxu0 0.0
      %1029 = vmatpush.xpose.msra.mxu0 0.0
      %1030 = vmatpush.xpose.msra.mxu0 0.0
      %1031 = vmatpush.xpose.msra.mxu0 0.0
      %1032 = vmatpush.xpose.msra.mxu0 0.0
      %1033 = vmatpush.xpose.msra.mxu0 0.0
      %1034 = vmatpush.xpose.msra.mxu0 0.0
      %1035 = vmatpush.xpose.msra.mxu0 0.0
      %1036 = vmatpush.xpose.msra.mxu0 0.0
      %1037 = vmatpush.xpose.msra.mxu0 0.0
      %1038 = vmatpush.xpose.msra.mxu0 %v1023
      %1039 = vmatpush.xpose.msra.mxu0 %v1021
      %1040 = vmatpush.xpose.msra.mxu0 %v1019
      %1041 = vmatmul.f32.gmra.mxu0 %v1013
      %v1042 = vpop.f32.mrf.mxu0
      %v1043 = vadd.f32 0.0, %v1042
      %1044 = vmatmul.f32.gmra.mxu0 %v1015
      %v1045 = vpop.f32.mrf.mxu0
      %v1046 = vadd.f32 0.0, %v1045
      %1047 = vmatmul.f32.gmra.mxu0 %v1017
      %v1048 = vpop.f32.mrf.mxu0
      %v1049 = vadd.f32 0.0, %v1048
      %1050 = vdwg.mxu0
      %v1051 = vmul.f32 %v1043, 0.35355338
      %v1052 = vmul.f32 %v1046, 0.35355338
      %v1053 = vmul.f32 %v1049, 0.35355338
      %v1054 = vadd.f32 %v1051, %v659
      %v1055 = vadd.f32 %v1052, %v660
      %v1056 = vadd.f32 %v1053, %v661
      %v1057 = vsel %vm720, %v1054, -inf
      %1058 = vmax.xlane.f32.xlu0 %v1057
      %v1059 = vpop.xlane.xlu0 %1058
      %v1060 = vsel %vm720, %v1055, -inf
      %1061 = vmax.xlane.f32.xlu0 %v1060
      %v1062 = vpop.xlane.xlu0 %1061
      %v1063 = vsel %vm720, %v1056, -inf
      %1064 = vmax.xlane.f32.xlu0 %v1063
      %v1065 = vpop.xlane.xlu0 %1064
      %v1066 = vsub.f32 %v1054, %v1059
      %v1067 = vsub.f32 %v1055, %v1062
      %v1068 = vsub.f32 %v1056, %v1065
      %v1069 = vmul.f32 %v1066, 1.442695
      %v1070 = vpow.pop %v1069
      %v1071 = vmul.f32 %v1067, 1.442695
      %v1072 = vpow.pop %v1071
      %v1073 = vmul.f32 %v1068, 1.442695
      %v1074 = vpow.pop %v1073
      %v1075 = vsel %vm720, %v1070, 0.0
      %1076 = vadd.xlane.f32.xlu0 %v1075
      %v1077 = vpop.xlane.xlu0 %1076
      %v1078 = vsel %vm720, %v1072, 0.0
      %1079 = vadd.xlane.f32.xlu0 %v1078
      %v1080 = vpop.xlane.xlu0 %1079
      %v1081 = vsel %vm720, %v1074, 0.0
      %1082 = vadd.xlane.f32.xlu0 %v1081
      %v1083 = vpop.xlane.xlu0 %1082
      %v1084 = vrcp.pop %v1077
      %v1085 = vrcp.pop %v1080
      %v1086 = vrcp.pop %v1083
      %v1087 = vmul.f32 %v1070, %v1084
      %v1088 = vmul.f32 %v1072, %v1085
      %v1089 = vmul.f32 %v1074, %v1086
      %1090 = vrot.lane.b32.xlu0 %v651, 48
      %v1091 = vpop.permute.xlu0 %1090
      %1092 = vrot.lane.b32.xlu0 %v654, 48
      %v1093 = vpop.permute.xlu0 %1092
      %1094 = vrot.lane.b32.xlu0 %v657, 48
      %v1095 = vpop.permute.xlu0 %1094
      %v1100 = vsel %vm720, %v1087, 0
      %v1103 = vsel %vm720, %v1088, 0
      %v1106 = vsel %vm720, %v1089, 0
      %1108 = vmatpush.msra.mxu0 0.0
      %1109 = vmatpush.msra.mxu0 0.0
      %1110 = vmatpush.msra.mxu0 0.0
      %1111 = vmatpush.msra.mxu0 0.0
      %1112 = vmatpush.msra.mxu0 0.0
      %1113 = vmatpush.msra.mxu0 0.0
      %1114 = vmatpush.msra.mxu0 0.0
      %1115 = vmatpush.msra.mxu0 0.0
      %1116 = vmatpush.msra.mxu0 0.0
      %1117 = vmatpush.msra.mxu0 0.0
      %1118 = vmatpush.msra.mxu0 0.0
      %1119 = vmatpush.msra.mxu0 0.0
      %1120 = vmatpush.msra.mxu0 0.0
      %1121 = vmatpush.msra.mxu0 %v1095
      %1122 = vmatpush.msra.mxu0 %v1093
      %1123 = vmatpush.msra.mxu0 %v1091
      %1124 = vmatmul.f32.gmra.mxu0 %v1100
      %v1125 = vpop.f32.mrf.mxu0
      %v1126 = vadd.f32 0.0, %v1125
      %1127 = vmatmul.f32.gmra.mxu0 %v1103
      %v1128 = vpop.f32.mrf.mxu0
      %v1129 = vadd.f32 0.0, %v1128
      %1130 = vmatmul.f32.gmra.mxu0 %v1106
      %v1131 = vpop.f32.mrf.mxu0
      %v1132 = vadd.f32 0.0, %v1131
      %1133 = vdwg.mxu0
      %v1135 = vsel %vm675, %v1126, 0
      %v1138 = vsel %vm675, %v1129, 0
      %v1141 = vsel %vm675, %v1132, 0
      %1143 = vmatpush.msra.mxu0 0.0
      %1144 = vmatpush.msra.mxu0 0.0
      %1145 = vmatpush.msra.mxu0 0.0
      %1146 = vmatpush.msra.mxu0 0.0
      %1147 = vmatpush.msra.mxu0 0.0
      %1148 = vmatpush.msra.mxu0 0.0
      %1149 = vmatpush.msra.mxu0 0.0
      %1150 = vmatpush.msra.mxu0 0.0
      %1151 = vmatpush.msra.mxu0 0.0
      %1152 = vmatpush.msra.mxu0 0.0
      %1153 = vmatpush.msra.mxu0 0.0
      %1154 = vmatpush.msra.mxu0 0.0
      %1155 = vmatpush.msra.mxu0 0.0
      %1156 = vmatpush.msra.mxu0 0.0
      %1157 = vmatpush.msra.mxu0 0.0
      %1158 = vmatpush.msra.mxu0 %v664
      %1159 = vmatmul.f32.gmra.mxu0 %v1135
      %v1160 = vpop.f32.mrf.mxu0
      %v1161 = vadd.f32 0.0, %v1160
      %1162 = vmatmul.f32.gmra.mxu0 %v1138
      %v1163 = vpop.f32.mrf.mxu0
      %v1164 = vadd.f32 0.0, %v1163
      %1165 = vmatmul.f32.gmra.mxu0 %v1141
      %v1166 = vpop.f32.mrf.mxu0
      %v1167 = vadd.f32 0.0, %v1166
      %1168 = vdwg.mxu0
      %v1169 = vadd.f32 %v993, %v1161
      %v1170 = vadd.f32 %v996, %v1164
      %v1171 = vadd.f32 %v999, %v1167
      %1172 = vrot.lane.b32.xlu0 %v651, 104
      %v1173 = vpop.permute.xlu0 %1172
      %1174 = vrot.lane.b32.xlu0 %v654, 104
      %v1175 = vpop.permute.xlu0 %1174
      %1176 = vrot.lane.b32.xlu0 %v657, 104
      %v1177 = vpop.permute.xlu0 %1176
      %1178 = vrot.lane.b32.xlu0 %v651, 72
      %v1179 = vpop.permute.xlu0 %1178
      %1180 = vrot.lane.b32.xlu0 %v654, 72
      %v1181 = vpop.permute.xlu0 %1180
      %1182 = vrot.lane.b32.xlu0 %v657, 72
      %v1183 = vpop.permute.xlu0 %1182
      %v1184 = vsel %vm675, %v1173, 0
      %v1186 = vsel %vm675, %v1175, 0
      %v1188 = vsel %vm675, %v1177, 0
      %v1190 = vsel %vm675, %v1179, 0
      %v1192 = vsel %vm675, %v1181, 0
      %v1194 = vsel %vm675, %v1183, 0
      %1196 = vmatpush.xpose.msra.mxu0 0.0
      %1197 = vmatpush.xpose.msra.mxu0 0.0
      %1198 = vmatpush.xpose.msra.mxu0 0.0
      %1199 = vmatpush.xpose.msra.mxu0 0.0
      %1200 = vmatpush.xpose.msra.mxu0 0.0
      %1201 = vmatpush.xpose.msra.mxu0 0.0
      %1202 = vmatpush.xpose.msra.mxu0 0.0
      %1203 = vmatpush.xpose.msra.mxu0 0.0
      %1204 = vmatpush.xpose.msra.mxu0 0.0
      %1205 = vmatpush.xpose.msra.mxu0 0.0
      %1206 = vmatpush.xpose.msra.mxu0 0.0
      %1207 = vmatpush.xpose.msra.mxu0 0.0
      %1208 = vmatpush.xpose.msra.mxu0 0.0
      %1209 = vmatpush.xpose.msra.mxu0 %v1194
      %1210 = vmatpush.xpose.msra.mxu0 %v1192
      %1211 = vmatpush.xpose.msra.mxu0 %v1190
      %1212 = vmatmul.f32.gmra.mxu0 %v1184
      %v1213 = vpop.f32.mrf.mxu0
      %v1214 = vadd.f32 0.0, %v1213
      %1215 = vmatmul.f32.gmra.mxu0 %v1186
      %v1216 = vpop.f32.mrf.mxu0
      %v1217 = vadd.f32 0.0, %v1216
      %1218 = vmatmul.f32.gmra.mxu0 %v1188
      %v1219 = vpop.f32.mrf.mxu0
      %v1220 = vadd.f32 0.0, %v1219
      %1221 = vdwg.mxu0
      %v1222 = vmul.f32 %v1214, 0.35355338
      %v1223 = vmul.f32 %v1217, 0.35355338
      %v1224 = vmul.f32 %v1220, 0.35355338
      %v1225 = vadd.f32 %v1222, %v659
      %v1226 = vadd.f32 %v1223, %v660
      %v1227 = vadd.f32 %v1224, %v661
      %v1228 = vsel %vm720, %v1225, -inf
      %1229 = vmax.xlane.f32.xlu0 %v1228
      %v1230 = vpop.xlane.xlu0 %1229
      %v1231 = vsel %vm720, %v1226, -inf
      %1232 = vmax.xlane.f32.xlu0 %v1231
      %v1233 = vpop.xlane.xlu0 %1232
      %v1234 = vsel %vm720, %v1227, -inf
      %1235 = vmax.xlane.f32.xlu0 %v1234
      %v1236 = vpop.xlane.xlu0 %1235
      %v1237 = vsub.f32 %v1225, %v1230
      %v1238 = vsub.f32 %v1226, %v1233
      %v1239 = vsub.f32 %v1227, %v1236
      %v1240 = vmul.f32 %v1237, 1.442695
      %v1241 = vpow.pop %v1240
      %v1242 = vmul.f32 %v1238, 1.442695
      %v1243 = vpow.pop %v1242
      %v1244 = vmul.f32 %v1239, 1.442695
      %v1245 = vpow.pop %v1244
      %v1246 = vsel %vm720, %v1241, 0.0
      %1247 = vadd.xlane.f32.xlu0 %v1246
      %v1248 = vpop.xlane.xlu0 %1247
      %v1249 = vsel %vm720, %v1243, 0.0
      %1250 = vadd.xlane.f32.xlu0 %v1249
      %v1251 = vpop.xlane.xlu0 %1250
      %v1252 = vsel %vm720, %v1245, 0.0
      %1253 = vadd.xlane.f32.xlu0 %v1252
      %v1254 = vpop.xlane.xlu0 %1253
      %v1255 = vrcp.pop %v1248
      %v1256 = vrcp.pop %v1251
      %v1257 = vrcp.pop %v1254
      %v1258 = vmul.f32 %v1241, %v1255
      %v1259 = vmul.f32 %v1243, %v1256
      %v1260 = vmul.f32 %v1245, %v1257
      %1261 = vrot.lane.b32.xlu0 %v651, 40
      %v1262 = vpop.permute.xlu0 %1261
      %1263 = vrot.lane.b32.xlu0 %v654, 40
      %v1264 = vpop.permute.xlu0 %1263
      %1265 = vrot.lane.b32.xlu0 %v657, 40
      %v1266 = vpop.permute.xlu0 %1265
      %v1271 = vsel %vm720, %v1258, 0
      %v1274 = vsel %vm720, %v1259, 0
      %v1277 = vsel %vm720, %v1260, 0
      %1279 = vmatpush.msra.mxu0 0.0
      %1280 = vmatpush.msra.mxu0 0.0
      %1281 = vmatpush.msra.mxu0 0.0
      %1282 = vmatpush.msra.mxu0 0.0
      %1283 = vmatpush.msra.mxu0 0.0
      %1284 = vmatpush.msra.mxu0 0.0
      %1285 = vmatpush.msra.mxu0 0.0
      %1286 = vmatpush.msra.mxu0 0.0
      %1287 = vmatpush.msra.mxu0 0.0
      %1288 = vmatpush.msra.mxu0 0.0
      %1289 = vmatpush.msra.mxu0 0.0
      %1290 = vmatpush.msra.mxu0 0.0
      %1291 = vmatpush.msra.mxu0 0.0
      %1292 = vmatpush.msra.mxu0 %v1266
      %1293 = vmatpush.msra.mxu0 %v1264
      %1294 = vmatpush.msra.mxu0 %v1262
      %1295 = vmatmul.f32.gmra.mxu0 %v1271
      %v1296 = vpop.f32.mrf.mxu0
      %v1297 = vadd.f32 0.0, %v1296
      %1298 = vmatmul.f32.gmra.mxu0 %v1274
      %v1299 = vpop.f32.mrf.mxu0
      %v1300 = vadd.f32 0.0, %v1299
      %1301 = vmatmul.f32.gmra.mxu0 %v1277
      %v1302 = vpop.f32.mrf.mxu0
      %v1303 = vadd.f32 0.0, %v1302
      %1304 = vdwg.mxu0
      %v1306 = vsel %vm675, %v1297, 0
      %v1309 = vsel %vm675, %v1300, 0
      %v1312 = vsel %vm675, %v1303, 0
      %1314 = vmatpush.msra.mxu0 0.0
      %1315 = vmatpush.msra.mxu0 0.0
      %1316 = vmatpush.msra.mxu0 0.0
      %1317 = vmatpush.msra.mxu0 0.0
      %1318 = vmatpush.msra.mxu0 0.0
      %1319 = vmatpush.msra.mxu0 0.0
      %1320 = vmatpush.msra.mxu0 0.0
      %1321 = vmatpush.msra.mxu0 0.0
      %1322 = vmatpush.msra.mxu0 0.0
      %1323 = vmatpush.msra.mxu0 0.0
      %1324 = vmatpush.msra.mxu0 0.0
      %1325 = vmatpush.msra.mxu0 0.0
      %1326 = vmatpush.msra.mxu0 0.0
      %1327 = vmatpush.msra.mxu0 0.0
      %1328 = vmatpush.msra.mxu0 0.0
      %1329 = vmatpush.msra.mxu0 %v665
      %1330 = vmatmul.f32.gmra.mxu0 %v1306
      %v1331 = vpop.f32.mrf.mxu0
      %v1332 = vadd.f32 0.0, %v1331
      %1333 = vmatmul.f32.gmra.mxu0 %v1309
      %v1334 = vpop.f32.mrf.mxu0
      %v1335 = vadd.f32 0.0, %v1334
      %1336 = vmatmul.f32.gmra.mxu0 %v1312
      %v1337 = vpop.f32.mrf.mxu0
      %v1338 = vadd.f32 0.0, %v1337
      %1339 = vdwg.mxu0
      %v1340 = vadd.f32 %v1169, %v1332
      %v1341 = vadd.f32 %v1170, %v1335
      %v1342 = vadd.f32 %v1171, %v1338
      %v1343 = vadd.f32 %v525, %v1340
      %v1344 = vadd.f32 %v526, %v1341
      %v1345 = vadd.f32 %v527, %v1342
      %v1346 = vld [vmem:[%s5] sm:$0x1]
      %v1348 = vperm.slane %v1346, 0
      %v1350 = vadd.f32 %v1343, %v1348
      %v1351 = vadd.f32 %v1344, %v1348
      %v1352 = vadd.f32 %v1345, %v1348
      %v1353 = vld [vmem:[%s12] sm:$0x1]
      %v1354 = vld [vmem:[%s13] sm:$0x1]
      %v1355 = vsel %vm530, %v1350, 0.0
      %1356 = vadd.xlane.f32.xlu0 %v1355
      %v1357 = vpop.xlane.xlu0 %1356
      %v1358 = vsel %vm530, %v1351, 0.0
      %1359 = vadd.xlane.f32.xlu0 %v1358
      %v1360 = vpop.xlane.xlu0 %1359
      %v1361 = vsel %vm530, %v1352, 0.0
      %1362 = vadd.xlane.f32.xlu0 %v1361
      %v1363 = vpop.xlane.xlu0 %1362
      %v1364 = vmul.f32 %v1357, %v546
      %v1365 = vmul.f32 %v1360, %v546
      %v1366 = vmul.f32 %v1363, %v546
      %v1367 = vsub.f32 %v1350, %v1364
      %v1368 = vsub.f32 %v1351, %v1365
      %v1369 = vsub.f32 %v1352, %v1366
      %v1370 = vmul.f32 %v1367, %v1367
      %v1371 = vmul.f32 %v1368, %v1368
      %v1372 = vmul.f32 %v1369, %v1369
      %v1373 = vsel %vm530, %v1370, 0.0
      %1374 = vadd.xlane.f32.xlu0 %v1373
      %v1375 = vpop.xlane.xlu0 %1374
      %v1376 = vsel %vm530, %v1371, 0.0
      %1377 = vadd.xlane.f32.xlu0 %v1376
      %v1378 = vpop.xlane.xlu0 %1377
      %v1379 = vsel %vm530, %v1372, 0.0
      %1380 = vadd.xlane.f32.xlu0 %v1379
      %v1381 = vpop.xlane.xlu0 %1380
      %v1382 = vmul.f32 %v1375, %v546
      %v1383 = vmul.f32 %v1378, %v546
      %v1384 = vmul.f32 %v1381, %v546
      %v1385 = vadd.f32 %v1382, 1e-12
      %v1386 = vadd.f32 %v1383, 1e-12
      %v1387 = vadd.f32 %v1384, 1e-12
      %v1388 = vrsqrt.pop %v1385
      %v1389 = vmul.f32 %v1388, %v1385
      %v1390 = vmul.f32 %v1389, %v1388
      %v1391 = vmul.f32 0.5, %v1390
      %v1392 = vsub.f32 1.5, %v1391
      %v1393 = vmul.f32 %v1388, %v1392
      %vm1394 = vweird.f32 %v1385
      %vm1395 = vweird.f32 %v1388
      %vm1396 = vmor %vm1394, %vm1395
      %v1397 = vsel %vm1396, %v1388, %v1393
      %v1398 = vrsqrt.pop %v1386
      %v1399 = vmul.f32 %v1398, %v1386
      %v1400 = vmul.f32 %v1399, %v1398
      %v1401 = vmul.f32 0.5, %v1400
      %v1402 = vsub.f32 1.5, %v1401
      %v1403 = vmul.f32 %v1398, %v1402
      %vm1404 = vweird.f32 %v1386
      %vm1405 = vweird.f32 %v1398
      %vm1406 = vmor %vm1404, %vm1405
      %v1407 = vsel %vm1406, %v1398, %v1403
      %v1408 = vrsqrt.pop %v1387
      %v1409 = vmul.f32 %v1408, %v1387
      %v1410 = vmul.f32 %v1409, %v1408
      %v1411 = vmul.f32 0.5, %v1410
      %v1412 = vsub.f32 1.5, %v1411
      %v1413 = vmul.f32 %v1408, %v1412
      %vm1414 = vweird.f32 %v1387
      %vm1415 = vweird.f32 %v1408
      %vm1416 = vmor %vm1414, %vm1415
      %v1417 = vsel %vm1416, %v1408, %v1413
      %v1418 = vmul.f32 %v1367, %v1397
      %v1419 = vmul.f32 %v1368, %v1407
      %v1420 = vmul.f32 %v1369, %v1417
      %v1422 = vperm.slane %v1353, 0
      %v1424 = vmul.f32 %v1418, %v1422
      %v1425 = vmul.f32 %v1419, %v1422
      %v1426 = vmul.f32 %v1420, %v1422
      %v1428 = vperm.slane %v1354, 0
      %v1430 = vadd.f32 %v1424, %v1428
      %v1431 = vadd.f32 %v1425, %v1428
      %v1432 = vadd.f32 %v1426, %v1428
      %v1433 = vld [vmem:[%s6] sm:$0xff]
      %v1434 = vld [vmem:[%s6 + $0x8] sm:$0xff]
      %v1435 = vld [vmem:[%s6 + $0x10] sm:$0xff]
      %v1436 = vld [vmem:[%s6 + $0x18] sm:$0xff]
      %v1437 = vld [vmem:[%s7] sm:$0x1]
      %v1439 = vperm.slane %v1437, 0
      %v1442 = vsel %vm530, %v1430, 0
      %v1445 = vsel %vm530, %v1431, 0
      %v1448 = vsel %vm530, %v1432, 0
      %1450 = vmatpush.msra.mxu0 0.0
      %1451 = vmatpush.msra.mxu0 0.0
      %1452 = vmatpush.msra.mxu0 0.0
      %1453 = vmatpush.msra.mxu0 0.0
      %1454 = vmatpush.msra.mxu0 0.0
      %1455 = vmatpush.msra.mxu0 0.0
      %1456 = vmatpush.msra.mxu0 0.0
      %1457 = vmatpush.msra.mxu0 0.0
      %1458 = vmatpush.msra.mxu0 0.0
      %1459 = vmatpush.msra.mxu0 0.0
      %1460 = vmatpush.msra.mxu0 0.0
      %1461 = vmatpush.msra.mxu0 0.0
      %1462 = vmatpush.msra.mxu0 %v1436
      %1463 = vmatpush.msra.mxu0 %v1435
      %1464 = vmatpush.msra.mxu0 %v1434
      %1465 = vmatpush.msra.mxu0 %v1433
      %1466 = vmatmul.f32.gmra.mxu0 %v1442
      %v1467 = vpop.f32.mrf.mxu0
      %v1468 = vadd.f32 %v1439, %v1467
      %1469 = vmatmul.f32.gmra.mxu0 %v1445
      %v1470 = vpop.f32.mrf.mxu0
      %v1471 = vadd.f32 %v1439, %v1470
      %1472 = vmatmul.f32.gmra.mxu0 %v1448
      %v1473 = vpop.f32.mrf.mxu0
      %v1474 = vadd.f32 %v1439, %v1473
      %1475 = vdwg.mxu0
      %v1476 = vmul.f32 %v1468, %v1468
      %v1477 = vmul.f32 %v1471, %v1471
      %v1478 = vmul.f32 %v1474, %v1474
      %v1479 = vmul.f32 %v1468, %v1476
      %v1480 = vmul.f32 %v1471, %v1477
      %v1481 = vmul.f32 %v1474, %v1478
      %v1482 = vmul.f32 %v1479, 0.044715
      %v1483 = vmul.f32 %v1480, 0.044715
      %v1484 = vmul.f32 %v1481, 0.044715
      %v1485 = vadd.f32 %v1468, %v1482
      %v1486 = vadd.f32 %v1471, %v1483
      %v1487 = vadd.f32 %v1474, %v1484
      %v1488 = vmul.f32 %v1485, 0.7978846
      %v1489 = vmul.f32 %v1486, 0.7978846
      %v1490 = vmul.f32 %v1487, 0.7978846
      %v1491 = vtanh.pop %v1488
      %v1492 = vtanh.pop %v1489
      %v1493 = vtanh.pop %v1490
      %v1494 = vadd.f32 %v1491, 1.0
      %v1495 = vadd.f32 %v1492, 1.0
      %v1496 = vadd.f32 %v1493, 1.0
      %v1497 = vmul.f32 %v1494, 0.5
      %v1498 = vmul.f32 %v1495, 0.5
      %v1499 = vmul.f32 %v1496, 0.5
      %v1500 = vmul.f32 %v1468, %v1497
      %v1501 = vmul.f32 %v1471, %v1498
      %v1502 = vmul.f32 %v1474, %v1499
      %v1503 = vld [vmem:[%s8] sm:$0xff]
      %v1504 = vld [vmem:[%s8 + $0x8] sm:$0xff]
      %v1505 = vld [vmem:[%s8 + $0x10] sm:$0xff]
      %v1506 = vld [vmem:[%s8 + $0x18] sm:$0xff]
      %v1507 = vld [vmem:[%s8 + $0x20] sm:$0xff]
      %v1508 = vld [vmem:[%s8 + $0x28] sm:$0xff]
      %v1509 = vld [vmem:[%s8 + $0x30] sm:$0xff]
      %v1510 = vld [vmem:[%s8 + $0x38] sm:$0xff]
      %v1511 = vld [vmem:[%s9] sm:$0x1]
      %v1513 = vperm.slane %v1511, 0
      %vm1515 = vcmask 523264
      %v1517 = vsel %vm1515, %v1500, 0
      %v1520 = vsel %vm1515, %v1501, 0
      %v1523 = vsel %vm1515, %v1502, 0
      %1525 = vmatpush.msra.mxu0 0.0
      %1526 = vmatpush.msra.mxu0 0.0
      %1527 = vmatpush.msra.mxu0 0.0
      %1528 = vmatpush.msra.mxu0 0.0
      %1529 = vmatpush.msra.mxu0 0.0
      %1530 = vmatpush.msra.mxu0 0.0
      %1531 = vmatpush.msra.mxu0 0.0
      %1532 = vmatpush.msra.mxu0 0.0
      %1533 = vmatpush.msra.mxu0 %v1510
      %1534 = vmatpush.msra.mxu0 %v1509
      %1535 = vmatpush.msra.mxu0 %v1508
      %1536 = vmatpush.msra.mxu0 %v1507
      %1537 = vmatpush.msra.mxu0 %v1506
      %1538 = vmatpush.msra.mxu0 %v1505
      %1539 = vmatpush.msra.mxu0 %v1504
      %1540 = vmatpush.msra.mxu0 %v1503
      %1541 = vmatmul.f32.gmra.mxu0 %v1517
      %v1542 = vpop.f32.mrf.mxu0
      %v1543 = vadd.f32 %v1513, %v1542
      %1544 = vmatmul.f32.gmra.mxu0 %v1520
      %v1545 = vpop.f32.mrf.mxu0
      %v1546 = vadd.f32 %v1513, %v1545
      %1547 = vmatmul.f32.gmra.mxu0 %v1523
      %v1548 = vpop.f32.mrf.mxu0
      %v1549 = vadd.f32 %v1513, %v1548
      %1550 = vdwg.mxu0
      %v1551 = vadd.f32 %v1350, %v1543
      %v1552 = vadd.f32 %v1351, %v1546
      %v1553 = vadd.f32 %v1352, %v1549
      %v1554 = vld [vmem:[%s14] sm:$0x1]
      %v1555 = vld [vmem:[%s15] sm:$0x1]
      %v1556 = vsel %vm530, %v1551, 0.0
      %1557 = vadd.xlane.f32.xlu0 %v1556
      %v1558 = vpop.xlane.xlu0 %1557
      %v1559 = vsel %vm530, %v1552, 0.0
      %1560 = vadd.xlane.f32.xlu0 %v1559
      %v1561 = vpop.xlane.xlu0 %1560
      %v1562 = vsel %vm530, %v1553, 0.0
      %1563 = vadd.xlane.f32.xlu0 %v1562
      %v1564 = vpop.xlane.xlu0 %1563
      %v1565 = vmul.f32 %v1558, %v546
      %v1566 = vmul.f32 %v1561, %v546
      %v1567 = vmul.f32 %v1564, %v546
      %v1568 = vsub.f32 %v1551, %v1565
      %v1569 = vsub.f32 %v1552, %v1566
      %v1570 = vsub.f32 %v1553, %v1567
      %v1571 = vmul.f32 %v1568, %v1568
      %v1572 = vmul.f32 %v1569, %v1569
      %v1573 = vmul.f32 %v1570, %v1570
      %v1574 = vsel %vm530, %v1571, 0.0
      %1575 = vadd.xlane.f32.xlu0 %v1574
      %v1576 = vpop.xlane.xlu0 %1575
      %v1577 = vsel %vm530, %v1572, 0.0
      %1578 = vadd.xlane.f32.xlu0 %v1577
      %v1579 = vpop.xlane.xlu0 %1578
      %v1580 = vsel %vm530, %v1573, 0.0
      %1581 = vadd.xlane.f32.xlu0 %v1580
      %v1582 = vpop.xlane.xlu0 %1581
      %v1583 = vmul.f32 %v1576, %v546
      %v1584 = vmul.f32 %v1579, %v546
      %v1585 = vmul.f32 %v1582, %v546
      %v1586 = vadd.f32 %v1583, 1e-12
      %v1587 = vadd.f32 %v1584, 1e-12
      %v1588 = vadd.f32 %v1585, 1e-12
      %v1589 = vrsqrt.pop %v1586
      %v1590 = vmul.f32 %v1589, %v1586
      %v1591 = vmul.f32 %v1590, %v1589
      %v1592 = vmul.f32 0.5, %v1591
      %v1593 = vsub.f32 1.5, %v1592
      %v1594 = vmul.f32 %v1589, %v1593
      %vm1595 = vweird.f32 %v1586
      %vm1596 = vweird.f32 %v1589
      %vm1597 = vmor %vm1595, %vm1596
      %v1598 = vsel %vm1597, %v1589, %v1594
      %v1599 = vrsqrt.pop %v1587
      %v1600 = vmul.f32 %v1599, %v1587
      %v1601 = vmul.f32 %v1600, %v1599
      %v1602 = vmul.f32 0.5, %v1601
      %v1603 = vsub.f32 1.5, %v1602
      %v1604 = vmul.f32 %v1599, %v1603
      %vm1605 = vweird.f32 %v1587
      %vm1606 = vweird.f32 %v1599
      %vm1607 = vmor %vm1605, %vm1606
      %v1608 = vsel %vm1607, %v1599, %v1604
      %v1609 = vrsqrt.pop %v1588
      %v1610 = vmul.f32 %v1609, %v1588
      %v1611 = vmul.f32 %v1610, %v1609
      %v1612 = vmul.f32 0.5, %v1611
      %v1613 = vsub.f32 1.5, %v1612
      %v1614 = vmul.f32 %v1609, %v1613
      %vm1615 = vweird.f32 %v1588
      %vm1616 = vweird.f32 %v1609
      %vm1617 = vmor %vm1615, %vm1616
      %v1618 = vsel %vm1617, %v1609, %v1614
      %v1619 = vmul.f32 %v1568, %v1598
      %v1620 = vmul.f32 %v1569, %v1608
      %v1621 = vmul.f32 %v1570, %v1618
      %v1623 = vperm.slane %v1554, 0
      %v1625 = vmul.f32 %v1619, %v1623
      %v1626 = vmul.f32 %v1620, %v1623
      %v1627 = vmul.f32 %v1621, %v1623
      %v1629 = vperm.slane %v1555, 0
      %v1631 = vadd.f32 %v1625, %v1629
      %v1632 = vadd.f32 %v1626, %v1629
      %v1633 = vadd.f32 %v1627, %v1629
      %1634 = vst.msk [vmem:[%s523] sm:$0xff] %vm530, %v1631
      %1635 = vst.msk [vmem:[%s523 + $0x8] sm:$0xff] %vm530, %v1632
      %1636 = vst.msk [vmem:[%s523 + $0x10] sm:$0xff] %vm530, %v1633
      %s1637 = smul.u32 3, %s27
      %p1638 = scmp.lt.s32.totalorder %s1637, 5
      %s1639 = scalar_select %p1638, %s1637, 5
      %s1640 = smul.addr %s1639, 8
      %s1641 = scalar_lea.vmem %s16, %s1640
      // Predicated region
      $region85: #{flip_model_forward.7} parent=83 // pred_check
        %p1642 = pneg %p386
      $region86: #{flip_model_forward.7} parent=83 // pred_check_branch
        %1644 = sbr.rel (%p1642) target = $region88
      $region87: #{flip_model_forward.7} parent=83 // pred_region
        %s1645 = smul.u32 3, %s27
      $region88: #{flip_model_forward.7} parent=83 // pred_fallthru
        _
    $region84: #{flip_model_forward.7} parent=5 // pred_fallthru
      _
    %p1646 = scmp.le.s32.totalorder 2, %s22
    // Predicated region
    $region89: #{flip_model_forward.7} parent=5 // pred_check
      %p1647 = pneg %p1646
    $region90: #{flip_model_forward.7} parent=5 // pred_check_branch
      %1649 = sbr.rel (%p1647) target = $region92
    $region91: #{flip_model_forward.7} parent=5 // pred_region
      %s1650 = ssub.s32 %s22, 2
      // Predicated region
      $region93: #{flip_model_forward.7} parent=91 // pred_check
        %p1651 = pneg %p392
      $region94: #{flip_model_forward.7} parent=91 // pred_check_branch
        %1653 = sbr.rel (%p1651) target = $region96
      $region95: #{flip_model_forward.7} parent=91 // pred_region
        %s1654 = smul.u32 3, %s28
        %p1655 = scmp.lt.s32.totalorder %s1654, 5
        %s1656 = scalar_select %p1655, %s1654, 5
        %s1657 = smul.addr %s1656, 8
        %s1658 = scalar_lea.vmem %s16, %s1657
      $region96: #{flip_model_forward.7} parent=91 // pred_fallthru
        _
    $region92: #{flip_model_forward.7} parent=5 // pred_fallthru
      _
  $region6: #{flip_model_forward.7} parent=0 // loop_footer
    %s26 = sadd.s32 1, %s22
  $region7: #{flip_model_forward.7} parent=0 // loop_footer_branch
    %21 = sbr.rel target = $region3
  $region8: #{flip_model_forward.7} parent=0 // loop_exit
    _

</llo_original>
